<compile_context>
chip_gen: v6e
topology: v6e:2x2x1
jax: 0.10.0
libtpu: 0.0.40
codegen_flags: <defaults>
</compile_context>

<pallas_src>
import functools

import jax
import jax.numpy as jnp
from jax.experimental import pallas as pl
from jax.experimental.pallas import tpu as pltpu

BN_EPS = 1e-5


def _round_up(x, m):
    return ((x + m - 1) // m) * m


def _num_tensorcores_per_chip():
    """Best-effort detection of dual-TensorCore chips (v7x). Defaults to 1."""
    try:
        kind = jax.devices()[0].device_kind.lower()
    except Exception:
        return 1
    return 2 if ("v7" in kind or "tpu7" in kind or "7x" in kind) else 1


# ----------------------------------------------------------------------------
# Pallas kernel: fused (A @ W) + shift, then activation.
# ----------------------------------------------------------------------------
def _fused_mm_kernel(a_ref, w_ref, shift_ref, o_ref, *, activation):
    acc = jnp.dot(a_ref[...], w_ref[...], preferred_element_type=jnp.float32)
    acc = acc + shift_ref[...]                      # (1, TN) broadcast
    if activation == "relu":
        acc = jnp.maximum(acc, 0.0)
    elif activation == "tanh":
        acc = jnp.tanh(acc)
    o_ref[...] = acc.astype(o_ref.dtype)


def fused_matmul_layer(a, layer, out_dtype):
    """act((a @ W) + shift).  a: (M, K) bf16; W/shift are prepadded slabs."""
    w_p, sh_p = layer["w"], layer["shift"]
    N, Kp, Np, TN = layer["N"], layer["Kp"], layer["Np"], layer["TN"]
    M, K = a.shape
    assert K == layer["K"]

    Mp = _round_up(max(M, 16), 16)                  # bf16 sublane packing
    a_p = a if (Mp == M and Kp == K) else jnp.pad(a, ((0, Mp - M), (0, Kp - K)))
    a_bf = a_p.astype(jnp.bfloat16)

    kernel = functools.partial(_fused_mm_kernel, activation=layer["activation"])
    out = pl.pallas_call(
        kernel,
        out_shape=jax.ShapeDtypeStruct((Mp, Np), out_dtype),
        grid=(Np // TN,),
        in_specs=[
            pl.BlockSpec((Mp, Kp), lambda j: (0, 0)),
            pl.BlockSpec((Kp, TN), lambda j: (0, j)),
            pl.BlockSpec((1, TN), lambda j: (0, j)),
        ],
        out_specs=pl.BlockSpec((Mp, TN), lambda j: (0, j)),
        compiler_params=pltpu.CompilerParams(dimension_semantics=("parallel",)),
    )(a_bf, w_p, sh_p)

    if Mp != M or Np != N:
        out = out[:M, :N]
    return out


# ----------------------------------------------------------------------------
# Plain-JAX glue: NHWC im2col (bf16), conv / conv-transpose wrappers.
# ----------------------------------------------------------------------------
def _im2col_nhwc(x, k, stride, pad):
    """x: (B, H, W, C) -> (B*Ho*Wo, k*k*C); K index = (ki*k + kj)*C + c."""
    B, H, W, C = x.shape
    xp = jnp.pad(x, ((0, 0), (pad, pad), (pad, pad), (0, 0)))
    Ho = (H + 2 * pad - k) // stride + 1
    Wo = (W + 2 * pad - k) // stride + 1
    patches = [
        xp[:, ki:ki + stride * Ho:stride, kj:kj + stride * Wo:stride, :]
        for ki in range(k) for kj in range(k)
    ]
    col = jnp.concatenate(patches, axis=-1)          # (B, Ho, Wo, k*k*C)
    return col.reshape(B * Ho * Wo, k * k * C), Ho, Wo


def conv2d_fused(x, layer, out_dtype):
    """PyTorch Conv2d(k=4, s=2, p=1) semantics on NHWC activations."""
    B = x.shape[0]
    col, Ho, Wo = _im2col_nhwc(x, layer["k"], layer["stride"], layer["pad"])
    out = fused_matmul_layer(col, layer, out_dtype)
    return out.reshape(B, Ho, Wo, layer["cout"])


def conv_transpose2d_fused(x, layer, out_dtype):
    """PyTorch ConvTranspose2d(k=4, s=2, p=1), sub-pixel decomposition.

    oy = 2*iy - 1 + ki  =>  even outputs use taps ki in {1,3}, odd use {0,2};
    all four output phases share one 3x3 stride-1 im2col GEMM and are
    pixel-shuffled back to (2H, 2W).
    """
    B, H, W, _ = x.shape
    col, _, _ = _im2col_nhwc(x, 3, 1, 1)             # (B*H*W, 9*Cin)
    out = fused_matmul_layer(col, layer, out_dtype)  # N index = co*4 + py*2 + px
    Cout = layer["cout"]
    out = out.reshape(B, H, W, Cout, 2, 2)
    out = out.transpose(0, 1, 4, 2, 5, 3).reshape(B, 2 * H, 2 * W, Cout)
    return out


# ----------------------------------------------------------------------------
# One-time weight preparation (BN folding, reshape, phase decomposition,
# padding, bf16 cast) -- runs ONCE, outside the jitted forward.
# ----------------------------------------------------------------------------
def _fold_conv_bn(w, b, bn=None, cout_axis=0):
    """Fold conv bias + eval-mode BatchNorm into (w', shift')."""
    if bn is None:
        return w, b
    gamma, beta, mean, var = bn
    scale = gamma / jnp.sqrt(var + BN_EPS)
    shift = beta - mean * scale + b * scale
    shape = [1] * w.ndim
    shape[cout_axis] = -1
    return w * scale.reshape(shape), shift


def prepare_generator(params):
    num_tc = _num_tensorcores_per_chip()

    def gemm_slabs(w_mat, shift):
        K, N = w_mat.shape
        Kp = _round_up(K, 128)
        Np = _round_up(N, 128)
        # N split only when it yields >=2 parallel blocks on a dual-TC chip.
        TN = 256 if (num_tc >= 2 and Np >= 512 and Np % 256 == 0) else Np
        w_p = jnp.pad(w_mat, ((0, Kp - K), (0, Np - N))).astype(jnp.bfloat16)
        sh = jnp.pad(shift, (0, Np - N)).astype(jnp.float32).reshape(1, Np)
        return dict(w=w_p, shift=sh, K=K, N=N, Kp=Kp, Np=Np, TN=TN)

    def prep_conv(w, b, bn, activation):
        w_f, s = _fold_conv_bn(w, b, bn, cout_axis=0)
        Cout, Cin, k, _ = w_f.shape
        w_mat = w_f.transpose(2, 3, 1, 0).reshape(k * k * Cin, Cout)
        L = gemm_slabs(w_mat, s)
        L.update(kind="conv", k=k, stride=2, pad=1, cout=Cout,
                 activation=activation)
        return L

    def prep_convT(w, b, bn, activation):
        w_f, s = _fold_conv_bn(w, b, bn, cout_axis=1)
        Cin, Cout, k, _ = w_f.shape
        assert k == 4
        # S[p, d, ki] = 1 iff 3x3 window offset d reads tap ki for phase p.
        S = jnp.zeros((2, 3, 4), jnp.float32)
        S = S.at[0, 0, 3].set(1.0).at[0, 1, 1].set(1.0)   # even output rows/cols
        S = S.at[1, 1, 2].set(1.0).at[1, 2, 0].set(1.0)   # odd output rows/cols
        # w3[d_i, d_j, ci, co, py, px]
        w3 = jnp.einsum("pik,qjl,abkl->ijabpq", S, S, w_f)
        w_mat = w3.reshape(9 * Cin, Cout * 4)
        shift4 = jnp.repeat(s, 4)
        L = gemm_slabs(w_mat, shift4)
        L.update(kind="convT", cout=Cout, activation=activation)
        return L

    return [
        prep_conv(params["c1_w"], params["c1_b"], None, "relu"),
        prep_conv(params["c2_w"], params["c2_b"], params["bn2"], "relu"),
        prep_conv(params["c3_w"], params["c3_b"], params["bn3"], "relu"),
        prep_convT(params["d1_w"], params["d1_b"], params["bn4"], "relu"),
        prep_convT(params["d2_w"], params["d2_b"], params["bn5"], "relu"),
        prep_convT(params["d3_w"], params["d3_b"], None, "tanh"),
    ]


def generator_forward(layers, x):
    h = x.transpose(0, 2, 3, 1).astype(jnp.bfloat16)  # NCHW -> NHWC, bf16, once
    n = len(layers)
    for i, L in enumerate(layers):
        out_dtype = jnp.float32 if i == n - 1 else jnp.bfloat16
        if L["kind"] == "conv":
            h = conv2d_fused(h, L, out_dtype)
        else:
            h = conv_transpose2d_fused(h, L, out_dtype)
    return h.transpose(0, 3, 1, 2)                    # NHWC -> NCHW (once)


# ----------------------------------------------------------------------------
# Plain-JAX f32 reference (numerical parity check for the Pallas path).
# ----------------------------------------------------------------------------
def _conv2d_ref(x, w, b):
    y = jax.lax.conv_general_dilated(
        x, w, window_strides=(2, 2), padding=((1, 1), (1, 1)),
        dimension_numbers=("NCHW", "OIHW", "NCHW"))
    return y + b.reshape(1, -1, 1, 1)


def _conv_transpose2d_ref(x, w, b):
    # ConvTranspose2d(k=4, s=2, p=1) == fractionally-strided conv with the
    # spatially flipped kernel and padding k-1-p = 2.
    w_r = jnp.flip(w, (2, 3)).transpose(1, 0, 2, 3)   # (Cout, Cin, k, k)
    y = jax.lax.conv_general_dilated(
        x, w_r, window_strides=(1, 1), padding=((2, 2), (2, 2)),
        lhs_dilation=(2, 2), dimension_numbers=("NCHW", "OIHW", "NCHW"))
    return y + b.reshape(1, -1, 1, 1)


def _bn_ref(x, bn):
    gamma, beta, mean, var = bn
    inv = (gamma / jnp.sqrt(var + BN_EPS)).reshape(1, -1, 1, 1)
    return (x - mean.reshape(1, -1, 1, 1)) * inv + beta.reshape(1, -1, 1, 1)


def generator_reference(params, x):
    h = jnp.maximum(_conv2d_ref(x, params["c1_w"], params["c1_b"]), 0.0)
    h = _conv2d_ref(h, params["c2_w"], params["c2_b"])
    h = jnp.maximum(_bn_ref(h, params["bn2"]), 0.0)
    h = _conv2d_ref(h, params["c3_w"], params["c3_b"])
    h = jnp.maximum(_bn_ref(h, params["bn3"]), 0.0)
    h = _conv_transpose2d_ref(h, params["d1_w"], params["d1_b"])
    h = jnp.maximum(_bn_ref(h, params["bn4"]), 0.0)
    h = _conv_transpose2d_ref(h, params["d2_w"], params["d2_b"])
    h = jnp.maximum(_bn_ref(h, params["bn5"]), 0.0)
    h = _conv_transpose2d_ref(h, params["d3_w"], params["d3_b"])
    return jnp.tanh(h)


# ----------------------------------------------------------------------------
# Parameter init (deterministic, synthetic).
# ----------------------------------------------------------------------------
def init_params(key):
    def conv_p(key, cout, cin, k):
        k1, k2 = jax.random.split(key)
        w = jax.random.normal(k1, (cout, cin, k, k), jnp.float32) * 0.05
        b = jax.random.normal(k2, (cout,), jnp.float32) * 0.01
        return w, b

    def convT_p(key, cin, cout, k):
        k1, k2 = jax.random.split(key)
        w = jax.random.normal(k1, (cin, cout, k, k), jnp.float32) * 0.05
        b = jax.random.normal(k2, (cout,), jnp.float32) * 0.01
        return w, b

    def bn_p(key, c):
        k1, k2, k3, k4 = jax.random.split(key, 4)
        gamma = 1.0 + 0.1 * jax.random.normal(k1, (c,), jnp.float32)
        beta = 0.1 * jax.random.normal(k2, (c,), jnp.float32)
        mean = 0.1 * jax.random.normal(k3, (c,), jnp.float32)
        var = 1.0 + 0.1 * jnp.abs(jax.random.normal(k4, (c,), jnp.float32))
        return gamma, beta, mean, var

    keys = jax.random.split(key, 11)
    p = {}
    p["c1_w"], p["c1_b"] = conv_p(keys[0], 64, 3, 4)
    p["c2_w"], p["c2_b"] = conv_p(keys[1], 128, 64, 4)
    p["bn2"] = bn_p(keys[2], 128)
    p["c3_w"], p["c3_b"] = conv_p(keys[3], 256, 128, 4)
    p["bn3"] = bn_p(keys[4], 256)
    p["d1_w"], p["d1_b"] = convT_p(keys[5], 256, 128, 4)
    p["bn4"] = bn_p(keys[6], 128)
    p["d2_w"], p["d2_b"] = convT_p(keys[7], 128, 64, 4)
    p["bn5"] = bn_p(keys[8], 64)
    p["d3_w"], p["d3_b"] = convT_p(keys[9], 64, 3, 4)
    return p


if __name__ == "__main__":
    key = jax.random.PRNGKey(0)
    kp, kx = jax.random.split(key)
    params = init_params(kp)
    x = jax.random.normal(kx, (2, 3, 16, 16), jnp.float32)   # NCHW input

    layers = prepare_generator(params)        # one-time weight prep (hoisted)
    fwd = jax.jit(functools.partial(generator_forward, layers))
    y = jax.block_until_ready(fwd(x))

    assert y.shape == (2, 3, 16, 16), y.shape
    assert y.dtype == jnp.float32
    assert bool(jnp.all(jnp.isfinite(y)))
    assert bool(jnp.all(jnp.abs(y) <= 1.0 + 1e-6))  # tanh output range

    # Numerical parity vs a plain-JAX f32 reference (bf16 MXU tolerance).
    y_ref = jax.block_until_ready(jax.jit(generator_reference)(params, x))
    abs_err = jnp.abs(y - y_ref)
    assert float(jnp.mean(abs_err)) < 3e-2, float(jnp.mean(abs_err))
    assert float(jnp.max(abs_err)) < 2e-1, float(jnp.max(abs_err))

    print("KERNEL_OK")
</pallas_src>

<mosaic_0001>
module attributes {stable_mosaic.version = 11 : i64} {
  func.func @_fused_mm_kernel(%arg0: i32, %arg1: memref<128x128xbf16, #tpu.memory_space<vmem>>, %arg2: memref<128x128xbf16, #tpu.memory_space<vmem>>, %arg3: memref<1x128xf32, #tpu.memory_space<vmem>>, %arg4: memref<128x128xbf16, #tpu.memory_space<vmem>>) attributes {dimension_semantics = [#tpu.dimension_semantics<parallel>], iteration_bounds = array<i64: 1>, scalar_prefetch = 0 : i64, scratch_operands = 0 : i64, tpu.core_type = #tpu.core_type<tc>, window_params = [{pipeline_mode = #tpu.pipeline_mode<synchronous>, transform_indices = @transform_0, window_bounds = array<i64: 128, 128>}, {transform_indices = @transform_1, window_bounds = array<i64: 128, 128>}, {transform_indices = @transform_2, window_bounds = array<i64: 1, 128>}, {transform_indices = @transform_3, window_bounds = array<i64: 128, 128>}]} {
    %c0 = arith.constant 0 : index
    %c0_0 = arith.constant 0 : index
    %0 = vector.load %arg1[%c0, %c0_0] : memref<128x128xbf16, #tpu.memory_space<vmem>>, vector<128x128xbf16>
    %c0_1 = arith.constant 0 : index
    %c0_2 = arith.constant 0 : index
    %1 = vector.load %arg2[%c0_1, %c0_2] : memref<128x128xbf16, #tpu.memory_space<vmem>>, vector<128x128xbf16>
    %cst = arith.constant dense<0.000000e+00> : vector<128x128xf32>
    %2 = tpu.matmul %0, %1, %cst {dimension_numbers = #tpu.dot_dimension_numbers<[1], [0], [0], [1], [0, 0, 1, 1], [], []>} : vector<128x128xbf16>, vector<128x128xbf16>, vector<128x128xf32> -> vector<128x128xf32>
    %c0_3 = arith.constant 0 : index
    %c0_4 = arith.constant 0 : index
    %3 = vector.load %arg3[%c0_3, %c0_4] : memref<1x128xf32, #tpu.memory_space<vmem>>, vector<1x128xf32>
    %4 = vector.broadcast %3 : vector<1x128xf32> to vector<128x128xf32>
    %5 = arith.addf %2, %4 : vector<128x128xf32>
    %cst_5 = arith.constant 0.000000e+00 : f32
    %6 = vector.broadcast %cst_5 : f32 to vector<128x128xf32>
    %7 = arith.maximumf %5, %6 : vector<128x128xf32>
    %8 = arith.truncf %7 : vector<128x128xf32> to vector<128x128xbf16>
    %c0_6 = arith.constant 0 : index
    %c0_7 = arith.constant 0 : index
    %9 = vector.load %arg4[%c0_6, %c0_7] : memref<128x128xbf16, #tpu.memory_space<vmem>>, vector<128x128xbf16>
    tpu.vector_store %arg4[%c0_6, %c0_7], %8 {strides = array<i32>} : memref<128x128xbf16, #tpu.memory_space<vmem>>, vector<128x128xbf16>,
    return
  }
  func.func @transform_0(%arg0: i32) -> (i32, i32) {
    %c0_i32 = arith.constant 0 : i32
    %c0_i32_0 = arith.constant 0 : i32
    %c0_i32_1 = arith.constant 0 : i32
    return %c0_i32, %c0_i32_0 : i32, i32
  }
  func.func @transform_1(%arg0: i32) -> (i32, i32) {
    %c0_i32 = arith.constant 0 : i32
    %c0_i32_0 = arith.constant 0 : i32
    return %c0_i32, %arg0 : i32, i32
  }
  func.func @transform_2(%arg0: i32) -> (i32, i32) {
    %c0_i32 = arith.constant 0 : i32
    %c0_i32_0 = arith.constant 0 : i32
    return %c0_i32, %arg0 : i32, i32
  }
  func.func @transform_3(%arg0: i32) -> (i32, i32) {
    %c0_i32 = arith.constant 0 : i32
    %c0_i32_0 = arith.constant 0 : i32
    return %c0_i32, %arg0 : i32, i32
  }
}

module attributes {stable_mosaic.version = 11 : i64} {
  func.func @_fused_mm_kernel(%arg0: i32, %arg1: memref<32x1024xbf16, #tpu.memory_space<vmem>>, %arg2: memref<1024x128xbf16, #tpu.memory_space<vmem>>, %arg3: memref<1x128xf32, #tpu.memory_space<vmem>>, %arg4: memref<32x128xbf16, #tpu.memory_space<vmem>>) attributes {dimension_semantics = [#tpu.dimension_semantics<parallel>], iteration_bounds = array<i64: 1>, scalar_prefetch = 0 : i64, scratch_operands = 0 : i64, tpu.core_type = #tpu.core_type<tc>, window_params = [{pipeline_mode = #tpu.pipeline_mode<synchronous>, transform_indices = @transform_0, window_bounds = array<i64: 32, 1024>}, {transform_indices = @transform_1, window_bounds = array<i64: 1024, 128>}, {transform_indices = @transform_2, window_bounds = array<i64: 1, 128>}, {transform_indices = @transform_3, window_bounds = array<i64: 32, 128>}]} {
    %c0 = arith.constant 0 : index
    %c0_0 = arith.constant 0 : index
    %0 = vector.load %arg1[%c0, %c0_0] : memref<32x1024xbf16, #tpu.memory_space<vmem>>, vector<32x1024xbf16>
    %c0_1 = arith.constant 0 : index
    %c0_2 = arith.constant 0 : index
    %1 = vector.load %arg2[%c0_1, %c0_2] : memref<1024x128xbf16, #tpu.memory_space<vmem>>, vector<1024x128xbf16>
    %cst = arith.constant dense<0.000000e+00> : vector<32x128xf32>
    %2 = tpu.matmul %0, %1, %cst {dimension_numbers = #tpu.dot_dimension_numbers<[1], [0], [0], [1], [0, 0, 1, 1], [], []>} : vector<32x1024xbf16>, vector<1024x128xbf16>, vector<32x128xf32> -> vector<32x128xf32>
    %c0_3 = arith.constant 0 : index
    %c0_4 = arith.constant 0 : index
    %3 = vector.load %arg3[%c0_3, %c0_4] : memref<1x128xf32, #tpu.memory_space<vmem>>, vector<1x128xf32>
    %4 = vector.broadcast %3 : vector<1x128xf32> to vector<32x128xf32>
    %5 = arith.addf %2, %4 : vector<32x128xf32>
    %cst_5 = arith.constant 0.000000e+00 : f32
    %6 = vector.broadcast %cst_5 : f32 to vector<32x128xf32>
    %7 = arith.maximumf %5, %6 : vector<32x128xf32>
    %8 = arith.truncf %7 : vector<32x128xf32> to vector<32x128xbf16>
    %c0_6 = arith.constant 0 : index
    %c0_7 = arith.constant 0 : index
    %9 = vector.load %arg4[%c0_6, %c0_7] : memref<32x128xbf16, #tpu.memory_space<vmem>>, vector<32x128xbf16>
    tpu.vector_store %arg4[%c0_6, %c0_7], %8 {strides = array<i32>} : memref<32x128xbf16, #tpu.memory_space<vmem>>, vector<32x128xbf16>,
    return
  }
  func.func @transform_0(%arg0: i32) -> (i32, i32) {
    %c0_i32 = arith.constant 0 : i32
    %c0_i32_0 = arith.constant 0 : i32
    %c0_i32_1 = arith.constant 0 : i32
    return %c0_i32, %c0_i32_0 : i32, i32
  }
  func.func @transform_1(%arg0: i32) -> (i32, i32) {
    %c0_i32 = arith.constant 0 : i32
    %c0_i32_0 = arith.constant 0 : i32
    return %c0_i32, %arg0 : i32, i32
  }
  func.func @transform_2(%arg0: i32) -> (i32, i32) {
    %c0_i32 = arith.constant 0 : i32
    %c0_i32_0 = arith.constant 0 : i32
    return %c0_i32, %arg0 : i32, i32
  }
  func.func @transform_3(%arg0: i32) -> (i32, i32) {
    %c0_i32 = arith.constant 0 : i32
    %c0_i32_0 = arith.constant 0 : i32
    return %c0_i32, %arg0 : i32, i32
  }
}

module attributes {stable_mosaic.version = 11 : i64} {
  func.func @_fused_mm_kernel(%arg0: i32, %arg1: memref<16x2048xbf16, #tpu.memory_space<vmem>>, %arg2: memref<2048x256xbf16, #tpu.memory_space<vmem>>, %arg3: memref<1x256xf32, #tpu.memory_space<vmem>>, %arg4: memref<16x256xbf16, #tpu.memory_space<vmem>>) attributes {dimension_semantics = [#tpu.dimension_semantics<parallel>], iteration_bounds = array<i64: 1>, scalar_prefetch = 0 : i64, scratch_operands = 0 : i64, tpu.core_type = #tpu.core_type<tc>, window_params = [{pipeline_mode = #tpu.pipeline_mode<synchronous>, transform_indices = @transform_0, window_bounds = array<i64: 16, 2048>}, {transform_indices = @transform_1, window_bounds = array<i64: 2048, 256>}, {transform_indices = @transform_2, window_bounds = array<i64: 1, 256>}, {transform_indices = @transform_3, window_bounds = array<i64: 16, 256>}]} {
    %c0 = arith.constant 0 : index
    %c0_0 = arith.constant 0 : index
    %0 = vector.load %arg1[%c0, %c0_0] : memref<16x2048xbf16, #tpu.memory_space<vmem>>, vector<16x2048xbf16>
    %c0_1 = arith.constant 0 : index
    %c0_2 = arith.constant 0 : index
    %1 = vector.load %arg2[%c0_1, %c0_2] : memref<2048x256xbf16, #tpu.memory_space<vmem>>, vector<2048x256xbf16>
    %cst = arith.constant dense<0.000000e+00> : vector<16x256xf32>
    %2 = tpu.matmul %0, %1, %cst {dimension_numbers = #tpu.dot_dimension_numbers<[1], [0], [0], [1], [0, 0, 1, 1], [], []>} : vector<16x2048xbf16>, vector<2048x256xbf16>, vector<16x256xf32> -> vector<16x256xf32>
    %c0_3 = arith.constant 0 : index
    %c0_4 = arith.constant 0 : index
    %3 = vector.load %arg3[%c0_3, %c0_4] : memref<1x256xf32, #tpu.memory_space<vmem>>, vector<1x256xf32>
    %4 = vector.broadcast %3 : vector<1x256xf32> to vector<16x256xf32>
    %5 = arith.addf %2, %4 : vector<16x256xf32>
    %cst_5 = arith.constant 0.000000e+00 : f32
    %6 = vector.broadcast %cst_5 : f32 to vector<16x256xf32>
    %7 = arith.maximumf %5, %6 : vector<16x256xf32>
    %8 = arith.truncf %7 : vector<16x256xf32> to vector<16x256xbf16>
    %c0_6 = arith.constant 0 : index
    %c0_7 = arith.constant 0 : index
    %9 = vector.load %arg4[%c0_6, %c0_7] : memref<16x256xbf16, #tpu.memory_space<vmem>>, vector<16x256xbf16>
    tpu.vector_store %arg4[%c0_6, %c0_7], %8 {strides = array<i32>} : memref<16x256xbf16, #tpu.memory_space<vmem>>, vector<16x256xbf16>,
    return
  }
  func.func @transform_0(%arg0: i32) -> (i32, i32) {
    %c0_i32 = arith.constant 0 : i32
    %c0_i32_0 = arith.constant 0 : i32
    %c0_i32_1 = arith.constant 0 : i32
    return %c0_i32, %c0_i32_0 : i32, i32
  }
  func.func @transform_1(%arg0: i32) -> (i32, i32) {
    %c0_i32 = arith.constant 0 : i32
    %c0_i32_0 = arith.constant 0 : i32
    return %c0_i32, %arg0 : i32, i32
  }
  func.func @transform_2(%arg0: i32) -> (i32, i32) {
    %c0_i32 = arith.constant 0 : i32
    %c0_i32_0 = arith.constant 0 : i32
    return %c0_i32, %arg0 : i32, i32
  }
  func.func @transform_3(%arg0: i32) -> (i32, i32) {
    %c0_i32 = arith.constant 0 : i32
    %c0_i32_0 = arith.constant 0 : i32
    return %c0_i32, %arg0 : i32, i32
  }
}

module attributes {stable_mosaic.version = 11 : i64} {
  func.func @_fused_mm_kernel(%arg0: i32, %arg1: memref<16x2304xbf16, #tpu.memory_space<vmem>>, %arg2: memref<2304x512xbf16, #tpu.memory_space<vmem>>, %arg3: memref<1x512xf32, #tpu.memory_space<vmem>>, %arg4: memref<16x512xbf16, #tpu.memory_space<vmem>>) attributes {dimension_semantics = [#tpu.dimension_semantics<parallel>], iteration_bounds = array<i64: 1>, scalar_prefetch = 0 : i64, scratch_operands = 0 : i64, tpu.core_type = #tpu.core_type<tc>, window_params = [{pipeline_mode = #tpu.pipeline_mode<synchronous>, transform_indices = @transform_0, window_bounds = array<i64: 16, 2304>}, {transform_indices = @transform_1, window_bounds = array<i64: 2304, 512>}, {transform_indices = @transform_2, window_bounds = array<i64: 1, 512>}, {transform_indices = @transform_3, window_bounds = array<i64: 16, 512>}]} {
    %c0 = arith.constant 0 : index
    %c0_0 = arith.constant 0 : index
    %0 = vector.load %arg1[%c0, %c0_0] : memref<16x2304xbf16, #tpu.memory_space<vmem>>, vector<16x2304xbf16>
    %c0_1 = arith.constant 0 : index
    %c0_2 = arith.constant 0 : index
    %1 = vector.load %arg2[%c0_1, %c0_2] : memref<2304x512xbf16, #tpu.memory_space<vmem>>, vector<2304x512xbf16>
    %cst = arith.constant dense<0.000000e+00> : vector<16x512xf32>
    %2 = tpu.matmul %0, %1, %cst {dimension_numbers = #tpu.dot_dimension_numbers<[1], [0], [0], [1], [0, 0, 1, 1], [], []>} : vector<16x2304xbf16>, vector<2304x512xbf16>, vector<16x512xf32> -> vector<16x512xf32>
    %c0_3 = arith.constant 0 : index
    %c0_4 = arith.constant 0 : index
    %3 = vector.load %arg3[%c0_3, %c0_4] : memref<1x512xf32, #tpu.memory_space<vmem>>, vector<1x512xf32>
    %4 = vector.broadcast %3 : vector<1x512xf32> to vector<16x512xf32>
    %5 = arith.addf %2, %4 : vector<16x512xf32>
    %cst_5 = arith.constant 0.000000e+00 : f32
    %6 = vector.broadcast %cst_5 : f32 to vector<16x512xf32>
    %7 = arith.maximumf %5, %6 : vector<16x512xf32>
    %8 = arith.truncf %7 : vector<16x512xf32> to vector<16x512xbf16>
    %c0_6 = arith.constant 0 : index
    %c0_7 = arith.constant 0 : index
    %9 = vector.load %arg4[%c0_6, %c0_7] : memref<16x512xbf16, #tpu.memory_space<vmem>>, vector<16x512xbf16>
    tpu.vector_store %arg4[%c0_6, %c0_7], %8 {strides = array<i32>} : memref<16x512xbf16, #tpu.memory_space<vmem>>, vector<16x512xbf16>,
    return
  }
  func.func @transform_0(%arg0: i32) -> (i32, i32) {
    %c0_i32 = arith.constant 0 : i32
    %c0_i32_0 = arith.constant 0 : i32
    %c0_i32_1 = arith.constant 0 : i32
    return %c0_i32, %c0_i32_0 : i32, i32
  }
  func.func @transform_1(%arg0: i32) -> (i32, i32) {
    %c0_i32 = arith.constant 0 : i32
    %c0_i32_0 = arith.constant 0 : i32
    return %c0_i32, %arg0 : i32, i32
  }
  func.func @transform_2(%arg0: i32) -> (i32, i32) {
    %c0_i32 = arith.constant 0 : i32
    %c0_i32_0 = arith.constant 0 : i32
    return %c0_i32, %arg0 : i32, i32
  }
  func.func @transform_3(%arg0: i32) -> (i32, i32) {
    %c0_i32 = arith.constant 0 : i32
    %c0_i32_0 = arith.constant 0 : i32
    return %c0_i32, %arg0 : i32, i32
  }
}

module attributes {stable_mosaic.version = 11 : i64} {
  func.func @_fused_mm_kernel(%arg0: i32, %arg1: memref<32x1152xbf16, #tpu.memory_space<vmem>>, %arg2: memref<1152x256xbf16, #tpu.memory_space<vmem>>, %arg3: memref<1x256xf32, #tpu.memory_space<vmem>>, %arg4: memref<32x256xbf16, #tpu.memory_space<vmem>>) attributes {dimension_semantics = [#tpu.dimension_semantics<parallel>], iteration_bounds = array<i64: 1>, scalar_prefetch = 0 : i64, scratch_operands = 0 : i64, tpu.core_type = #tpu.core_type<tc>, window_params = [{pipeline_mode = #tpu.pipeline_mode<synchronous>, transform_indices = @transform_0, window_bounds = array<i64: 32, 1152>}, {transform_indices = @transform_1, window_bounds = array<i64: 1152, 256>}, {transform_indices = @transform_2, window_bounds = array<i64: 1, 256>}, {transform_indices = @transform_3, window_bounds = array<i64: 32, 256>}]} {
    %c0 = arith.constant 0 : index
    %c0_0 = arith.constant 0 : index
    %0 = vector.load %arg1[%c0, %c0_0] : memref<32x1152xbf16, #tpu.memory_space<vmem>>, vector<32x1152xbf16>
    %c0_1 = arith.constant 0 : index
    %c0_2 = arith.constant 0 : index
    %1 = vector.load %arg2[%c0_1, %c0_2] : memref<1152x256xbf16, #tpu.memory_space<vmem>>, vector<1152x256xbf16>
    %cst = arith.constant dense<0.000000e+00> : vector<32x256xf32>
    %2 = tpu.matmul %0, %1, %cst {dimension_numbers = #tpu.dot_dimension_numbers<[1], [0], [0], [1], [0, 0, 1, 1], [], []>} : vector<32x1152xbf16>, vector<1152x256xbf16>, vector<32x256xf32> -> vector<32x256xf32>
    %c0_3 = arith.constant 0 : index
    %c0_4 = arith.constant 0 : index
    %3 = vector.load %arg3[%c0_3, %c0_4] : memref<1x256xf32, #tpu.memory_space<vmem>>, vector<1x256xf32>
    %4 = vector.broadcast %3 : vector<1x256xf32> to vector<32x256xf32>
    %5 = arith.addf %2, %4 : vector<32x256xf32>
    %cst_5 = arith.constant 0.000000e+00 : f32
    %6 = vector.broadcast %cst_5 : f32 to vector<32x256xf32>
    %7 = arith.maximumf %5, %6 : vector<32x256xf32>
    %8 = arith.truncf %7 : vector<32x256xf32> to vector<32x256xbf16>
    %c0_6 = arith.constant 0 : index
    %c0_7 = arith.constant 0 : index
    %9 = vector.load %arg4[%c0_6, %c0_7] : memref<32x256xbf16, #tpu.memory_space<vmem>>, vector<32x256xbf16>
    tpu.vector_store %arg4[%c0_6, %c0_7], %8 {strides = array<i32>} : memref<32x256xbf16, #tpu.memory_space<vmem>>, vector<32x256xbf16>,
    return
  }
  func.func @transform_0(%arg0: i32) -> (i32, i32) {
    %c0_i32 = arith.constant 0 : i32
    %c0_i32_0 = arith.constant 0 : i32
    %c0_i32_1 = arith.constant 0 : i32
    return %c0_i32, %c0_i32_0 : i32, i32
  }
  func.func @transform_1(%arg0: i32) -> (i32, i32) {
    %c0_i32 = arith.constant 0 : i32
    %c0_i32_0 = arith.constant 0 : i32
    return %c0_i32, %arg0 : i32, i32
  }
  func.func @transform_2(%arg0: i32) -> (i32, i32) {
    %c0_i32 = arith.constant 0 : i32
    %c0_i32_0 = arith.constant 0 : i32
    return %c0_i32, %arg0 : i32, i32
  }
  func.func @transform_3(%arg0: i32) -> (i32, i32) {
    %c0_i32 = arith.constant 0 : i32
    %c0_i32_0 = arith.constant 0 : i32
    return %c0_i32, %arg0 : i32, i32
  }
}

module attributes {stable_mosaic.version = 11 : i64} {
  func.func @_fused_mm_kernel(%arg0: i32, %arg1: memref<128x640xbf16, #tpu.memory_space<vmem>>, %arg2: memref<640x128xbf16, #tpu.memory_space<vmem>>, %arg3: memref<1x128xf32, #tpu.memory_space<vmem>>, %arg4: memref<128x128xf32, #tpu.memory_space<vmem>>) attributes {dimension_semantics = [#tpu.dimension_semantics<parallel>], iteration_bounds = array<i64: 1>, scalar_prefetch = 0 : i64, scratch_operands = 0 : i64, tpu.core_type = #tpu.core_type<tc>, window_params = [{pipeline_mode = #tpu.pipeline_mode<synchronous>, transform_indices = @transform_0, window_bounds = array<i64: 128, 640>}, {transform_indices = @transform_1, window_bounds = array<i64: 640, 128>}, {transform_indices = @transform_2, window_bounds = array<i64: 1, 128>}, {transform_indices = @transform_3, window_bounds = array<i64: 128, 128>}]} {
    %c0 = arith.constant 0 : index
    %c0_0 = arith.constant 0 : index
    %0 = vector.load %arg1[%c0, %c0_0] : memref<128x640xbf16, #tpu.memory_space<vmem>>, vector<128x640xbf16>
    %c0_1 = arith.constant 0 : index
    %c0_2 = arith.constant 0 : index
    %1 = vector.load %arg2[%c0_1, %c0_2] : memref<640x128xbf16, #tpu.memory_space<vmem>>, vector<640x128xbf16>
    %cst = arith.constant dense<0.000000e+00> : vector<128x128xf32>
    %2 = tpu.matmul %0, %1, %cst {dimension_numbers = #tpu.dot_dimension_numbers<[1], [0], [0], [1], [0, 0, 1, 1], [], []>} : vector<128x640xbf16>, vector<640x128xbf16>, vector<128x128xf32> -> vector<128x128xf32>
    %c0_3 = arith.constant 0 : index
    %c0_4 = arith.constant 0 : index
    %3 = vector.load %arg3[%c0_3, %c0_4] : memref<1x128xf32, #tpu.memory_space<vmem>>, vector<1x128xf32>
    %4 = vector.broadcast %3 : vector<1x128xf32> to vector<128x128xf32>
    %5 = arith.addf %2, %4 : vector<128x128xf32>
    %6 = math.tanh %5 : vector<128x128xf32>
    %c0_5 = arith.constant 0 : index
    %c0_6 = arith.constant 0 : index
    %7 = vector.load %arg4[%c0_5, %c0_6] : memref<128x128xf32, #tpu.memory_space<vmem>>, vector<128x128xf32>
    tpu.vector_store %arg4[%c0_5, %c0_6], %6 {strides = array<i32>} : memref<128x128xf32, #tpu.memory_space<vmem>>, vector<128x128xf32>,
    return
  }
  func.func @transform_0(%arg0: i32) -> (i32, i32) {
    %c0_i32 = arith.constant 0 : i32
    %c0_i32_0 = arith.constant 0 : i32
    %c0_i32_1 = arith.constant 0 : i32
    return %c0_i32, %c0_i32_0 : i32, i32
  }
  func.func @transform_1(%arg0: i32) -> (i32, i32) {
    %c0_i32 = arith.constant 0 : i32
    %c0_i32_0 = arith.constant 0 : i32
    return %c0_i32, %arg0 : i32, i32
  }
  func.func @transform_2(%arg0: i32) -> (i32, i32) {
    %c0_i32 = arith.constant 0 : i32
    %c0_i32_0 = arith.constant 0 : i32
    return %c0_i32, %arg0 : i32, i32
  }
  func.func @transform_3(%arg0: i32) -> (i32, i32) {
    %c0_i32 = arith.constant 0 : i32
    %c0_i32_0 = arith.constant 0 : i32
    return %c0_i32, %arg0 : i32, i32
  }
}

</mosaic_0001>

<llo_original>
// kernel: generator_forward.6
$region0: #{generator_forward.6}
  #allocation0 [shape = 'u32[]', space=smem, size = 0x4, offset = 0x4, fixed_abs, tag = 'smem constant byte address 0x4 - core index']
  #allocation1 [shape = 'u32[144,128]{1,0:T(1,128)}', space=vmem, size = 0x12000, scoped, tag = 'internal scratch']
  %s0 = inlined_call_operand.vmem [shape: bf16[128,128], index: 0, kind: input, shape index: {}]
  %s1 = inlined_call_operand.hbm [shape: bf16[128,128], index: 1, kind: input, shape index: {}]
  %s2 = inlined_call_operand.hbm [shape: f32[1,128], index: 2, kind: input, shape index: {}]
  %s3 = inlined_call_operand.vmem [shape: bf16[128,128], index: 3, kind: output, shape index: {}]
  %s4 = sld [smem:[#allocation0]]
  $region30: #{generator_forward.6} parent=0
    _
  %s6 = ssub.s32 1, %s4
  %s7 = scalar_select 0, %s6, %s4
  $region1: #{generator_forward.6} parent=0
    #allocation2 [shape = 'u8[32768]{0}', space=vmem, size = 0x8000, scoped, tag = 'input window, operand 1, single buffered']
    #allocation3 [shape = 's32[1]{0}', space=sflag, size = 0x4, scoped, tag = 'scoped memory for generator_forward.6']
    #allocation4 [shape = 'u8[512]{0}', space=vmem, size = 0x400, scoped, tag = 'input window, operand 2, single buffered']
    #allocation5 [shape = 's32[1]{0}', space=sflag, size = 0x4, scoped, tag = 'scoped memory for generator_forward.6']
    %8 = vsyncpa [#allocation3], 0
    %9 = vsyncpa [#allocation5], 0
    // Predicated region
    $region2: #{generator_forward.6} parent=1 // pred_check
      _
    $region3: #{generator_forward.6} parent=1 // pred_check_branch
      %11 = sbr.rel (0) target = $region5
    $region4: #{generator_forward.6} parent=1 // pred_region
      _
    $region5: #{generator_forward.6} parent=1 // pred_fallthru
      _
    // Predicated region
    $region6: #{generator_forward.6} parent=1 // pred_check
      _
    $region7: #{generator_forward.6} parent=1 // pred_check_branch
      %13 = sbr.rel (0) target = $region9
    $region8: #{generator_forward.6} parent=1 // pred_region
      %s15 = ssub.s32 1024, 1024
      %16 = vsyncadd [#allocation3], %s15
      %s17 = sshll.u32 [#allocation2], 4
      %s18 = int_to_ptr.vmem [resolvable:$true] %s17
      %23 = dma.hbm_to_vmem [thread:$0]  %s1, 1024, %s18, [#allocation3], 64, 64, 4
    $region9: #{generator_forward.6} parent=1 // pred_fallthru
      _
    // Predicated region
    $region10: #{generator_forward.6} parent=1 // pred_check
      _
    $region11: #{generator_forward.6} parent=1 // pred_check_branch
      %25 = sbr.rel (0) target = $region13
    $region12: #{generator_forward.6} parent=1 // pred_region
      %s27 = ssub.s32 16, 16
      %28 = vsyncadd [#allocation5], %s27
      %s30 = sshll.u32 [#allocation4], 4
      %s31 = int_to_ptr.vmem [resolvable:$true] %s30
      %33 = dma.hbm_to_vmem [thread:$0]  %s2, 16, %s31, [#allocation5]
    $region13: #{generator_forward.6} parent=1 // pred_fallthru
      _
    // Predicated region
    $region14: #{generator_forward.6} parent=1 // pred_check
      _
    $region15: #{generator_forward.6} parent=1 // pred_check_branch
      %35 = sbr.rel (0) target = $region17
    $region16: #{generator_forward.6} parent=1 // pred_region
      %36 = dma.done [#allocation3], 1024
    $region17: #{generator_forward.6} parent=1 // pred_fallthru
      _
    // Predicated region
    $region18: #{generator_forward.6} parent=1 // pred_check
      _
    $region19: #{generator_forward.6} parent=1 // pred_check_branch
      %38 = sbr.rel (0) target = $region21
    $region20: #{generator_forward.6} parent=1 // pred_region
      %39 = dma.done [#allocation5], 16
    $region21: #{generator_forward.6} parent=1 // pred_fallthru
      _
    %v41 = vld [vmem:[%s0] sm:$0xf]
    %v42 = vld [vmem:[%s0 + $0x4] sm:$0xf]
    %v43 = vld [vmem:[%s0 + $0x8] sm:$0xf]
    %v44 = vld [vmem:[%s0 + $0xc] sm:$0xf]
    %v45 = vld [vmem:[%s0 + $0x10] sm:$0xf]
    %v46 = vld [vmem:[%s0 + $0x14] sm:$0xf]
    %v47 = vld [vmem:[%s0 + $0x18] sm:$0xf]
    %v48 = vld [vmem:[%s0 + $0x1c] sm:$0xf]
    %v49 = vld [vmem:[%s0 + $0x20] sm:$0xf]
    %v50 = vld [vmem:[%s0 + $0x24] sm:$0xf]
    %v51 = vld [vmem:[%s0 + $0x28] sm:$0xf]
    %v52 = vld [vmem:[%s0 + $0x2c] sm:$0xf]
    %v53 = vld [vmem:[%s0 + $0x30] sm:$0xf]
    %v54 = vld [vmem:[%s0 + $0x34] sm:$0xf]
    %v55 = vld [vmem:[%s0 + $0x38] sm:$0xf]
    %v56 = vld [vmem:[%s0 + $0x3c] sm:$0xf]
    %v57 = vld [vmem:[#allocation2] sm:$0xf]
    %v58 = vld [vmem:[#allocation2 + $0x4] sm:$0xf]
    %v59 = vld [vmem:[#allocation2 + $0x8] sm:$0xf]
    %v60 = vld [vmem:[#allocation2 + $0xc] sm:$0xf]
    %v61 = vld [vmem:[#allocation2 + $0x10] sm:$0xf]
    %v62 = vld [vmem:[#allocation2 + $0x14] sm:$0xf]
    %v63 = vld [vmem:[#allocation2 + $0x18] sm:$0xf]
    %v64 = vld [vmem:[#allocation2 + $0x1c] sm:$0xf]
    %v65 = vld [vmem:[#allocation2 + $0x20] sm:$0xf]
    %v66 = vld [vmem:[#allocation2 + $0x24] sm:$0xf]
    %v67 = vld [vmem:[#allocation2 + $0x28] sm:$0xf]
    %v68 = vld [vmem:[#allocation2 + $0x2c] sm:$0xf]
    %v69 = vld [vmem:[#allocation2 + $0x30] sm:$0xf]
    %v70 = vld [vmem:[#allocation2 + $0x34] sm:$0xf]
    %v71 = vld [vmem:[#allocation2 + $0x38] sm:$0xf]
    %v72 = vld [vmem:[#allocation2 + $0x3c] sm:$0xf]
    %v73 = vld [vmem:[#allocation4] sm:$0x1]
    %v75 = vlaneseq
    %v76 = vshrl.u32 %v75, 7
    %v77 = vsub.s32 0, %v76
    %v78 = vrot.slane %v73, %v77
    %v96 = vunpack.c.l.b16 %v41
    %v97 = vunpack.c.l.b16 %v42
    %v98 = vunpack.c.l.b16 %v43
    %v99 = vunpack.c.l.b16 %v44
    %v100 = vunpack.c.l.b16 %v45
    %v101 = vunpack.c.l.b16 %v46
    %v102 = vunpack.c.l.b16 %v47
    %v103 = vunpack.c.l.b16 %v48
    %v104 = vunpack.c.l.b16 %v49
    %v105 = vunpack.c.l.b16 %v50
    %v106 = vunpack.c.l.b16 %v51
    %v107 = vunpack.c.l.b16 %v52
    %v108 = vunpack.c.l.b16 %v53
    %v109 = vunpack.c.l.b16 %v54
    %v110 = vunpack.c.l.b16 %v55
    %v111 = vunpack.c.l.b16 %v56
    %v112 = vpack.c.b16 %v97, %v96
    %v113 = vpack.c.b16 %v99, %v98
    %v114 = vpack.c.b16 %v101, %v100
    %v115 = vpack.c.b16 %v103, %v102
    %v116 = vpack.c.b16 %v105, %v104
    %v117 = vpack.c.b16 %v107, %v106
    %v118 = vpack.c.b16 %v109, %v108
    %v119 = vpack.c.b16 %v111, %v110
    %v144 = vunpack.c.l.b16 %v57
    %v145 = vunpack.c.l.b16 %v58
    %v146 = vunpack.c.l.b16 %v59
    %v147 = vunpack.c.l.b16 %v60
    %v148 = vunpack.c.l.b16 %v61
    %v149 = vunpack.c.l.b16 %v62
    %v150 = vunpack.c.l.b16 %v63
    %v151 = vunpack.c.l.b16 %v64
    %v152 = vunpack.c.l.b16 %v65
    %v153 = vunpack.c.l.b16 %v66
    %v154 = vunpack.c.l.b16 %v67
    %v155 = vunpack.c.l.b16 %v68
    %v156 = vunpack.c.l.b16 %v69
    %v157 = vunpack.c.l.b16 %v70
    %v158 = vunpack.c.l.b16 %v71
    %v159 = vunpack.c.l.b16 %v72
    %v160 = vpack.c.b16 %v145, %v144
    %v161 = vpack.c.b16 %v147, %v146
    %v162 = vpack.c.b16 %v149, %v148
    %v163 = vpack.c.b16 %v151, %v150
    %v164 = vpack.c.b16 %v153, %v152
    %v165 = vpack.c.b16 %v155, %v154
    %v166 = vpack.c.b16 %v157, %v156
    %v167 = vpack.c.b16 %v159, %v158
    %176 = vmatprep.subr.bf16.mxu0 0
    %177 = vmatpush1.bf16.msra.mxu0 %v167
    %178 = vmatprep.subr.bf16.mxu0 0
    %179 = vmatpush1.bf16.msra.mxu0 %v166
    %180 = vmatprep.subr.bf16.mxu0 0
    %181 = vmatpush1.bf16.msra.mxu0 %v165
    %182 = vmatprep.subr.bf16.mxu0 0
    %183 = vmatpush1.bf16.msra.mxu0 %v164
    %184 = vmatprep.subr.bf16.mxu0 0
    %185 = vmatpush1.bf16.msra.mxu0 %v163
    %186 = vmatprep.subr.bf16.mxu0 0
    %187 = vmatpush1.bf16.msra.mxu0 %v162
    %188 = vmatprep.subr.bf16.mxu0 0
    %189 = vmatpush1.bf16.msra.mxu0 %v161
    %190 = vmatprep.subr.bf16.mxu0 0
    %191 = vmatpush1.bf16.msra.mxu0 %v160
    %192 = vmatprep.subr.bf16.mxu0 0
    %193 = vmatpush2.bf16.msra.mxu0 0
    %194 = vmatprep.subr.bf16.mxu0 0
    %195 = vmatpush2.bf16.msra.mxu0 0
    %196 = vmatprep.subr.bf16.mxu0 0
    %197 = vmatpush2.bf16.msra.mxu0 0
    %198 = vmatprep.subr.bf16.mxu0 0
    %199 = vmatpush2.bf16.msra.mxu0 0
    %200 = vmatprep.subr.bf16.mxu0 0
    %201 = vmatpush2.bf16.msra.mxu0 0
    %202 = vmatprep.subr.bf16.mxu0 0
    %203 = vmatpush2.bf16.msra.mxu0 0
    %204 = vmatprep.subr.bf16.mxu0 0
    %205 = vmatpush2.bf16.msra.mxu0 0
    %206 = vmatprep.subr.bf16.mxu0 0
    %207 = vmatpush2.bf16.msra.mxu0 0
    %208 = vmatprep.mubr.bf16.mxu0 0
    %209 = vmatmul.mubr.bf16.gmra.mxu0 %v112
    %v210 = vpop.f32.mrf.mxu0
    %v211 = vadd.f32 %v78, %v210
    %v212 = vpop.f32.mrf.mxu0
    %v213 = vpop.f32.mrf.mxu0
    %v214 = vadd.f32 %v78, %v213
    %v215 = vpop.f32.mrf.mxu0
    %216 = vmatprep.mubr.bf16.mxu0 0
    %217 = vmatmul.mubr.bf16.gmra.mxu0 %v113
    %v218 = vpop.f32.mrf.mxu0
    %v219 = vadd.f32 %v78, %v218
    %v220 = vpop.f32.mrf.mxu0
    %v221 = vpop.f32.mrf.mxu0
    %v222 = vadd.f32 %v78, %v221
    %v223 = vpop.f32.mrf.mxu0
    %224 = vmatprep.mubr.bf16.mxu0 0
    %225 = vmatmul.mubr.bf16.gmra.mxu0 %v114
    %v226 = vpop.f32.mrf.mxu0
    %v227 = vadd.f32 %v78, %v226
    %v228 = vpop.f32.mrf.mxu0
    %v229 = vpop.f32.mrf.mxu0
    %v230 = vadd.f32 %v78, %v229
    %v231 = vpop.f32.mrf.mxu0
    %232 = vmatprep.mubr.bf16.mxu0 0
    %233 = vmatmul.mubr.bf16.gmra.mxu0 %v115
    %v234 = vpop.f32.mrf.mxu0
    %v235 = vadd.f32 %v78, %v234
    %v236 = vpop.f32.mrf.mxu0
    %v237 = vpop.f32.mrf.mxu0
    %v238 = vadd.f32 %v78, %v237
    %v239 = vpop.f32.mrf.mxu0
    %240 = vmatprep.mubr.bf16.mxu0 0
    %241 = vmatmul.mubr.bf16.gmra.mxu0 %v116
    %v242 = vpop.f32.mrf.mxu0
    %v243 = vadd.f32 %v78, %v242
    %v244 = vpop.f32.mrf.mxu0
    %v245 = vpop.f32.mrf.mxu0
    %v246 = vadd.f32 %v78, %v245
    %v247 = vpop.f32.mrf.mxu0
    %248 = vmatprep.mubr.bf16.mxu0 0
    %249 = vmatmul.mubr.bf16.gmra.mxu0 %v117
    %v250 = vpop.f32.mrf.mxu0
    %v251 = vadd.f32 %v78, %v250
    %v252 = vpop.f32.mrf.mxu0
    %v253 = vpop.f32.mrf.mxu0
    %v254 = vadd.f32 %v78, %v253
    %v255 = vpop.f32.mrf.mxu0
    %256 = vmatprep.mubr.bf16.mxu0 0
    %257 = vmatmul.mubr.bf16.gmra.mxu0 %v118
    %v258 = vpop.f32.mrf.mxu0
    %v259 = vadd.f32 %v78, %v258
    %v260 = vpop.f32.mrf.mxu0
    %v261 = vpop.f32.mrf.mxu0
    %v262 = vadd.f32 %v78, %v261
    %v263 = vpop.f32.mrf.mxu0
    %264 = vmatprep.mubr.bf16.mxu0 0
    %265 = vmatmul.mubr.bf16.gmra.mxu0 %v119
    %v266 = vpop.f32.mrf.mxu0
    %v267 = vadd.f32 %v78, %v266
    %v268 = vpop.f32.mrf.mxu0
    %v269 = vpop.f32.mrf.mxu0
    %v270 = vadd.f32 %v78, %v269
    %v271 = vpop.f32.mrf.mxu0
    %272 = vdwg.mxu0
    %v273 = vmax.f32 %v211, 0.0
    %v274 = vmax.f32 %v214, 0.0
    %v275 = vmax.f32 %v219, 0.0
    %v276 = vmax.f32 %v222, 0.0
    %v277 = vmax.f32 %v227, 0.0
    %v278 = vmax.f32 %v230, 0.0
    %v279 = vmax.f32 %v235, 0.0
    %v280 = vmax.f32 %v238, 0.0
    %v281 = vmax.f32 %v243, 0.0
    %v282 = vmax.f32 %v246, 0.0
    %v283 = vmax.f32 %v251, 0.0
    %v284 = vmax.f32 %v254, 0.0
    %v285 = vmax.f32 %v259, 0.0
    %v286 = vmax.f32 %v262, 0.0
    %v287 = vmax.f32 %v267, 0.0
    %v288 = vmax.f32 %v270, 0.0
    %v289 = vpack.c.bf16 %v274, %v273
    %v290 = vpack.c.bf16 %v276, %v275
    %v291 = vpack.c.bf16 %v278, %v277
    %v292 = vpack.c.bf16 %v280, %v279
    %v293 = vpack.c.bf16 %v282, %v281
    %v294 = vpack.c.bf16 %v284, %v283
    %v295 = vpack.c.bf16 %v286, %v285
    %v296 = vpack.c.bf16 %v288, %v287
    %v305 = vunpack.c.l.b16 %v289
    %v306 = vunpack.c.h.b16 %v289
    %v307 = vunpack.c.l.b16 %v290
    %v308 = vunpack.c.h.b16 %v290
    %v309 = vunpack.c.l.b16 %v291
    %v310 = vunpack.c.h.b16 %v291
    %v311 = vunpack.c.l.b16 %v292
    %v312 = vunpack.c.h.b16 %v292
    %v313 = vunpack.c.l.b16 %v293
    %v314 = vunpack.c.h.b16 %v293
    %v315 = vunpack.c.l.b16 %v294
    %v316 = vunpack.c.h.b16 %v294
    %v317 = vunpack.c.l.b16 %v295
    %v318 = vunpack.c.h.b16 %v295
    %v319 = vunpack.c.l.b16 %v296
    %v320 = vunpack.c.h.b16 %v296
    %v321 = vpack.c.b16 %v305, %v305
    %v322 = vpack.c.b16 %v306, %v306
    %v323 = vpack.c.b16 %v307, %v307
    %v324 = vpack.c.b16 %v308, %v308
    %v325 = vpack.c.b16 %v309, %v309
    %v326 = vpack.c.b16 %v310, %v310
    %v327 = vpack.c.b16 %v311, %v311
    %v328 = vpack.c.b16 %v312, %v312
    %v329 = vpack.c.b16 %v313, %v313
    %v330 = vpack.c.b16 %v314, %v314
    %v331 = vpack.c.b16 %v315, %v315
    %v332 = vpack.c.b16 %v316, %v316
    %v333 = vpack.c.b16 %v317, %v317
    %v334 = vpack.c.b16 %v318, %v318
    %v335 = vpack.c.b16 %v319, %v319
    %v336 = vpack.c.b16 %v320, %v320
    %353 = vst [vmem:[%s3] sm:$0xf] %v321
    %354 = vst [vmem:[%s3 + $0x4] sm:$0xf] %v322
    %355 = vst [vmem:[%s3 + $0x8] sm:$0xf] %v323
    %356 = vst [vmem:[%s3 + $0xc] sm:$0xf] %v324
    %357 = vst [vmem:[%s3 + $0x10] sm:$0xf] %v325
    %358 = vst [vmem:[%s3 + $0x14] sm:$0xf] %v326
    %359 = vst [vmem:[%s3 + $0x18] sm:$0xf] %v327
    %360 = vst [vmem:[%s3 + $0x1c] sm:$0xf] %v328
    %361 = vst [vmem:[%s3 + $0x20] sm:$0xf] %v329
    %362 = vst [vmem:[%s3 + $0x24] sm:$0xf] %v330
    %363 = vst [vmem:[%s3 + $0x28] sm:$0xf] %v331
    %364 = vst [vmem:[%s3 + $0x2c] sm:$0xf] %v332
    %365 = vst [vmem:[%s3 + $0x30] sm:$0xf] %v333
    %366 = vst [vmem:[%s3 + $0x34] sm:$0xf] %v334
    %367 = vst [vmem:[%s3 + $0x38] sm:$0xf] %v335
    %368 = vst [vmem:[%s3 + $0x3c] sm:$0xf] %v336
    // Predicated region
    $region22: #{generator_forward.6} parent=1 // pred_check
      _
    $region23: #{generator_forward.6} parent=1 // pred_check_branch
      %370 = sbr.rel (0) target = $region25
    $region24: #{generator_forward.6} parent=1 // pred_region
      _
    $region25: #{generator_forward.6} parent=1 // pred_fallthru
      _
    // Predicated region
    $region26: #{generator_forward.6} parent=1 // pred_check
      _
    $region27: #{generator_forward.6} parent=1 // pred_check_branch
      %372 = sbr.rel (0) target = $region29
    $region28: #{generator_forward.6} parent=1 // pred_region
      _
    $region29: #{generator_forward.6} parent=1 // pred_fallthru
      _
    %373 = vsyncpa [#allocation3], 1
    %374 = vsyncpa [#allocation5], 1

// kernel: generator_forward.7
$region0: #{generator_forward.7}
  #allocation0 [shape = 'u32[]', space=smem, size = 0x4, offset = 0x4, fixed_abs, tag = 'smem constant byte address 0x4 - core index']
  #allocation1 [shape = 'u32[144,128]{1,0:T(1,128)}', space=vmem, size = 0x12000, scoped, tag = 'internal scratch']
  %s0 = inlined_call_operand.vmem [shape: bf16[32,1024], index: 0, kind: input, shape index: {}]
  %s1 = inlined_call_operand.vmem [shape: bf16[1024,128], index: 1, kind: input, shape index: {}]
  %s2 = inlined_call_operand.vmem [shape: f32[1,128], index: 2, kind: input, shape index: {}]
  %s3 = inlined_call_operand.vmem [shape: bf16[32,128], index: 3, kind: output, shape index: {}]
  %s4 = sld [smem:[#allocation0]]
  $region22: #{generator_forward.7} parent=0
    _
  %s6 = ssub.s32 1, %s4
  %s7 = scalar_select 0, %s6, %s4
  // Predicated region
  $region2: #{generator_forward.7} parent=0 // pred_check
    _
  $region3: #{generator_forward.7} parent=0 // pred_check_branch
    %9 = sbr.rel (0) target = $region5
  $region4: #{generator_forward.7} parent=0 // pred_region
    _
  $region5: #{generator_forward.7} parent=0 // pred_fallthru
    _
  // Predicated region
  $region6: #{generator_forward.7} parent=0 // pred_check
    _
  $region7: #{generator_forward.7} parent=0 // pred_check_branch
    %11 = sbr.rel (0) target = $region9
  $region8: #{generator_forward.7} parent=0 // pred_region
    _
  $region9: #{generator_forward.7} parent=0 // pred_fallthru
    _
  // Predicated region
  $region10: #{generator_forward.7} parent=0 // pred_check
    _
  $region11: #{generator_forward.7} parent=0 // pred_check_branch
    %13 = sbr.rel (0) target = $region13
  $region12: #{generator_forward.7} parent=0 // pred_region
    _
  $region13: #{generator_forward.7} parent=0 // pred_fallthru
    _
  %v15 = vld [vmem:[%s0] sm:$0xff]
  %v16 = vld [vmem:[%s0 + $0x8] sm:$0xff]
  %v17 = vld [vmem:[%s0 + $0x10] sm:$0xff]
  %v18 = vld [vmem:[%s0 + $0x18] sm:$0xff]
  %v19 = vld [vmem:[%s0 + $0x20] sm:$0xff]
  %v20 = vld [vmem:[%s0 + $0x28] sm:$0xff]
  %v21 = vld [vmem:[%s0 + $0x30] sm:$0xff]
  %v22 = vld [vmem:[%s0 + $0x38] sm:$0xff]
  %v23 = vld [vmem:[%s0 + $0x40] sm:$0xff]
  %v24 = vld [vmem:[%s0 + $0x48] sm:$0xff]
  %v25 = vld [vmem:[%s0 + $0x50] sm:$0xff]
  %v26 = vld [vmem:[%s0 + $0x58] sm:$0xff]
  %v27 = vld [vmem:[%s0 + $0x60] sm:$0xff]
  %v28 = vld [vmem:[%s0 + $0x68] sm:$0xff]
  %v29 = vld [vmem:[%s0 + $0x70] sm:$0xff]
  %v30 = vld [vmem:[%s0 + $0x78] sm:$0xff]
  %v31 = vld [vmem:[%s1] sm:$0xf]
  %v32 = vld [vmem:[%s1 + $0x4] sm:$0xf]
  %v33 = vld [vmem:[%s1 + $0x8] sm:$0xf]
  %v34 = vld [vmem:[%s1 + $0xc] sm:$0xf]
  %v35 = vld [vmem:[%s1 + $0x10] sm:$0xf]
  %v36 = vld [vmem:[%s1 + $0x14] sm:$0xf]
  %v37 = vld [vmem:[%s1 + $0x18] sm:$0xf]
  %v38 = vld [vmem:[%s1 + $0x1c] sm:$0xf]
  %v39 = vld [vmem:[%s1 + $0x20] sm:$0xf]
  %v40 = vld [vmem:[%s1 + $0x24] sm:$0xf]
  %v41 = vld [vmem:[%s1 + $0x28] sm:$0xf]
  %v42 = vld [vmem:[%s1 + $0x2c] sm:$0xf]
  %v43 = vld [vmem:[%s1 + $0x30] sm:$0xf]
  %v44 = vld [vmem:[%s1 + $0x34] sm:$0xf]
  %v45 = vld [vmem:[%s1 + $0x38] sm:$0xf]
  %v46 = vld [vmem:[%s1 + $0x3c] sm:$0xf]
  %v47 = vld [vmem:[%s1 + $0x40] sm:$0xf]
  %v48 = vld [vmem:[%s1 + $0x44] sm:$0xf]
  %v49 = vld [vmem:[%s1 + $0x48] sm:$0xf]
  %v50 = vld [vmem:[%s1 + $0x4c] sm:$0xf]
  %v51 = vld [vmem:[%s1 + $0x50] sm:$0xf]
  %v52 = vld [vmem:[%s1 + $0x54] sm:$0xf]
  %v53 = vld [vmem:[%s1 + $0x58] sm:$0xf]
  %v54 = vld [vmem:[%s1 + $0x5c] sm:$0xf]
  %v55 = vld [vmem:[%s1 + $0x60] sm:$0xf]
  %v56 = vld [vmem:[%s1 + $0x64] sm:$0xf]
  %v57 = vld [vmem:[%s1 + $0x68] sm:$0xf]
  %v58 = vld [vmem:[%s1 + $0x6c] sm:$0xf]
  %v59 = vld [vmem:[%s1 + $0x70] sm:$0xf]
  %v60 = vld [vmem:[%s1 + $0x74] sm:$0xf]
  %v61 = vld [vmem:[%s1 + $0x78] sm:$0xf]
  %v62 = vld [vmem:[%s1 + $0x7c] sm:$0xf]
  %v63 = vld [vmem:[%s1 + $0x80] sm:$0xf]
  %v64 = vld [vmem:[%s1 + $0x84] sm:$0xf]
  %v65 = vld [vmem:[%s1 + $0x88] sm:$0xf]
  %v66 = vld [vmem:[%s1 + $0x8c] sm:$0xf]
  %v67 = vld [vmem:[%s1 + $0x90] sm:$0xf]
  %v68 = vld [vmem:[%s1 + $0x94] sm:$0xf]
  %v69 = vld [vmem:[%s1 + $0x98] sm:$0xf]
  %v70 = vld [vmem:[%s1 + $0x9c] sm:$0xf]
  %v71 = vld [vmem:[%s1 + $0xa0] sm:$0xf]
  %v72 = vld [vmem:[%s1 + $0xa4] sm:$0xf]
  %v73 = vld [vmem:[%s1 + $0xa8] sm:$0xf]
  %v74 = vld [vmem:[%s1 + $0xac] sm:$0xf]
  %v75 = vld [vmem:[%s1 + $0xb0] sm:$0xf]
  %v76 = vld [vmem:[%s1 + $0xb4] sm:$0xf]
  %v77 = vld [vmem:[%s1 + $0xb8] sm:$0xf]
  %v78 = vld [vmem:[%s1 + $0xbc] sm:$0xf]
  %v79 = vld [vmem:[%s1 + $0xc0] sm:$0xf]
  %v80 = vld [vmem:[%s1 + $0xc4] sm:$0xf]
  %v81 = vld [vmem:[%s1 + $0xc8] sm:$0xf]
  %v82 = vld [vmem:[%s1 + $0xcc] sm:$0xf]
  %v83 = vld [vmem:[%s1 + $0xd0] sm:$0xf]
  %v84 = vld [vmem:[%s1 + $0xd4] sm:$0xf]
  %v85 = vld [vmem:[%s1 + $0xd8] sm:$0xf]
  %v86 = vld [vmem:[%s1 + $0xdc] sm:$0xf]
  %v87 = vld [vmem:[%s1 + $0xe0] sm:$0xf]
  %v88 = vld [vmem:[%s1 + $0xe4] sm:$0xf]
  %v89 = vld [vmem:[%s1 + $0xe8] sm:$0xf]
  %v90 = vld [vmem:[%s1 + $0xec] sm:$0xf]
  %v91 = vld [vmem:[%s1 + $0xf0] sm:$0xf]
  %v92 = vld [vmem:[%s1 + $0xf4] sm:$0xf]
  %v93 = vld [vmem:[%s1 + $0xf8] sm:$0xf]
  %v94 = vld [vmem:[%s1 + $0xfc] sm:$0xf]
  %v95 = vld [vmem:[%s1 + $0x100] sm:$0xf]
  %v96 = vld [vmem:[%s1 + $0x104] sm:$0xf]
  %v97 = vld [vmem:[%s1 + $0x108] sm:$0xf]
  %v98 = vld [vmem:[%s1 + $0x10c] sm:$0xf]
  %v99 = vld [vmem:[%s1 + $0x110] sm:$0xf]
  %v100 = vld [vmem:[%s1 + $0x114] sm:$0xf]
  %v101 = vld [vmem:[%s1 + $0x118] sm:$0xf]
  %v102 = vld [vmem:[%s1 + $0x11c] sm:$0xf]
  %v103 = vld [vmem:[%s1 + $0x120] sm:$0xf]
  %v104 = vld [vmem:[%s1 + $0x124] sm:$0xf]
  %v105 = vld [vmem:[%s1 + $0x128] sm:$0xf]
  %v106 = vld [vmem:[%s1 + $0x12c] sm:$0xf]
  %v107 = vld [vmem:[%s1 + $0x130] sm:$0xf]
  %v108 = vld [vmem:[%s1 + $0x134] sm:$0xf]
  %v109 = vld [vmem:[%s1 + $0x138] sm:$0xf]
  %v110 = vld [vmem:[%s1 + $0x13c] sm:$0xf]
  %v111 = vld [vmem:[%s1 + $0x140] sm:$0xf]
  %v112 = vld [vmem:[%s1 + $0x144] sm:$0xf]
  %v113 = vld [vmem:[%s1 + $0x148] sm:$0xf]
  %v114 = vld [vmem:[%s1 + $0x14c] sm:$0xf]
  %v115 = vld [vmem:[%s1 + $0x150] sm:$0xf]
  %v116 = vld [vmem:[%s1 + $0x154] sm:$0xf]
  %v117 = vld [vmem:[%s1 + $0x158] sm:$0xf]
  %v118 = vld [vmem:[%s1 + $0x15c] sm:$0xf]
  %v119 = vld [vmem:[%s1 + $0x160] sm:$0xf]
  %v120 = vld [vmem:[%s1 + $0x164] sm:$0xf]
  %v121 = vld [vmem:[%s1 + $0x168] sm:$0xf]
  %v122 = vld [vmem:[%s1 + $0x16c] sm:$0xf]
  %v123 = vld [vmem:[%s1 + $0x170] sm:$0xf]
  %v124 = vld [vmem:[%s1 + $0x174] sm:$0xf]
  %v125 = vld [vmem:[%s1 + $0x178] sm:$0xf]
  %v126 = vld [vmem:[%s1 + $0x17c] sm:$0xf]
  %v127 = vld [vmem:[%s1 + $0x180] sm:$0xf]
  %v128 = vld [vmem:[%s1 + $0x184] sm:$0xf]
  %v129 = vld [vmem:[%s1 + $0x188] sm:$0xf]
  %v130 = vld [vmem:[%s1 + $0x18c] sm:$0xf]
  %v131 = vld [vmem:[%s1 + $0x190] sm:$0xf]
  %v132 = vld [vmem:[%s1 + $0x194] sm:$0xf]
  %v133 = vld [vmem:[%s1 + $0x198] sm:$0xf]
  %v134 = vld [vmem:[%s1 + $0x19c] sm:$0xf]
  %v135 = vld [vmem:[%s1 + $0x1a0] sm:$0xf]
  %v136 = vld [vmem:[%s1 + $0x1a4] sm:$0xf]
  %v137 = vld [vmem:[%s1 + $0x1a8] sm:$0xf]
  %v138 = vld [vmem:[%s1 + $0x1ac] sm:$0xf]
  %v139 = vld [vmem:[%s1 + $0x1b0] sm:$0xf]
  %v140 = vld [vmem:[%s1 + $0x1b4] sm:$0xf]
  %v141 = vld [vmem:[%s1 + $0x1b8] sm:$0xf]
  %v142 = vld [vmem:[%s1 + $0x1bc] sm:$0xf]
  %v143 = vld [vmem:[%s1 + $0x1c0] sm:$0xf]
  %v144 = vld [vmem:[%s1 + $0x1c4] sm:$0xf]
  %v145 = vld [vmem:[%s1 + $0x1c8] sm:$0xf]
  %v146 = vld [vmem:[%s1 + $0x1cc] sm:$0xf]
  %v147 = vld [vmem:[%s1 + $0x1d0] sm:$0xf]
  %v148 = vld [vmem:[%s1 + $0x1d4] sm:$0xf]
  %v149 = vld [vmem:[%s1 + $0x1d8] sm:$0xf]
  %v150 = vld [vmem:[%s1 + $0x1dc] sm:$0xf]
  %v151 = vld [vmem:[%s1 + $0x1e0] sm:$0xf]
  %v152 = vld [vmem:[%s1 + $0x1e4] sm:$0xf]
  %v153 = vld [vmem:[%s1 + $0x1e8] sm:$0xf]
  %v154 = vld [vmem:[%s1 + $0x1ec] sm:$0xf]
  %v155 = vld [vmem:[%s1 + $0x1f0] sm:$0xf]
  %v156 = vld [vmem:[%s1 + $0x1f4] sm:$0xf]
  %v157 = vld [vmem:[%s1 + $0x1f8] sm:$0xf]
  %v158 = vld [vmem:[%s1 + $0x1fc] sm:$0xf]
  %v159 = vld [vmem:[%s2] sm:$0x1]
  %v161 = vlaneseq
  %v162 = vshrl.u32 %v161, 7
  %v163 = vsub.s32 0, %v162
  %v164 = vrot.slane %v159, %v163
  %v182 = vunpack.c.l.b16 %v15
  %v183 = vunpack.c.h.b16 %v15
  %v184 = vunpack.c.l.b16 %v16
  %v185 = vunpack.c.h.b16 %v16
  %v186 = vunpack.c.l.b16 %v17
  %v187 = vunpack.c.h.b16 %v17
  %v188 = vunpack.c.l.b16 %v18
  %v189 = vunpack.c.h.b16 %v18
  %v190 = vunpack.c.l.b16 %v19
  %v191 = vunpack.c.h.b16 %v19
  %v192 = vunpack.c.l.b16 %v20
  %v193 = vunpack.c.h.b16 %v20
  %v194 = vunpack.c.l.b16 %v21
  %v195 = vunpack.c.h.b16 %v21
  %v196 = vunpack.c.l.b16 %v22
  %v197 = vunpack.c.h.b16 %v22
  %v198 = vunpack.c.l.b16 %v23
  %v199 = vunpack.c.h.b16 %v23
  %v200 = vunpack.c.l.b16 %v24
  %v201 = vunpack.c.h.b16 %v24
  %v202 = vunpack.c.l.b16 %v25
  %v203 = vunpack.c.h.b16 %v25
  %v204 = vunpack.c.l.b16 %v26
  %v205 = vunpack.c.h.b16 %v26
  %v206 = vunpack.c.l.b16 %v27
  %v207 = vunpack.c.h.b16 %v27
  %v208 = vunpack.c.l.b16 %v28
  %v209 = vunpack.c.h.b16 %v28
  %v210 = vunpack.c.l.b16 %v29
  %v211 = vunpack.c.h.b16 %v29
  %v212 = vunpack.c.l.b16 %v30
  %v213 = vunpack.c.h.b16 %v30
  %v214 = vpack.c.b16 %v190, %v182
  %v215 = vpack.c.b16 %v191, %v183
  %v216 = vpack.c.b16 %v192, %v184
  %v217 = vpack.c.b16 %v193, %v185
  %v218 = vpack.c.b16 %v194, %v186
  %v219 = vpack.c.b16 %v195, %v187
  %v220 = vpack.c.b16 %v196, %v188
  %v221 = vpack.c.b16 %v197, %v189
  %v222 = vpack.c.b16 %v206, %v198
  %v223 = vpack.c.b16 %v207, %v199
  %v224 = vpack.c.b16 %v208, %v200
  %v225 = vpack.c.b16 %v209, %v201
  %v226 = vpack.c.b16 %v210, %v202
  %v227 = vpack.c.b16 %v211, %v203
  %v228 = vpack.c.b16 %v212, %v204
  %v229 = vpack.c.b16 %v213, %v205
  %v374 = vunpack.c.l.b16 %v31
  %v375 = vunpack.c.l.b16 %v32
  %v376 = vunpack.c.l.b16 %v33
  %v377 = vunpack.c.l.b16 %v34
  %v378 = vunpack.c.l.b16 %v35
  %v379 = vunpack.c.l.b16 %v36
  %v380 = vunpack.c.l.b16 %v37
  %v381 = vunpack.c.l.b16 %v38
  %v382 = vunpack.c.l.b16 %v39
  %v383 = vunpack.c.l.b16 %v40
  %v384 = vunpack.c.l.b16 %v41
  %v385 = vunpack.c.l.b16 %v42
  %v386 = vunpack.c.l.b16 %v43
  %v387 = vunpack.c.l.b16 %v44
  %v388 = vunpack.c.l.b16 %v45
  %v389 = vunpack.c.l.b16 %v46
  %v390 = vunpack.c.l.b16 %v47
  %v391 = vunpack.c.l.b16 %v48
  %v392 = vunpack.c.l.b16 %v49
  %v393 = vunpack.c.l.b16 %v50
  %v394 = vunpack.c.l.b16 %v51
  %v395 = vunpack.c.l.b16 %v52
  %v396 = vunpack.c.l.b16 %v53
  %v397 = vunpack.c.l.b16 %v54
  %v398 = vunpack.c.l.b16 %v55
  %v399 = vunpack.c.l.b16 %v56
  %v400 = vunpack.c.l.b16 %v57
  %v401 = vunpack.c.l.b16 %v58
  %v402 = vunpack.c.l.b16 %v59
  %v403 = vunpack.c.l.b16 %v60
  %v404 = vunpack.c.l.b16 %v61
  %v405 = vunpack.c.l.b16 %v62
  %v406 = vunpack.c.l.b16 %v63
  %v407 = vunpack.c.l.b16 %v64
  %v408 = vunpack.c.l.b16 %v65
  %v409 = vunpack.c.l.b16 %v66
  %v410 = vunpack.c.l.b16 %v67
  %v411 = vunpack.c.l.b16 %v68
  %v412 = vunpack.c.l.b16 %v69
  %v413 = vunpack.c.l.b16 %v70
  %v414 = vunpack.c.l.b16 %v71
  %v415 = vunpack.c.l.b16 %v72
  %v416 = vunpack.c.l.b16 %v73
  %v417 = vunpack.c.l.b16 %v74
  %v418 = vunpack.c.l.b16 %v75
  %v419 = vunpack.c.l.b16 %v76
  %v420 = vunpack.c.l.b16 %v77
  %v421 = vunpack.c.l.b16 %v78
  %v422 = vunpack.c.l.b16 %v79
  %v423 = vunpack.c.l.b16 %v80
  %v424 = vunpack.c.l.b16 %v81
  %v425 = vunpack.c.l.b16 %v82
  %v426 = vunpack.c.l.b16 %v83
  %v427 = vunpack.c.l.b16 %v84
  %v428 = vunpack.c.l.b16 %v85
  %v429 = vunpack.c.l.b16 %v86
  %v430 = vunpack.c.l.b16 %v87
  %v431 = vunpack.c.l.b16 %v88
  %v432 = vunpack.c.l.b16 %v89
  %v433 = vunpack.c.l.b16 %v90
  %v434 = vunpack.c.l.b16 %v91
  %v435 = vunpack.c.l.b16 %v92
  %v436 = vunpack.c.l.b16 %v93
  %v437 = vunpack.c.l.b16 %v94
  %v438 = vunpack.c.l.b16 %v95
  %v439 = vunpack.c.l.b16 %v96
  %v440 = vunpack.c.l.b16 %v97
  %v441 = vunpack.c.l.b16 %v98
  %v442 = vunpack.c.l.b16 %v99
  %v443 = vunpack.c.l.b16 %v100
  %v444 = vunpack.c.l.b16 %v101
  %v445 = vunpack.c.l.b16 %v102
  %v446 = vunpack.c.l.b16 %v103
  %v447 = vunpack.c.l.b16 %v104
  %v448 = vunpack.c.l.b16 %v105
  %v449 = vunpack.c.l.b16 %v106
  %v450 = vunpack.c.l.b16 %v107
  %v451 = vunpack.c.l.b16 %v108
  %v452 = vunpack.c.l.b16 %v109
  %v453 = vunpack.c.l.b16 %v110
  %v454 = vunpack.c.l.b16 %v111
  %v455 = vunpack.c.l.b16 %v112
  %v456 = vunpack.c.l.b16 %v113
  %v457 = vunpack.c.l.b16 %v114
  %v458 = vunpack.c.l.b16 %v115
  %v459 = vunpack.c.l.b16 %v116
  %v460 = vunpack.c.l.b16 %v117
  %v461 = vunpack.c.l.b16 %v118
  %v462 = vunpack.c.l.b16 %v119
  %v463 = vunpack.c.l.b16 %v120
  %v464 = vunpack.c.l.b16 %v121
  %v465 = vunpack.c.l.b16 %v122
  %v466 = vunpack.c.l.b16 %v123
  %v467 = vunpack.c.l.b16 %v124
  %v468 = vunpack.c.l.b16 %v125
  %v469 = vunpack.c.l.b16 %v126
  %v470 = vunpack.c.l.b16 %v127
  %v471 = vunpack.c.l.b16 %v128
  %v472 = vunpack.c.l.b16 %v129
  %v473 = vunpack.c.l.b16 %v130
  %v474 = vunpack.c.l.b16 %v131
  %v475 = vunpack.c.l.b16 %v132
  %v476 = vunpack.c.l.b16 %v133
  %v477 = vunpack.c.l.b16 %v134
  %v478 = vunpack.c.l.b16 %v135
  %v479 = vunpack.c.l.b16 %v136
  %v480 = vunpack.c.l.b16 %v137
  %v481 = vunpack.c.l.b16 %v138
  %v482 = vunpack.c.l.b16 %v139
  %v483 = vunpack.c.l.b16 %v140
  %v484 = vunpack.c.l.b16 %v141
  %v485 = vunpack.c.l.b16 %v142
  %v486 = vunpack.c.l.b16 %v143
  %v487 = vunpack.c.l.b16 %v144
  %v488 = vunpack.c.l.b16 %v145
  %v489 = vunpack.c.l.b16 %v146
  %v490 = vunpack.c.l.b16 %v147
  %v491 = vunpack.c.l.b16 %v148
  %v492 = vunpack.c.l.b16 %v149
  %v493 = vunpack.c.l.b16 %v150
  %v494 = vunpack.c.l.b16 %v151
  %v495 = vunpack.c.l.b16 %v152
  %v496 = vunpack.c.l.b16 %v153
  %v497 = vunpack.c.l.b16 %v154
  %v498 = vunpack.c.l.b16 %v155
  %v499 = vunpack.c.l.b16 %v156
  %v500 = vunpack.c.l.b16 %v157
  %v501 = vunpack.c.l.b16 %v158
  %v502 = vpack.c.b16 %v375, %v374
  %v503 = vpack.c.b16 %v377, %v376
  %v504 = vpack.c.b16 %v379, %v378
  %v505 = vpack.c.b16 %v381, %v380
  %v506 = vpack.c.b16 %v383, %v382
  %v507 = vpack.c.b16 %v385, %v384
  %v508 = vpack.c.b16 %v387, %v386
  %v509 = vpack.c.b16 %v389, %v388
  %v510 = vpack.c.b16 %v391, %v390
  %v511 = vpack.c.b16 %v393, %v392
  %v512 = vpack.c.b16 %v395, %v394
  %v513 = vpack.c.b16 %v397, %v396
  %v514 = vpack.c.b16 %v399, %v398
  %v515 = vpack.c.b16 %v401, %v400
  %v516 = vpack.c.b16 %v403, %v402
  %v517 = vpack.c.b16 %v405, %v404
  %v518 = vpack.c.b16 %v407, %v406
  %v519 = vpack.c.b16 %v409, %v408
  %v520 = vpack.c.b16 %v411, %v410
  %v521 = vpack.c.b16 %v413, %v412
  %v522 = vpack.c.b16 %v415, %v414
  %v523 = vpack.c.b16 %v417, %v416
  %v524 = vpack.c.b16 %v419, %v418
  %v525 = vpack.c.b16 %v421, %v420
  %v526 = vpack.c.b16 %v423, %v422
  %v527 = vpack.c.b16 %v425, %v424
  %v528 = vpack.c.b16 %v427, %v426
  %v529 = vpack.c.b16 %v429, %v428
  %v530 = vpack.c.b16 %v431, %v430
  %v531 = vpack.c.b16 %v433, %v432
  %v532 = vpack.c.b16 %v435, %v434
  %v533 = vpack.c.b16 %v437, %v436
  %v534 = vpack.c.b16 %v439, %v438
  %v535 = vpack.c.b16 %v441, %v440
  %v536 = vpack.c.b16 %v443, %v442
  %v537 = vpack.c.b16 %v445, %v444
  %v538 = vpack.c.b16 %v447, %v446
  %v539 = vpack.c.b16 %v449, %v448
  %v540 = vpack.c.b16 %v451, %v450
  %v541 = vpack.c.b16 %v453, %v452
  %v542 = vpack.c.b16 %v455, %v454
  %v543 = vpack.c.b16 %v457, %v456
  %v544 = vpack.c.b16 %v459, %v458
  %v545 = vpack.c.b16 %v461, %v460
  %v546 = vpack.c.b16 %v463, %v462
  %v547 = vpack.c.b16 %v465, %v464
  %v548 = vpack.c.b16 %v467, %v466
  %v549 = vpack.c.b16 %v469, %v468
  %v550 = vpack.c.b16 %v471, %v470
  %v551 = vpack.c.b16 %v473, %v472
  %v552 = vpack.c.b16 %v475, %v474
  %v553 = vpack.c.b16 %v477, %v476
  %v554 = vpack.c.b16 %v479, %v478
  %v555 = vpack.c.b16 %v481, %v480
  %v556 = vpack.c.b16 %v483, %v482
  %v557 = vpack.c.b16 %v485, %v484
  %v558 = vpack.c.b16 %v487, %v486
  %v559 = vpack.c.b16 %v489, %v488
  %v560 = vpack.c.b16 %v491, %v490
  %v561 = vpack.c.b16 %v493, %v492
  %v562 = vpack.c.b16 %v495, %v494
  %v563 = vpack.c.b16 %v497, %v496
  %v564 = vpack.c.b16 %v499, %v498
  %v565 = vpack.c.b16 %v501, %v500
  %630 = vmatprep.subr.bf16.mxu0 0
  %631 = vmatpush1.bf16.msra.mxu0 %v509
  %632 = vmatprep.subr.bf16.mxu0 0
  %633 = vmatpush1.bf16.msra.mxu0 %v508
  %634 = vmatprep.subr.bf16.mxu0 0
  %635 = vmatpush1.bf16.msra.mxu0 %v507
  %636 = vmatprep.subr.bf16.mxu0 0
  %637 = vmatpush1.bf16.msra.mxu0 %v506
  %638 = vmatprep.subr.bf16.mxu0 0
  %639 = vmatpush1.bf16.msra.mxu0 %v505
  %640 = vmatprep.subr.bf16.mxu0 0
  %641 = vmatpush1.bf16.msra.mxu0 %v504
  %642 = vmatprep.subr.bf16.mxu0 0
  %643 = vmatpush1.bf16.msra.mxu0 %v503
  %644 = vmatprep.subr.bf16.mxu0 0
  %645 = vmatpush1.bf16.msra.mxu0 %v502
  %646 = vmatprep.subr.bf16.mxu0 0
  %647 = vmatpush2.bf16.msra.mxu0 %v517
  %648 = vmatprep.subr.bf16.mxu0 0
  %649 = vmatpush2.bf16.msra.mxu0 %v516
  %650 = vmatprep.subr.bf16.mxu0 0
  %651 = vmatpush2.bf16.msra.mxu0 %v515
  %652 = vmatprep.subr.bf16.mxu0 0
  %653 = vmatpush2.bf16.msra.mxu0 %v514
  %654 = vmatprep.subr.bf16.mxu0 0
  %655 = vmatpush2.bf16.msra.mxu0 %v513
  %656 = vmatprep.subr.bf16.mxu0 0
  %657 = vmatpush2.bf16.msra.mxu0 %v512
  %658 = vmatprep.subr.bf16.mxu0 0
  %659 = vmatpush2.bf16.msra.mxu0 %v511
  %660 = vmatprep.subr.bf16.mxu0 0
  %661 = vmatpush2.bf16.msra.mxu0 %v510
  %662 = vmatprep.mubr.bf16.mxu0 %v215
  %663 = vmatmul.mubr.bf16.gmra.mxu0 %v214
  %v664 = vpop.f32.mrf.mxu0
  %v665 = vadd.f32 %v164, %v664
  %v666 = vpop.f32.mrf.mxu0
  %v667 = vpop.f32.mrf.mxu0
  %v668 = vadd.f32 %v164, %v667
  %v669 = vpop.f32.mrf.mxu0
  %670 = vmatprep.mubr.bf16.mxu0 %v223
  %671 = vmatmul.mubr.bf16.gmra.mxu0 %v222
  %v672 = vpop.f32.mrf.mxu0
  %v673 = vadd.f32 %v164, %v672
  %v674 = vpop.f32.mrf.mxu0
  %v675 = vpop.f32.mrf.mxu0
  %v676 = vadd.f32 %v164, %v675
  %v677 = vpop.f32.mrf.mxu0
  %678 = vdwg.mxu0
  %679 = vmatprep.subr.bf16.mxu0 0
  %680 = vmatpush1.bf16.msra.mxu0 %v525
  %681 = vmatprep.subr.bf16.mxu0 0
  %682 = vmatpush1.bf16.msra.mxu0 %v524
  %683 = vmatprep.subr.bf16.mxu0 0
  %684 = vmatpush1.bf16.msra.mxu0 %v523
  %685 = vmatprep.subr.bf16.mxu0 0
  %686 = vmatpush1.bf16.msra.mxu0 %v522
  %687 = vmatprep.subr.bf16.mxu0 0
  %688 = vmatpush1.bf16.msra.mxu0 %v521
  %689 = vmatprep.subr.bf16.mxu0 0
  %690 = vmatpush1.bf16.msra.mxu0 %v520
  %691 = vmatprep.subr.bf16.mxu0 0
  %692 = vmatpush1.bf16.msra.mxu0 %v519
  %693 = vmatprep.subr.bf16.mxu0 0
  %694 = vmatpush1.bf16.msra.mxu0 %v518
  %695 = vmatprep.subr.bf16.mxu0 0
  %696 = vmatpush2.bf16.msra.mxu0 %v533
  %697 = vmatprep.subr.bf16.mxu0 0
  %698 = vmatpush2.bf16.msra.mxu0 %v532
  %699 = vmatprep.subr.bf16.mxu0 0
  %700 = vmatpush2.bf16.msra.mxu0 %v531
  %701 = vmatprep.subr.bf16.mxu0 0
  %702 = vmatpush2.bf16.msra.mxu0 %v530
  %703 = vmatprep.subr.bf16.mxu0 0
  %704 = vmatpush2.bf16.msra.mxu0 %v529
  %705 = vmatprep.subr.bf16.mxu0 0
  %706 = vmatpush2.bf16.msra.mxu0 %v528
  %707 = vmatprep.subr.bf16.mxu0 0
  %708 = vmatpush2.bf16.msra.mxu0 %v527
  %709 = vmatprep.subr.bf16.mxu0 0
  %710 = vmatpush2.bf16.msra.mxu0 %v526
  %711 = vmatprep.mubr.bf16.mxu0 %v217
  %712 = vmatmul.mubr.bf16.gmra.mxu0 %v216
  %v713 = vpop.f32.mrf.mxu0
  %v714 = vadd.f32 %v665, %v713
  %v715 = vpop.f32.mrf.mxu0
  %v716 = vpop.f32.mrf.mxu0
  %v717 = vadd.f32 %v668, %v716
  %v718 = vpop.f32.mrf.mxu0
  %719 = vmatprep.mubr.bf16.mxu0 %v225
  %720 = vmatmul.mubr.bf16.gmra.mxu0 %v224
  %v721 = vpop.f32.mrf.mxu0
  %v722 = vadd.f32 %v673, %v721
  %v723 = vpop.f32.mrf.mxu0
  %v724 = vpop.f32.mrf.mxu0
  %v725 = vadd.f32 %v676, %v724
  %v726 = vpop.f32.mrf.mxu0
  %727 = vdwg.mxu0
  %728 = vmatprep.subr.bf16.mxu0 0
  %729 = vmatpush1.bf16.msra.mxu0 %v541
  %730 = vmatprep.subr.bf16.mxu0 0
  %731 = vmatpush1.bf16.msra.mxu0 %v540
  %732 = vmatprep.subr.bf16.mxu0 0
  %733 = vmatpush1.bf16.msra.mxu0 %v539
  %734 = vmatprep.subr.bf16.mxu0 0
  %735 = vmatpush1.bf16.msra.mxu0 %v538
  %736 = vmatprep.subr.bf16.mxu0 0
  %737 = vmatpush1.bf16.msra.mxu0 %v537
  %738 = vmatprep.subr.bf16.mxu0 0
  %739 = vmatpush1.bf16.msra.mxu0 %v536
  %740 = vmatprep.subr.bf16.mxu0 0
  %741 = vmatpush1.bf16.msra.mxu0 %v535
  %742 = vmatprep.subr.bf16.mxu0 0
  %743 = vmatpush1.bf16.msra.mxu0 %v534
  %744 = vmatprep.subr.bf16.mxu0 0
  %745 = vmatpush2.bf16.msra.mxu0 %v549
  %746 = vmatprep.subr.bf16.mxu0 0
  %747 = vmatpush2.bf16.msra.mxu0 %v548
  %748 = vmatprep.subr.bf16.mxu0 0
  %749 = vmatpush2.bf16.msra.mxu0 %v547
  %750 = vmatprep.subr.bf16.mxu0 0
  %751 = vmatpush2.bf16.msra.mxu0 %v546
  %752 = vmatprep.subr.bf16.mxu0 0
  %753 = vmatpush2.bf16.msra.mxu0 %v545
  %754 = vmatprep.subr.bf16.mxu0 0
  %755 = vmatpush2.bf16.msra.mxu0 %v544
  %756 = vmatprep.subr.bf16.mxu0 0
  %757 = vmatpush2.bf16.msra.mxu0 %v543
  %758 = vmatprep.subr.bf16.mxu0 0
  %759 = vmatpush2.bf16.msra.mxu0 %v542
  %760 = vmatprep.mubr.bf16.mxu0 %v219
  %761 = vmatmul.mubr.bf16.gmra.mxu0 %v218
  %v762 = vpop.f32.mrf.mxu0
  %v763 = vadd.f32 %v714, %v762
  %v764 = vpop.f32.mrf.mxu0
  %v765 = vpop.f32.mrf.mxu0
  %v766 = vadd.f32 %v717, %v765
  %v767 = vpop.f32.mrf.mxu0
  %768 = vmatprep.mubr.bf16.mxu0 %v227
  %769 = vmatmul.mubr.bf16.gmra.mxu0 %v226
  %v770 = vpop.f32.mrf.mxu0
  %v771 = vadd.f32 %v722, %v770
  %v772 = vpop.f32.mrf.mxu0
  %v773 = vpop.f32.mrf.mxu0
  %v774 = vadd.f32 %v725, %v773
  %v775 = vpop.f32.mrf.mxu0
  %776 = vdwg.mxu0
  %777 = vmatprep.subr.bf16.mxu0 0
  %778 = vmatpush1.bf16.msra.mxu0 %v557
  %779 = vmatprep.subr.bf16.mxu0 0
  %780 = vmatpush1.bf16.msra.mxu0 %v556
  %781 = vmatprep.subr.bf16.mxu0 0
  %782 = vmatpush1.bf16.msra.mxu0 %v555
  %783 = vmatprep.subr.bf16.mxu0 0
  %784 = vmatpush1.bf16.msra.mxu0 %v554
  %785 = vmatprep.subr.bf16.mxu0 0
  %786 = vmatpush1.bf16.msra.mxu0 %v553
  %787 = vmatprep.subr.bf16.mxu0 0
  %788 = vmatpush1.bf16.msra.mxu0 %v552
  %789 = vmatprep.subr.bf16.mxu0 0
  %790 = vmatpush1.bf16.msra.mxu0 %v551
  %791 = vmatprep.subr.bf16.mxu0 0
  %792 = vmatpush1.bf16.msra.mxu0 %v550
  %793 = vmatprep.subr.bf16.mxu0 0
  %794 = vmatpush2.bf16.msra.mxu0 %v565
  %795 = vmatprep.subr.bf16.mxu0 0
  %796 = vmatpush2.bf16.msra.mxu0 %v564
  %797 = vmatprep.subr.bf16.mxu0 0
  %798 = vmatpush2.bf16.msra.mxu0 %v563
  %799 = vmatprep.subr.bf16.mxu0 0
  %800 = vmatpush2.bf16.msra.mxu0 %v562
  %801 = vmatprep.subr.bf16.mxu0 0
  %802 = vmatpush2.bf16.msra.mxu0 %v561
  %803 = vmatprep.subr.bf16.mxu0 0
  %804 = vmatpush2.bf16.msra.mxu0 %v560
  %805 = vmatprep.subr.bf16.mxu0 0
  %806 = vmatpush2.bf16.msra.mxu0 %v559
  %807 = vmatprep.subr.bf16.mxu0 0
  %808 = vmatpush2.bf16.msra.mxu0 %v558
  %809 = vmatprep.mubr.bf16.mxu0 %v221
  %810 = vmatmul.mubr.bf16.gmra.mxu0 %v220
  %v811 = vpop.f32.mrf.mxu0
  %v812 = vadd.f32 %v763, %v811
  %v813 = vpop.f32.mrf.mxu0
  %v814 = vpop.f32.mrf.mxu0
  %v815 = vadd.f32 %v766, %v814
  %v816 = vpop.f32.mrf.mxu0
  %817 = vmatprep.mubr.bf16.mxu0 %v229
  %818 = vmatmul.mubr.bf16.gmra.mxu0 %v228
  %v819 = vpop.f32.mrf.mxu0
  %v820 = vadd.f32 %v771, %v819
  %v821 = vpop.f32.mrf.mxu0
  %v822 = vpop.f32.mrf.mxu0
  %v823 = vadd.f32 %v774, %v822
  %v824 = vpop.f32.mrf.mxu0
  %825 = vdwg.mxu0
  %v826 = vmax.f32 %v812, 0.0
  %v827 = vmax.f32 %v815, 0.0
  %v828 = vmax.f32 %v820, 0.0
  %v829 = vmax.f32 %v823, 0.0
  %v830 = vpack.c.bf16 %v827, %v826
  %v831 = vpack.c.bf16 %v829, %v828
  %v834 = vunpack.c.l.b16 %v830
  %v835 = vunpack.c.h.b16 %v830
  %v836 = vunpack.c.l.b16 %v831
  %v837 = vunpack.c.h.b16 %v831
  %v838 = vpack.c.b16 %v834, %v834
  %v839 = vpack.c.b16 %v835, %v835
  %v840 = vpack.c.b16 %v836, %v836
  %v841 = vpack.c.b16 %v837, %v837
  %846 = vst [vmem:[%s3] sm:$0xf] %v838
  %847 = vst [vmem:[%s3 + $0x4] sm:$0xf] %v839
  %848 = vst [vmem:[%s3 + $0x8] sm:$0xf] %v840
  %849 = vst [vmem:[%s3 + $0xc] sm:$0xf] %v841
  // Predicated region
  $region14: #{generator_forward.7} parent=0 // pred_check
    _
  $region15: #{generator_forward.7} parent=0 // pred_check_branch
    %851 = sbr.rel (0) target = $region17
  $region16: #{generator_forward.7} parent=0 // pred_region
    _
  $region17: #{generator_forward.7} parent=0 // pred_fallthru
    _
  // Predicated region
  $region18: #{generator_forward.7} parent=0 // pred_check
    _
  $region19: #{generator_forward.7} parent=0 // pred_check_branch
    %853 = sbr.rel (0) target = $region21
  $region20: #{generator_forward.7} parent=0 // pred_region
    _
  $region21: #{generator_forward.7} parent=0 // pred_fallthru
    _

// kernel: generator_forward.8
$region0: #{generator_forward.8}
  #allocation0 [shape = 'u32[]', space=smem, size = 0x4, offset = 0x4, fixed_abs, tag = 'smem constant byte address 0x4 - core index']
  #allocation1 [shape = 'u32[144,128]{1,0:T(1,128)}', space=vmem, size = 0x12000, scoped, tag = 'internal scratch']
  %s0 = inlined_call_operand.vmem [shape: bf16[16,2048], index: 0, kind: input, shape index: {}]
  %s1 = inlined_call_operand.vmem [shape: bf16[2048,256], index: 1, kind: input, shape index: {}]
  %s2 = inlined_call_operand.vmem [shape: f32[1,256], index: 2, kind: input, shape index: {}]
  %s3 = inlined_call_operand.vmem [shape: bf16[16,256], index: 3, kind: output, shape index: {}]
  %s4 = sld [smem:[#allocation0]]
  $region22: #{generator_forward.8} parent=0
    _
  %s6 = ssub.s32 1, %s4
  %s7 = scalar_select 0, %s6, %s4
  // Predicated region
  $region2: #{generator_forward.8} parent=0 // pred_check
    _
  $region3: #{generator_forward.8} parent=0 // pred_check_branch
    %9 = sbr.rel (0) target = $region5
  $region4: #{generator_forward.8} parent=0 // pred_region
    _
  $region5: #{generator_forward.8} parent=0 // pred_fallthru
    _
  // Predicated region
  $region6: #{generator_forward.8} parent=0 // pred_check
    _
  $region7: #{generator_forward.8} parent=0 // pred_check_branch
    %11 = sbr.rel (0) target = $region9
  $region8: #{generator_forward.8} parent=0 // pred_region
    _
  $region9: #{generator_forward.8} parent=0 // pred_fallthru
    _
  // Predicated region
  $region10: #{generator_forward.8} parent=0 // pred_check
    _
  $region11: #{generator_forward.8} parent=0 // pred_check_branch
    %13 = sbr.rel (0) target = $region13
  $region12: #{generator_forward.8} parent=0 // pred_region
    _
  $region13: #{generator_forward.8} parent=0 // pred_fallthru
    _
  %v14 = vld [vmem:[%s0] sm:$0xff]
  %v15 = vld [vmem:[%s0 + $0x8] sm:$0xff]
  %v16 = vld [vmem:[%s0 + $0x10] sm:$0xff]
  %v17 = vld [vmem:[%s0 + $0x18] sm:$0xff]
  %v18 = vld [vmem:[%s0 + $0x20] sm:$0xff]
  %v19 = vld [vmem:[%s0 + $0x28] sm:$0xff]
  %v20 = vld [vmem:[%s0 + $0x30] sm:$0xff]
  %v21 = vld [vmem:[%s0 + $0x38] sm:$0xff]
  %v22 = vld [vmem:[%s0 + $0x40] sm:$0xff]
  %v23 = vld [vmem:[%s0 + $0x48] sm:$0xff]
  %v24 = vld [vmem:[%s0 + $0x50] sm:$0xff]
  %v25 = vld [vmem:[%s0 + $0x58] sm:$0xff]
  %v26 = vld [vmem:[%s0 + $0x60] sm:$0xff]
  %v27 = vld [vmem:[%s0 + $0x68] sm:$0xff]
  %v28 = vld [vmem:[%s0 + $0x70] sm:$0xff]
  %v29 = vld [vmem:[%s0 + $0x78] sm:$0xff]
  %v30 = vld [vmem:[%s1] sm:$0xff]
  %v31 = vld [vmem:[%s1 + $0x8] sm:$0xff]
  %v32 = vld [vmem:[%s1 + $0x10] sm:$0xff]
  %v33 = vld [vmem:[%s1 + $0x18] sm:$0xff]
  %v34 = vld [vmem:[%s1 + $0x20] sm:$0xff]
  %v35 = vld [vmem:[%s1 + $0x28] sm:$0xff]
  %v36 = vld [vmem:[%s1 + $0x30] sm:$0xff]
  %v37 = vld [vmem:[%s1 + $0x38] sm:$0xff]
  %v38 = vld [vmem:[%s1 + $0x40] sm:$0xff]
  %v39 = vld [vmem:[%s1 + $0x48] sm:$0xff]
  %v40 = vld [vmem:[%s1 + $0x50] sm:$0xff]
  %v41 = vld [vmem:[%s1 + $0x58] sm:$0xff]
  %v42 = vld [vmem:[%s1 + $0x60] sm:$0xff]
  %v43 = vld [vmem:[%s1 + $0x68] sm:$0xff]
  %v44 = vld [vmem:[%s1 + $0x70] sm:$0xff]
  %v45 = vld [vmem:[%s1 + $0x78] sm:$0xff]
  %v46 = vld [vmem:[%s1 + $0x80] sm:$0xff]
  %v47 = vld [vmem:[%s1 + $0x88] sm:$0xff]
  %v48 = vld [vmem:[%s1 + $0x90] sm:$0xff]
  %v49 = vld [vmem:[%s1 + $0x98] sm:$0xff]
  %v50 = vld [vmem:[%s1 + $0xa0] sm:$0xff]
  %v51 = vld [vmem:[%s1 + $0xa8] sm:$0xff]
  %v52 = vld [vmem:[%s1 + $0xb0] sm:$0xff]
  %v53 = vld [vmem:[%s1 + $0xb8] sm:$0xff]
  %v54 = vld [vmem:[%s1 + $0xc0] sm:$0xff]
  %v55 = vld [vmem:[%s1 + $0xc8] sm:$0xff]
  %v56 = vld [vmem:[%s1 + $0xd0] sm:$0xff]
  %v57 = vld [vmem:[%s1 + $0xd8] sm:$0xff]
  %v58 = vld [vmem:[%s1 + $0xe0] sm:$0xff]
  %v59 = vld [vmem:[%s1 + $0xe8] sm:$0xff]
  %v60 = vld [vmem:[%s1 + $0xf0] sm:$0xff]
  %v61 = vld [vmem:[%s1 + $0xf8] sm:$0xff]
  %v62 = vld [vmem:[%s1 + $0x100] sm:$0xff]
  %v63 = vld [vmem:[%s1 + $0x108] sm:$0xff]
  %v64 = vld [vmem:[%s1 + $0x110] sm:$0xff]
  %v65 = vld [vmem:[%s1 + $0x118] sm:$0xff]
  %v66 = vld [vmem:[%s1 + $0x120] sm:$0xff]
  %v67 = vld [vmem:[%s1 + $0x128] sm:$0xff]
  %v68 = vld [vmem:[%s1 + $0x130] sm:$0xff]
  %v69 = vld [vmem:[%s1 + $0x138] sm:$0xff]
  %v70 = vld [vmem:[%s1 + $0x140] sm:$0xff]
  %v71 = vld [vmem:[%s1 + $0x148] sm:$0xff]
  %v72 = vld [vmem:[%s1 + $0x150] sm:$0xff]
  %v73 = vld [vmem:[%s1 + $0x158] sm:$0xff]
  %v74 = vld [vmem:[%s1 + $0x160] sm:$0xff]
  %v75 = vld [vmem:[%s1 + $0x168] sm:$0xff]
  %v76 = vld [vmem:[%s1 + $0x170] sm:$0xff]
  %v77 = vld [vmem:[%s1 + $0x178] sm:$0xff]
  %v78 = vld [vmem:[%s1 + $0x180] sm:$0xff]
  %v79 = vld [vmem:[%s1 + $0x188] sm:$0xff]
  %v80 = vld [vmem:[%s1 + $0x190] sm:$0xff]
  %v81 = vld [vmem:[%s1 + $0x198] sm:$0xff]
  %v82 = vld [vmem:[%s1 + $0x1a0] sm:$0xff]
  %v83 = vld [vmem:[%s1 + $0x1a8] sm:$0xff]
  %v84 = vld [vmem:[%s1 + $0x1b0] sm:$0xff]
  %v85 = vld [vmem:[%s1 + $0x1b8] sm:$0xff]
  %v86 = vld [vmem:[%s1 + $0x1c0] sm:$0xff]
  %v87 = vld [vmem:[%s1 + $0x1c8] sm:$0xff]
  %v88 = vld [vmem:[%s1 + $0x1d0] sm:$0xff]
  %v89 = vld [vmem:[%s1 + $0x1d8] sm:$0xff]
  %v90 = vld [vmem:[%s1 + $0x1e0] sm:$0xff]
  %v91 = vld [vmem:[%s1 + $0x1e8] sm:$0xff]
  %v92 = vld [vmem:[%s1 + $0x1f0] sm:$0xff]
  %v93 = vld [vmem:[%s1 + $0x1f8] sm:$0xff]
  %v94 = vld [vmem:[%s1 + $0x200] sm:$0xff]
  %v95 = vld [vmem:[%s1 + $0x208] sm:$0xff]
  %v96 = vld [vmem:[%s1 + $0x210] sm:$0xff]
  %v97 = vld [vmem:[%s1 + $0x218] sm:$0xff]
  %v98 = vld [vmem:[%s1 + $0x220] sm:$0xff]
  %v99 = vld [vmem:[%s1 + $0x228] sm:$0xff]
  %v100 = vld [vmem:[%s1 + $0x230] sm:$0xff]
  %v101 = vld [vmem:[%s1 + $0x238] sm:$0xff]
  %v102 = vld [vmem:[%s1 + $0x240] sm:$0xff]
  %v103 = vld [vmem:[%s1 + $0x248] sm:$0xff]
  %v104 = vld [vmem:[%s1 + $0x250] sm:$0xff]
  %v105 = vld [vmem:[%s1 + $0x258] sm:$0xff]
  %v106 = vld [vmem:[%s1 + $0x260] sm:$0xff]
  %v107 = vld [vmem:[%s1 + $0x268] sm:$0xff]
  %v108 = vld [vmem:[%s1 + $0x270] sm:$0xff]
  %v109 = vld [vmem:[%s1 + $0x278] sm:$0xff]
  %v110 = vld [vmem:[%s1 + $0x280] sm:$0xff]
  %v111 = vld [vmem:[%s1 + $0x288] sm:$0xff]
  %v112 = vld [vmem:[%s1 + $0x290] sm:$0xff]
  %v113 = vld [vmem:[%s1 + $0x298] sm:$0xff]
  %v114 = vld [vmem:[%s1 + $0x2a0] sm:$0xff]
  %v115 = vld [vmem:[%s1 + $0x2a8] sm:$0xff]
  %v116 = vld [vmem:[%s1 + $0x2b0] sm:$0xff]
  %v117 = vld [vmem:[%s1 + $0x2b8] sm:$0xff]
  %v118 = vld [vmem:[%s1 + $0x2c0] sm:$0xff]
  %v119 = vld [vmem:[%s1 + $0x2c8] sm:$0xff]
  %v120 = vld [vmem:[%s1 + $0x2d0] sm:$0xff]
  %v121 = vld [vmem:[%s1 + $0x2d8] sm:$0xff]
  %v122 = vld [vmem:[%s1 + $0x2e0] sm:$0xff]
  %v123 = vld [vmem:[%s1 + $0x2e8] sm:$0xff]
  %v124 = vld [vmem:[%s1 + $0x2f0] sm:$0xff]
  %v125 = vld [vmem:[%s1 + $0x2f8] sm:$0xff]
  %v126 = vld [vmem:[%s1 + $0x300] sm:$0xff]
  %v127 = vld [vmem:[%s1 + $0x308] sm:$0xff]
  %v128 = vld [vmem:[%s1 + $0x310] sm:$0xff]
  %v129 = vld [vmem:[%s1 + $0x318] sm:$0xff]
  %v130 = vld [vmem:[%s1 + $0x320] sm:$0xff]
  %v131 = vld [vmem:[%s1 + $0x328] sm:$0xff]
  %v132 = vld [vmem:[%s1 + $0x330] sm:$0xff]
  %v133 = vld [vmem:[%s1 + $0x338] sm:$0xff]
  %v134 = vld [vmem:[%s1 + $0x340] sm:$0xff]
  %v135 = vld [vmem:[%s1 + $0x348] sm:$0xff]
  %v136 = vld [vmem:[%s1 + $0x350] sm:$0xff]
  %v137 = vld [vmem:[%s1 + $0x358] sm:$0xff]
  %v138 = vld [vmem:[%s1 + $0x360] sm:$0xff]
  %v139 = vld [vmem:[%s1 + $0x368] sm:$0xff]
  %v140 = vld [vmem:[%s1 + $0x370] sm:$0xff]
  %v141 = vld [vmem:[%s1 + $0x378] sm:$0xff]
  %v142 = vld [vmem:[%s1 + $0x380] sm:$0xff]
  %v143 = vld [vmem:[%s1 + $0x388] sm:$0xff]
  %v144 = vld [vmem:[%s1 + $0x390] sm:$0xff]
  %v145 = vld [vmem:[%s1 + $0x398] sm:$0xff]
  %v146 = vld [vmem:[%s1 + $0x3a0] sm:$0xff]
  %v147 = vld [vmem:[%s1 + $0x3a8] sm:$0xff]
  %v148 = vld [vmem:[%s1 + $0x3b0] sm:$0xff]
  %v149 = vld [vmem:[%s1 + $0x3b8] sm:$0xff]
  %v150 = vld [vmem:[%s1 + $0x3c0] sm:$0xff]
  %v151 = vld [vmem:[%s1 + $0x3c8] sm:$0xff]
  %v152 = vld [vmem:[%s1 + $0x3d0] sm:$0xff]
  %v153 = vld [vmem:[%s1 + $0x3d8] sm:$0xff]
  %v154 = vld [vmem:[%s1 + $0x3e0] sm:$0xff]
  %v155 = vld [vmem:[%s1 + $0x3e8] sm:$0xff]
  %v156 = vld [vmem:[%s1 + $0x3f0] sm:$0xff]
  %v157 = vld [vmem:[%s1 + $0x3f8] sm:$0xff]
  %v158 = vld [vmem:[%s1 + $0x400] sm:$0xff]
  %v159 = vld [vmem:[%s1 + $0x408] sm:$0xff]
  %v160 = vld [vmem:[%s1 + $0x410] sm:$0xff]
  %v161 = vld [vmem:[%s1 + $0x418] sm:$0xff]
  %v162 = vld [vmem:[%s1 + $0x420] sm:$0xff]
  %v163 = vld [vmem:[%s1 + $0x428] sm:$0xff]
  %v164 = vld [vmem:[%s1 + $0x430] sm:$0xff]
  %v165 = vld [vmem:[%s1 + $0x438] sm:$0xff]
  %v166 = vld [vmem:[%s1 + $0x440] sm:$0xff]
  %v167 = vld [vmem:[%s1 + $0x448] sm:$0xff]
  %v168 = vld [vmem:[%s1 + $0x450] sm:$0xff]
  %v169 = vld [vmem:[%s1 + $0x458] sm:$0xff]
  %v170 = vld [vmem:[%s1 + $0x460] sm:$0xff]
  %v171 = vld [vmem:[%s1 + $0x468] sm:$0xff]
  %v172 = vld [vmem:[%s1 + $0x470] sm:$0xff]
  %v173 = vld [vmem:[%s1 + $0x478] sm:$0xff]
  %v174 = vld [vmem:[%s1 + $0x480] sm:$0xff]
  %v175 = vld [vmem:[%s1 + $0x488] sm:$0xff]
  %v176 = vld [vmem:[%s1 + $0x490] sm:$0xff]
  %v177 = vld [vmem:[%s1 + $0x498] sm:$0xff]
  %v178 = vld [vmem:[%s1 + $0x4a0] sm:$0xff]
  %v179 = vld [vmem:[%s1 + $0x4a8] sm:$0xff]
  %v180 = vld [vmem:[%s1 + $0x4b0] sm:$0xff]
  %v181 = vld [vmem:[%s1 + $0x4b8] sm:$0xff]
  %v182 = vld [vmem:[%s1 + $0x4c0] sm:$0xff]
  %v183 = vld [vmem:[%s1 + $0x4c8] sm:$0xff]
  %v184 = vld [vmem:[%s1 + $0x4d0] sm:$0xff]
  %v185 = vld [vmem:[%s1 + $0x4d8] sm:$0xff]
  %v186 = vld [vmem:[%s1 + $0x4e0] sm:$0xff]
  %v187 = vld [vmem:[%s1 + $0x4e8] sm:$0xff]
  %v188 = vld [vmem:[%s1 + $0x4f0] sm:$0xff]
  %v189 = vld [vmem:[%s1 + $0x4f8] sm:$0xff]
  %v190 = vld [vmem:[%s1 + $0x500] sm:$0xff]
  %v191 = vld [vmem:[%s1 + $0x508] sm:$0xff]
  %v192 = vld [vmem:[%s1 + $0x510] sm:$0xff]
  %v193 = vld [vmem:[%s1 + $0x518] sm:$0xff]
  %v194 = vld [vmem:[%s1 + $0x520] sm:$0xff]
  %v195 = vld [vmem:[%s1 + $0x528] sm:$0xff]
  %v196 = vld [vmem:[%s1 + $0x530] sm:$0xff]
  %v197 = vld [vmem:[%s1 + $0x538] sm:$0xff]
  %v198 = vld [vmem:[%s1 + $0x540] sm:$0xff]
  %v199 = vld [vmem:[%s1 + $0x548] sm:$0xff]
  %v200 = vld [vmem:[%s1 + $0x550] sm:$0xff]
  %v201 = vld [vmem:[%s1 + $0x558] sm:$0xff]
  %v202 = vld [vmem:[%s1 + $0x560] sm:$0xff]
  %v203 = vld [vmem:[%s1 + $0x568] sm:$0xff]
  %v204 = vld [vmem:[%s1 + $0x570] sm:$0xff]
  %v205 = vld [vmem:[%s1 + $0x578] sm:$0xff]
  %v206 = vld [vmem:[%s1 + $0x580] sm:$0xff]
  %v207 = vld [vmem:[%s1 + $0x588] sm:$0xff]
  %v208 = vld [vmem:[%s1 + $0x590] sm:$0xff]
  %v209 = vld [vmem:[%s1 + $0x598] sm:$0xff]
  %v210 = vld [vmem:[%s1 + $0x5a0] sm:$0xff]
  %v211 = vld [vmem:[%s1 + $0x5a8] sm:$0xff]
  %v212 = vld [vmem:[%s1 + $0x5b0] sm:$0xff]
  %v213 = vld [vmem:[%s1 + $0x5b8] sm:$0xff]
  %v214 = vld [vmem:[%s1 + $0x5c0] sm:$0xff]
  %v215 = vld [vmem:[%s1 + $0x5c8] sm:$0xff]
  %v216 = vld [vmem:[%s1 + $0x5d0] sm:$0xff]
  %v217 = vld [vmem:[%s1 + $0x5d8] sm:$0xff]
  %v218 = vld [vmem:[%s1 + $0x5e0] sm:$0xff]
  %v219 = vld [vmem:[%s1 + $0x5e8] sm:$0xff]
  %v220 = vld [vmem:[%s1 + $0x5f0] sm:$0xff]
  %v221 = vld [vmem:[%s1 + $0x5f8] sm:$0xff]
  %v222 = vld [vmem:[%s1 + $0x600] sm:$0xff]
  %v223 = vld [vmem:[%s1 + $0x608] sm:$0xff]
  %v224 = vld [vmem:[%s1 + $0x610] sm:$0xff]
  %v225 = vld [vmem:[%s1 + $0x618] sm:$0xff]
  %v226 = vld [vmem:[%s1 + $0x620] sm:$0xff]
  %v227 = vld [vmem:[%s1 + $0x628] sm:$0xff]
  %v228 = vld [vmem:[%s1 + $0x630] sm:$0xff]
  %v229 = vld [vmem:[%s1 + $0x638] sm:$0xff]
  %v230 = vld [vmem:[%s1 + $0x640] sm:$0xff]
  %v231 = vld [vmem:[%s1 + $0x648] sm:$0xff]
  %v232 = vld [vmem:[%s1 + $0x650] sm:$0xff]
  %v233 = vld [vmem:[%s1 + $0x658] sm:$0xff]
  %v234 = vld [vmem:[%s1 + $0x660] sm:$0xff]
  %v235 = vld [vmem:[%s1 + $0x668] sm:$0xff]
  %v236 = vld [vmem:[%s1 + $0x670] sm:$0xff]
  %v237 = vld [vmem:[%s1 + $0x678] sm:$0xff]
  %v238 = vld [vmem:[%s1 + $0x680] sm:$0xff]
  %v239 = vld [vmem:[%s1 + $0x688] sm:$0xff]
  %v240 = vld [vmem:[%s1 + $0x690] sm:$0xff]
  %v241 = vld [vmem:[%s1 + $0x698] sm:$0xff]
  %v242 = vld [vmem:[%s1 + $0x6a0] sm:$0xff]
  %v243 = vld [vmem:[%s1 + $0x6a8] sm:$0xff]
  %v244 = vld [vmem:[%s1 + $0x6b0] sm:$0xff]
  %v245 = vld [vmem:[%s1 + $0x6b8] sm:$0xff]
  %v246 = vld [vmem:[%s1 + $0x6c0] sm:$0xff]
  %v247 = vld [vmem:[%s1 + $0x6c8] sm:$0xff]
  %v248 = vld [vmem:[%s1 + $0x6d0] sm:$0xff]
  %v249 = vld [vmem:[%s1 + $0x6d8] sm:$0xff]
  %v250 = vld [vmem:[%s1 + $0x6e0] sm:$0xff]
  %v251 = vld [vmem:[%s1 + $0x6e8] sm:$0xff]
  %v252 = vld [vmem:[%s1 + $0x6f0] sm:$0xff]
  %v253 = vld [vmem:[%s1 + $0x6f8] sm:$0xff]
  %v254 = vld [vmem:[%s1 + $0x700] sm:$0xff]
  %v255 = vld [vmem:[%s1 + $0x708] sm:$0xff]
  %v256 = vld [vmem:[%s1 + $0x710] sm:$0xff]
  %v257 = vld [vmem:[%s1 + $0x718] sm:$0xff]
  %v258 = vld [vmem:[%s1 + $0x720] sm:$0xff]
  %v259 = vld [vmem:[%s1 + $0x728] sm:$0xff]
  %v260 = vld [vmem:[%s1 + $0x730] sm:$0xff]
  %v261 = vld [vmem:[%s1 + $0x738] sm:$0xff]
  %v262 = vld [vmem:[%s1 + $0x740] sm:$0xff]
  %v263 = vld [vmem:[%s1 + $0x748] sm:$0xff]
  %v264 = vld [vmem:[%s1 + $0x750] sm:$0xff]
  %v265 = vld [vmem:[%s1 + $0x758] sm:$0xff]
  %v266 = vld [vmem:[%s1 + $0x760] sm:$0xff]
  %v267 = vld [vmem:[%s1 + $0x768] sm:$0xff]
  %v268 = vld [vmem:[%s1 + $0x770] sm:$0xff]
  %v269 = vld [vmem:[%s1 + $0x778] sm:$0xff]
  %v270 = vld [vmem:[%s1 + $0x780] sm:$0xff]
  %v271 = vld [vmem:[%s1 + $0x788] sm:$0xff]
  %v272 = vld [vmem:[%s1 + $0x790] sm:$0xff]
  %v273 = vld [vmem:[%s1 + $0x798] sm:$0xff]
  %v274 = vld [vmem:[%s1 + $0x7a0] sm:$0xff]
  %v275 = vld [vmem:[%s1 + $0x7a8] sm:$0xff]
  %v276 = vld [vmem:[%s1 + $0x7b0] sm:$0xff]
  %v277 = vld [vmem:[%s1 + $0x7b8] sm:$0xff]
  %v278 = vld [vmem:[%s1 + $0x7c0] sm:$0xff]
  %v279 = vld [vmem:[%s1 + $0x7c8] sm:$0xff]
  %v280 = vld [vmem:[%s1 + $0x7d0] sm:$0xff]
  %v281 = vld [vmem:[%s1 + $0x7d8] sm:$0xff]
  %v282 = vld [vmem:[%s1 + $0x7e0] sm:$0xff]
  %v283 = vld [vmem:[%s1 + $0x7e8] sm:$0xff]
  %v284 = vld [vmem:[%s1 + $0x7f0] sm:$0xff]
  %v285 = vld [vmem:[%s1 + $0x7f8] sm:$0xff]
  %v286 = vld [vmem:[%s2] sm:$0x3]
  %v288 = vlaneseq
  %v289 = vshrl.u32 %v288, 7
  %v290 = vsub.s32 0, %v289
  %v291 = vrot.slane %v286, %v290
  %v292 = vlaneseq
  %v293 = vshrl.u32 %v292, 7
  %v294 = vsub.s32 1, %v293
  %v295 = vrot.slane %v286, %v294
  %v314 = vunpack.c.l.b16 %v14
  %v315 = vunpack.c.h.b16 %v14
  %v316 = vunpack.c.l.b16 %v15
  %v317 = vunpack.c.h.b16 %v15
  %v318 = vunpack.c.l.b16 %v16
  %v319 = vunpack.c.h.b16 %v16
  %v320 = vunpack.c.l.b16 %v17
  %v321 = vunpack.c.h.b16 %v17
  %v322 = vunpack.c.l.b16 %v18
  %v323 = vunpack.c.h.b16 %v18
  %v324 = vunpack.c.l.b16 %v19
  %v325 = vunpack.c.h.b16 %v19
  %v326 = vunpack.c.l.b16 %v20
  %v327 = vunpack.c.h.b16 %v20
  %v328 = vunpack.c.l.b16 %v21
  %v329 = vunpack.c.h.b16 %v21
  %v330 = vunpack.c.l.b16 %v22
  %v331 = vunpack.c.h.b16 %v22
  %v332 = vunpack.c.l.b16 %v23
  %v333 = vunpack.c.h.b16 %v23
  %v334 = vunpack.c.l.b16 %v24
  %v335 = vunpack.c.h.b16 %v24
  %v336 = vunpack.c.l.b16 %v25
  %v337 = vunpack.c.h.b16 %v25
  %v338 = vunpack.c.l.b16 %v26
  %v339 = vunpack.c.h.b16 %v26
  %v340 = vunpack.c.l.b16 %v27
  %v341 = vunpack.c.h.b16 %v27
  %v342 = vunpack.c.l.b16 %v28
  %v343 = vunpack.c.h.b16 %v28
  %v344 = vunpack.c.l.b16 %v29
  %v345 = vunpack.c.h.b16 %v29
  %v346 = vpack.c.b16 %v330, %v314
  %v347 = vpack.c.b16 %v331, %v315
  %v348 = vpack.c.b16 %v332, %v316
  %v349 = vpack.c.b16 %v333, %v317
  %v350 = vpack.c.b16 %v334, %v318
  %v351 = vpack.c.b16 %v335, %v319
  %v352 = vpack.c.b16 %v336, %v320
  %v353 = vpack.c.b16 %v337, %v321
  %v354 = vpack.c.b16 %v338, %v322
  %v355 = vpack.c.b16 %v339, %v323
  %v356 = vpack.c.b16 %v340, %v324
  %v357 = vpack.c.b16 %v341, %v325
  %v358 = vpack.c.b16 %v342, %v326
  %v359 = vpack.c.b16 %v343, %v327
  %v360 = vpack.c.b16 %v344, %v328
  %v361 = vpack.c.b16 %v345, %v329
  %v634 = vunpack.c.l.b16 %v30
  %v635 = vunpack.c.h.b16 %v30
  %v636 = vunpack.c.l.b16 %v31
  %v637 = vunpack.c.h.b16 %v31
  %v638 = vunpack.c.l.b16 %v32
  %v639 = vunpack.c.h.b16 %v32
  %v640 = vunpack.c.l.b16 %v33
  %v641 = vunpack.c.h.b16 %v33
  %v642 = vunpack.c.l.b16 %v34
  %v643 = vunpack.c.h.b16 %v34
  %v644 = vunpack.c.l.b16 %v35
  %v645 = vunpack.c.h.b16 %v35
  %v646 = vunpack.c.l.b16 %v36
  %v647 = vunpack.c.h.b16 %v36
  %v648 = vunpack.c.l.b16 %v37
  %v649 = vunpack.c.h.b16 %v37
  %v650 = vunpack.c.l.b16 %v38
  %v651 = vunpack.c.h.b16 %v38
  %v652 = vunpack.c.l.b16 %v39
  %v653 = vunpack.c.h.b16 %v39
  %v654 = vunpack.c.l.b16 %v40
  %v655 = vunpack.c.h.b16 %v40
  %v656 = vunpack.c.l.b16 %v41
  %v657 = vunpack.c.h.b16 %v41
  %v658 = vunpack.c.l.b16 %v42
  %v659 = vunpack.c.h.b16 %v42
  %v660 = vunpack.c.l.b16 %v43
  %v661 = vunpack.c.h.b16 %v43
  %v662 = vunpack.c.l.b16 %v44
  %v663 = vunpack.c.h.b16 %v44
  %v664 = vunpack.c.l.b16 %v45
  %v665 = vunpack.c.h.b16 %v45
  %v666 = vunpack.c.l.b16 %v46
  %v667 = vunpack.c.h.b16 %v46
  %v668 = vunpack.c.l.b16 %v47
  %v669 = vunpack.c.h.b16 %v47
  %v670 = vunpack.c.l.b16 %v48
  %v671 = vunpack.c.h.b16 %v48
  %v672 = vunpack.c.l.b16 %v49
  %v673 = vunpack.c.h.b16 %v49
  %v674 = vunpack.c.l.b16 %v50
  %v675 = vunpack.c.h.b16 %v50
  %v676 = vunpack.c.l.b16 %v51
  %v677 = vunpack.c.h.b16 %v51
  %v678 = vunpack.c.l.b16 %v52
  %v679 = vunpack.c.h.b16 %v52
  %v680 = vunpack.c.l.b16 %v53
  %v681 = vunpack.c.h.b16 %v53
  %v682 = vunpack.c.l.b16 %v54
  %v683 = vunpack.c.h.b16 %v54
  %v684 = vunpack.c.l.b16 %v55
  %v685 = vunpack.c.h.b16 %v55
  %v686 = vunpack.c.l.b16 %v56
  %v687 = vunpack.c.h.b16 %v56
  %v688 = vunpack.c.l.b16 %v57
  %v689 = vunpack.c.h.b16 %v57
  %v690 = vunpack.c.l.b16 %v58
  %v691 = vunpack.c.h.b16 %v58
  %v692 = vunpack.c.l.b16 %v59
  %v693 = vunpack.c.h.b16 %v59
  %v694 = vunpack.c.l.b16 %v60
  %v695 = vunpack.c.h.b16 %v60
  %v696 = vunpack.c.l.b16 %v61
  %v697 = vunpack.c.h.b16 %v61
  %v698 = vunpack.c.l.b16 %v62
  %v699 = vunpack.c.h.b16 %v62
  %v700 = vunpack.c.l.b16 %v63
  %v701 = vunpack.c.h.b16 %v63
  %v702 = vunpack.c.l.b16 %v64
  %v703 = vunpack.c.h.b16 %v64
  %v704 = vunpack.c.l.b16 %v65
  %v705 = vunpack.c.h.b16 %v65
  %v706 = vunpack.c.l.b16 %v66
  %v707 = vunpack.c.h.b16 %v66
  %v708 = vunpack.c.l.b16 %v67
  %v709 = vunpack.c.h.b16 %v67
  %v710 = vunpack.c.l.b16 %v68
  %v711 = vunpack.c.h.b16 %v68
  %v712 = vunpack.c.l.b16 %v69
  %v713 = vunpack.c.h.b16 %v69
  %v714 = vunpack.c.l.b16 %v70
  %v715 = vunpack.c.h.b16 %v70
  %v716 = vunpack.c.l.b16 %v71
  %v717 = vunpack.c.h.b16 %v71
  %v718 = vunpack.c.l.b16 %v72
  %v719 = vunpack.c.h.b16 %v72
  %v720 = vunpack.c.l.b16 %v73
  %v721 = vunpack.c.h.b16 %v73
  %v722 = vunpack.c.l.b16 %v74
  %v723 = vunpack.c.h.b16 %v74
  %v724 = vunpack.c.l.b16 %v75
  %v725 = vunpack.c.h.b16 %v75
  %v726 = vunpack.c.l.b16 %v76
  %v727 = vunpack.c.h.b16 %v76
  %v728 = vunpack.c.l.b16 %v77
  %v729 = vunpack.c.h.b16 %v77
  %v730 = vunpack.c.l.b16 %v78
  %v731 = vunpack.c.h.b16 %v78
  %v732 = vunpack.c.l.b16 %v79
  %v733 = vunpack.c.h.b16 %v79
  %v734 = vunpack.c.l.b16 %v80
  %v735 = vunpack.c.h.b16 %v80
  %v736 = vunpack.c.l.b16 %v81
  %v737 = vunpack.c.h.b16 %v81
  %v738 = vunpack.c.l.b16 %v82
  %v739 = vunpack.c.h.b16 %v82
  %v740 = vunpack.c.l.b16 %v83
  %v741 = vunpack.c.h.b16 %v83
  %v742 = vunpack.c.l.b16 %v84
  %v743 = vunpack.c.h.b16 %v84
  %v744 = vunpack.c.l.b16 %v85
  %v745 = vunpack.c.h.b16 %v85
  %v746 = vunpack.c.l.b16 %v86
  %v747 = vunpack.c.h.b16 %v86
  %v748 = vunpack.c.l.b16 %v87
  %v749 = vunpack.c.h.b16 %v87
  %v750 = vunpack.c.l.b16 %v88
  %v751 = vunpack.c.h.b16 %v88
  %v752 = vunpack.c.l.b16 %v89
  %v753 = vunpack.c.h.b16 %v89
  %v754 = vunpack.c.l.b16 %v90
  %v755 = vunpack.c.h.b16 %v90
  %v756 = vunpack.c.l.b16 %v91
  %v757 = vunpack.c.h.b16 %v91
  %v758 = vunpack.c.l.b16 %v92
  %v759 = vunpack.c.h.b16 %v92
  %v760 = vunpack.c.l.b16 %v93
  %v761 = vunpack.c.h.b16 %v93
  %v762 = vunpack.c.l.b16 %v94
  %v763 = vunpack.c.h.b16 %v94
  %v764 = vunpack.c.l.b16 %v95
  %v765 = vunpack.c.h.b16 %v95
  %v766 = vunpack.c.l.b16 %v96
  %v767 = vunpack.c.h.b16 %v96
  %v768 = vunpack.c.l.b16 %v97
  %v769 = vunpack.c.h.b16 %v97
  %v770 = vunpack.c.l.b16 %v98
  %v771 = vunpack.c.h.b16 %v98
  %v772 = vunpack.c.l.b16 %v99
  %v773 = vunpack.c.h.b16 %v99
  %v774 = vunpack.c.l.b16 %v100
  %v775 = vunpack.c.h.b16 %v100
  %v776 = vunpack.c.l.b16 %v101
  %v777 = vunpack.c.h.b16 %v101
  %v778 = vunpack.c.l.b16 %v102
  %v779 = vunpack.c.h.b16 %v102
  %v780 = vunpack.c.l.b16 %v103
  %v781 = vunpack.c.h.b16 %v103
  %v782 = vunpack.c.l.b16 %v104
  %v783 = vunpack.c.h.b16 %v104
  %v784 = vunpack.c.l.b16 %v105
  %v785 = vunpack.c.h.b16 %v105
  %v786 = vunpack.c.l.b16 %v106
  %v787 = vunpack.c.h.b16 %v106
  %v788 = vunpack.c.l.b16 %v107
  %v789 = vunpack.c.h.b16 %v107
  %v790 = vunpack.c.l.b16 %v108
  %v791 = vunpack.c.h.b16 %v108
  %v792 = vunpack.c.l.b16 %v109
  %v793 = vunpack.c.h.b16 %v109
  %v794 = vunpack.c.l.b16 %v110
  %v795 = vunpack.c.h.b16 %v110
  %v796 = vunpack.c.l.b16 %v111
  %v797 = vunpack.c.h.b16 %v111
  %v798 = vunpack.c.l.b16 %v112
  %v799 = vunpack.c.h.b16 %v112
  %v800 = vunpack.c.l.b16 %v113
  %v801 = vunpack.c.h.b16 %v113
  %v802 = vunpack.c.l.b16 %v114
  %v803 = vunpack.c.h.b16 %v114
  %v804 = vunpack.c.l.b16 %v115
  %v805 = vunpack.c.h.b16 %v115
  %v806 = vunpack.c.l.b16 %v116
  %v807 = vunpack.c.h.b16 %v116
  %v808 = vunpack.c.l.b16 %v117
  %v809 = vunpack.c.h.b16 %v117
  %v810 = vunpack.c.l.b16 %v118
  %v811 = vunpack.c.h.b16 %v118
  %v812 = vunpack.c.l.b16 %v119
  %v813 = vunpack.c.h.b16 %v119
  %v814 = vunpack.c.l.b16 %v120
  %v815 = vunpack.c.h.b16 %v120
  %v816 = vunpack.c.l.b16 %v121
  %v817 = vunpack.c.h.b16 %v121
  %v818 = vunpack.c.l.b16 %v122
  %v819 = vunpack.c.h.b16 %v122
  %v820 = vunpack.c.l.b16 %v123
  %v821 = vunpack.c.h.b16 %v123
  %v822 = vunpack.c.l.b16 %v124
  %v823 = vunpack.c.h.b16 %v124
  %v824 = vunpack.c.l.b16 %v125
  %v825 = vunpack.c.h.b16 %v125
  %v826 = vunpack.c.l.b16 %v126
  %v827 = vunpack.c.h.b16 %v126
  %v828 = vunpack.c.l.b16 %v127
  %v829 = vunpack.c.h.b16 %v127
  %v830 = vunpack.c.l.b16 %v128
  %v831 = vunpack.c.h.b16 %v128
  %v832 = vunpack.c.l.b16 %v129
  %v833 = vunpack.c.h.b16 %v129
  %v834 = vunpack.c.l.b16 %v130
  %v835 = vunpack.c.h.b16 %v130
  %v836 = vunpack.c.l.b16 %v131
  %v837 = vunpack.c.h.b16 %v131
  %v838 = vunpack.c.l.b16 %v132
  %v839 = vunpack.c.h.b16 %v132
  %v840 = vunpack.c.l.b16 %v133
  %v841 = vunpack.c.h.b16 %v133
  %v842 = vunpack.c.l.b16 %v134
  %v843 = vunpack.c.h.b16 %v134
  %v844 = vunpack.c.l.b16 %v135
  %v845 = vunpack.c.h.b16 %v135
  %v846 = vunpack.c.l.b16 %v136
  %v847 = vunpack.c.h.b16 %v136
  %v848 = vunpack.c.l.b16 %v137
  %v849 = vunpack.c.h.b16 %v137
  %v850 = vunpack.c.l.b16 %v138
  %v851 = vunpack.c.h.b16 %v138
  %v852 = vunpack.c.l.b16 %v139
  %v853 = vunpack.c.h.b16 %v139
  %v854 = vunpack.c.l.b16 %v140
  %v855 = vunpack.c.h.b16 %v140
  %v856 = vunpack.c.l.b16 %v141
  %v857 = vunpack.c.h.b16 %v141
  %v858 = vunpack.c.l.b16 %v142
  %v859 = vunpack.c.h.b16 %v142
  %v860 = vunpack.c.l.b16 %v143
  %v861 = vunpack.c.h.b16 %v143
  %v862 = vunpack.c.l.b16 %v144
  %v863 = vunpack.c.h.b16 %v144
  %v864 = vunpack.c.l.b16 %v145
  %v865 = vunpack.c.h.b16 %v145
  %v866 = vunpack.c.l.b16 %v146
  %v867 = vunpack.c.h.b16 %v146
  %v868 = vunpack.c.l.b16 %v147
  %v869 = vunpack.c.h.b16 %v147
  %v870 = vunpack.c.l.b16 %v148
  %v871 = vunpack.c.h.b16 %v148
  %v872 = vunpack.c.l.b16 %v149
  %v873 = vunpack.c.h.b16 %v149
  %v874 = vunpack.c.l.b16 %v150
  %v875 = vunpack.c.h.b16 %v150
  %v876 = vunpack.c.l.b16 %v151
  %v877 = vunpack.c.h.b16 %v151
  %v878 = vunpack.c.l.b16 %v152
  %v879 = vunpack.c.h.b16 %v152
  %v880 = vunpack.c.l.b16 %v153
  %v881 = vunpack.c.h.b16 %v153
  %v882 = vunpack.c.l.b16 %v154
  %v883 = vunpack.c.h.b16 %v154
  %v884 = vunpack.c.l.b16 %v155
  %v885 = vunpack.c.h.b16 %v155
  %v886 = vunpack.c.l.b16 %v156
  %v887 = vunpack.c.h.b16 %v156
  %v888 = vunpack.c.l.b16 %v157
  %v889 = vunpack.c.h.b16 %v157
  %v890 = vunpack.c.l.b16 %v158
  %v891 = vunpack.c.h.b16 %v158
  %v892 = vunpack.c.l.b16 %v159
  %v893 = vunpack.c.h.b16 %v159
  %v894 = vunpack.c.l.b16 %v160
  %v895 = vunpack.c.h.b16 %v160
  %v896 = vunpack.c.l.b16 %v161
  %v897 = vunpack.c.h.b16 %v161
  %v898 = vunpack.c.l.b16 %v162
  %v899 = vunpack.c.h.b16 %v162
  %v900 = vunpack.c.l.b16 %v163
  %v901 = vunpack.c.h.b16 %v163
  %v902 = vunpack.c.l.b16 %v164
  %v903 = vunpack.c.h.b16 %v164
  %v904 = vunpack.c.l.b16 %v165
  %v905 = vunpack.c.h.b16 %v165
  %v906 = vunpack.c.l.b16 %v166
  %v907 = vunpack.c.h.b16 %v166
  %v908 = vunpack.c.l.b16 %v167
  %v909 = vunpack.c.h.b16 %v167
  %v910 = vunpack.c.l.b16 %v168
  %v911 = vunpack.c.h.b16 %v168
  %v912 = vunpack.c.l.b16 %v169
  %v913 = vunpack.c.h.b16 %v169
  %v914 = vunpack.c.l.b16 %v170
  %v915 = vunpack.c.h.b16 %v170
  %v916 = vunpack.c.l.b16 %v171
  %v917 = vunpack.c.h.b16 %v171
  %v918 = vunpack.c.l.b16 %v172
  %v919 = vunpack.c.h.b16 %v172
  %v920 = vunpack.c.l.b16 %v173
  %v921 = vunpack.c.h.b16 %v173
  %v922 = vunpack.c.l.b16 %v174
  %v923 = vunpack.c.h.b16 %v174
  %v924 = vunpack.c.l.b16 %v175
  %v925 = vunpack.c.h.b16 %v175
  %v926 = vunpack.c.l.b16 %v176
  %v927 = vunpack.c.h.b16 %v176
  %v928 = vunpack.c.l.b16 %v177
  %v929 = vunpack.c.h.b16 %v177
  %v930 = vunpack.c.l.b16 %v178
  %v931 = vunpack.c.h.b16 %v178
  %v932 = vunpack.c.l.b16 %v179
  %v933 = vunpack.c.h.b16 %v179
  %v934 = vunpack.c.l.b16 %v180
  %v935 = vunpack.c.h.b16 %v180
  %v936 = vunpack.c.l.b16 %v181
  %v937 = vunpack.c.h.b16 %v181
  %v938 = vunpack.c.l.b16 %v182
  %v939 = vunpack.c.h.b16 %v182
  %v940 = vunpack.c.l.b16 %v183
  %v941 = vunpack.c.h.b16 %v183
  %v942 = vunpack.c.l.b16 %v184
  %v943 = vunpack.c.h.b16 %v184
  %v944 = vunpack.c.l.b16 %v185
  %v945 = vunpack.c.h.b16 %v185
  %v946 = vunpack.c.l.b16 %v186
  %v947 = vunpack.c.h.b16 %v186
  %v948 = vunpack.c.l.b16 %v187
  %v949 = vunpack.c.h.b16 %v187
  %v950 = vunpack.c.l.b16 %v188
  %v951 = vunpack.c.h.b16 %v188
  %v952 = vunpack.c.l.b16 %v189
  %v953 = vunpack.c.h.b16 %v189
  %v954 = vunpack.c.l.b16 %v190
  %v955 = vunpack.c.h.b16 %v190
  %v956 = vunpack.c.l.b16 %v191
  %v957 = vunpack.c.h.b16 %v191
  %v958 = vunpack.c.l.b16 %v192
  %v959 = vunpack.c.h.b16 %v192
  %v960 = vunpack.c.l.b16 %v193
  %v961 = vunpack.c.h.b16 %v193
  %v962 = vunpack.c.l.b16 %v194
  %v963 = vunpack.c.h.b16 %v194
  %v964 = vunpack.c.l.b16 %v195
  %v965 = vunpack.c.h.b16 %v195
  %v966 = vunpack.c.l.b16 %v196
  %v967 = vunpack.c.h.b16 %v196
  %v968 = vunpack.c.l.b16 %v197
  %v969 = vunpack.c.h.b16 %v197
  %v970 = vunpack.c.l.b16 %v198
  %v971 = vunpack.c.h.b16 %v198
  %v972 = vunpack.c.l.b16 %v199
  %v973 = vunpack.c.h.b16 %v199
  %v974 = vunpack.c.l.b16 %v200
  %v975 = vunpack.c.h.b16 %v200
  %v976 = vunpack.c.l.b16 %v201
  %v977 = vunpack.c.h.b16 %v201
  %v978 = vunpack.c.l.b16 %v202
  %v979 = vunpack.c.h.b16 %v202
  %v980 = vunpack.c.l.b16 %v203
  %v981 = vunpack.c.h.b16 %v203
  %v982 = vunpack.c.l.b16 %v204
  %v983 = vunpack.c.h.b16 %v204
  %v984 = vunpack.c.l.b16 %v205
  %v985 = vunpack.c.h.b16 %v205
  %v986 = vunpack.c.l.b16 %v206
  %v987 = vunpack.c.h.b16 %v206
  %v988 = vunpack.c.l.b16 %v207
  %v989 = vunpack.c.h.b16 %v207
  %v990 = vunpack.c.l.b16 %v208
  %v991 = vunpack.c.h.b16 %v208
  %v992 = vunpack.c.l.b16 %v209
  %v993 = vunpack.c.h.b16 %v209
  %v994 = vunpack.c.l.b16 %v210
  %v995 = vunpack.c.h.b16 %v210
  %v996 = vunpack.c.l.b16 %v211
  %v997 = vunpack.c.h.b16 %v211
  %v998 = vunpack.c.l.b16 %v212
  %v999 = vunpack.c.h.b16 %v212
  %v1000 = vunpack.c.l.b16 %v213
  %v1001 = vunpack.c.h.b16 %v213
  %v1002 = vunpack.c.l.b16 %v214
  %v1003 = vunpack.c.h.b16 %v214
  %v1004 = vunpack.c.l.b16 %v215
  %v1005 = vunpack.c.h.b16 %v215
  %v1006 = vunpack.c.l.b16 %v216
  %v1007 = vunpack.c.h.b16 %v216
  %v1008 = vunpack.c.l.b16 %v217
  %v1009 = vunpack.c.h.b16 %v217
  %v1010 = vunpack.c.l.b16 %v218
  %v1011 = vunpack.c.h.b16 %v218
  %v1012 = vunpack.c.l.b16 %v219
  %v1013 = vunpack.c.h.b16 %v219
  %v1014 = vunpack.c.l.b16 %v220
  %v1015 = vunpack.c.h.b16 %v220
  %v1016 = vunpack.c.l.b16 %v221
  %v1017 = vunpack.c.h.b16 %v221
  %v1018 = vunpack.c.l.b16 %v222
  %v1019 = vunpack.c.h.b16 %v222
  %v1020 = vunpack.c.l.b16 %v223
  %v1021 = vunpack.c.h.b16 %v223
  %v1022 = vunpack.c.l.b16 %v224
  %v1023 = vunpack.c.h.b16 %v224
  %v1024 = vunpack.c.l.b16 %v225
  %v1025 = vunpack.c.h.b16 %v225
  %v1026 = vunpack.c.l.b16 %v226
  %v1027 = vunpack.c.h.b16 %v226
  %v1028 = vunpack.c.l.b16 %v227
  %v1029 = vunpack.c.h.b16 %v227
  %v1030 = vunpack.c.l.b16 %v228
  %v1031 = vunpack.c.h.b16 %v228
  %v1032 = vunpack.c.l.b16 %v229
  %v1033 = vunpack.c.h.b16 %v229
  %v1034 = vunpack.c.l.b16 %v230
  %v1035 = vunpack.c.h.b16 %v230
  %v1036 = vunpack.c.l.b16 %v231
  %v1037 = vunpack.c.h.b16 %v231
  %v1038 = vunpack.c.l.b16 %v232
  %v1039 = vunpack.c.h.b16 %v232
  %v1040 = vunpack.c.l.b16 %v233
  %v1041 = vunpack.c.h.b16 %v233
  %v1042 = vunpack.c.l.b16 %v234
  %v1043 = vunpack.c.h.b16 %v234
  %v1044 = vunpack.c.l.b16 %v235
  %v1045 = vunpack.c.h.b16 %v235
  %v1046 = vunpack.c.l.b16 %v236
  %v1047 = vunpack.c.h.b16 %v236
  %v1048 = vunpack.c.l.b16 %v237
  %v1049 = vunpack.c.h.b16 %v237
  %v1050 = vunpack.c.l.b16 %v238
  %v1051 = vunpack.c.h.b16 %v238
  %v1052 = vunpack.c.l.b16 %v239
  %v1053 = vunpack.c.h.b16 %v239
  %v1054 = vunpack.c.l.b16 %v240
  %v1055 = vunpack.c.h.b16 %v240
  %v1056 = vunpack.c.l.b16 %v241
  %v1057 = vunpack.c.h.b16 %v241
  %v1058 = vunpack.c.l.b16 %v242
  %v1059 = vunpack.c.h.b16 %v242
  %v1060 = vunpack.c.l.b16 %v243
  %v1061 = vunpack.c.h.b16 %v243
  %v1062 = vunpack.c.l.b16 %v244
  %v1063 = vunpack.c.h.b16 %v244
  %v1064 = vunpack.c.l.b16 %v245
  %v1065 = vunpack.c.h.b16 %v245
  %v1066 = vunpack.c.l.b16 %v246
  %v1067 = vunpack.c.h.b16 %v246
  %v1068 = vunpack.c.l.b16 %v247
  %v1069 = vunpack.c.h.b16 %v247
  %v1070 = vunpack.c.l.b16 %v248
  %v1071 = vunpack.c.h.b16 %v248
  %v1072 = vunpack.c.l.b16 %v249
  %v1073 = vunpack.c.h.b16 %v249
  %v1074 = vunpack.c.l.b16 %v250
  %v1075 = vunpack.c.h.b16 %v250
  %v1076 = vunpack.c.l.b16 %v251
  %v1077 = vunpack.c.h.b16 %v251
  %v1078 = vunpack.c.l.b16 %v252
  %v1079 = vunpack.c.h.b16 %v252
  %v1080 = vunpack.c.l.b16 %v253
  %v1081 = vunpack.c.h.b16 %v253
  %v1082 = vunpack.c.l.b16 %v254
  %v1083 = vunpack.c.h.b16 %v254
  %v1084 = vunpack.c.l.b16 %v255
  %v1085 = vunpack.c.h.b16 %v255
  %v1086 = vunpack.c.l.b16 %v256
  %v1087 = vunpack.c.h.b16 %v256
  %v1088 = vunpack.c.l.b16 %v257
  %v1089 = vunpack.c.h.b16 %v257
  %v1090 = vunpack.c.l.b16 %v258
  %v1091 = vunpack.c.h.b16 %v258
  %v1092 = vunpack.c.l.b16 %v259
  %v1093 = vunpack.c.h.b16 %v259
  %v1094 = vunpack.c.l.b16 %v260
  %v1095 = vunpack.c.h.b16 %v260
  %v1096 = vunpack.c.l.b16 %v261
  %v1097 = vunpack.c.h.b16 %v261
  %v1098 = vunpack.c.l.b16 %v262
  %v1099 = vunpack.c.h.b16 %v262
  %v1100 = vunpack.c.l.b16 %v263
  %v1101 = vunpack.c.h.b16 %v263
  %v1102 = vunpack.c.l.b16 %v264
  %v1103 = vunpack.c.h.b16 %v264
  %v1104 = vunpack.c.l.b16 %v265
  %v1105 = vunpack.c.h.b16 %v265
  %v1106 = vunpack.c.l.b16 %v266
  %v1107 = vunpack.c.h.b16 %v266
  %v1108 = vunpack.c.l.b16 %v267
  %v1109 = vunpack.c.h.b16 %v267
  %v1110 = vunpack.c.l.b16 %v268
  %v1111 = vunpack.c.h.b16 %v268
  %v1112 = vunpack.c.l.b16 %v269
  %v1113 = vunpack.c.h.b16 %v269
  %v1114 = vunpack.c.l.b16 %v270
  %v1115 = vunpack.c.h.b16 %v270
  %v1116 = vunpack.c.l.b16 %v271
  %v1117 = vunpack.c.h.b16 %v271
  %v1118 = vunpack.c.l.b16 %v272
  %v1119 = vunpack.c.h.b16 %v272
  %v1120 = vunpack.c.l.b16 %v273
  %v1121 = vunpack.c.h.b16 %v273
  %v1122 = vunpack.c.l.b16 %v274
  %v1123 = vunpack.c.h.b16 %v274
  %v1124 = vunpack.c.l.b16 %v275
  %v1125 = vunpack.c.h.b16 %v275
  %v1126 = vunpack.c.l.b16 %v276
  %v1127 = vunpack.c.h.b16 %v276
  %v1128 = vunpack.c.l.b16 %v277
  %v1129 = vunpack.c.h.b16 %v277
  %v1130 = vunpack.c.l.b16 %v278
  %v1131 = vunpack.c.h.b16 %v278
  %v1132 = vunpack.c.l.b16 %v279
  %v1133 = vunpack.c.h.b16 %v279
  %v1134 = vunpack.c.l.b16 %v280
  %v1135 = vunpack.c.h.b16 %v280
  %v1136 = vunpack.c.l.b16 %v281
  %v1137 = vunpack.c.h.b16 %v281
  %v1138 = vunpack.c.l.b16 %v282
  %v1139 = vunpack.c.h.b16 %v282
  %v1140 = vunpack.c.l.b16 %v283
  %v1141 = vunpack.c.h.b16 %v283
  %v1142 = vunpack.c.l.b16 %v284
  %v1143 = vunpack.c.h.b16 %v284
  %v1144 = vunpack.c.l.b16 %v285
  %v1145 = vunpack.c.h.b16 %v285
  %v1146 = vpack.c.b16 %v636, %v634
  %v1147 = vpack.c.b16 %v637, %v635
  %v1148 = vpack.c.b16 %v640, %v638
  %v1149 = vpack.c.b16 %v641, %v639
  %v1150 = vpack.c.b16 %v644, %v642
  %v1151 = vpack.c.b16 %v645, %v643
  %v1152 = vpack.c.b16 %v648, %v646
  %v1153 = vpack.c.b16 %v649, %v647
  %v1154 = vpack.c.b16 %v652, %v650
  %v1155 = vpack.c.b16 %v653, %v651
  %v1156 = vpack.c.b16 %v656, %v654
  %v1157 = vpack.c.b16 %v657, %v655
  %v1158 = vpack.c.b16 %v660, %v658
  %v1159 = vpack.c.b16 %v661, %v659
  %v1160 = vpack.c.b16 %v664, %v662
  %v1161 = vpack.c.b16 %v665, %v663
  %v1162 = vpack.c.b16 %v668, %v666
  %v1163 = vpack.c.b16 %v669, %v667
  %v1164 = vpack.c.b16 %v672, %v670
  %v1165 = vpack.c.b16 %v673, %v671
  %v1166 = vpack.c.b16 %v676, %v674
  %v1167 = vpack.c.b16 %v677, %v675
  %v1168 = vpack.c.b16 %v680, %v678
  %v1169 = vpack.c.b16 %v681, %v679
  %v1170 = vpack.c.b16 %v684, %v682
  %v1171 = vpack.c.b16 %v685, %v683
  %v1172 = vpack.c.b16 %v688, %v686
  %v1173 = vpack.c.b16 %v689, %v687
  %v1174 = vpack.c.b16 %v692, %v690
  %v1175 = vpack.c.b16 %v693, %v691
  %v1176 = vpack.c.b16 %v696, %v694
  %v1177 = vpack.c.b16 %v697, %v695
  %v1178 = vpack.c.b16 %v700, %v698
  %v1179 = vpack.c.b16 %v701, %v699
  %v1180 = vpack.c.b16 %v704, %v702
  %v1181 = vpack.c.b16 %v705, %v703
  %v1182 = vpack.c.b16 %v708, %v706
  %v1183 = vpack.c.b16 %v709, %v707
  %v1184 = vpack.c.b16 %v712, %v710
  %v1185 = vpack.c.b16 %v713, %v711
  %v1186 = vpack.c.b16 %v716, %v714
  %v1187 = vpack.c.b16 %v717, %v715
  %v1188 = vpack.c.b16 %v720, %v718
  %v1189 = vpack.c.b16 %v721, %v719
  %v1190 = vpack.c.b16 %v724, %v722
  %v1191 = vpack.c.b16 %v725, %v723
  %v1192 = vpack.c.b16 %v728, %v726
  %v1193 = vpack.c.b16 %v729, %v727
  %v1194 = vpack.c.b16 %v732, %v730
  %v1195 = vpack.c.b16 %v733, %v731
  %v1196 = vpack.c.b16 %v736, %v734
  %v1197 = vpack.c.b16 %v737, %v735
  %v1198 = vpack.c.b16 %v740, %v738
  %v1199 = vpack.c.b16 %v741, %v739
  %v1200 = vpack.c.b16 %v744, %v742
  %v1201 = vpack.c.b16 %v745, %v743
  %v1202 = vpack.c.b16 %v748, %v746
  %v1203 = vpack.c.b16 %v749, %v747
  %v1204 = vpack.c.b16 %v752, %v750
  %v1205 = vpack.c.b16 %v753, %v751
  %v1206 = vpack.c.b16 %v756, %v754
  %v1207 = vpack.c.b16 %v757, %v755
  %v1208 = vpack.c.b16 %v760, %v758
  %v1209 = vpack.c.b16 %v761, %v759
  %v1210 = vpack.c.b16 %v764, %v762
  %v1211 = vpack.c.b16 %v765, %v763
  %v1212 = vpack.c.b16 %v768, %v766
  %v1213 = vpack.c.b16 %v769, %v767
  %v1214 = vpack.c.b16 %v772, %v770
  %v1215 = vpack.c.b16 %v773, %v771
  %v1216 = vpack.c.b16 %v776, %v774
  %v1217 = vpack.c.b16 %v777, %v775
  %v1218 = vpack.c.b16 %v780, %v778
  %v1219 = vpack.c.b16 %v781, %v779
  %v1220 = vpack.c.b16 %v784, %v782
  %v1221 = vpack.c.b16 %v785, %v783
  %v1222 = vpack.c.b16 %v788, %v786
  %v1223 = vpack.c.b16 %v789, %v787
  %v1224 = vpack.c.b16 %v792, %v790
  %v1225 = vpack.c.b16 %v793, %v791
  %v1226 = vpack.c.b16 %v796, %v794
  %v1227 = vpack.c.b16 %v797, %v795
  %v1228 = vpack.c.b16 %v800, %v798
  %v1229 = vpack.c.b16 %v801, %v799
  %v1230 = vpack.c.b16 %v804, %v802
  %v1231 = vpack.c.b16 %v805, %v803
  %v1232 = vpack.c.b16 %v808, %v806
  %v1233 = vpack.c.b16 %v809, %v807
  %v1234 = vpack.c.b16 %v812, %v810
  %v1235 = vpack.c.b16 %v813, %v811
  %v1236 = vpack.c.b16 %v816, %v814
  %v1237 = vpack.c.b16 %v817, %v815
  %v1238 = vpack.c.b16 %v820, %v818
  %v1239 = vpack.c.b16 %v821, %v819
  %v1240 = vpack.c.b16 %v824, %v822
  %v1241 = vpack.c.b16 %v825, %v823
  %v1242 = vpack.c.b16 %v828, %v826
  %v1243 = vpack.c.b16 %v829, %v827
  %v1244 = vpack.c.b16 %v832, %v830
  %v1245 = vpack.c.b16 %v833, %v831
  %v1246 = vpack.c.b16 %v836, %v834
  %v1247 = vpack.c.b16 %v837, %v835
  %v1248 = vpack.c.b16 %v840, %v838
  %v1249 = vpack.c.b16 %v841, %v839
  %v1250 = vpack.c.b16 %v844, %v842
  %v1251 = vpack.c.b16 %v845, %v843
  %v1252 = vpack.c.b16 %v848, %v846
  %v1253 = vpack.c.b16 %v849, %v847
  %v1254 = vpack.c.b16 %v852, %v850
  %v1255 = vpack.c.b16 %v853, %v851
  %v1256 = vpack.c.b16 %v856, %v854
  %v1257 = vpack.c.b16 %v857, %v855
  %v1258 = vpack.c.b16 %v860, %v858
  %v1259 = vpack.c.b16 %v861, %v859
  %v1260 = vpack.c.b16 %v864, %v862
  %v1261 = vpack.c.b16 %v865, %v863
  %v1262 = vpack.c.b16 %v868, %v866
  %v1263 = vpack.c.b16 %v869, %v867
  %v1264 = vpack.c.b16 %v872, %v870
  %v1265 = vpack.c.b16 %v873, %v871
  %v1266 = vpack.c.b16 %v876, %v874
  %v1267 = vpack.c.b16 %v877, %v875
  %v1268 = vpack.c.b16 %v880, %v878
  %v1269 = vpack.c.b16 %v881, %v879
  %v1270 = vpack.c.b16 %v884, %v882
  %v1271 = vpack.c.b16 %v885, %v883
  %v1272 = vpack.c.b16 %v888, %v886
  %v1273 = vpack.c.b16 %v889, %v887
  %v1274 = vpack.c.b16 %v892, %v890
  %v1275 = vpack.c.b16 %v893, %v891
  %v1276 = vpack.c.b16 %v896, %v894
  %v1277 = vpack.c.b16 %v897, %v895
  %v1278 = vpack.c.b16 %v900, %v898
  %v1279 = vpack.c.b16 %v901, %v899
  %v1280 = vpack.c.b16 %v904, %v902
  %v1281 = vpack.c.b16 %v905, %v903
  %v1282 = vpack.c.b16 %v908, %v906
  %v1283 = vpack.c.b16 %v909, %v907
  %v1284 = vpack.c.b16 %v912, %v910
  %v1285 = vpack.c.b16 %v913, %v911
  %v1286 = vpack.c.b16 %v916, %v914
  %v1287 = vpack.c.b16 %v917, %v915
  %v1288 = vpack.c.b16 %v920, %v918
  %v1289 = vpack.c.b16 %v921, %v919
  %v1290 = vpack.c.b16 %v924, %v922
  %v1291 = vpack.c.b16 %v925, %v923
  %v1292 = vpack.c.b16 %v928, %v926
  %v1293 = vpack.c.b16 %v929, %v927
  %v1294 = vpack.c.b16 %v932, %v930
  %v1295 = vpack.c.b16 %v933, %v931
  %v1296 = vpack.c.b16 %v936, %v934
  %v1297 = vpack.c.b16 %v937, %v935
  %v1298 = vpack.c.b16 %v940, %v938
  %v1299 = vpack.c.b16 %v941, %v939
  %v1300 = vpack.c.b16 %v944, %v942
  %v1301 = vpack.c.b16 %v945, %v943
  %v1302 = vpack.c.b16 %v948, %v946
  %v1303 = vpack.c.b16 %v949, %v947
  %v1304 = vpack.c.b16 %v952, %v950
  %v1305 = vpack.c.b16 %v953, %v951
  %v1306 = vpack.c.b16 %v956, %v954
  %v1307 = vpack.c.b16 %v957, %v955
  %v1308 = vpack.c.b16 %v960, %v958
  %v1309 = vpack.c.b16 %v961, %v959
  %v1310 = vpack.c.b16 %v964, %v962
  %v1311 = vpack.c.b16 %v965, %v963
  %v1312 = vpack.c.b16 %v968, %v966
  %v1313 = vpack.c.b16 %v969, %v967
  %v1314 = vpack.c.b16 %v972, %v970
  %v1315 = vpack.c.b16 %v973, %v971
  %v1316 = vpack.c.b16 %v976, %v974
  %v1317 = vpack.c.b16 %v977, %v975
  %v1318 = vpack.c.b16 %v980, %v978
  %v1319 = vpack.c.b16 %v981, %v979
  %v1320 = vpack.c.b16 %v984, %v982
  %v1321 = vpack.c.b16 %v985, %v983
  %v1322 = vpack.c.b16 %v988, %v986
  %v1323 = vpack.c.b16 %v989, %v987
  %v1324 = vpack.c.b16 %v992, %v990
  %v1325 = vpack.c.b16 %v993, %v991
  %v1326 = vpack.c.b16 %v996, %v994
  %v1327 = vpack.c.b16 %v997, %v995
  %v1328 = vpack.c.b16 %v1000, %v998
  %v1329 = vpack.c.b16 %v1001, %v999
  %v1330 = vpack.c.b16 %v1004, %v1002
  %v1331 = vpack.c.b16 %v1005, %v1003
  %v1332 = vpack.c.b16 %v1008, %v1006
  %v1333 = vpack.c.b16 %v1009, %v1007
  %v1334 = vpack.c.b16 %v1012, %v1010
  %v1335 = vpack.c.b16 %v1013, %v1011
  %v1336 = vpack.c.b16 %v1016, %v1014
  %v1337 = vpack.c.b16 %v1017, %v1015
  %v1338 = vpack.c.b16 %v1020, %v1018
  %v1339 = vpack.c.b16 %v1021, %v1019
  %v1340 = vpack.c.b16 %v1024, %v1022
  %v1341 = vpack.c.b16 %v1025, %v1023
  %v1342 = vpack.c.b16 %v1028, %v1026
  %v1343 = vpack.c.b16 %v1029, %v1027
  %v1344 = vpack.c.b16 %v1032, %v1030
  %v1345 = vpack.c.b16 %v1033, %v1031
  %v1346 = vpack.c.b16 %v1036, %v1034
  %v1347 = vpack.c.b16 %v1037, %v1035
  %v1348 = vpack.c.b16 %v1040, %v1038
  %v1349 = vpack.c.b16 %v1041, %v1039
  %v1350 = vpack.c.b16 %v1044, %v1042
  %v1351 = vpack.c.b16 %v1045, %v1043
  %v1352 = vpack.c.b16 %v1048, %v1046
  %v1353 = vpack.c.b16 %v1049, %v1047
  %v1354 = vpack.c.b16 %v1052, %v1050
  %v1355 = vpack.c.b16 %v1053, %v1051
  %v1356 = vpack.c.b16 %v1056, %v1054
  %v1357 = vpack.c.b16 %v1057, %v1055
  %v1358 = vpack.c.b16 %v1060, %v1058
  %v1359 = vpack.c.b16 %v1061, %v1059
  %v1360 = vpack.c.b16 %v1064, %v1062
  %v1361 = vpack.c.b16 %v1065, %v1063
  %v1362 = vpack.c.b16 %v1068, %v1066
  %v1363 = vpack.c.b16 %v1069, %v1067
  %v1364 = vpack.c.b16 %v1072, %v1070
  %v1365 = vpack.c.b16 %v1073, %v1071
  %v1366 = vpack.c.b16 %v1076, %v1074
  %v1367 = vpack.c.b16 %v1077, %v1075
  %v1368 = vpack.c.b16 %v1080, %v1078
  %v1369 = vpack.c.b16 %v1081, %v1079
  %v1370 = vpack.c.b16 %v1084, %v1082
  %v1371 = vpack.c.b16 %v1085, %v1083
  %v1372 = vpack.c.b16 %v1088, %v1086
  %v1373 = vpack.c.b16 %v1089, %v1087
  %v1374 = vpack.c.b16 %v1092, %v1090
  %v1375 = vpack.c.b16 %v1093, %v1091
  %v1376 = vpack.c.b16 %v1096, %v1094
  %v1377 = vpack.c.b16 %v1097, %v1095
  %v1378 = vpack.c.b16 %v1100, %v1098
  %v1379 = vpack.c.b16 %v1101, %v1099
  %v1380 = vpack.c.b16 %v1104, %v1102
  %v1381 = vpack.c.b16 %v1105, %v1103
  %v1382 = vpack.c.b16 %v1108, %v1106
  %v1383 = vpack.c.b16 %v1109, %v1107
  %v1384 = vpack.c.b16 %v1112, %v1110
  %v1385 = vpack.c.b16 %v1113, %v1111
  %v1386 = vpack.c.b16 %v1116, %v1114
  %v1387 = vpack.c.b16 %v1117, %v1115
  %v1388 = vpack.c.b16 %v1120, %v1118
  %v1389 = vpack.c.b16 %v1121, %v1119
  %v1390 = vpack.c.b16 %v1124, %v1122
  %v1391 = vpack.c.b16 %v1125, %v1123
  %v1392 = vpack.c.b16 %v1128, %v1126
  %v1393 = vpack.c.b16 %v1129, %v1127
  %v1394 = vpack.c.b16 %v1132, %v1130
  %v1395 = vpack.c.b16 %v1133, %v1131
  %v1396 = vpack.c.b16 %v1136, %v1134
  %v1397 = vpack.c.b16 %v1137, %v1135
  %v1398 = vpack.c.b16 %v1140, %v1138
  %v1399 = vpack.c.b16 %v1141, %v1139
  %v1400 = vpack.c.b16 %v1144, %v1142
  %v1401 = vpack.c.b16 %v1145, %v1143
  %1658 = vmatprep.subr.bf16.mxu0 %v1161
  %1659 = vmatpush1.bf16.msra.mxu0 %v1160
  %1660 = vmatprep.subr.bf16.mxu0 %v1159
  %1661 = vmatpush1.bf16.msra.mxu0 %v1158
  %1662 = vmatprep.subr.bf16.mxu0 %v1157
  %1663 = vmatpush1.bf16.msra.mxu0 %v1156
  %1664 = vmatprep.subr.bf16.mxu0 %v1155
  %1665 = vmatpush1.bf16.msra.mxu0 %v1154
  %1666 = vmatprep.subr.bf16.mxu0 %v1153
  %1667 = vmatpush1.bf16.msra.mxu0 %v1152
  %1668 = vmatprep.subr.bf16.mxu0 %v1151
  %1669 = vmatpush1.bf16.msra.mxu0 %v1150
  %1670 = vmatprep.subr.bf16.mxu0 %v1149
  %1671 = vmatpush1.bf16.msra.mxu0 %v1148
  %1672 = vmatprep.subr.bf16.mxu0 %v1147
  %1673 = vmatpush1.bf16.msra.mxu0 %v1146
  %1674 = vmatprep.subr.bf16.mxu0 %v1177
  %1675 = vmatpush2.bf16.msra.mxu0 %v1176
  %1676 = vmatprep.subr.bf16.mxu0 %v1175
  %1677 = vmatpush2.bf16.msra.mxu0 %v1174
  %1678 = vmatprep.subr.bf16.mxu0 %v1173
  %1679 = vmatpush2.bf16.msra.mxu0 %v1172
  %1680 = vmatprep.subr.bf16.mxu0 %v1171
  %1681 = vmatpush2.bf16.msra.mxu0 %v1170
  %1682 = vmatprep.subr.bf16.mxu0 %v1169
  %1683 = vmatpush2.bf16.msra.mxu0 %v1168
  %1684 = vmatprep.subr.bf16.mxu0 %v1167
  %1685 = vmatpush2.bf16.msra.mxu0 %v1166
  %1686 = vmatprep.subr.bf16.mxu0 %v1165
  %1687 = vmatpush2.bf16.msra.mxu0 %v1164
  %1688 = vmatprep.subr.bf16.mxu0 %v1163
  %1689 = vmatpush2.bf16.msra.mxu0 %v1162
  %1690 = vmatprep.mubr.bf16.mxu0 %v347
  %1691 = vmatmul.mubr.bf16.gmra.mxu0 %v346
  %v1692 = vpop.f32.mrf.mxu0
  %v1693 = vadd.f32 %v291, %v1692
  %v1694 = vpop.f32.mrf.mxu0
  %v1695 = vadd.f32 %v295, %v1694
  %v1696 = vpop.f32.mrf.mxu0
  %v1697 = vadd.f32 %v291, %v1696
  %v1698 = vpop.f32.mrf.mxu0
  %v1699 = vadd.f32 %v295, %v1698
  %1700 = vdwg.mxu0
  %1701 = vmatprep.subr.bf16.mxu0 %v1193
  %1702 = vmatpush1.bf16.msra.mxu0 %v1192
  %1703 = vmatprep.subr.bf16.mxu0 %v1191
  %1704 = vmatpush1.bf16.msra.mxu0 %v1190
  %1705 = vmatprep.subr.bf16.mxu0 %v1189
  %1706 = vmatpush1.bf16.msra.mxu0 %v1188
  %1707 = vmatprep.subr.bf16.mxu0 %v1187
  %1708 = vmatpush1.bf16.msra.mxu0 %v1186
  %1709 = vmatprep.subr.bf16.mxu0 %v1185
  %1710 = vmatpush1.bf16.msra.mxu0 %v1184
  %1711 = vmatprep.subr.bf16.mxu0 %v1183
  %1712 = vmatpush1.bf16.msra.mxu0 %v1182
  %1713 = vmatprep.subr.bf16.mxu0 %v1181
  %1714 = vmatpush1.bf16.msra.mxu0 %v1180
  %1715 = vmatprep.subr.bf16.mxu0 %v1179
  %1716 = vmatpush1.bf16.msra.mxu0 %v1178
  %1717 = vmatprep.subr.bf16.mxu0 %v1209
  %1718 = vmatpush2.bf16.msra.mxu0 %v1208
  %1719 = vmatprep.subr.bf16.mxu0 %v1207
  %1720 = vmatpush2.bf16.msra.mxu0 %v1206
  %1721 = vmatprep.subr.bf16.mxu0 %v1205
  %1722 = vmatpush2.bf16.msra.mxu0 %v1204
  %1723 = vmatprep.subr.bf16.mxu0 %v1203
  %1724 = vmatpush2.bf16.msra.mxu0 %v1202
  %1725 = vmatprep.subr.bf16.mxu0 %v1201
  %1726 = vmatpush2.bf16.msra.mxu0 %v1200
  %1727 = vmatprep.subr.bf16.mxu0 %v1199
  %1728 = vmatpush2.bf16.msra.mxu0 %v1198
  %1729 = vmatprep.subr.bf16.mxu0 %v1197
  %1730 = vmatpush2.bf16.msra.mxu0 %v1196
  %1731 = vmatprep.subr.bf16.mxu0 %v1195
  %1732 = vmatpush2.bf16.msra.mxu0 %v1194
  %1733 = vmatprep.mubr.bf16.mxu0 %v349
  %1734 = vmatmul.mubr.bf16.gmra.mxu0 %v348
  %v1735 = vpop.f32.mrf.mxu0
  %v1736 = vadd.f32 %v1693, %v1735
  %v1737 = vpop.f32.mrf.mxu0
  %v1738 = vadd.f32 %v1695, %v1737
  %v1739 = vpop.f32.mrf.mxu0
  %v1740 = vadd.f32 %v1697, %v1739
  %v1741 = vpop.f32.mrf.mxu0
  %v1742 = vadd.f32 %v1699, %v1741
  %1743 = vdwg.mxu0
  %1744 = vmatprep.subr.bf16.mxu0 %v1225
  %1745 = vmatpush1.bf16.msra.mxu0 %v1224
  %1746 = vmatprep.subr.bf16.mxu0 %v1223
  %1747 = vmatpush1.bf16.msra.mxu0 %v1222
  %1748 = vmatprep.subr.bf16.mxu0 %v1221
  %1749 = vmatpush1.bf16.msra.mxu0 %v1220
  %1750 = vmatprep.subr.bf16.mxu0 %v1219
  %1751 = vmatpush1.bf16.msra.mxu0 %v1218
  %1752 = vmatprep.subr.bf16.mxu0 %v1217
  %1753 = vmatpush1.bf16.msra.mxu0 %v1216
  %1754 = vmatprep.subr.bf16.mxu0 %v1215
  %1755 = vmatpush1.bf16.msra.mxu0 %v1214
  %1756 = vmatprep.subr.bf16.mxu0 %v1213
  %1757 = vmatpush1.bf16.msra.mxu0 %v1212
  %1758 = vmatprep.subr.bf16.mxu0 %v1211
  %1759 = vmatpush1.bf16.msra.mxu0 %v1210
  %1760 = vmatprep.subr.bf16.mxu0 %v1241
  %1761 = vmatpush2.bf16.msra.mxu0 %v1240
  %1762 = vmatprep.subr.bf16.mxu0 %v1239
  %1763 = vmatpush2.bf16.msra.mxu0 %v1238
  %1764 = vmatprep.subr.bf16.mxu0 %v1237
  %1765 = vmatpush2.bf16.msra.mxu0 %v1236
  %1766 = vmatprep.subr.bf16.mxu0 %v1235
  %1767 = vmatpush2.bf16.msra.mxu0 %v1234
  %1768 = vmatprep.subr.bf16.mxu0 %v1233
  %1769 = vmatpush2.bf16.msra.mxu0 %v1232
  %1770 = vmatprep.subr.bf16.mxu0 %v1231
  %1771 = vmatpush2.bf16.msra.mxu0 %v1230
  %1772 = vmatprep.subr.bf16.mxu0 %v1229
  %1773 = vmatpush2.bf16.msra.mxu0 %v1228
  %1774 = vmatprep.subr.bf16.mxu0 %v1227
  %1775 = vmatpush2.bf16.msra.mxu0 %v1226
  %1776 = vmatprep.mubr.bf16.mxu0 %v351
  %1777 = vmatmul.mubr.bf16.gmra.mxu0 %v350
  %v1778 = vpop.f32.mrf.mxu0
  %v1779 = vadd.f32 %v1736, %v1778
  %v1780 = vpop.f32.mrf.mxu0
  %v1781 = vadd.f32 %v1738, %v1780
  %v1782 = vpop.f32.mrf.mxu0
  %v1783 = vadd.f32 %v1740, %v1782
  %v1784 = vpop.f32.mrf.mxu0
  %v1785 = vadd.f32 %v1742, %v1784
  %1786 = vdwg.mxu0
  %1787 = vmatprep.subr.bf16.mxu0 %v1257
  %1788 = vmatpush1.bf16.msra.mxu0 %v1256
  %1789 = vmatprep.subr.bf16.mxu0 %v1255
  %1790 = vmatpush1.bf16.msra.mxu0 %v1254
  %1791 = vmatprep.subr.bf16.mxu0 %v1253
  %1792 = vmatpush1.bf16.msra.mxu0 %v1252
  %1793 = vmatprep.subr.bf16.mxu0 %v1251
  %1794 = vmatpush1.bf16.msra.mxu0 %v1250
  %1795 = vmatprep.subr.bf16.mxu0 %v1249
  %1796 = vmatpush1.bf16.msra.mxu0 %v1248
  %1797 = vmatprep.subr.bf16.mxu0 %v1247
  %1798 = vmatpush1.bf16.msra.mxu0 %v1246
  %1799 = vmatprep.subr.bf16.mxu0 %v1245
  %1800 = vmatpush1.bf16.msra.mxu0 %v1244
  %1801 = vmatprep.subr.bf16.mxu0 %v1243
  %1802 = vmatpush1.bf16.msra.mxu0 %v1242
  %1803 = vmatprep.subr.bf16.mxu0 %v1273
  %1804 = vmatpush2.bf16.msra.mxu0 %v1272
  %1805 = vmatprep.subr.bf16.mxu0 %v1271
  %1806 = vmatpush2.bf16.msra.mxu0 %v1270
  %1807 = vmatprep.subr.bf16.mxu0 %v1269
  %1808 = vmatpush2.bf16.msra.mxu0 %v1268
  %1809 = vmatprep.subr.bf16.mxu0 %v1267
  %1810 = vmatpush2.bf16.msra.mxu0 %v1266
  %1811 = vmatprep.subr.bf16.mxu0 %v1265
  %1812 = vmatpush2.bf16.msra.mxu0 %v1264
  %1813 = vmatprep.subr.bf16.mxu0 %v1263
  %1814 = vmatpush2.bf16.msra.mxu0 %v1262
  %1815 = vmatprep.subr.bf16.mxu0 %v1261
  %1816 = vmatpush2.bf16.msra.mxu0 %v1260
  %1817 = vmatprep.subr.bf16.mxu0 %v1259
  %1818 = vmatpush2.bf16.msra.mxu0 %v1258
  %1819 = vmatprep.mubr.bf16.mxu0 %v353
  %1820 = vmatmul.mubr.bf16.gmra.mxu0 %v352
  %v1821 = vpop.f32.mrf.mxu0
  %v1822 = vadd.f32 %v1779, %v1821
  %v1823 = vpop.f32.mrf.mxu0
  %v1824 = vadd.f32 %v1781, %v1823
  %v1825 = vpop.f32.mrf.mxu0
  %v1826 = vadd.f32 %v1783, %v1825
  %v1827 = vpop.f32.mrf.mxu0
  %v1828 = vadd.f32 %v1785, %v1827
  %1829 = vdwg.mxu0
  %1830 = vmatprep.subr.bf16.mxu0 %v1289
  %1831 = vmatpush1.bf16.msra.mxu0 %v1288
  %1832 = vmatprep.subr.bf16.mxu0 %v1287
  %1833 = vmatpush1.bf16.msra.mxu0 %v1286
  %1834 = vmatprep.subr.bf16.mxu0 %v1285
  %1835 = vmatpush1.bf16.msra.mxu0 %v1284
  %1836 = vmatprep.subr.bf16.mxu0 %v1283
  %1837 = vmatpush1.bf16.msra.mxu0 %v1282
  %1838 = vmatprep.subr.bf16.mxu0 %v1281
  %1839 = vmatpush1.bf16.msra.mxu0 %v1280
  %1840 = vmatprep.subr.bf16.mxu0 %v1279
  %1841 = vmatpush1.bf16.msra.mxu0 %v1278
  %1842 = vmatprep.subr.bf16.mxu0 %v1277
  %1843 = vmatpush1.bf16.msra.mxu0 %v1276
  %1844 = vmatprep.subr.bf16.mxu0 %v1275
  %1845 = vmatpush1.bf16.msra.mxu0 %v1274
  %1846 = vmatprep.subr.bf16.mxu0 %v1305
  %1847 = vmatpush2.bf16.msra.mxu0 %v1304
  %1848 = vmatprep.subr.bf16.mxu0 %v1303
  %1849 = vmatpush2.bf16.msra.mxu0 %v1302
  %1850 = vmatprep.subr.bf16.mxu0 %v1301
  %1851 = vmatpush2.bf16.msra.mxu0 %v1300
  %1852 = vmatprep.subr.bf16.mxu0 %v1299
  %1853 = vmatpush2.bf16.msra.mxu0 %v1298
  %1854 = vmatprep.subr.bf16.mxu0 %v1297
  %1855 = vmatpush2.bf16.msra.mxu0 %v1296
  %1856 = vmatprep.subr.bf16.mxu0 %v1295
  %1857 = vmatpush2.bf16.msra.mxu0 %v1294
  %1858 = vmatprep.subr.bf16.mxu0 %v1293
  %1859 = vmatpush2.bf16.msra.mxu0 %v1292
  %1860 = vmatprep.subr.bf16.mxu0 %v1291
  %1861 = vmatpush2.bf16.msra.mxu0 %v1290
  %1862 = vmatprep.mubr.bf16.mxu0 %v355
  %1863 = vmatmul.mubr.bf16.gmra.mxu0 %v354
  %v1864 = vpop.f32.mrf.mxu0
  %v1865 = vadd.f32 %v1822, %v1864
  %v1866 = vpop.f32.mrf.mxu0
  %v1867 = vadd.f32 %v1824, %v1866
  %v1868 = vpop.f32.mrf.mxu0
  %v1869 = vadd.f32 %v1826, %v1868
  %v1870 = vpop.f32.mrf.mxu0
  %v1871 = vadd.f32 %v1828, %v1870
  %1872 = vdwg.mxu0
  %1873 = vmatprep.subr.bf16.mxu0 %v1321
  %1874 = vmatpush1.bf16.msra.mxu0 %v1320
  %1875 = vmatprep.subr.bf16.mxu0 %v1319
  %1876 = vmatpush1.bf16.msra.mxu0 %v1318
  %1877 = vmatprep.subr.bf16.mxu0 %v1317
  %1878 = vmatpush1.bf16.msra.mxu0 %v1316
  %1879 = vmatprep.subr.bf16.mxu0 %v1315
  %1880 = vmatpush1.bf16.msra.mxu0 %v1314
  %1881 = vmatprep.subr.bf16.mxu0 %v1313
  %1882 = vmatpush1.bf16.msra.mxu0 %v1312
  %1883 = vmatprep.subr.bf16.mxu0 %v1311
  %1884 = vmatpush1.bf16.msra.mxu0 %v1310
  %1885 = vmatprep.subr.bf16.mxu0 %v1309
  %1886 = vmatpush1.bf16.msra.mxu0 %v1308
  %1887 = vmatprep.subr.bf16.mxu0 %v1307
  %1888 = vmatpush1.bf16.msra.mxu0 %v1306
  %1889 = vmatprep.subr.bf16.mxu0 %v1337
  %1890 = vmatpush2.bf16.msra.mxu0 %v1336
  %1891 = vmatprep.subr.bf16.mxu0 %v1335
  %1892 = vmatpush2.bf16.msra.mxu0 %v1334
  %1893 = vmatprep.subr.bf16.mxu0 %v1333
  %1894 = vmatpush2.bf16.msra.mxu0 %v1332
  %1895 = vmatprep.subr.bf16.mxu0 %v1331
  %1896 = vmatpush2.bf16.msra.mxu0 %v1330
  %1897 = vmatprep.subr.bf16.mxu0 %v1329
  %1898 = vmatpush2.bf16.msra.mxu0 %v1328
  %1899 = vmatprep.subr.bf16.mxu0 %v1327
  %1900 = vmatpush2.bf16.msra.mxu0 %v1326
  %1901 = vmatprep.subr.bf16.mxu0 %v1325
  %1902 = vmatpush2.bf16.msra.mxu0 %v1324
  %1903 = vmatprep.subr.bf16.mxu0 %v1323
  %1904 = vmatpush2.bf16.msra.mxu0 %v1322
  %1905 = vmatprep.mubr.bf16.mxu0 %v357
  %1906 = vmatmul.mubr.bf16.gmra.mxu0 %v356
  %v1907 = vpop.f32.mrf.mxu0
  %v1908 = vadd.f32 %v1865, %v1907
  %v1909 = vpop.f32.mrf.mxu0
  %v1910 = vadd.f32 %v1867, %v1909
  %v1911 = vpop.f32.mrf.mxu0
  %v1912 = vadd.f32 %v1869, %v1911
  %v1913 = vpop.f32.mrf.mxu0
  %v1914 = vadd.f32 %v1871, %v1913
  %1915 = vdwg.mxu0
  %1916 = vmatprep.subr.bf16.mxu0 %v1353
  %1917 = vmatpush1.bf16.msra.mxu0 %v1352
  %1918 = vmatprep.subr.bf16.mxu0 %v1351
  %1919 = vmatpush1.bf16.msra.mxu0 %v1350
  %1920 = vmatprep.subr.bf16.mxu0 %v1349
  %1921 = vmatpush1.bf16.msra.mxu0 %v1348
  %1922 = vmatprep.subr.bf16.mxu0 %v1347
  %1923 = vmatpush1.bf16.msra.mxu0 %v1346
  %1924 = vmatprep.subr.bf16.mxu0 %v1345
  %1925 = vmatpush1.bf16.msra.mxu0 %v1344
  %1926 = vmatprep.subr.bf16.mxu0 %v1343
  %1927 = vmatpush1.bf16.msra.mxu0 %v1342
  %1928 = vmatprep.subr.bf16.mxu0 %v1341
  %1929 = vmatpush1.bf16.msra.mxu0 %v1340
  %1930 = vmatprep.subr.bf16.mxu0 %v1339
  %1931 = vmatpush1.bf16.msra.mxu0 %v1338
  %1932 = vmatprep.subr.bf16.mxu0 %v1369
  %1933 = vmatpush2.bf16.msra.mxu0 %v1368
  %1934 = vmatprep.subr.bf16.mxu0 %v1367
  %1935 = vmatpush2.bf16.msra.mxu0 %v1366
  %1936 = vmatprep.subr.bf16.mxu0 %v1365
  %1937 = vmatpush2.bf16.msra.mxu0 %v1364
  %1938 = vmatprep.subr.bf16.mxu0 %v1363
  %1939 = vmatpush2.bf16.msra.mxu0 %v1362
  %1940 = vmatprep.subr.bf16.mxu0 %v1361
  %1941 = vmatpush2.bf16.msra.mxu0 %v1360
  %1942 = vmatprep.subr.bf16.mxu0 %v1359
  %1943 = vmatpush2.bf16.msra.mxu0 %v1358
  %1944 = vmatprep.subr.bf16.mxu0 %v1357
  %1945 = vmatpush2.bf16.msra.mxu0 %v1356
  %1946 = vmatprep.subr.bf16.mxu0 %v1355
  %1947 = vmatpush2.bf16.msra.mxu0 %v1354
  %1948 = vmatprep.mubr.bf16.mxu0 %v359
  %1949 = vmatmul.mubr.bf16.gmra.mxu0 %v358
  %v1950 = vpop.f32.mrf.mxu0
  %v1951 = vadd.f32 %v1908, %v1950
  %v1952 = vpop.f32.mrf.mxu0
  %v1953 = vadd.f32 %v1910, %v1952
  %v1954 = vpop.f32.mrf.mxu0
  %v1955 = vadd.f32 %v1912, %v1954
  %v1956 = vpop.f32.mrf.mxu0
  %v1957 = vadd.f32 %v1914, %v1956
  %1958 = vdwg.mxu0
  %1959 = vmatprep.subr.bf16.mxu0 %v1385
  %1960 = vmatpush1.bf16.msra.mxu0 %v1384
  %1961 = vmatprep.subr.bf16.mxu0 %v1383
  %1962 = vmatpush1.bf16.msra.mxu0 %v1382
  %1963 = vmatprep.subr.bf16.mxu0 %v1381
  %1964 = vmatpush1.bf16.msra.mxu0 %v1380
  %1965 = vmatprep.subr.bf16.mxu0 %v1379
  %1966 = vmatpush1.bf16.msra.mxu0 %v1378
  %1967 = vmatprep.subr.bf16.mxu0 %v1377
  %1968 = vmatpush1.bf16.msra.mxu0 %v1376
  %1969 = vmatprep.subr.bf16.mxu0 %v1375
  %1970 = vmatpush1.bf16.msra.mxu0 %v1374
  %1971 = vmatprep.subr.bf16.mxu0 %v1373
  %1972 = vmatpush1.bf16.msra.mxu0 %v1372
  %1973 = vmatprep.subr.bf16.mxu0 %v1371
  %1974 = vmatpush1.bf16.msra.mxu0 %v1370
  %1975 = vmatprep.subr.bf16.mxu0 %v1401
  %1976 = vmatpush2.bf16.msra.mxu0 %v1400
  %1977 = vmatprep.subr.bf16.mxu0 %v1399
  %1978 = vmatpush2.bf16.msra.mxu0 %v1398
  %1979 = vmatprep.subr.bf16.mxu0 %v1397
  %1980 = vmatpush2.bf16.msra.mxu0 %v1396
  %1981 = vmatprep.subr.bf16.mxu0 %v1395
  %1982 = vmatpush2.bf16.msra.mxu0 %v1394
  %1983 = vmatprep.subr.bf16.mxu0 %v1393
  %1984 = vmatpush2.bf16.msra.mxu0 %v1392
  %1985 = vmatprep.subr.bf16.mxu0 %v1391
  %1986 = vmatpush2.bf16.msra.mxu0 %v1390
  %1987 = vmatprep.subr.bf16.mxu0 %v1389
  %1988 = vmatpush2.bf16.msra.mxu0 %v1388
  %1989 = vmatprep.subr.bf16.mxu0 %v1387
  %1990 = vmatpush2.bf16.msra.mxu0 %v1386
  %1991 = vmatprep.mubr.bf16.mxu0 %v361
  %1992 = vmatmul.mubr.bf16.gmra.mxu0 %v360
  %v1993 = vpop.f32.mrf.mxu0
  %v1994 = vadd.f32 %v1951, %v1993
  %v1995 = vpop.f32.mrf.mxu0
  %v1996 = vadd.f32 %v1953, %v1995
  %v1997 = vpop.f32.mrf.mxu0
  %v1998 = vadd.f32 %v1955, %v1997
  %v1999 = vpop.f32.mrf.mxu0
  %v2000 = vadd.f32 %v1957, %v1999
  %2001 = vdwg.mxu0
  %v2002 = vmax.f32 %v1994, 0.0
  %v2003 = vmax.f32 %v1996, 0.0
  %v2004 = vmax.f32 %v1998, 0.0
  %v2005 = vmax.f32 %v2000, 0.0
  %v2006 = vpack.c.bf16 %v2004, %v2002
  %v2007 = vpack.c.bf16 %v2005, %v2003
  %v2010 = vunpack.c.l.b16 %v2006
  %v2011 = vunpack.c.l.b16 %v2007
  %v2012 = vunpack.c.h.b16 %v2006
  %v2013 = vunpack.c.h.b16 %v2007
  %v2014 = vpack.c.b16 %v2011, %v2010
  %v2015 = vpack.c.b16 %v2013, %v2012
  %2018 = vst [vmem:[%s3] sm:$0xff] %v2014
  %2019 = vst [vmem:[%s3 + $0x8] sm:$0xff] %v2015
  // Predicated region
  $region14: #{generator_forward.8} parent=0 // pred_check
    _
  $region15: #{generator_forward.8} parent=0 // pred_check_branch
    %2021 = sbr.rel (0) target = $region17
  $region16: #{generator_forward.8} parent=0 // pred_region
    _
  $region17: #{generator_forward.8} parent=0 // pred_fallthru
    _
  // Predicated region
  $region18: #{generator_forward.8} parent=0 // pred_check
    _
  $region19: #{generator_forward.8} parent=0 // pred_check_branch
    %2023 = sbr.rel (0) target = $region21
  $region20: #{generator_forward.8} parent=0 // pred_region
    _
  $region21: #{generator_forward.8} parent=0 // pred_fallthru
    _

// kernel: generator_forward.9
$region0: #{generator_forward.9}
  #allocation0 [shape = 'u32[]', space=smem, size = 0x4, offset = 0x4, fixed_abs, tag = 'smem constant byte address 0x4 - core index']
  #allocation1 [shape = 'u32[144,128]{1,0:T(1,128)}', space=vmem, size = 0x12000, scoped, tag = 'internal scratch']
  %s0 = inlined_call_operand.vmem [shape: bf16[16,2304], index: 0, kind: input, shape index: {}]
  %s1 = inlined_call_operand.vmem [shape: bf16[2304,512], index: 1, kind: input, shape index: {}]
  %s2 = inlined_call_operand.vmem [shape: f32[1,512], index: 2, kind: input, shape index: {}]
  %s3 = inlined_call_operand.vmem [shape: bf16[16,512], index: 3, kind: output, shape index: {}]
  %s4 = sld [smem:[#allocation0]]
  $region22: #{generator_forward.9} parent=0
    _
  %s6 = ssub.s32 1, %s4
  %s7 = scalar_select 0, %s6, %s4
  // Predicated region
  $region2: #{generator_forward.9} parent=0 // pred_check
    _
  $region3: #{generator_forward.9} parent=0 // pred_check_branch
    %9 = sbr.rel (0) target = $region5
  $region4: #{generator_forward.9} parent=0 // pred_region
    _
  $region5: #{generator_forward.9} parent=0 // pred_fallthru
    _
  // Predicated region
  $region6: #{generator_forward.9} parent=0 // pred_check
    _
  $region7: #{generator_forward.9} parent=0 // pred_check_branch
    %11 = sbr.rel (0) target = $region9
  $region8: #{generator_forward.9} parent=0 // pred_region
    _
  $region9: #{generator_forward.9} parent=0 // pred_fallthru
    _
  // Predicated region
  $region10: #{generator_forward.9} parent=0 // pred_check
    _
  $region11: #{generator_forward.9} parent=0 // pred_check_branch
    %13 = sbr.rel (0) target = $region13
  $region12: #{generator_forward.9} parent=0 // pred_region
    _
  $region13: #{generator_forward.9} parent=0 // pred_fallthru
    _
  %v14 = vld [vmem:[%s0] sm:$0xff]
  %v15 = vld [vmem:[%s0 + $0x8] sm:$0xff]
  %v16 = vld [vmem:[%s0 + $0x10] sm:$0xff]
  %v17 = vld [vmem:[%s0 + $0x18] sm:$0xff]
  %v18 = vld [vmem:[%s0 + $0x20] sm:$0xff]
  %v19 = vld [vmem:[%s0 + $0x28] sm:$0xff]
  %v20 = vld [vmem:[%s0 + $0x30] sm:$0xff]
  %v21 = vld [vmem:[%s0 + $0x38] sm:$0xff]
  %v22 = vld [vmem:[%s0 + $0x40] sm:$0xff]
  %v23 = vld [vmem:[%s0 + $0x48] sm:$0xff]
  %v24 = vld [vmem:[%s0 + $0x50] sm:$0xff]
  %v25 = vld [vmem:[%s0 + $0x58] sm:$0xff]
  %v26 = vld [vmem:[%s0 + $0x60] sm:$0xff]
  %v27 = vld [vmem:[%s0 + $0x68] sm:$0xff]
  %v28 = vld [vmem:[%s0 + $0x70] sm:$0xff]
  %v29 = vld [vmem:[%s0 + $0x78] sm:$0xff]
  %v30 = vld [vmem:[%s0 + $0x80] sm:$0xff]
  %v31 = vld [vmem:[%s0 + $0x88] sm:$0xff]
  %v32 = vld [vmem:[%s1] sm:$0xff]
  %v33 = vld [vmem:[%s1 + $0x8] sm:$0xff]
  %v34 = vld [vmem:[%s1 + $0x10] sm:$0xff]
  %v35 = vld [vmem:[%s1 + $0x18] sm:$0xff]
  %v36 = vld [vmem:[%s1 + $0x20] sm:$0xff]
  %v37 = vld [vmem:[%s1 + $0x28] sm:$0xff]
  %v38 = vld [vmem:[%s1 + $0x30] sm:$0xff]
  %v39 = vld [vmem:[%s1 + $0x38] sm:$0xff]
  %v40 = vld [vmem:[%s1 + $0x40] sm:$0xff]
  %v41 = vld [vmem:[%s1 + $0x48] sm:$0xff]
  %v42 = vld [vmem:[%s1 + $0x50] sm:$0xff]
  %v43 = vld [vmem:[%s1 + $0x58] sm:$0xff]
  %v44 = vld [vmem:[%s1 + $0x60] sm:$0xff]
  %v45 = vld [vmem:[%s1 + $0x68] sm:$0xff]
  %v46 = vld [vmem:[%s1 + $0x70] sm:$0xff]
  %v47 = vld [vmem:[%s1 + $0x78] sm:$0xff]
  %v48 = vld [vmem:[%s1 + $0x80] sm:$0xff]
  %v49 = vld [vmem:[%s1 + $0x88] sm:$0xff]
  %v50 = vld [vmem:[%s1 + $0x90] sm:$0xff]
  %v51 = vld [vmem:[%s1 + $0x98] sm:$0xff]
  %v52 = vld [vmem:[%s1 + $0xa0] sm:$0xff]
  %v53 = vld [vmem:[%s1 + $0xa8] sm:$0xff]
  %v54 = vld [vmem:[%s1 + $0xb0] sm:$0xff]
  %v55 = vld [vmem:[%s1 + $0xb8] sm:$0xff]
  %v56 = vld [vmem:[%s1 + $0xc0] sm:$0xff]
  %v57 = vld [vmem:[%s1 + $0xc8] sm:$0xff]
  %v58 = vld [vmem:[%s1 + $0xd0] sm:$0xff]
  %v59 = vld [vmem:[%s1 + $0xd8] sm:$0xff]
  %v60 = vld [vmem:[%s1 + $0xe0] sm:$0xff]
  %v61 = vld [vmem:[%s1 + $0xe8] sm:$0xff]
  %v62 = vld [vmem:[%s1 + $0xf0] sm:$0xff]
  %v63 = vld [vmem:[%s1 + $0xf8] sm:$0xff]
  %v64 = vld [vmem:[%s1 + $0x100] sm:$0xff]
  %v65 = vld [vmem:[%s1 + $0x108] sm:$0xff]
  %v66 = vld [vmem:[%s1 + $0x110] sm:$0xff]
  %v67 = vld [vmem:[%s1 + $0x118] sm:$0xff]
  %v68 = vld [vmem:[%s1 + $0x120] sm:$0xff]
  %v69 = vld [vmem:[%s1 + $0x128] sm:$0xff]
  %v70 = vld [vmem:[%s1 + $0x130] sm:$0xff]
  %v71 = vld [vmem:[%s1 + $0x138] sm:$0xff]
  %v72 = vld [vmem:[%s1 + $0x140] sm:$0xff]
  %v73 = vld [vmem:[%s1 + $0x148] sm:$0xff]
  %v74 = vld [vmem:[%s1 + $0x150] sm:$0xff]
  %v75 = vld [vmem:[%s1 + $0x158] sm:$0xff]
  %v76 = vld [vmem:[%s1 + $0x160] sm:$0xff]
  %v77 = vld [vmem:[%s1 + $0x168] sm:$0xff]
  %v78 = vld [vmem:[%s1 + $0x170] sm:$0xff]
  %v79 = vld [vmem:[%s1 + $0x178] sm:$0xff]
  %v80 = vld [vmem:[%s1 + $0x180] sm:$0xff]
  %v81 = vld [vmem:[%s1 + $0x188] sm:$0xff]
  %v82 = vld [vmem:[%s1 + $0x190] sm:$0xff]
  %v83 = vld [vmem:[%s1 + $0x198] sm:$0xff]
  %v84 = vld [vmem:[%s1 + $0x1a0] sm:$0xff]
  %v85 = vld [vmem:[%s1 + $0x1a8] sm:$0xff]
  %v86 = vld [vmem:[%s1 + $0x1b0] sm:$0xff]
  %v87 = vld [vmem:[%s1 + $0x1b8] sm:$0xff]
  %v88 = vld [vmem:[%s1 + $0x1c0] sm:$0xff]
  %v89 = vld [vmem:[%s1 + $0x1c8] sm:$0xff]
  %v90 = vld [vmem:[%s1 + $0x1d0] sm:$0xff]
  %v91 = vld [vmem:[%s1 + $0x1d8] sm:$0xff]
  %v92 = vld [vmem:[%s1 + $0x1e0] sm:$0xff]
  %v93 = vld [vmem:[%s1 + $0x1e8] sm:$0xff]
  %v94 = vld [vmem:[%s1 + $0x1f0] sm:$0xff]
  %v95 = vld [vmem:[%s1 + $0x1f8] sm:$0xff]
  %v96 = vld [vmem:[%s1 + $0x200] sm:$0xff]
  %v97 = vld [vmem:[%s1 + $0x208] sm:$0xff]
  %v98 = vld [vmem:[%s1 + $0x210] sm:$0xff]
  %v99 = vld [vmem:[%s1 + $0x218] sm:$0xff]
  %v100 = vld [vmem:[%s1 + $0x220] sm:$0xff]
  %v101 = vld [vmem:[%s1 + $0x228] sm:$0xff]
  %v102 = vld [vmem:[%s1 + $0x230] sm:$0xff]
  %v103 = vld [vmem:[%s1 + $0x238] sm:$0xff]
  %v104 = vld [vmem:[%s1 + $0x240] sm:$0xff]
  %v105 = vld [vmem:[%s1 + $0x248] sm:$0xff]
  %v106 = vld [vmem:[%s1 + $0x250] sm:$0xff]
  %v107 = vld [vmem:[%s1 + $0x258] sm:$0xff]
  %v108 = vld [vmem:[%s1 + $0x260] sm:$0xff]
  %v109 = vld [vmem:[%s1 + $0x268] sm:$0xff]
  %v110 = vld [vmem:[%s1 + $0x270] sm:$0xff]
  %v111 = vld [vmem:[%s1 + $0x278] sm:$0xff]
  %v112 = vld [vmem:[%s1 + $0x280] sm:$0xff]
  %v113 = vld [vmem:[%s1 + $0x288] sm:$0xff]
  %v114 = vld [vmem:[%s1 + $0x290] sm:$0xff]
  %v115 = vld [vmem:[%s1 + $0x298] sm:$0xff]
  %v116 = vld [vmem:[%s1 + $0x2a0] sm:$0xff]
  %v117 = vld [vmem:[%s1 + $0x2a8] sm:$0xff]
  %v118 = vld [vmem:[%s1 + $0x2b0] sm:$0xff]
  %v119 = vld [vmem:[%s1 + $0x2b8] sm:$0xff]
  %v120 = vld [vmem:[%s1 + $0x2c0] sm:$0xff]
  %v121 = vld [vmem:[%s1 + $0x2c8] sm:$0xff]
  %v122 = vld [vmem:[%s1 + $0x2d0] sm:$0xff]
  %v123 = vld [vmem:[%s1 + $0x2d8] sm:$0xff]
  %v124 = vld [vmem:[%s1 + $0x2e0] sm:$0xff]
  %v125 = vld [vmem:[%s1 + $0x2e8] sm:$0xff]
  %v126 = vld [vmem:[%s1 + $0x2f0] sm:$0xff]
  %v127 = vld [vmem:[%s1 + $0x2f8] sm:$0xff]
  %v128 = vld [vmem:[%s1 + $0x300] sm:$0xff]
  %v129 = vld [vmem:[%s1 + $0x308] sm:$0xff]
  %v130 = vld [vmem:[%s1 + $0x310] sm:$0xff]
  %v131 = vld [vmem:[%s1 + $0x318] sm:$0xff]
  %v132 = vld [vmem:[%s1 + $0x320] sm:$0xff]
  %v133 = vld [vmem:[%s1 + $0x328] sm:$0xff]
  %v134 = vld [vmem:[%s1 + $0x330] sm:$0xff]
  %v135 = vld [vmem:[%s1 + $0x338] sm:$0xff]
  %v136 = vld [vmem:[%s1 + $0x340] sm:$0xff]
  %v137 = vld [vmem:[%s1 + $0x348] sm:$0xff]
  %v138 = vld [vmem:[%s1 + $0x350] sm:$0xff]
  %v139 = vld [vmem:[%s1 + $0x358] sm:$0xff]
  %v140 = vld [vmem:[%s1 + $0x360] sm:$0xff]
  %v141 = vld [vmem:[%s1 + $0x368] sm:$0xff]
  %v142 = vld [vmem:[%s1 + $0x370] sm:$0xff]
  %v143 = vld [vmem:[%s1 + $0x378] sm:$0xff]
  %v144 = vld [vmem:[%s1 + $0x380] sm:$0xff]
  %v145 = vld [vmem:[%s1 + $0x388] sm:$0xff]
  %v146 = vld [vmem:[%s1 + $0x390] sm:$0xff]
  %v147 = vld [vmem:[%s1 + $0x398] sm:$0xff]
  %v148 = vld [vmem:[%s1 + $0x3a0] sm:$0xff]
  %v149 = vld [vmem:[%s1 + $0x3a8] sm:$0xff]
  %v150 = vld [vmem:[%s1 + $0x3b0] sm:$0xff]
  %v151 = vld [vmem:[%s1 + $0x3b8] sm:$0xff]
  %v152 = vld [vmem:[%s1 + $0x3c0] sm:$0xff]
  %v153 = vld [vmem:[%s1 + $0x3c8] sm:$0xff]
  %v154 = vld [vmem:[%s1 + $0x3d0] sm:$0xff]
  %v155 = vld [vmem:[%s1 + $0x3d8] sm:$0xff]
  %v156 = vld [vmem:[%s1 + $0x3e0] sm:$0xff]
  %v157 = vld [vmem:[%s1 + $0x3e8] sm:$0xff]
  %v158 = vld [vmem:[%s1 + $0x3f0] sm:$0xff]
  %v159 = vld [vmem:[%s1 + $0x3f8] sm:$0xff]
  %v160 = vld [vmem:[%s1 + $0x400] sm:$0xff]
  %v161 = vld [vmem:[%s1 + $0x408] sm:$0xff]
  %v162 = vld [vmem:[%s1 + $0x410] sm:$0xff]
  %v163 = vld [vmem:[%s1 + $0x418] sm:$0xff]
  %v164 = vld [vmem:[%s1 + $0x420] sm:$0xff]
  %v165 = vld [vmem:[%s1 + $0x428] sm:$0xff]
  %v166 = vld [vmem:[%s1 + $0x430] sm:$0xff]
  %v167 = vld [vmem:[%s1 + $0x438] sm:$0xff]
  %v168 = vld [vmem:[%s1 + $0x440] sm:$0xff]
  %v169 = vld [vmem:[%s1 + $0x448] sm:$0xff]
  %v170 = vld [vmem:[%s1 + $0x450] sm:$0xff]
  %v171 = vld [vmem:[%s1 + $0x458] sm:$0xff]
  %v172 = vld [vmem:[%s1 + $0x460] sm:$0xff]
  %v173 = vld [vmem:[%s1 + $0x468] sm:$0xff]
  %v174 = vld [vmem:[%s1 + $0x470] sm:$0xff]
  %v175 = vld [vmem:[%s1 + $0x478] sm:$0xff]
  %v176 = vld [vmem:[%s1 + $0x480] sm:$0xff]
  %v177 = vld [vmem:[%s1 + $0x488] sm:$0xff]
  %v178 = vld [vmem:[%s1 + $0x490] sm:$0xff]
  %v179 = vld [vmem:[%s1 + $0x498] sm:$0xff]
  %v180 = vld [vmem:[%s1 + $0x4a0] sm:$0xff]
  %v181 = vld [vmem:[%s1 + $0x4a8] sm:$0xff]
  %v182 = vld [vmem:[%s1 + $0x4b0] sm:$0xff]
  %v183 = vld [vmem:[%s1 + $0x4b8] sm:$0xff]
  %v184 = vld [vmem:[%s1 + $0x4c0] sm:$0xff]
  %v185 = vld [vmem:[%s1 + $0x4c8] sm:$0xff]
  %v186 = vld [vmem:[%s1 + $0x4d0] sm:$0xff]
  %v187 = vld [vmem:[%s1 + $0x4d8] sm:$0xff]
  %v188 = vld [vmem:[%s1 + $0x4e0] sm:$0xff]
  %v189 = vld [vmem:[%s1 + $0x4e8] sm:$0xff]
  %v190 = vld [vmem:[%s1 + $0x4f0] sm:$0xff]
  %v191 = vld [vmem:[%s1 + $0x4f8] sm:$0xff]
  %v192 = vld [vmem:[%s1 + $0x500] sm:$0xff]
  %v193 = vld [vmem:[%s1 + $0x508] sm:$0xff]
  %v194 = vld [vmem:[%s1 + $0x510] sm:$0xff]
  %v195 = vld [vmem:[%s1 + $0x518] sm:$0xff]
  %v196 = vld [vmem:[%s1 + $0x520] sm:$0xff]
  %v197 = vld [vmem:[%s1 + $0x528] sm:$0xff]
  %v198 = vld [vmem:[%s1 + $0x530] sm:$0xff]
  %v199 = vld [vmem:[%s1 + $0x538] sm:$0xff]
  %v200 = vld [vmem:[%s1 + $0x540] sm:$0xff]
  %v201 = vld [vmem:[%s1 + $0x548] sm:$0xff]
  %v202 = vld [vmem:[%s1 + $0x550] sm:$0xff]
  %v203 = vld [vmem:[%s1 + $0x558] sm:$0xff]
  %v204 = vld [vmem:[%s1 + $0x560] sm:$0xff]
  %v205 = vld [vmem:[%s1 + $0x568] sm:$0xff]
  %v206 = vld [vmem:[%s1 + $0x570] sm:$0xff]
  %v207 = vld [vmem:[%s1 + $0x578] sm:$0xff]
  %v208 = vld [vmem:[%s1 + $0x580] sm:$0xff]
  %v209 = vld [vmem:[%s1 + $0x588] sm:$0xff]
  %v210 = vld [vmem:[%s1 + $0x590] sm:$0xff]
  %v211 = vld [vmem:[%s1 + $0x598] sm:$0xff]
  %v212 = vld [vmem:[%s1 + $0x5a0] sm:$0xff]
  %v213 = vld [vmem:[%s1 + $0x5a8] sm:$0xff]
  %v214 = vld [vmem:[%s1 + $0x5b0] sm:$0xff]
  %v215 = vld [vmem:[%s1 + $0x5b8] sm:$0xff]
  %v216 = vld [vmem:[%s1 + $0x5c0] sm:$0xff]
  %v217 = vld [vmem:[%s1 + $0x5c8] sm:$0xff]
  %v218 = vld [vmem:[%s1 + $0x5d0] sm:$0xff]
  %v219 = vld [vmem:[%s1 + $0x5d8] sm:$0xff]
  %v220 = vld [vmem:[%s1 + $0x5e0] sm:$0xff]
  %v221 = vld [vmem:[%s1 + $0x5e8] sm:$0xff]
  %v222 = vld [vmem:[%s1 + $0x5f0] sm:$0xff]
  %v223 = vld [vmem:[%s1 + $0x5f8] sm:$0xff]
  %v224 = vld [vmem:[%s1 + $0x600] sm:$0xff]
  %v225 = vld [vmem:[%s1 + $0x608] sm:$0xff]
  %v226 = vld [vmem:[%s1 + $0x610] sm:$0xff]
  %v227 = vld [vmem:[%s1 + $0x618] sm:$0xff]
  %v228 = vld [vmem:[%s1 + $0x620] sm:$0xff]
  %v229 = vld [vmem:[%s1 + $0x628] sm:$0xff]
  %v230 = vld [vmem:[%s1 + $0x630] sm:$0xff]
  %v231 = vld [vmem:[%s1 + $0x638] sm:$0xff]
  %v232 = vld [vmem:[%s1 + $0x640] sm:$0xff]
  %v233 = vld [vmem:[%s1 + $0x648] sm:$0xff]
  %v234 = vld [vmem:[%s1 + $0x650] sm:$0xff]
  %v235 = vld [vmem:[%s1 + $0x658] sm:$0xff]
  %v236 = vld [vmem:[%s1 + $0x660] sm:$0xff]
  %v237 = vld [vmem:[%s1 + $0x668] sm:$0xff]
  %v238 = vld [vmem:[%s1 + $0x670] sm:$0xff]
  %v239 = vld [vmem:[%s1 + $0x678] sm:$0xff]
  %v240 = vld [vmem:[%s1 + $0x680] sm:$0xff]
  %v241 = vld [vmem:[%s1 + $0x688] sm:$0xff]
  %v242 = vld [vmem:[%s1 + $0x690] sm:$0xff]
  %v243 = vld [vmem:[%s1 + $0x698] sm:$0xff]
  %v244 = vld [vmem:[%s1 + $0x6a0] sm:$0xff]
  %v245 = vld [vmem:[%s1 + $0x6a8] sm:$0xff]
  %v246 = vld [vmem:[%s1 + $0x6b0] sm:$0xff]
  %v247 = vld [vmem:[%s1 + $0x6b8] sm:$0xff]
  %v248 = vld [vmem:[%s1 + $0x6c0] sm:$0xff]
  %v249 = vld [vmem:[%s1 + $0x6c8] sm:$0xff]
  %v250 = vld [vmem:[%s1 + $0x6d0] sm:$0xff]
  %v251 = vld [vmem:[%s1 + $0x6d8] sm:$0xff]
  %v252 = vld [vmem:[%s1 + $0x6e0] sm:$0xff]
  %v253 = vld [vmem:[%s1 + $0x6e8] sm:$0xff]
  %v254 = vld [vmem:[%s1 + $0x6f0] sm:$0xff]
  %v255 = vld [vmem:[%s1 + $0x6f8] sm:$0xff]
  %v256 = vld [vmem:[%s1 + $0x700] sm:$0xff]
  %v257 = vld [vmem:[%s1 + $0x708] sm:$0xff]
  %v258 = vld [vmem:[%s1 + $0x710] sm:$0xff]
  %v259 = vld [vmem:[%s1 + $0x718] sm:$0xff]
  %v260 = vld [vmem:[%s1 + $0x720] sm:$0xff]
  %v261 = vld [vmem:[%s1 + $0x728] sm:$0xff]
  %v262 = vld [vmem:[%s1 + $0x730] sm:$0xff]
  %v263 = vld [vmem:[%s1 + $0x738] sm:$0xff]
  %v264 = vld [vmem:[%s1 + $0x740] sm:$0xff]
  %v265 = vld [vmem:[%s1 + $0x748] sm:$0xff]
  %v266 = vld [vmem:[%s1 + $0x750] sm:$0xff]
  %v267 = vld [vmem:[%s1 + $0x758] sm:$0xff]
  %v268 = vld [vmem:[%s1 + $0x760] sm:$0xff]
  %v269 = vld [vmem:[%s1 + $0x768] sm:$0xff]
  %v270 = vld [vmem:[%s1 + $0x770] sm:$0xff]
  %v271 = vld [vmem:[%s1 + $0x778] sm:$0xff]
  %v272 = vld [vmem:[%s1 + $0x780] sm:$0xff]
  %v273 = vld [vmem:[%s1 + $0x788] sm:$0xff]
  %v274 = vld [vmem:[%s1 + $0x790] sm:$0xff]
  %v275 = vld [vmem:[%s1 + $0x798] sm:$0xff]
  %v276 = vld [vmem:[%s1 + $0x7a0] sm:$0xff]
  %v277 = vld [vmem:[%s1 + $0x7a8] sm:$0xff]
  %v278 = vld [vmem:[%s1 + $0x7b0] sm:$0xff]
  %v279 = vld [vmem:[%s1 + $0x7b8] sm:$0xff]
  %v280 = vld [vmem:[%s1 + $0x7c0] sm:$0xff]
  %v281 = vld [vmem:[%s1 + $0x7c8] sm:$0xff]
  %v282 = vld [vmem:[%s1 + $0x7d0] sm:$0xff]
  %v283 = vld [vmem:[%s1 + $0x7d8] sm:$0xff]
  %v284 = vld [vmem:[%s1 + $0x7e0] sm:$0xff]
  %v285 = vld [vmem:[%s1 + $0x7e8] sm:$0xff]
  %v286 = vld [vmem:[%s1 + $0x7f0] sm:$0xff]
  %v287 = vld [vmem:[%s1 + $0x7f8] sm:$0xff]
  %v288 = vld [vmem:[%s1 + $0x800] sm:$0xff]
  %v289 = vld [vmem:[%s1 + $0x808] sm:$0xff]
  %v290 = vld [vmem:[%s1 + $0x810] sm:$0xff]
  %v291 = vld [vmem:[%s1 + $0x818] sm:$0xff]
  %v292 = vld [vmem:[%s1 + $0x820] sm:$0xff]
  %v293 = vld [vmem:[%s1 + $0x828] sm:$0xff]
  %v294 = vld [vmem:[%s1 + $0x830] sm:$0xff]
  %v295 = vld [vmem:[%s1 + $0x838] sm:$0xff]
  %v296 = vld [vmem:[%s1 + $0x840] sm:$0xff]
  %v297 = vld [vmem:[%s1 + $0x848] sm:$0xff]
  %v298 = vld [vmem:[%s1 + $0x850] sm:$0xff]
  %v299 = vld [vmem:[%s1 + $0x858] sm:$0xff]
  %v300 = vld [vmem:[%s1 + $0x860] sm:$0xff]
  %v301 = vld [vmem:[%s1 + $0x868] sm:$0xff]
  %v302 = vld [vmem:[%s1 + $0x870] sm:$0xff]
  %v303 = vld [vmem:[%s1 + $0x878] sm:$0xff]
  %v304 = vld [vmem:[%s1 + $0x880] sm:$0xff]
  %v305 = vld [vmem:[%s1 + $0x888] sm:$0xff]
  %v306 = vld [vmem:[%s1 + $0x890] sm:$0xff]
  %v307 = vld [vmem:[%s1 + $0x898] sm:$0xff]
  %v308 = vld [vmem:[%s1 + $0x8a0] sm:$0xff]
  %v309 = vld [vmem:[%s1 + $0x8a8] sm:$0xff]
  %v310 = vld [vmem:[%s1 + $0x8b0] sm:$0xff]
  %v311 = vld [vmem:[%s1 + $0x8b8] sm:$0xff]
  %v312 = vld [vmem:[%s1 + $0x8c0] sm:$0xff]
  %v313 = vld [vmem:[%s1 + $0x8c8] sm:$0xff]
  %v314 = vld [vmem:[%s1 + $0x8d0] sm:$0xff]
  %v315 = vld [vmem:[%s1 + $0x8d8] sm:$0xff]
  %v316 = vld [vmem:[%s1 + $0x8e0] sm:$0xff]
  %v317 = vld [vmem:[%s1 + $0x8e8] sm:$0xff]
  %v318 = vld [vmem:[%s1 + $0x8f0] sm:$0xff]
  %v319 = vld [vmem:[%s1 + $0x8f8] sm:$0xff]
  %v320 = vld [vmem:[%s1 + $0x900] sm:$0xff]
  %v321 = vld [vmem:[%s1 + $0x908] sm:$0xff]
  %v322 = vld [vmem:[%s1 + $0x910] sm:$0xff]
  %v323 = vld [vmem:[%s1 + $0x918] sm:$0xff]
  %v324 = vld [vmem:[%s1 + $0x920] sm:$0xff]
  %v325 = vld [vmem:[%s1 + $0x928] sm:$0xff]
  %v326 = vld [vmem:[%s1 + $0x930] sm:$0xff]
  %v327 = vld [vmem:[%s1 + $0x938] sm:$0xff]
  %v328 = vld [vmem:[%s1 + $0x940] sm:$0xff]
  %v329 = vld [vmem:[%s1 + $0x948] sm:$0xff]
  %v330 = vld [vmem:[%s1 + $0x950] sm:$0xff]
  %v331 = vld [vmem:[%s1 + $0x958] sm:$0xff]
  %v332 = vld [vmem:[%s1 + $0x960] sm:$0xff]
  %v333 = vld [vmem:[%s1 + $0x968] sm:$0xff]
  %v334 = vld [vmem:[%s1 + $0x970] sm:$0xff]
  %v335 = vld [vmem:[%s1 + $0x978] sm:$0xff]
  %v336 = vld [vmem:[%s1 + $0x980] sm:$0xff]
  %v337 = vld [vmem:[%s1 + $0x988] sm:$0xff]
  %v338 = vld [vmem:[%s1 + $0x990] sm:$0xff]
  %v339 = vld [vmem:[%s1 + $0x998] sm:$0xff]
  %v340 = vld [vmem:[%s1 + $0x9a0] sm:$0xff]
  %v341 = vld [vmem:[%s1 + $0x9a8] sm:$0xff]
  %v342 = vld [vmem:[%s1 + $0x9b0] sm:$0xff]
  %v343 = vld [vmem:[%s1 + $0x9b8] sm:$0xff]
  %v344 = vld [vmem:[%s1 + $0x9c0] sm:$0xff]
  %v345 = vld [vmem:[%s1 + $0x9c8] sm:$0xff]
  %v346 = vld [vmem:[%s1 + $0x9d0] sm:$0xff]
  %v347 = vld [vmem:[%s1 + $0x9d8] sm:$0xff]
  %v348 = vld [vmem:[%s1 + $0x9e0] sm:$0xff]
  %v349 = vld [vmem:[%s1 + $0x9e8] sm:$0xff]
  %v350 = vld [vmem:[%s1 + $0x9f0] sm:$0xff]
  %v351 = vld [vmem:[%s1 + $0x9f8] sm:$0xff]
  %v352 = vld [vmem:[%s1 + $0xa00] sm:$0xff]
  %v353 = vld [vmem:[%s1 + $0xa08] sm:$0xff]
  %v354 = vld [vmem:[%s1 + $0xa10] sm:$0xff]
  %v355 = vld [vmem:[%s1 + $0xa18] sm:$0xff]
  %v356 = vld [vmem:[%s1 + $0xa20] sm:$0xff]
  %v357 = vld [vmem:[%s1 + $0xa28] sm:$0xff]
  %v358 = vld [vmem:[%s1 + $0xa30] sm:$0xff]
  %v359 = vld [vmem:[%s1 + $0xa38] sm:$0xff]
  %v360 = vld [vmem:[%s1 + $0xa40] sm:$0xff]
  %v361 = vld [vmem:[%s1 + $0xa48] sm:$0xff]
  %v362 = vld [vmem:[%s1 + $0xa50] sm:$0xff]
  %v363 = vld [vmem:[%s1 + $0xa58] sm:$0xff]
  %v364 = vld [vmem:[%s1 + $0xa60] sm:$0xff]
  %v365 = vld [vmem:[%s1 + $0xa68] sm:$0xff]
  %v366 = vld [vmem:[%s1 + $0xa70] sm:$0xff]
  %v367 = vld [vmem:[%s1 + $0xa78] sm:$0xff]
  %v368 = vld [vmem:[%s1 + $0xa80] sm:$0xff]
  %v369 = vld [vmem:[%s1 + $0xa88] sm:$0xff]
  %v370 = vld [vmem:[%s1 + $0xa90] sm:$0xff]
  %v371 = vld [vmem:[%s1 + $0xa98] sm:$0xff]
  %v372 = vld [vmem:[%s1 + $0xaa0] sm:$0xff]
  %v373 = vld [vmem:[%s1 + $0xaa8] sm:$0xff]
  %v374 = vld [vmem:[%s1 + $0xab0] sm:$0xff]
  %v375 = vld [vmem:[%s1 + $0xab8] sm:$0xff]
  %v376 = vld [vmem:[%s1 + $0xac0] sm:$0xff]
  %v377 = vld [vmem:[%s1 + $0xac8] sm:$0xff]
  %v378 = vld [vmem:[%s1 + $0xad0] sm:$0xff]
  %v379 = vld [vmem:[%s1 + $0xad8] sm:$0xff]
  %v380 = vld [vmem:[%s1 + $0xae0] sm:$0xff]
  %v381 = vld [vmem:[%s1 + $0xae8] sm:$0xff]
  %v382 = vld [vmem:[%s1 + $0xaf0] sm:$0xff]
  %v383 = vld [vmem:[%s1 + $0xaf8] sm:$0xff]
  %v384 = vld [vmem:[%s1 + $0xb00] sm:$0xff]
  %v385 = vld [vmem:[%s1 + $0xb08] sm:$0xff]
  %v386 = vld [vmem:[%s1 + $0xb10] sm:$0xff]
  %v387 = vld [vmem:[%s1 + $0xb18] sm:$0xff]
  %v388 = vld [vmem:[%s1 + $0xb20] sm:$0xff]
  %v389 = vld [vmem:[%s1 + $0xb28] sm:$0xff]
  %v390 = vld [vmem:[%s1 + $0xb30] sm:$0xff]
  %v391 = vld [vmem:[%s1 + $0xb38] sm:$0xff]
  %v392 = vld [vmem:[%s1 + $0xb40] sm:$0xff]
  %v393 = vld [vmem:[%s1 + $0xb48] sm:$0xff]
  %v394 = vld [vmem:[%s1 + $0xb50] sm:$0xff]
  %v395 = vld [vmem:[%s1 + $0xb58] sm:$0xff]
  %v396 = vld [vmem:[%s1 + $0xb60] sm:$0xff]
  %v397 = vld [vmem:[%s1 + $0xb68] sm:$0xff]
  %v398 = vld [vmem:[%s1 + $0xb70] sm:$0xff]
  %v399 = vld [vmem:[%s1 + $0xb78] sm:$0xff]
  %v400 = vld [vmem:[%s1 + $0xb80] sm:$0xff]
  %v401 = vld [vmem:[%s1 + $0xb88] sm:$0xff]
  %v402 = vld [vmem:[%s1 + $0xb90] sm:$0xff]
  %v403 = vld [vmem:[%s1 + $0xb98] sm:$0xff]
  %v404 = vld [vmem:[%s1 + $0xba0] sm:$0xff]
  %v405 = vld [vmem:[%s1 + $0xba8] sm:$0xff]
  %v406 = vld [vmem:[%s1 + $0xbb0] sm:$0xff]
  %v407 = vld [vmem:[%s1 + $0xbb8] sm:$0xff]
  %v408 = vld [vmem:[%s1 + $0xbc0] sm:$0xff]
  %v409 = vld [vmem:[%s1 + $0xbc8] sm:$0xff]
  %v410 = vld [vmem:[%s1 + $0xbd0] sm:$0xff]
  %v411 = vld [vmem:[%s1 + $0xbd8] sm:$0xff]
  %v412 = vld [vmem:[%s1 + $0xbe0] sm:$0xff]
  %v413 = vld [vmem:[%s1 + $0xbe8] sm:$0xff]
  %v414 = vld [vmem:[%s1 + $0xbf0] sm:$0xff]
  %v415 = vld [vmem:[%s1 + $0xbf8] sm:$0xff]
  %v416 = vld [vmem:[%s1 + $0xc00] sm:$0xff]
  %v417 = vld [vmem:[%s1 + $0xc08] sm:$0xff]
  %v418 = vld [vmem:[%s1 + $0xc10] sm:$0xff]
  %v419 = vld [vmem:[%s1 + $0xc18] sm:$0xff]
  %v420 = vld [vmem:[%s1 + $0xc20] sm:$0xff]
  %v421 = vld [vmem:[%s1 + $0xc28] sm:$0xff]
  %v422 = vld [vmem:[%s1 + $0xc30] sm:$0xff]
  %v423 = vld [vmem:[%s1 + $0xc38] sm:$0xff]
  %v424 = vld [vmem:[%s1 + $0xc40] sm:$0xff]
  %v425 = vld [vmem:[%s1 + $0xc48] sm:$0xff]
  %v426 = vld [vmem:[%s1 + $0xc50] sm:$0xff]
  %v427 = vld [vmem:[%s1 + $0xc58] sm:$0xff]
  %v428 = vld [vmem:[%s1 + $0xc60] sm:$0xff]
  %v429 = vld [vmem:[%s1 + $0xc68] sm:$0xff]
  %v430 = vld [vmem:[%s1 + $0xc70] sm:$0xff]
  %v431 = vld [vmem:[%s1 + $0xc78] sm:$0xff]
  %v432 = vld [vmem:[%s1 + $0xc80] sm:$0xff]
  %v433 = vld [vmem:[%s1 + $0xc88] sm:$0xff]
  %v434 = vld [vmem:[%s1 + $0xc90] sm:$0xff]
  %v435 = vld [vmem:[%s1 + $0xc98] sm:$0xff]
  %v436 = vld [vmem:[%s1 + $0xca0] sm:$0xff]
  %v437 = vld [vmem:[%s1 + $0xca8] sm:$0xff]
  %v438 = vld [vmem:[%s1 + $0xcb0] sm:$0xff]
  %v439 = vld [vmem:[%s1 + $0xcb8] sm:$0xff]
  %v440 = vld [vmem:[%s1 + $0xcc0] sm:$0xff]
  %v441 = vld [vmem:[%s1 + $0xcc8] sm:$0xff]
  %v442 = vld [vmem:[%s1 + $0xcd0] sm:$0xff]
  %v443 = vld [vmem:[%s1 + $0xcd8] sm:$0xff]
  %v444 = vld [vmem:[%s1 + $0xce0] sm:$0xff]
  %v445 = vld [vmem:[%s1 + $0xce8] sm:$0xff]
  %v446 = vld [vmem:[%s1 + $0xcf0] sm:$0xff]
  %v447 = vld [vmem:[%s1 + $0xcf8] sm:$0xff]
  %v448 = vld [vmem:[%s1 + $0xd00] sm:$0xff]
  %v449 = vld [vmem:[%s1 + $0xd08] sm:$0xff]
  %v450 = vld [vmem:[%s1 + $0xd10] sm:$0xff]
  %v451 = vld [vmem:[%s1 + $0xd18] sm:$0xff]
  %v452 = vld [vmem:[%s1 + $0xd20] sm:$0xff]
  %v453 = vld [vmem:[%s1 + $0xd28] sm:$0xff]
  %v454 = vld [vmem:[%s1 + $0xd30] sm:$0xff]
  %v455 = vld [vmem:[%s1 + $0xd38] sm:$0xff]
  %v456 = vld [vmem:[%s1 + $0xd40] sm:$0xff]
  %v457 = vld [vmem:[%s1 + $0xd48] sm:$0xff]
  %v458 = vld [vmem:[%s1 + $0xd50] sm:$0xff]
  %v459 = vld [vmem:[%s1 + $0xd58] sm:$0xff]
  %v460 = vld [vmem:[%s1 + $0xd60] sm:$0xff]
  %v461 = vld [vmem:[%s1 + $0xd68] sm:$0xff]
  %v462 = vld [vmem:[%s1 + $0xd70] sm:$0xff]
  %v463 = vld [vmem:[%s1 + $0xd78] sm:$0xff]
  %v464 = vld [vmem:[%s1 + $0xd80] sm:$0xff]
  %v465 = vld [vmem:[%s1 + $0xd88] sm:$0xff]
  %v466 = vld [vmem:[%s1 + $0xd90] sm:$0xff]
  %v467 = vld [vmem:[%s1 + $0xd98] sm:$0xff]
  %v468 = vld [vmem:[%s1 + $0xda0] sm:$0xff]
  %v469 = vld [vmem:[%s1 + $0xda8] sm:$0xff]
  %v470 = vld [vmem:[%s1 + $0xdb0] sm:$0xff]
  %v471 = vld [vmem:[%s1 + $0xdb8] sm:$0xff]
  %v472 = vld [vmem:[%s1 + $0xdc0] sm:$0xff]
  %v473 = vld [vmem:[%s1 + $0xdc8] sm:$0xff]
  %v474 = vld [vmem:[%s1 + $0xdd0] sm:$0xff]
  %v475 = vld [vmem:[%s1 + $0xdd8] sm:$0xff]
  %v476 = vld [vmem:[%s1 + $0xde0] sm:$0xff]
  %v477 = vld [vmem:[%s1 + $0xde8] sm:$0xff]
  %v478 = vld [vmem:[%s1 + $0xdf0] sm:$0xff]
  %v479 = vld [vmem:[%s1 + $0xdf8] sm:$0xff]
  %v480 = vld [vmem:[%s1 + $0xe00] sm:$0xff]
  %v481 = vld [vmem:[%s1 + $0xe08] sm:$0xff]
  %v482 = vld [vmem:[%s1 + $0xe10] sm:$0xff]
  %v483 = vld [vmem:[%s1 + $0xe18] sm:$0xff]
  %v484 = vld [vmem:[%s1 + $0xe20] sm:$0xff]
  %v485 = vld [vmem:[%s1 + $0xe28] sm:$0xff]
  %v486 = vld [vmem:[%s1 + $0xe30] sm:$0xff]
  %v487 = vld [vmem:[%s1 + $0xe38] sm:$0xff]
  %v488 = vld [vmem:[%s1 + $0xe40] sm:$0xff]
  %v489 = vld [vmem:[%s1 + $0xe48] sm:$0xff]
  %v490 = vld [vmem:[%s1 + $0xe50] sm:$0xff]
  %v491 = vld [vmem:[%s1 + $0xe58] sm:$0xff]
  %v492 = vld [vmem:[%s1 + $0xe60] sm:$0xff]
  %v493 = vld [vmem:[%s1 + $0xe68] sm:$0xff]
  %v494 = vld [vmem:[%s1 + $0xe70] sm:$0xff]
  %v495 = vld [vmem:[%s1 + $0xe78] sm:$0xff]
  %v496 = vld [vmem:[%s1 + $0xe80] sm:$0xff]
  %v497 = vld [vmem:[%s1 + $0xe88] sm:$0xff]
  %v498 = vld [vmem:[%s1 + $0xe90] sm:$0xff]
  %v499 = vld [vmem:[%s1 + $0xe98] sm:$0xff]
  %v500 = vld [vmem:[%s1 + $0xea0] sm:$0xff]
  %v501 = vld [vmem:[%s1 + $0xea8] sm:$0xff]
  %v502 = vld [vmem:[%s1 + $0xeb0] sm:$0xff]
  %v503 = vld [vmem:[%s1 + $0xeb8] sm:$0xff]
  %v504 = vld [vmem:[%s1 + $0xec0] sm:$0xff]
  %v505 = vld [vmem:[%s1 + $0xec8] sm:$0xff]
  %v506 = vld [vmem:[%s1 + $0xed0] sm:$0xff]
  %v507 = vld [vmem:[%s1 + $0xed8] sm:$0xff]
  %v508 = vld [vmem:[%s1 + $0xee0] sm:$0xff]
  %v509 = vld [vmem:[%s1 + $0xee8] sm:$0xff]
  %v510 = vld [vmem:[%s1 + $0xef0] sm:$0xff]
  %v511 = vld [vmem:[%s1 + $0xef8] sm:$0xff]
  %v512 = vld [vmem:[%s1 + $0xf00] sm:$0xff]
  %v513 = vld [vmem:[%s1 + $0xf08] sm:$0xff]
  %v514 = vld [vmem:[%s1 + $0xf10] sm:$0xff]
  %v515 = vld [vmem:[%s1 + $0xf18] sm:$0xff]
  %v516 = vld [vmem:[%s1 + $0xf20] sm:$0xff]
  %v517 = vld [vmem:[%s1 + $0xf28] sm:$0xff]
  %v518 = vld [vmem:[%s1 + $0xf30] sm:$0xff]
  %v519 = vld [vmem:[%s1 + $0xf38] sm:$0xff]
  %v520 = vld [vmem:[%s1 + $0xf40] sm:$0xff]
  %v521 = vld [vmem:[%s1 + $0xf48] sm:$0xff]
  %v522 = vld [vmem:[%s1 + $0xf50] sm:$0xff]
  %v523 = vld [vmem:[%s1 + $0xf58] sm:$0xff]
  %v524 = vld [vmem:[%s1 + $0xf60] sm:$0xff]
  %v525 = vld [vmem:[%s1 + $0xf68] sm:$0xff]
  %v526 = vld [vmem:[%s1 + $0xf70] sm:$0xff]
  %v527 = vld [vmem:[%s1 + $0xf78] sm:$0xff]
  %v528 = vld [vmem:[%s1 + $0xf80] sm:$0xff]
  %v529 = vld [vmem:[%s1 + $0xf88] sm:$0xff]
  %v530 = vld [vmem:[%s1 + $0xf90] sm:$0xff]
  %v531 = vld [vmem:[%s1 + $0xf98] sm:$0xff]
  %v532 = vld [vmem:[%s1 + $0xfa0] sm:$0xff]
  %v533 = vld [vmem:[%s1 + $0xfa8] sm:$0xff]
  %v534 = vld [vmem:[%s1 + $0xfb0] sm:$0xff]
  %v535 = vld [vmem:[%s1 + $0xfb8] sm:$0xff]
  %v536 = vld [vmem:[%s1 + $0xfc0] sm:$0xff]
  %v537 = vld [vmem:[%s1 + $0xfc8] sm:$0xff]
  %v538 = vld [vmem:[%s1 + $0xfd0] sm:$0xff]
  %v539 = vld [vmem:[%s1 + $0xfd8] sm:$0xff]
  %v540 = vld [vmem:[%s1 + $0xfe0] sm:$0xff]
  %v541 = vld [vmem:[%s1 + $0xfe8] sm:$0xff]
  %v542 = vld [vmem:[%s1 + $0xff0] sm:$0xff]
  %v543 = vld [vmem:[%s1 + $0xff8] sm:$0xff]
  %v544 = vld [vmem:[%s1 + $0x1000] sm:$0xff]
  %v545 = vld [vmem:[%s1 + $0x1008] sm:$0xff]
  %v546 = vld [vmem:[%s1 + $0x1010] sm:$0xff]
  %v547 = vld [vmem:[%s1 + $0x1018] sm:$0xff]
  %v548 = vld [vmem:[%s1 + $0x1020] sm:$0xff]
  %v549 = vld [vmem:[%s1 + $0x1028] sm:$0xff]
  %v550 = vld [vmem:[%s1 + $0x1030] sm:$0xff]
  %v551 = vld [vmem:[%s1 + $0x1038] sm:$0xff]
  %v552 = vld [vmem:[%s1 + $0x1040] sm:$0xff]
  %v553 = vld [vmem:[%s1 + $0x1048] sm:$0xff]
  %v554 = vld [vmem:[%s1 + $0x1050] sm:$0xff]
  %v555 = vld [vmem:[%s1 + $0x1058] sm:$0xff]
  %v556 = vld [vmem:[%s1 + $0x1060] sm:$0xff]
  %v557 = vld [vmem:[%s1 + $0x1068] sm:$0xff]
  %v558 = vld [vmem:[%s1 + $0x1070] sm:$0xff]
  %v559 = vld [vmem:[%s1 + $0x1078] sm:$0xff]
  %v560 = vld [vmem:[%s1 + $0x1080] sm:$0xff]
  %v561 = vld [vmem:[%s1 + $0x1088] sm:$0xff]
  %v562 = vld [vmem:[%s1 + $0x1090] sm:$0xff]
  %v563 = vld [vmem:[%s1 + $0x1098] sm:$0xff]
  %v564 = vld [vmem:[%s1 + $0x10a0] sm:$0xff]
  %v565 = vld [vmem:[%s1 + $0x10a8] sm:$0xff]
  %v566 = vld [vmem:[%s1 + $0x10b0] sm:$0xff]
  %v567 = vld [vmem:[%s1 + $0x10b8] sm:$0xff]
  %v568 = vld [vmem:[%s1 + $0x10c0] sm:$0xff]
  %v569 = vld [vmem:[%s1 + $0x10c8] sm:$0xff]
  %v570 = vld [vmem:[%s1 + $0x10d0] sm:$0xff]
  %v571 = vld [vmem:[%s1 + $0x10d8] sm:$0xff]
  %v572 = vld [vmem:[%s1 + $0x10e0] sm:$0xff]
  %v573 = vld [vmem:[%s1 + $0x10e8] sm:$0xff]
  %v574 = vld [vmem:[%s1 + $0x10f0] sm:$0xff]
  %v575 = vld [vmem:[%s1 + $0x10f8] sm:$0xff]
  %v576 = vld [vmem:[%s1 + $0x1100] sm:$0xff]
  %v577 = vld [vmem:[%s1 + $0x1108] sm:$0xff]
  %v578 = vld [vmem:[%s1 + $0x1110] sm:$0xff]
  %v579 = vld [vmem:[%s1 + $0x1118] sm:$0xff]
  %v580 = vld [vmem:[%s1 + $0x1120] sm:$0xff]
  %v581 = vld [vmem:[%s1 + $0x1128] sm:$0xff]
  %v582 = vld [vmem:[%s1 + $0x1130] sm:$0xff]
  %v583 = vld [vmem:[%s1 + $0x1138] sm:$0xff]
  %v584 = vld [vmem:[%s1 + $0x1140] sm:$0xff]
  %v585 = vld [vmem:[%s1 + $0x1148] sm:$0xff]
  %v586 = vld [vmem:[%s1 + $0x1150] sm:$0xff]
  %v587 = vld [vmem:[%s1 + $0x1158] sm:$0xff]
  %v588 = vld [vmem:[%s1 + $0x1160] sm:$0xff]
  %v589 = vld [vmem:[%s1 + $0x1168] sm:$0xff]
  %v590 = vld [vmem:[%s1 + $0x1170] sm:$0xff]
  %v591 = vld [vmem:[%s1 + $0x1178] sm:$0xff]
  %v592 = vld [vmem:[%s1 + $0x1180] sm:$0xff]
  %v593 = vld [vmem:[%s1 + $0x1188] sm:$0xff]
  %v594 = vld [vmem:[%s1 + $0x1190] sm:$0xff]
  %v595 = vld [vmem:[%s1 + $0x1198] sm:$0xff]
  %v596 = vld [vmem:[%s1 + $0x11a0] sm:$0xff]
  %v597 = vld [vmem:[%s1 + $0x11a8] sm:$0xff]
  %v598 = vld [vmem:[%s1 + $0x11b0] sm:$0xff]
  %v599 = vld [vmem:[%s1 + $0x11b8] sm:$0xff]
  %v600 = vld [vmem:[%s1 + $0x11c0] sm:$0xff]
  %v601 = vld [vmem:[%s1 + $0x11c8] sm:$0xff]
  %v602 = vld [vmem:[%s1 + $0x11d0] sm:$0xff]
  %v603 = vld [vmem:[%s1 + $0x11d8] sm:$0xff]
  %v604 = vld [vmem:[%s1 + $0x11e0] sm:$0xff]
  %v605 = vld [vmem:[%s1 + $0x11e8] sm:$0xff]
  %v606 = vld [vmem:[%s1 + $0x11f0] sm:$0xff]
  %v607 = vld [vmem:[%s1 + $0x11f8] sm:$0xff]
  %v608 = vld [vmem:[%s2] sm:$0xf]
  %v610 = vlaneseq
  %v611 = vshrl.u32 %v610, 7
  %v612 = vsub.s32 0, %v611
  %v613 = vrot.slane %v608, %v612
  %v614 = vlaneseq
  %v615 = vshrl.u32 %v614, 7
  %v616 = vsub.s32 1, %v615
  %v617 = vrot.slane %v608, %v616
  %v618 = vlaneseq
  %v619 = vshrl.u32 %v618, 7
  %v620 = vsub.s32 2, %v619
  %v621 = vrot.slane %v608, %v620
  %v622 = vlaneseq
  %v623 = vshrl.u32 %v622, 7
  %v624 = vsub.s32 3, %v623
  %v625 = vrot.slane %v608, %v624
  %v648 = vunpack.c.l.b16 %v14
  %v649 = vunpack.c.h.b16 %v14
  %v650 = vunpack.c.l.b16 %v15
  %v651 = vunpack.c.h.b16 %v15
  %v652 = vunpack.c.l.b16 %v16
  %v653 = vunpack.c.h.b16 %v16
  %v654 = vunpack.c.l.b16 %v17
  %v655 = vunpack.c.h.b16 %v17
  %v656 = vunpack.c.l.b16 %v18
  %v657 = vunpack.c.h.b16 %v18
  %v658 = vunpack.c.l.b16 %v19
  %v659 = vunpack.c.h.b16 %v19
  %v660 = vunpack.c.l.b16 %v20
  %v661 = vunpack.c.h.b16 %v20
  %v662 = vunpack.c.l.b16 %v21
  %v663 = vunpack.c.h.b16 %v21
  %v664 = vunpack.c.l.b16 %v22
  %v665 = vunpack.c.h.b16 %v22
  %v666 = vunpack.c.l.b16 %v23
  %v667 = vunpack.c.h.b16 %v23
  %v668 = vunpack.c.l.b16 %v24
  %v669 = vunpack.c.h.b16 %v24
  %v670 = vunpack.c.l.b16 %v25
  %v671 = vunpack.c.h.b16 %v25
  %v672 = vunpack.c.l.b16 %v26
  %v673 = vunpack.c.h.b16 %v26
  %v674 = vunpack.c.l.b16 %v27
  %v675 = vunpack.c.h.b16 %v27
  %v676 = vunpack.c.l.b16 %v28
  %v677 = vunpack.c.h.b16 %v28
  %v678 = vunpack.c.l.b16 %v29
  %v679 = vunpack.c.h.b16 %v29
  %v680 = vunpack.c.l.b16 %v30
  %v681 = vunpack.c.h.b16 %v30
  %v682 = vunpack.c.l.b16 %v31
  %v683 = vunpack.c.h.b16 %v31
  %v684 = vpack.c.b16 %v666, %v648
  %v685 = vpack.c.b16 %v667, %v649
  %v686 = vpack.c.b16 %v668, %v650
  %v687 = vpack.c.b16 %v669, %v651
  %v688 = vpack.c.b16 %v670, %v652
  %v689 = vpack.c.b16 %v671, %v653
  %v690 = vpack.c.b16 %v672, %v654
  %v691 = vpack.c.b16 %v673, %v655
  %v692 = vpack.c.b16 %v674, %v656
  %v693 = vpack.c.b16 %v675, %v657
  %v694 = vpack.c.b16 %v676, %v658
  %v695 = vpack.c.b16 %v677, %v659
  %v696 = vpack.c.b16 %v678, %v660
  %v697 = vpack.c.b16 %v679, %v661
  %v698 = vpack.c.b16 %v680, %v662
  %v699 = vpack.c.b16 %v681, %v663
  %v700 = vpack.c.b16 %v682, %v664
  %v701 = vpack.c.b16 %v683, %v665
  %v1296 = vunpack.c.l.b16 %v32
  %v1297 = vunpack.c.h.b16 %v32
  %v1298 = vunpack.c.l.b16 %v33
  %v1299 = vunpack.c.h.b16 %v33
  %v1300 = vunpack.c.l.b16 %v34
  %v1301 = vunpack.c.h.b16 %v34
  %v1302 = vunpack.c.l.b16 %v35
  %v1303 = vunpack.c.h.b16 %v35
  %v1304 = vunpack.c.l.b16 %v36
  %v1305 = vunpack.c.h.b16 %v36
  %v1306 = vunpack.c.l.b16 %v37
  %v1307 = vunpack.c.h.b16 %v37
  %v1308 = vunpack.c.l.b16 %v38
  %v1309 = vunpack.c.h.b16 %v38
  %v1310 = vunpack.c.l.b16 %v39
  %v1311 = vunpack.c.h.b16 %v39
  %v1312 = vunpack.c.l.b16 %v40
  %v1313 = vunpack.c.h.b16 %v40
  %v1314 = vunpack.c.l.b16 %v41
  %v1315 = vunpack.c.h.b16 %v41
  %v1316 = vunpack.c.l.b16 %v42
  %v1317 = vunpack.c.h.b16 %v42
  %v1318 = vunpack.c.l.b16 %v43
  %v1319 = vunpack.c.h.b16 %v43
  %v1320 = vunpack.c.l.b16 %v44
  %v1321 = vunpack.c.h.b16 %v44
  %v1322 = vunpack.c.l.b16 %v45
  %v1323 = vunpack.c.h.b16 %v45
  %v1324 = vunpack.c.l.b16 %v46
  %v1325 = vunpack.c.h.b16 %v46
  %v1326 = vunpack.c.l.b16 %v47
  %v1327 = vunpack.c.h.b16 %v47
  %v1328 = vunpack.c.l.b16 %v48
  %v1329 = vunpack.c.h.b16 %v48
  %v1330 = vunpack.c.l.b16 %v49
  %v1331 = vunpack.c.h.b16 %v49
  %v1332 = vunpack.c.l.b16 %v50
  %v1333 = vunpack.c.h.b16 %v50
  %v1334 = vunpack.c.l.b16 %v51
  %v1335 = vunpack.c.h.b16 %v51
  %v1336 = vunpack.c.l.b16 %v52
  %v1337 = vunpack.c.h.b16 %v52
  %v1338 = vunpack.c.l.b16 %v53
  %v1339 = vunpack.c.h.b16 %v53
  %v1340 = vunpack.c.l.b16 %v54
  %v1341 = vunpack.c.h.b16 %v54
  %v1342 = vunpack.c.l.b16 %v55
  %v1343 = vunpack.c.h.b16 %v55
  %v1344 = vunpack.c.l.b16 %v56
  %v1345 = vunpack.c.h.b16 %v56
  %v1346 = vunpack.c.l.b16 %v57
  %v1347 = vunpack.c.h.b16 %v57
  %v1348 = vunpack.c.l.b16 %v58
  %v1349 = vunpack.c.h.b16 %v58
  %v1350 = vunpack.c.l.b16 %v59
  %v1351 = vunpack.c.h.b16 %v59
  %v1352 = vunpack.c.l.b16 %v60
  %v1353 = vunpack.c.h.b16 %v60
  %v1354 = vunpack.c.l.b16 %v61
  %v1355 = vunpack.c.h.b16 %v61
  %v1356 = vunpack.c.l.b16 %v62
  %v1357 = vunpack.c.h.b16 %v62
  %v1358 = vunpack.c.l.b16 %v63
  %v1359 = vunpack.c.h.b16 %v63
  %v1360 = vunpack.c.l.b16 %v64
  %v1361 = vunpack.c.h.b16 %v64
  %v1362 = vunpack.c.l.b16 %v65
  %v1363 = vunpack.c.h.b16 %v65
  %v1364 = vunpack.c.l.b16 %v66
  %v1365 = vunpack.c.h.b16 %v66
  %v1366 = vunpack.c.l.b16 %v67
  %v1367 = vunpack.c.h.b16 %v67
  %v1368 = vunpack.c.l.b16 %v68
  %v1369 = vunpack.c.h.b16 %v68
  %v1370 = vunpack.c.l.b16 %v69
  %v1371 = vunpack.c.h.b16 %v69
  %v1372 = vunpack.c.l.b16 %v70
  %v1373 = vunpack.c.h.b16 %v70
  %v1374 = vunpack.c.l.b16 %v71
  %v1375 = vunpack.c.h.b16 %v71
  %v1376 = vunpack.c.l.b16 %v72
  %v1377 = vunpack.c.h.b16 %v72
  %v1378 = vunpack.c.l.b16 %v73
  %v1379 = vunpack.c.h.b16 %v73
  %v1380 = vunpack.c.l.b16 %v74
  %v1381 = vunpack.c.h.b16 %v74
  %v1382 = vunpack.c.l.b16 %v75
  %v1383 = vunpack.c.h.b16 %v75
  %v1384 = vunpack.c.l.b16 %v76
  %v1385 = vunpack.c.h.b16 %v76
  %v1386 = vunpack.c.l.b16 %v77
  %v1387 = vunpack.c.h.b16 %v77
  %v1388 = vunpack.c.l.b16 %v78
  %v1389 = vunpack.c.h.b16 %v78
  %v1390 = vunpack.c.l.b16 %v79
  %v1391 = vunpack.c.h.b16 %v79
  %v1392 = vunpack.c.l.b16 %v80
  %v1393 = vunpack.c.h.b16 %v80
  %v1394 = vunpack.c.l.b16 %v81
  %v1395 = vunpack.c.h.b16 %v81
  %v1396 = vunpack.c.l.b16 %v82
  %v1397 = vunpack.c.h.b16 %v82
  %v1398 = vunpack.c.l.b16 %v83
  %v1399 = vunpack.c.h.b16 %v83
  %v1400 = vunpack.c.l.b16 %v84
  %v1401 = vunpack.c.h.b16 %v84
  %v1402 = vunpack.c.l.b16 %v85
  %v1403 = vunpack.c.h.b16 %v85
  %v1404 = vunpack.c.l.b16 %v86
  %v1405 = vunpack.c.h.b16 %v86
  %v1406 = vunpack.c.l.b16 %v87
  %v1407 = vunpack.c.h.b16 %v87
  %v1408 = vunpack.c.l.b16 %v88
  %v1409 = vunpack.c.h.b16 %v88
  %v1410 = vunpack.c.l.b16 %v89
  %v1411 = vunpack.c.h.b16 %v89
  %v1412 = vunpack.c.l.b16 %v90
  %v1413 = vunpack.c.h.b16 %v90
  %v1414 = vunpack.c.l.b16 %v91
  %v1415 = vunpack.c.h.b16 %v91
  %v1416 = vunpack.c.l.b16 %v92
  %v1417 = vunpack.c.h.b16 %v92
  %v1418 = vunpack.c.l.b16 %v93
  %v1419 = vunpack.c.h.b16 %v93
  %v1420 = vunpack.c.l.b16 %v94
  %v1421 = vunpack.c.h.b16 %v94
  %v1422 = vunpack.c.l.b16 %v95
  %v1423 = vunpack.c.h.b16 %v95
  %v1424 = vunpack.c.l.b16 %v96
  %v1425 = vunpack.c.h.b16 %v96
  %v1426 = vunpack.c.l.b16 %v97
  %v1427 = vunpack.c.h.b16 %v97
  %v1428 = vunpack.c.l.b16 %v98
  %v1429 = vunpack.c.h.b16 %v98
  %v1430 = vunpack.c.l.b16 %v99
  %v1431 = vunpack.c.h.b16 %v99
  %v1432 = vunpack.c.l.b16 %v100
  %v1433 = vunpack.c.h.b16 %v100
  %v1434 = vunpack.c.l.b16 %v101
  %v1435 = vunpack.c.h.b16 %v101
  %v1436 = vunpack.c.l.b16 %v102
  %v1437 = vunpack.c.h.b16 %v102
  %v1438 = vunpack.c.l.b16 %v103
  %v1439 = vunpack.c.h.b16 %v103
  %v1440 = vunpack.c.l.b16 %v104
  %v1441 = vunpack.c.h.b16 %v104
  %v1442 = vunpack.c.l.b16 %v105
  %v1443 = vunpack.c.h.b16 %v105
  %v1444 = vunpack.c.l.b16 %v106
  %v1445 = vunpack.c.h.b16 %v106
  %v1446 = vunpack.c.l.b16 %v107
  %v1447 = vunpack.c.h.b16 %v107
  %v1448 = vunpack.c.l.b16 %v108
  %v1449 = vunpack.c.h.b16 %v108
  %v1450 = vunpack.c.l.b16 %v109
  %v1451 = vunpack.c.h.b16 %v109
  %v1452 = vunpack.c.l.b16 %v110
  %v1453 = vunpack.c.h.b16 %v110
  %v1454 = vunpack.c.l.b16 %v111
  %v1455 = vunpack.c.h.b16 %v111
  %v1456 = vunpack.c.l.b16 %v112
  %v1457 = vunpack.c.h.b16 %v112
  %v1458 = vunpack.c.l.b16 %v113
  %v1459 = vunpack.c.h.b16 %v113
  %v1460 = vunpack.c.l.b16 %v114
  %v1461 = vunpack.c.h.b16 %v114
  %v1462 = vunpack.c.l.b16 %v115
  %v1463 = vunpack.c.h.b16 %v115
  %v1464 = vunpack.c.l.b16 %v116
  %v1465 = vunpack.c.h.b16 %v116
  %v1466 = vunpack.c.l.b16 %v117
  %v1467 = vunpack.c.h.b16 %v117
  %v1468 = vunpack.c.l.b16 %v118
  %v1469 = vunpack.c.h.b16 %v118
  %v1470 = vunpack.c.l.b16 %v119
  %v1471 = vunpack.c.h.b16 %v119
  %v1472 = vunpack.c.l.b16 %v120
  %v1473 = vunpack.c.h.b16 %v120
  %v1474 = vunpack.c.l.b16 %v121
  %v1475 = vunpack.c.h.b16 %v121
  %v1476 = vunpack.c.l.b16 %v122
  %v1477 = vunpack.c.h.b16 %v122
  %v1478 = vunpack.c.l.b16 %v123
  %v1479 = vunpack.c.h.b16 %v123
  %v1480 = vunpack.c.l.b16 %v124
  %v1481 = vunpack.c.h.b16 %v124
  %v1482 = vunpack.c.l.b16 %v125
  %v1483 = vunpack.c.h.b16 %v125
  %v1484 = vunpack.c.l.b16 %v126
  %v1485 = vunpack.c.h.b16 %v126
  %v1486 = vunpack.c.l.b16 %v127
  %v1487 = vunpack.c.h.b16 %v127
  %v1488 = vunpack.c.l.b16 %v128
  %v1489 = vunpack.c.h.b16 %v128
  %v1490 = vunpack.c.l.b16 %v129
  %v1491 = vunpack.c.h.b16 %v129
  %v1492 = vunpack.c.l.b16 %v130
  %v1493 = vunpack.c.h.b16 %v130
  %v1494 = vunpack.c.l.b16 %v131
  %v1495 = vunpack.c.h.b16 %v131
  %v1496 = vunpack.c.l.b16 %v132
  %v1497 = vunpack.c.h.b16 %v132
  %v1498 = vunpack.c.l.b16 %v133
  %v1499 = vunpack.c.h.b16 %v133
  %v1500 = vunpack.c.l.b16 %v134
  %v1501 = vunpack.c.h.b16 %v134
  %v1502 = vunpack.c.l.b16 %v135
  %v1503 = vunpack.c.h.b16 %v135
  %v1504 = vunpack.c.l.b16 %v136
  %v1505 = vunpack.c.h.b16 %v136
  %v1506 = vunpack.c.l.b16 %v137
  %v1507 = vunpack.c.h.b16 %v137
  %v1508 = vunpack.c.l.b16 %v138
  %v1509 = vunpack.c.h.b16 %v138
  %v1510 = vunpack.c.l.b16 %v139
  %v1511 = vunpack.c.h.b16 %v139
  %v1512 = vunpack.c.l.b16 %v140
  %v1513 = vunpack.c.h.b16 %v140
  %v1514 = vunpack.c.l.b16 %v141
  %v1515 = vunpack.c.h.b16 %v141
  %v1516 = vunpack.c.l.b16 %v142
  %v1517 = vunpack.c.h.b16 %v142
  %v1518 = vunpack.c.l.b16 %v143
  %v1519 = vunpack.c.h.b16 %v143
  %v1520 = vunpack.c.l.b16 %v144
  %v1521 = vunpack.c.h.b16 %v144
  %v1522 = vunpack.c.l.b16 %v145
  %v1523 = vunpack.c.h.b16 %v145
  %v1524 = vunpack.c.l.b16 %v146
  %v1525 = vunpack.c.h.b16 %v146
  %v1526 = vunpack.c.l.b16 %v147
  %v1527 = vunpack.c.h.b16 %v147
  %v1528 = vunpack.c.l.b16 %v148
  %v1529 = vunpack.c.h.b16 %v148
  %v1530 = vunpack.c.l.b16 %v149
  %v1531 = vunpack.c.h.b16 %v149
  %v1532 = vunpack.c.l.b16 %v150
  %v1533 = vunpack.c.h.b16 %v150
  %v1534 = vunpack.c.l.b16 %v151
  %v1535 = vunpack.c.h.b16 %v151
  %v1536 = vunpack.c.l.b16 %v152
  %v1537 = vunpack.c.h.b16 %v152
  %v1538 = vunpack.c.l.b16 %v153
  %v1539 = vunpack.c.h.b16 %v153
  %v1540 = vunpack.c.l.b16 %v154
  %v1541 = vunpack.c.h.b16 %v154
  %v1542 = vunpack.c.l.b16 %v155
  %v1543 = vunpack.c.h.b16 %v155
  %v1544 = vunpack.c.l.b16 %v156
  %v1545 = vunpack.c.h.b16 %v156
  %v1546 = vunpack.c.l.b16 %v157
  %v1547 = vunpack.c.h.b16 %v157
  %v1548 = vunpack.c.l.b16 %v158
  %v1549 = vunpack.c.h.b16 %v158
  %v1550 = vunpack.c.l.b16 %v159
  %v1551 = vunpack.c.h.b16 %v159
  %v1552 = vunpack.c.l.b16 %v160
  %v1553 = vunpack.c.h.b16 %v160
  %v1554 = vunpack.c.l.b16 %v161
  %v1555 = vunpack.c.h.b16 %v161
  %v1556 = vunpack.c.l.b16 %v162
  %v1557 = vunpack.c.h.b16 %v162
  %v1558 = vunpack.c.l.b16 %v163
  %v1559 = vunpack.c.h.b16 %v163
  %v1560 = vunpack.c.l.b16 %v164
  %v1561 = vunpack.c.h.b16 %v164
  %v1562 = vunpack.c.l.b16 %v165
  %v1563 = vunpack.c.h.b16 %v165
  %v1564 = vunpack.c.l.b16 %v166
  %v1565 = vunpack.c.h.b16 %v166
  %v1566 = vunpack.c.l.b16 %v167
  %v1567 = vunpack.c.h.b16 %v167
  %v1568 = vunpack.c.l.b16 %v168
  %v1569 = vunpack.c.h.b16 %v168
  %v1570 = vunpack.c.l.b16 %v169
  %v1571 = vunpack.c.h.b16 %v169
  %v1572 = vunpack.c.l.b16 %v170
  %v1573 = vunpack.c.h.b16 %v170
  %v1574 = vunpack.c.l.b16 %v171
  %v1575 = vunpack.c.h.b16 %v171
  %v1576 = vunpack.c.l.b16 %v172
  %v1577 = vunpack.c.h.b16 %v172
  %v1578 = vunpack.c.l.b16 %v173
  %v1579 = vunpack.c.h.b16 %v173
  %v1580 = vunpack.c.l.b16 %v174
  %v1581 = vunpack.c.h.b16 %v174
  %v1582 = vunpack.c.l.b16 %v175
  %v1583 = vunpack.c.h.b16 %v175
  %v1584 = vunpack.c.l.b16 %v176
  %v1585 = vunpack.c.h.b16 %v176
  %v1586 = vunpack.c.l.b16 %v177
  %v1587 = vunpack.c.h.b16 %v177
  %v1588 = vunpack.c.l.b16 %v178
  %v1589 = vunpack.c.h.b16 %v178
  %v1590 = vunpack.c.l.b16 %v179
  %v1591 = vunpack.c.h.b16 %v179
  %v1592 = vunpack.c.l.b16 %v180
  %v1593 = vunpack.c.h.b16 %v180
  %v1594 = vunpack.c.l.b16 %v181
  %v1595 = vunpack.c.h.b16 %v181
  %v1596 = vunpack.c.l.b16 %v182
  %v1597 = vunpack.c.h.b16 %v182
  %v1598 = vunpack.c.l.b16 %v183
  %v1599 = vunpack.c.h.b16 %v183
  %v1600 = vunpack.c.l.b16 %v184
  %v1601 = vunpack.c.h.b16 %v184
  %v1602 = vunpack.c.l.b16 %v185
  %v1603 = vunpack.c.h.b16 %v185
  %v1604 = vunpack.c.l.b16 %v186
  %v1605 = vunpack.c.h.b16 %v186
  %v1606 = vunpack.c.l.b16 %v187
  %v1607 = vunpack.c.h.b16 %v187
  %v1608 = vunpack.c.l.b16 %v188
  %v1609 = vunpack.c.h.b16 %v188
  %v1610 = vunpack.c.l.b16 %v189
  %v1611 = vunpack.c.h.b16 %v189
  %v1612 = vunpack.c.l.b16 %v190
  %v1613 = vunpack.c.h.b16 %v190
  %v1614 = vunpack.c.l.b16 %v191
  %v1615 = vunpack.c.h.b16 %v191
  %v1616 = vunpack.c.l.b16 %v192
  %v1617 = vunpack.c.h.b16 %v192
  %v1618 = vunpack.c.l.b16 %v193
  %v1619 = vunpack.c.h.b16 %v193
  %v1620 = vunpack.c.l.b16 %v194
  %v1621 = vunpack.c.h.b16 %v194
  %v1622 = vunpack.c.l.b16 %v195
  %v1623 = vunpack.c.h.b16 %v195
  %v1624 = vunpack.c.l.b16 %v196
  %v1625 = vunpack.c.h.b16 %v196
  %v1626 = vunpack.c.l.b16 %v197
  %v1627 = vunpack.c.h.b16 %v197
  %v1628 = vunpack.c.l.b16 %v198
  %v1629 = vunpack.c.h.b16 %v198
  %v1630 = vunpack.c.l.b16 %v199
  %v1631 = vunpack.c.h.b16 %v199
  %v1632 = vunpack.c.l.b16 %v200
  %v1633 = vunpack.c.h.b16 %v200
  %v1634 = vunpack.c.l.b16 %v201
  %v1635 = vunpack.c.h.b16 %v201
  %v1636 = vunpack.c.l.b16 %v202
  %v1637 = vunpack.c.h.b16 %v202
  %v1638 = vunpack.c.l.b16 %v203
  %v1639 = vunpack.c.h.b16 %v203
  %v1640 = vunpack.c.l.b16 %v204
  %v1641 = vunpack.c.h.b16 %v204
  %v1642 = vunpack.c.l.b16 %v205
  %v1643 = vunpack.c.h.b16 %v205
  %v1644 = vunpack.c.l.b16 %v206
  %v1645 = vunpack.c.h.b16 %v206
  %v1646 = vunpack.c.l.b16 %v207
  %v1647 = vunpack.c.h.b16 %v207
  %v1648 = vunpack.c.l.b16 %v208
  %v1649 = vunpack.c.h.b16 %v208
  %v1650 = vunpack.c.l.b16 %v209
  %v1651 = vunpack.c.h.b16 %v209
  %v1652 = vunpack.c.l.b16 %v210
  %v1653 = vunpack.c.h.b16 %v210
  %v1654 = vunpack.c.l.b16 %v211
  %v1655 = vunpack.c.h.b16 %v211
  %v1656 = vunpack.c.l.b16 %v212
  %v1657 = vunpack.c.h.b16 %v212
  %v1658 = vunpack.c.l.b16 %v213
  %v1659 = vunpack.c.h.b16 %v213
  %v1660 = vunpack.c.l.b16 %v214
  %v1661 = vunpack.c.h.b16 %v214
  %v1662 = vunpack.c.l.b16 %v215
  %v1663 = vunpack.c.h.b16 %v215
  %v1664 = vunpack.c.l.b16 %v216
  %v1665 = vunpack.c.h.b16 %v216
  %v1666 = vunpack.c.l.b16 %v217
  %v1667 = vunpack.c.h.b16 %v217
  %v1668 = vunpack.c.l.b16 %v218
  %v1669 = vunpack.c.h.b16 %v218
  %v1670 = vunpack.c.l.b16 %v219
  %v1671 = vunpack.c.h.b16 %v219
  %v1672 = vunpack.c.l.b16 %v220
  %v1673 = vunpack.c.h.b16 %v220
  %v1674 = vunpack.c.l.b16 %v221
  %v1675 = vunpack.c.h.b16 %v221
  %v1676 = vunpack.c.l.b16 %v222
  %v1677 = vunpack.c.h.b16 %v222
  %v1678 = vunpack.c.l.b16 %v223
  %v1679 = vunpack.c.h.b16 %v223
  %v1680 = vunpack.c.l.b16 %v224
  %v1681 = vunpack.c.h.b16 %v224
  %v1682 = vunpack.c.l.b16 %v225
  %v1683 = vunpack.c.h.b16 %v225
  %v1684 = vunpack.c.l.b16 %v226
  %v1685 = vunpack.c.h.b16 %v226
  %v1686 = vunpack.c.l.b16 %v227
  %v1687 = vunpack.c.h.b16 %v227
  %v1688 = vunpack.c.l.b16 %v228
  %v1689 = vunpack.c.h.b16 %v228
  %v1690 = vunpack.c.l.b16 %v229
  %v1691 = vunpack.c.h.b16 %v229
  %v1692 = vunpack.c.l.b16 %v230
  %v1693 = vunpack.c.h.b16 %v230
  %v1694 = vunpack.c.l.b16 %v231
  %v1695 = vunpack.c.h.b16 %v231
  %v1696 = vunpack.c.l.b16 %v232
  %v1697 = vunpack.c.h.b16 %v232
  %v1698 = vunpack.c.l.b16 %v233
  %v1699 = vunpack.c.h.b16 %v233
  %v1700 = vunpack.c.l.b16 %v234
  %v1701 = vunpack.c.h.b16 %v234
  %v1702 = vunpack.c.l.b16 %v235
  %v1703 = vunpack.c.h.b16 %v235
  %v1704 = vunpack.c.l.b16 %v236
  %v1705 = vunpack.c.h.b16 %v236
  %v1706 = vunpack.c.l.b16 %v237
  %v1707 = vunpack.c.h.b16 %v237
  %v1708 = vunpack.c.l.b16 %v238
  %v1709 = vunpack.c.h.b16 %v238
  %v1710 = vunpack.c.l.b16 %v239
  %v1711 = vunpack.c.h.b16 %v239
  %v1712 = vunpack.c.l.b16 %v240
  %v1713 = vunpack.c.h.b16 %v240
  %v1714 = vunpack.c.l.b16 %v241
  %v1715 = vunpack.c.h.b16 %v241
  %v1716 = vunpack.c.l.b16 %v242
  %v1717 = vunpack.c.h.b16 %v242
  %v1718 = vunpack.c.l.b16 %v243
  %v1719 = vunpack.c.h.b16 %v243
  %v1720 = vunpack.c.l.b16 %v244
  %v1721 = vunpack.c.h.b16 %v244
  %v1722 = vunpack.c.l.b16 %v245
  %v1723 = vunpack.c.h.b16 %v245
  %v1724 = vunpack.c.l.b16 %v246
  %v1725 = vunpack.c.h.b16 %v246
  %v1726 = vunpack.c.l.b16 %v247
  %v1727 = vunpack.c.h.b16 %v247
  %v1728 = vunpack.c.l.b16 %v248
  %v1729 = vunpack.c.h.b16 %v248
  %v1730 = vunpack.c.l.b16 %v249
  %v1731 = vunpack.c.h.b16 %v249
  %v1732 = vunpack.c.l.b16 %v250
  %v1733 = vunpack.c.h.b16 %v250
  %v1734 = vunpack.c.l.b16 %v251
  %v1735 = vunpack.c.h.b16 %v251
  %v1736 = vunpack.c.l.b16 %v252
  %v1737 = vunpack.c.h.b16 %v252
  %v1738 = vunpack.c.l.b16 %v253
  %v1739 = vunpack.c.h.b16 %v253
  %v1740 = vunpack.c.l.b16 %v254
  %v1741 = vunpack.c.h.b16 %v254
  %v1742 = vunpack.c.l.b16 %v255
  %v1743 = vunpack.c.h.b16 %v255
  %v1744 = vunpack.c.l.b16 %v256
  %v1745 = vunpack.c.h.b16 %v256
  %v1746 = vunpack.c.l.b16 %v257
  %v1747 = vunpack.c.h.b16 %v257
  %v1748 = vunpack.c.l.b16 %v258
  %v1749 = vunpack.c.h.b16 %v258
  %v1750 = vunpack.c.l.b16 %v259
  %v1751 = vunpack.c.h.b16 %v259
  %v1752 = vunpack.c.l.b16 %v260
  %v1753 = vunpack.c.h.b16 %v260
  %v1754 = vunpack.c.l.b16 %v261
  %v1755 = vunpack.c.h.b16 %v261
  %v1756 = vunpack.c.l.b16 %v262
  %v1757 = vunpack.c.h.b16 %v262
  %v1758 = vunpack.c.l.b16 %v263
  %v1759 = vunpack.c.h.b16 %v263
  %v1760 = vunpack.c.l.b16 %v264
  %v1761 = vunpack.c.h.b16 %v264
  %v1762 = vunpack.c.l.b16 %v265
  %v1763 = vunpack.c.h.b16 %v265
  %v1764 = vunpack.c.l.b16 %v266
  %v1765 = vunpack.c.h.b16 %v266
  %v1766 = vunpack.c.l.b16 %v267
  %v1767 = vunpack.c.h.b16 %v267
  %v1768 = vunpack.c.l.b16 %v268
  %v1769 = vunpack.c.h.b16 %v268
  %v1770 = vunpack.c.l.b16 %v269
  %v1771 = vunpack.c.h.b16 %v269
  %v1772 = vunpack.c.l.b16 %v270
  %v1773 = vunpack.c.h.b16 %v270
  %v1774 = vunpack.c.l.b16 %v271
  %v1775 = vunpack.c.h.b16 %v271
  %v1776 = vunpack.c.l.b16 %v272
  %v1777 = vunpack.c.h.b16 %v272
  %v1778 = vunpack.c.l.b16 %v273
  %v1779 = vunpack.c.h.b16 %v273
  %v1780 = vunpack.c.l.b16 %v274
  %v1781 = vunpack.c.h.b16 %v274
  %v1782 = vunpack.c.l.b16 %v275
  %v1783 = vunpack.c.h.b16 %v275
  %v1784 = vunpack.c.l.b16 %v276
  %v1785 = vunpack.c.h.b16 %v276
  %v1786 = vunpack.c.l.b16 %v277
  %v1787 = vunpack.c.h.b16 %v277
  %v1788 = vunpack.c.l.b16 %v278
  %v1789 = vunpack.c.h.b16 %v278
  %v1790 = vunpack.c.l.b16 %v279
  %v1791 = vunpack.c.h.b16 %v279
  %v1792 = vunpack.c.l.b16 %v280
  %v1793 = vunpack.c.h.b16 %v280
  %v1794 = vunpack.c.l.b16 %v281
  %v1795 = vunpack.c.h.b16 %v281
  %v1796 = vunpack.c.l.b16 %v282
  %v1797 = vunpack.c.h.b16 %v282
  %v1798 = vunpack.c.l.b16 %v283
  %v1799 = vunpack.c.h.b16 %v283
  %v1800 = vunpack.c.l.b16 %v284
  %v1801 = vunpack.c.h.b16 %v284
  %v1802 = vunpack.c.l.b16 %v285
  %v1803 = vunpack.c.h.b16 %v285
  %v1804 = vunpack.c.l.b16 %v286
  %v1805 = vunpack.c.h.b16 %v286
  %v1806 = vunpack.c.l.b16 %v287
  %v1807 = vunpack.c.h.b16 %v287
  %v1808 = vunpack.c.l.b16 %v288
  %v1809 = vunpack.c.h.b16 %v288
  %v1810 = vunpack.c.l.b16 %v289
  %v1811 = vunpack.c.h.b16 %v289
  %v1812 = vunpack.c.l.b16 %v290
  %v1813 = vunpack.c.h.b16 %v290
  %v1814 = vunpack.c.l.b16 %v291
  %v1815 = vunpack.c.h.b16 %v291
  %v1816 = vunpack.c.l.b16 %v292
  %v1817 = vunpack.c.h.b16 %v292
  %v1818 = vunpack.c.l.b16 %v293
  %v1819 = vunpack.c.h.b16 %v293
  %v1820 = vunpack.c.l.b16 %v294
  %v1821 = vunpack.c.h.b16 %v294
  %v1822 = vunpack.c.l.b16 %v295
  %v1823 = vunpack.c.h.b16 %v295
  %v1824 = vunpack.c.l.b16 %v296
  %v1825 = vunpack.c.h.b16 %v296
  %v1826 = vunpack.c.l.b16 %v297
  %v1827 = vunpack.c.h.b16 %v297
  %v1828 = vunpack.c.l.b16 %v298
  %v1829 = vunpack.c.h.b16 %v298
  %v1830 = vunpack.c.l.b16 %v299
  %v1831 = vunpack.c.h.b16 %v299
  %v1832 = vunpack.c.l.b16 %v300
  %v1833 = vunpack.c.h.b16 %v300
  %v1834 = vunpack.c.l.b16 %v301
  %v1835 = vunpack.c.h.b16 %v301
  %v1836 = vunpack.c.l.b16 %v302
  %v1837 = vunpack.c.h.b16 %v302
  %v1838 = vunpack.c.l.b16 %v303
  %v1839 = vunpack.c.h.b16 %v303
  %v1840 = vunpack.c.l.b16 %v304
  %v1841 = vunpack.c.h.b16 %v304
  %v1842 = vunpack.c.l.b16 %v305
  %v1843 = vunpack.c.h.b16 %v305
  %v1844 = vunpack.c.l.b16 %v306
  %v1845 = vunpack.c.h.b16 %v306
  %v1846 = vunpack.c.l.b16 %v307
  %v1847 = vunpack.c.h.b16 %v307
  %v1848 = vunpack.c.l.b16 %v308
  %v1849 = vunpack.c.h.b16 %v308
  %v1850 = vunpack.c.l.b16 %v309
  %v1851 = vunpack.c.h.b16 %v309
  %v1852 = vunpack.c.l.b16 %v310
  %v1853 = vunpack.c.h.b16 %v310
  %v1854 = vunpack.c.l.b16 %v311
  %v1855 = vunpack.c.h.b16 %v311
  %v1856 = vunpack.c.l.b16 %v312
  %v1857 = vunpack.c.h.b16 %v312
  %v1858 = vunpack.c.l.b16 %v313
  %v1859 = vunpack.c.h.b16 %v313
  %v1860 = vunpack.c.l.b16 %v314
  %v1861 = vunpack.c.h.b16 %v314
  %v1862 = vunpack.c.l.b16 %v315
  %v1863 = vunpack.c.h.b16 %v315
  %v1864 = vunpack.c.l.b16 %v316
  %v1865 = vunpack.c.h.b16 %v316
  %v1866 = vunpack.c.l.b16 %v317
  %v1867 = vunpack.c.h.b16 %v317
  %v1868 = vunpack.c.l.b16 %v318
  %v1869 = vunpack.c.h.b16 %v318
  %v1870 = vunpack.c.l.b16 %v319
  %v1871 = vunpack.c.h.b16 %v319
  %v1872 = vunpack.c.l.b16 %v320
  %v1873 = vunpack.c.h.b16 %v320
  %v1874 = vunpack.c.l.b16 %v321
  %v1875 = vunpack.c.h.b16 %v321
  %v1876 = vunpack.c.l.b16 %v322
  %v1877 = vunpack.c.h.b16 %v322
  %v1878 = vunpack.c.l.b16 %v323
  %v1879 = vunpack.c.h.b16 %v323
  %v1880 = vunpack.c.l.b16 %v324
  %v1881 = vunpack.c.h.b16 %v324
  %v1882 = vunpack.c.l.b16 %v325
  %v1883 = vunpack.c.h.b16 %v325
  %v1884 = vunpack.c.l.b16 %v326
  %v1885 = vunpack.c.h.b16 %v326
  %v1886 = vunpack.c.l.b16 %v327
  %v1887 = vunpack.c.h.b16 %v327
  %v1888 = vunpack.c.l.b16 %v328
  %v1889 = vunpack.c.h.b16 %v328
  %v1890 = vunpack.c.l.b16 %v329
  %v1891 = vunpack.c.h.b16 %v329
  %v1892 = vunpack.c.l.b16 %v330
  %v1893 = vunpack.c.h.b16 %v330
  %v1894 = vunpack.c.l.b16 %v331
  %v1895 = vunpack.c.h.b16 %v331
  %v1896 = vunpack.c.l.b16 %v332
  %v1897 = vunpack.c.h.b16 %v332
  %v1898 = vunpack.c.l.b16 %v333
  %v1899 = vunpack.c.h.b16 %v333
  %v1900 = vunpack.c.l.b16 %v334
  %v1901 = vunpack.c.h.b16 %v334
  %v1902 = vunpack.c.l.b16 %v335
  %v1903 = vunpack.c.h.b16 %v335
  %v1904 = vunpack.c.l.b16 %v336
  %v1905 = vunpack.c.h.b16 %v336
  %v1906 = vunpack.c.l.b16 %v337
  %v1907 = vunpack.c.h.b16 %v337
  %v1908 = vunpack.c.l.b16 %v338
  %v1909 = vunpack.c.h.b16 %v338
  %v1910 = vunpack.c.l.b16 %v339
  %v1911 = vunpack.c.h.b16 %v339
  %v1912 = vunpack.c.l.b16 %v340
  %v1913 = vunpack.c.h.b16 %v340
  %v1914 = vunpack.c.l.b16 %v341
  %v1915 = vunpack.c.h.b16 %v341
  %v1916 = vunpack.c.l.b16 %v342
  %v1917 = vunpack.c.h.b16 %v342
  %v1918 = vunpack.c.l.b16 %v343
  %v1919 = vunpack.c.h.b16 %v343
  %v1920 = vunpack.c.l.b16 %v344
  %v1921 = vunpack.c.h.b16 %v344
  %v1922 = vunpack.c.l.b16 %v345
  %v1923 = vunpack.c.h.b16 %v345
  %v1924 = vunpack.c.l.b16 %v346
  %v1925 = vunpack.c.h.b16 %v346
  %v1926 = vunpack.c.l.b16 %v347
  %v1927 = vunpack.c.h.b16 %v347
  %v1928 = vunpack.c.l.b16 %v348
  %v1929 = vunpack.c.h.b16 %v348
  %v1930 = vunpack.c.l.b16 %v349
  %v1931 = vunpack.c.h.b16 %v349
  %v1932 = vunpack.c.l.b16 %v350
  %v1933 = vunpack.c.h.b16 %v350
  %v1934 = vunpack.c.l.b16 %v351
  %v1935 = vunpack.c.h.b16 %v351
  %v1936 = vunpack.c.l.b16 %v352
  %v1937 = vunpack.c.h.b16 %v352
  %v1938 = vunpack.c.l.b16 %v353
  %v1939 = vunpack.c.h.b16 %v353
  %v1940 = vunpack.c.l.b16 %v354
  %v1941 = vunpack.c.h.b16 %v354
  %v1942 = vunpack.c.l.b16 %v355
  %v1943 = vunpack.c.h.b16 %v355
  %v1944 = vunpack.c.l.b16 %v356
  %v1945 = vunpack.c.h.b16 %v356
  %v1946 = vunpack.c.l.b16 %v357
  %v1947 = vunpack.c.h.b16 %v357
  %v1948 = vunpack.c.l.b16 %v358
  %v1949 = vunpack.c.h.b16 %v358
  %v1950 = vunpack.c.l.b16 %v359
  %v1951 = vunpack.c.h.b16 %v359
  %v1952 = vunpack.c.l.b16 %v360
  %v1953 = vunpack.c.h.b16 %v360
  %v1954 = vunpack.c.l.b16 %v361
  %v1955 = vunpack.c.h.b16 %v361
  %v1956 = vunpack.c.l.b16 %v362
  %v1957 = vunpack.c.h.b16 %v362
  %v1958 = vunpack.c.l.b16 %v363
  %v1959 = vunpack.c.h.b16 %v363
  %v1960 = vunpack.c.l.b16 %v364
  %v1961 = vunpack.c.h.b16 %v364
  %v1962 = vunpack.c.l.b16 %v365
  %v1963 = vunpack.c.h.b16 %v365
  %v1964 = vunpack.c.l.b16 %v366
  %v1965 = vunpack.c.h.b16 %v366
  %v1966 = vunpack.c.l.b16 %v367
  %v1967 = vunpack.c.h.b16 %v367
  %v1968 = vunpack.c.l.b16 %v368
  %v1969 = vunpack.c.h.b16 %v368
  %v1970 = vunpack.c.l.b16 %v369
  %v1971 = vunpack.c.h.b16 %v369
  %v1972 = vunpack.c.l.b16 %v370
  %v1973 = vunpack.c.h.b16 %v370
  %v1974 = vunpack.c.l.b16 %v371
  %v1975 = vunpack.c.h.b16 %v371
  %v1976 = vunpack.c.l.b16 %v372
  %v1977 = vunpack.c.h.b16 %v372
  %v1978 = vunpack.c.l.b16 %v373
  %v1979 = vunpack.c.h.b16 %v373
  %v1980 = vunpack.c.l.b16 %v374
  %v1981 = vunpack.c.h.b16 %v374
  %v1982 = vunpack.c.l.b16 %v375
  %v1983 = vunpack.c.h.b16 %v375
  %v1984 = vunpack.c.l.b16 %v376
  %v1985 = vunpack.c.h.b16 %v376
  %v1986 = vunpack.c.l.b16 %v377
  %v1987 = vunpack.c.h.b16 %v377
  %v1988 = vunpack.c.l.b16 %v378
  %v1989 = vunpack.c.h.b16 %v378
  %v1990 = vunpack.c.l.b16 %v379
  %v1991 = vunpack.c.h.b16 %v379
  %v1992 = vunpack.c.l.b16 %v380
  %v1993 = vunpack.c.h.b16 %v380
  %v1994 = vunpack.c.l.b16 %v381
  %v1995 = vunpack.c.h.b16 %v381
  %v1996 = vunpack.c.l.b16 %v382
  %v1997 = vunpack.c.h.b16 %v382
  %v1998 = vunpack.c.l.b16 %v383
  %v1999 = vunpack.c.h.b16 %v383
  %v2000 = vunpack.c.l.b16 %v384
  %v2001 = vunpack.c.h.b16 %v384
  %v2002 = vunpack.c.l.b16 %v385
  %v2003 = vunpack.c.h.b16 %v385
  %v2004 = vunpack.c.l.b16 %v386
  %v2005 = vunpack.c.h.b16 %v386
  %v2006 = vunpack.c.l.b16 %v387
  %v2007 = vunpack.c.h.b16 %v387
  %v2008 = vunpack.c.l.b16 %v388
  %v2009 = vunpack.c.h.b16 %v388
  %v2010 = vunpack.c.l.b16 %v389
  %v2011 = vunpack.c.h.b16 %v389
  %v2012 = vunpack.c.l.b16 %v390
  %v2013 = vunpack.c.h.b16 %v390
  %v2014 = vunpack.c.l.b16 %v391
  %v2015 = vunpack.c.h.b16 %v391
  %v2016 = vunpack.c.l.b16 %v392
  %v2017 = vunpack.c.h.b16 %v392
  %v2018 = vunpack.c.l.b16 %v393
  %v2019 = vunpack.c.h.b16 %v393
  %v2020 = vunpack.c.l.b16 %v394
  %v2021 = vunpack.c.h.b16 %v394
  %v2022 = vunpack.c.l.b16 %v395
  %v2023 = vunpack.c.h.b16 %v395
  %v2024 = vunpack.c.l.b16 %v396
  %v2025 = vunpack.c.h.b16 %v396
  %v2026 = vunpack.c.l.b16 %v397
  %v2027 = vunpack.c.h.b16 %v397
  %v2028 = vunpack.c.l.b16 %v398
  %v2029 = vunpack.c.h.b16 %v398
  %v2030 = vunpack.c.l.b16 %v399
  %v2031 = vunpack.c.h.b16 %v399
  %v2032 = vunpack.c.l.b16 %v400
  %v2033 = vunpack.c.h.b16 %v400
  %v2034 = vunpack.c.l.b16 %v401
  %v2035 = vunpack.c.h.b16 %v401
  %v2036 = vunpack.c.l.b16 %v402
  %v2037 = vunpack.c.h.b16 %v402
  %v2038 = vunpack.c.l.b16 %v403
  %v2039 = vunpack.c.h.b16 %v403
  %v2040 = vunpack.c.l.b16 %v404
  %v2041 = vunpack.c.h.b16 %v404
  %v2042 = vunpack.c.l.b16 %v405
  %v2043 = vunpack.c.h.b16 %v405
  %v2044 = vunpack.c.l.b16 %v406
  %v2045 = vunpack.c.h.b16 %v406
  %v2046 = vunpack.c.l.b16 %v407
  %v2047 = vunpack.c.h.b16 %v407
  %v2048 = vunpack.c.l.b16 %v408
  %v2049 = vunpack.c.h.b16 %v408
  %v2050 = vunpack.c.l.b16 %v409
  %v2051 = vunpack.c.h.b16 %v409
  %v2052 = vunpack.c.l.b16 %v410
  %v2053 = vunpack.c.h.b16 %v410
  %v2054 = vunpack.c.l.b16 %v411
  %v2055 = vunpack.c.h.b16 %v411
  %v2056 = vunpack.c.l.b16 %v412
  %v2057 = vunpack.c.h.b16 %v412
  %v2058 = vunpack.c.l.b16 %v413
  %v2059 = vunpack.c.h.b16 %v413
  %v2060 = vunpack.c.l.b16 %v414
  %v2061 = vunpack.c.h.b16 %v414
  %v2062 = vunpack.c.l.b16 %v415
  %v2063 = vunpack.c.h.b16 %v415
  %v2064 = vunpack.c.l.b16 %v416
  %v2065 = vunpack.c.h.b16 %v416
  %v2066 = vunpack.c.l.b16 %v417
  %v2067 = vunpack.c.h.b16 %v417
  %v2068 = vunpack.c.l.b16 %v418
  %v2069 = vunpack.c.h.b16 %v418
  %v2070 = vunpack.c.l.b16 %v419
  %v2071 = vunpack.c.h.b16 %v419
  %v2072 = vunpack.c.l.b16 %v420
  %v2073 = vunpack.c.h.b16 %v420
  %v2074 = vunpack.c.l.b16 %v421
  %v2075 = vunpack.c.h.b16 %v421
  %v2076 = vunpack.c.l.b16 %v422
  %v2077 = vunpack.c.h.b16 %v422
  %v2078 = vunpack.c.l.b16 %v423
  %v2079 = vunpack.c.h.b16 %v423
  %v2080 = vunpack.c.l.b16 %v424
  %v2081 = vunpack.c.h.b16 %v424
  %v2082 = vunpack.c.l.b16 %v425
  %v2083 = vunpack.c.h.b16 %v425
  %v2084 = vunpack.c.l.b16 %v426
  %v2085 = vunpack.c.h.b16 %v426
  %v2086 = vunpack.c.l.b16 %v427
  %v2087 = vunpack.c.h.b16 %v427
  %v2088 = vunpack.c.l.b16 %v428
  %v2089 = vunpack.c.h.b16 %v428
  %v2090 = vunpack.c.l.b16 %v429
  %v2091 = vunpack.c.h.b16 %v429
  %v2092 = vunpack.c.l.b16 %v430
  %v2093 = vunpack.c.h.b16 %v430
  %v2094 = vunpack.c.l.b16 %v431
  %v2095 = vunpack.c.h.b16 %v431
  %v2096 = vunpack.c.l.b16 %v432
  %v2097 = vunpack.c.h.b16 %v432
  %v2098 = vunpack.c.l.b16 %v433
  %v2099 = vunpack.c.h.b16 %v433
  %v2100 = vunpack.c.l.b16 %v434
  %v2101 = vunpack.c.h.b16 %v434
  %v2102 = vunpack.c.l.b16 %v435
  %v2103 = vunpack.c.h.b16 %v435
  %v2104 = vunpack.c.l.b16 %v436
  %v2105 = vunpack.c.h.b16 %v436
  %v2106 = vunpack.c.l.b16 %v437
  %v2107 = vunpack.c.h.b16 %v437
  %v2108 = vunpack.c.l.b16 %v438
  %v2109 = vunpack.c.h.b16 %v438
  %v2110 = vunpack.c.l.b16 %v439
  %v2111 = vunpack.c.h.b16 %v439
  %v2112 = vunpack.c.l.b16 %v440
  %v2113 = vunpack.c.h.b16 %v440
  %v2114 = vunpack.c.l.b16 %v441
  %v2115 = vunpack.c.h.b16 %v441
  %v2116 = vunpack.c.l.b16 %v442
  %v2117 = vunpack.c.h.b16 %v442
  %v2118 = vunpack.c.l.b16 %v443
  %v2119 = vunpack.c.h.b16 %v443
  %v2120 = vunpack.c.l.b16 %v444
  %v2121 = vunpack.c.h.b16 %v444
  %v2122 = vunpack.c.l.b16 %v445
  %v2123 = vunpack.c.h.b16 %v445
  %v2124 = vunpack.c.l.b16 %v446
  %v2125 = vunpack.c.h.b16 %v446
  %v2126 = vunpack.c.l.b16 %v447
  %v2127 = vunpack.c.h.b16 %v447
  %v2128 = vunpack.c.l.b16 %v448
  %v2129 = vunpack.c.h.b16 %v448
  %v2130 = vunpack.c.l.b16 %v449
  %v2131 = vunpack.c.h.b16 %v449
  %v2132 = vunpack.c.l.b16 %v450
  %v2133 = vunpack.c.h.b16 %v450
  %v2134 = vunpack.c.l.b16 %v451
  %v2135 = vunpack.c.h.b16 %v451
  %v2136 = vunpack.c.l.b16 %v452
  %v2137 = vunpack.c.h.b16 %v452
  %v2138 = vunpack.c.l.b16 %v453
  %v2139 = vunpack.c.h.b16 %v453
  %v2140 = vunpack.c.l.b16 %v454
  %v2141 = vunpack.c.h.b16 %v454
  %v2142 = vunpack.c.l.b16 %v455
  %v2143 = vunpack.c.h.b16 %v455
  %v2144 = vunpack.c.l.b16 %v456
  %v2145 = vunpack.c.h.b16 %v456
  %v2146 = vunpack.c.l.b16 %v457
  %v2147 = vunpack.c.h.b16 %v457
  %v2148 = vunpack.c.l.b16 %v458
  %v2149 = vunpack.c.h.b16 %v458
  %v2150 = vunpack.c.l.b16 %v459
  %v2151 = vunpack.c.h.b16 %v459
  %v2152 = vunpack.c.l.b16 %v460
  %v2153 = vunpack.c.h.b16 %v460
  %v2154 = vunpack.c.l.b16 %v461
  %v2155 = vunpack.c.h.b16 %v461
  %v2156 = vunpack.c.l.b16 %v462
  %v2157 = vunpack.c.h.b16 %v462
  %v2158 = vunpack.c.l.b16 %v463
  %v2159 = vunpack.c.h.b16 %v463
  %v2160 = vunpack.c.l.b16 %v464
  %v2161 = vunpack.c.h.b16 %v464
  %v2162 = vunpack.c.l.b16 %v465
  %v2163 = vunpack.c.h.b16 %v465
  %v2164 = vunpack.c.l.b16 %v466
  %v2165 = vunpack.c.h.b16 %v466
  %v2166 = vunpack.c.l.b16 %v467
  %v2167 = vunpack.c.h.b16 %v467
  %v2168 = vunpack.c.l.b16 %v468
  %v2169 = vunpack.c.h.b16 %v468
  %v2170 = vunpack.c.l.b16 %v469
  %v2171 = vunpack.c.h.b16 %v469
  %v2172 = vunpack.c.l.b16 %v470
  %v2173 = vunpack.c.h.b16 %v470
  %v2174 = vunpack.c.l.b16 %v471
  %v2175 = vunpack.c.h.b16 %v471
  %v2176 = vunpack.c.l.b16 %v472
  %v2177 = vunpack.c.h.b16 %v472
  %v2178 = vunpack.c.l.b16 %v473
  %v2179 = vunpack.c.h.b16 %v473
  %v2180 = vunpack.c.l.b16 %v474
  %v2181 = vunpack.c.h.b16 %v474
  %v2182 = vunpack.c.l.b16 %v475
  %v2183 = vunpack.c.h.b16 %v475
  %v2184 = vunpack.c.l.b16 %v476
  %v2185 = vunpack.c.h.b16 %v476
  %v2186 = vunpack.c.l.b16 %v477
  %v2187 = vunpack.c.h.b16 %v477
  %v2188 = vunpack.c.l.b16 %v478
  %v2189 = vunpack.c.h.b16 %v478
  %v2190 = vunpack.c.l.b16 %v479
  %v2191 = vunpack.c.h.b16 %v479
  %v2192 = vunpack.c.l.b16 %v480
  %v2193 = vunpack.c.h.b16 %v480
  %v2194 = vunpack.c.l.b16 %v481
  %v2195 = vunpack.c.h.b16 %v481
  %v2196 = vunpack.c.l.b16 %v482
  %v2197 = vunpack.c.h.b16 %v482
  %v2198 = vunpack.c.l.b16 %v483
  %v2199 = vunpack.c.h.b16 %v483
  %v2200 = vunpack.c.l.b16 %v484
  %v2201 = vunpack.c.h.b16 %v484
  %v2202 = vunpack.c.l.b16 %v485
  %v2203 = vunpack.c.h.b16 %v485
  %v2204 = vunpack.c.l.b16 %v486
  %v2205 = vunpack.c.h.b16 %v486
  %v2206 = vunpack.c.l.b16 %v487
  %v2207 = vunpack.c.h.b16 %v487
  %v2208 = vunpack.c.l.b16 %v488
  %v2209 = vunpack.c.h.b16 %v488
  %v2210 = vunpack.c.l.b16 %v489
  %v2211 = vunpack.c.h.b16 %v489
  %v2212 = vunpack.c.l.b16 %v490
  %v2213 = vunpack.c.h.b16 %v490
  %v2214 = vunpack.c.l.b16 %v491
  %v2215 = vunpack.c.h.b16 %v491
  %v2216 = vunpack.c.l.b16 %v492
  %v2217 = vunpack.c.h.b16 %v492
  %v2218 = vunpack.c.l.b16 %v493
  %v2219 = vunpack.c.h.b16 %v493
  %v2220 = vunpack.c.l.b16 %v494
  %v2221 = vunpack.c.h.b16 %v494
  %v2222 = vunpack.c.l.b16 %v495
  %v2223 = vunpack.c.h.b16 %v495
  %v2224 = vunpack.c.l.b16 %v496
  %v2225 = vunpack.c.h.b16 %v496
  %v2226 = vunpack.c.l.b16 %v497
  %v2227 = vunpack.c.h.b16 %v497
  %v2228 = vunpack.c.l.b16 %v498
  %v2229 = vunpack.c.h.b16 %v498
  %v2230 = vunpack.c.l.b16 %v499
  %v2231 = vunpack.c.h.b16 %v499
  %v2232 = vunpack.c.l.b16 %v500
  %v2233 = vunpack.c.h.b16 %v500
  %v2234 = vunpack.c.l.b16 %v501
  %v2235 = vunpack.c.h.b16 %v501
  %v2236 = vunpack.c.l.b16 %v502
  %v2237 = vunpack.c.h.b16 %v502
  %v2238 = vunpack.c.l.b16 %v503
  %v2239 = vunpack.c.h.b16 %v503
  %v2240 = vunpack.c.l.b16 %v504
  %v2241 = vunpack.c.h.b16 %v504
  %v2242 = vunpack.c.l.b16 %v505
  %v2243 = vunpack.c.h.b16 %v505
  %v2244 = vunpack.c.l.b16 %v506
  %v2245 = vunpack.c.h.b16 %v506
  %v2246 = vunpack.c.l.b16 %v507
  %v2247 = vunpack.c.h.b16 %v507
  %v2248 = vunpack.c.l.b16 %v508
  %v2249 = vunpack.c.h.b16 %v508
  %v2250 = vunpack.c.l.b16 %v509
  %v2251 = vunpack.c.h.b16 %v509
  %v2252 = vunpack.c.l.b16 %v510
  %v2253 = vunpack.c.h.b16 %v510
  %v2254 = vunpack.c.l.b16 %v511
  %v2255 = vunpack.c.h.b16 %v511
  %v2256 = vunpack.c.l.b16 %v512
  %v2257 = vunpack.c.h.b16 %v512
  %v2258 = vunpack.c.l.b16 %v513
  %v2259 = vunpack.c.h.b16 %v513
  %v2260 = vunpack.c.l.b16 %v514
  %v2261 = vunpack.c.h.b16 %v514
  %v2262 = vunpack.c.l.b16 %v515
  %v2263 = vunpack.c.h.b16 %v515
  %v2264 = vunpack.c.l.b16 %v516
  %v2265 = vunpack.c.h.b16 %v516
  %v2266 = vunpack.c.l.b16 %v517
  %v2267 = vunpack.c.h.b16 %v517
  %v2268 = vunpack.c.l.b16 %v518
  %v2269 = vunpack.c.h.b16 %v518
  %v2270 = vunpack.c.l.b16 %v519
  %v2271 = vunpack.c.h.b16 %v519
  %v2272 = vunpack.c.l.b16 %v520
  %v2273 = vunpack.c.h.b16 %v520
  %v2274 = vunpack.c.l.b16 %v521
  %v2275 = vunpack.c.h.b16 %v521
  %v2276 = vunpack.c.l.b16 %v522
  %v2277 = vunpack.c.h.b16 %v522
  %v2278 = vunpack.c.l.b16 %v523
  %v2279 = vunpack.c.h.b16 %v523
  %v2280 = vunpack.c.l.b16 %v524
  %v2281 = vunpack.c.h.b16 %v524
  %v2282 = vunpack.c.l.b16 %v525
  %v2283 = vunpack.c.h.b16 %v525
  %v2284 = vunpack.c.l.b16 %v526
  %v2285 = vunpack.c.h.b16 %v526
  %v2286 = vunpack.c.l.b16 %v527
  %v2287 = vunpack.c.h.b16 %v527
  %v2288 = vunpack.c.l.b16 %v528
  %v2289 = vunpack.c.h.b16 %v528
  %v2290 = vunpack.c.l.b16 %v529
  %v2291 = vunpack.c.h.b16 %v529
  %v2292 = vunpack.c.l.b16 %v530
  %v2293 = vunpack.c.h.b16 %v530
  %v2294 = vunpack.c.l.b16 %v531
  %v2295 = vunpack.c.h.b16 %v531
  %v2296 = vunpack.c.l.b16 %v532
  %v2297 = vunpack.c.h.b16 %v532
  %v2298 = vunpack.c.l.b16 %v533
  %v2299 = vunpack.c.h.b16 %v533
  %v2300 = vunpack.c.l.b16 %v534
  %v2301 = vunpack.c.h.b16 %v534
  %v2302 = vunpack.c.l.b16 %v535
  %v2303 = vunpack.c.h.b16 %v535
  %v2304 = vunpack.c.l.b16 %v536
  %v2305 = vunpack.c.h.b16 %v536
  %v2306 = vunpack.c.l.b16 %v537
  %v2307 = vunpack.c.h.b16 %v537
  %v2308 = vunpack.c.l.b16 %v538
  %v2309 = vunpack.c.h.b16 %v538
  %v2310 = vunpack.c.l.b16 %v539
  %v2311 = vunpack.c.h.b16 %v539
  %v2312 = vunpack.c.l.b16 %v540
  %v2313 = vunpack.c.h.b16 %v540
  %v2314 = vunpack.c.l.b16 %v541
  %v2315 = vunpack.c.h.b16 %v541
  %v2316 = vunpack.c.l.b16 %v542
  %v2317 = vunpack.c.h.b16 %v542
  %v2318 = vunpack.c.l.b16 %v543
  %v2319 = vunpack.c.h.b16 %v543
  %v2320 = vunpack.c.l.b16 %v544
  %v2321 = vunpack.c.h.b16 %v544
  %v2322 = vunpack.c.l.b16 %v545
  %v2323 = vunpack.c.h.b16 %v545
  %v2324 = vunpack.c.l.b16 %v546
  %v2325 = vunpack.c.h.b16 %v546
  %v2326 = vunpack.c.l.b16 %v547
  %v2327 = vunpack.c.h.b16 %v547
  %v2328 = vunpack.c.l.b16 %v548
  %v2329 = vunpack.c.h.b16 %v548
  %v2330 = vunpack.c.l.b16 %v549
  %v2331 = vunpack.c.h.b16 %v549
  %v2332 = vunpack.c.l.b16 %v550
  %v2333 = vunpack.c.h.b16 %v550
  %v2334 = vunpack.c.l.b16 %v551
  %v2335 = vunpack.c.h.b16 %v551
  %v2336 = vunpack.c.l.b16 %v552
  %v2337 = vunpack.c.h.b16 %v552
  %v2338 = vunpack.c.l.b16 %v553
  %v2339 = vunpack.c.h.b16 %v553
  %v2340 = vunpack.c.l.b16 %v554
  %v2341 = vunpack.c.h.b16 %v554
  %v2342 = vunpack.c.l.b16 %v555
  %v2343 = vunpack.c.h.b16 %v555
  %v2344 = vunpack.c.l.b16 %v556
  %v2345 = vunpack.c.h.b16 %v556
  %v2346 = vunpack.c.l.b16 %v557
  %v2347 = vunpack.c.h.b16 %v557
  %v2348 = vunpack.c.l.b16 %v558
  %v2349 = vunpack.c.h.b16 %v558
  %v2350 = vunpack.c.l.b16 %v559
  %v2351 = vunpack.c.h.b16 %v559
  %v2352 = vunpack.c.l.b16 %v560
  %v2353 = vunpack.c.h.b16 %v560
  %v2354 = vunpack.c.l.b16 %v561
  %v2355 = vunpack.c.h.b16 %v561
  %v2356 = vunpack.c.l.b16 %v562
  %v2357 = vunpack.c.h.b16 %v562
  %v2358 = vunpack.c.l.b16 %v563
  %v2359 = vunpack.c.h.b16 %v563
  %v2360 = vunpack.c.l.b16 %v564
  %v2361 = vunpack.c.h.b16 %v564
  %v2362 = vunpack.c.l.b16 %v565
  %v2363 = vunpack.c.h.b16 %v565
  %v2364 = vunpack.c.l.b16 %v566
  %v2365 = vunpack.c.h.b16 %v566
  %v2366 = vunpack.c.l.b16 %v567
  %v2367 = vunpack.c.h.b16 %v567
  %v2368 = vunpack.c.l.b16 %v568
  %v2369 = vunpack.c.h.b16 %v568
  %v2370 = vunpack.c.l.b16 %v569
  %v2371 = vunpack.c.h.b16 %v569
  %v2372 = vunpack.c.l.b16 %v570
  %v2373 = vunpack.c.h.b16 %v570
  %v2374 = vunpack.c.l.b16 %v571
  %v2375 = vunpack.c.h.b16 %v571
  %v2376 = vunpack.c.l.b16 %v572
  %v2377 = vunpack.c.h.b16 %v572
  %v2378 = vunpack.c.l.b16 %v573
  %v2379 = vunpack.c.h.b16 %v573
  %v2380 = vunpack.c.l.b16 %v574
  %v2381 = vunpack.c.h.b16 %v574
  %v2382 = vunpack.c.l.b16 %v575
  %v2383 = vunpack.c.h.b16 %v575
  %v2384 = vunpack.c.l.b16 %v576
  %v2385 = vunpack.c.h.b16 %v576
  %v2386 = vunpack.c.l.b16 %v577
  %v2387 = vunpack.c.h.b16 %v577
  %v2388 = vunpack.c.l.b16 %v578
  %v2389 = vunpack.c.h.b16 %v578
  %v2390 = vunpack.c.l.b16 %v579
  %v2391 = vunpack.c.h.b16 %v579
  %v2392 = vunpack.c.l.b16 %v580
  %v2393 = vunpack.c.h.b16 %v580
  %v2394 = vunpack.c.l.b16 %v581
  %v2395 = vunpack.c.h.b16 %v581
  %v2396 = vunpack.c.l.b16 %v582
  %v2397 = vunpack.c.h.b16 %v582
  %v2398 = vunpack.c.l.b16 %v583
  %v2399 = vunpack.c.h.b16 %v583
  %v2400 = vunpack.c.l.b16 %v584
  %v2401 = vunpack.c.h.b16 %v584
  %v2402 = vunpack.c.l.b16 %v585
  %v2403 = vunpack.c.h.b16 %v585
  %v2404 = vunpack.c.l.b16 %v586
  %v2405 = vunpack.c.h.b16 %v586
  %v2406 = vunpack.c.l.b16 %v587
  %v2407 = vunpack.c.h.b16 %v587
  %v2408 = vunpack.c.l.b16 %v588
  %v2409 = vunpack.c.h.b16 %v588
  %v2410 = vunpack.c.l.b16 %v589
  %v2411 = vunpack.c.h.b16 %v589
  %v2412 = vunpack.c.l.b16 %v590
  %v2413 = vunpack.c.h.b16 %v590
  %v2414 = vunpack.c.l.b16 %v591
  %v2415 = vunpack.c.h.b16 %v591
  %v2416 = vunpack.c.l.b16 %v592
  %v2417 = vunpack.c.h.b16 %v592
  %v2418 = vunpack.c.l.b16 %v593
  %v2419 = vunpack.c.h.b16 %v593
  %v2420 = vunpack.c.l.b16 %v594
  %v2421 = vunpack.c.h.b16 %v594
  %v2422 = vunpack.c.l.b16 %v595
  %v2423 = vunpack.c.h.b16 %v595
  %v2424 = vunpack.c.l.b16 %v596
  %v2425 = vunpack.c.h.b16 %v596
  %v2426 = vunpack.c.l.b16 %v597
  %v2427 = vunpack.c.h.b16 %v597
  %v2428 = vunpack.c.l.b16 %v598
  %v2429 = vunpack.c.h.b16 %v598
  %v2430 = vunpack.c.l.b16 %v599
  %v2431 = vunpack.c.h.b16 %v599
  %v2432 = vunpack.c.l.b16 %v600
  %v2433 = vunpack.c.h.b16 %v600
  %v2434 = vunpack.c.l.b16 %v601
  %v2435 = vunpack.c.h.b16 %v601
  %v2436 = vunpack.c.l.b16 %v602
  %v2437 = vunpack.c.h.b16 %v602
  %v2438 = vunpack.c.l.b16 %v603
  %v2439 = vunpack.c.h.b16 %v603
  %v2440 = vunpack.c.l.b16 %v604
  %v2441 = vunpack.c.h.b16 %v604
  %v2442 = vunpack.c.l.b16 %v605
  %v2443 = vunpack.c.h.b16 %v605
  %v2444 = vunpack.c.l.b16 %v606
  %v2445 = vunpack.c.h.b16 %v606
  %v2446 = vunpack.c.l.b16 %v607
  %v2447 = vunpack.c.h.b16 %v607
  %v2448 = vpack.c.b16 %v1300, %v1296
  %v2449 = vpack.c.b16 %v1301, %v1297
  %v2450 = vpack.c.b16 %v1302, %v1298
  %v2451 = vpack.c.b16 %v1303, %v1299
  %v2452 = vpack.c.b16 %v1308, %v1304
  %v2453 = vpack.c.b16 %v1309, %v1305
  %v2454 = vpack.c.b16 %v1310, %v1306
  %v2455 = vpack.c.b16 %v1311, %v1307
  %v2456 = vpack.c.b16 %v1316, %v1312
  %v2457 = vpack.c.b16 %v1317, %v1313
  %v2458 = vpack.c.b16 %v1318, %v1314
  %v2459 = vpack.c.b16 %v1319, %v1315
  %v2460 = vpack.c.b16 %v1324, %v1320
  %v2461 = vpack.c.b16 %v1325, %v1321
  %v2462 = vpack.c.b16 %v1326, %v1322
  %v2463 = vpack.c.b16 %v1327, %v1323
  %v2464 = vpack.c.b16 %v1332, %v1328
  %v2465 = vpack.c.b16 %v1333, %v1329
  %v2466 = vpack.c.b16 %v1334, %v1330
  %v2467 = vpack.c.b16 %v1335, %v1331
  %v2468 = vpack.c.b16 %v1340, %v1336
  %v2469 = vpack.c.b16 %v1341, %v1337
  %v2470 = vpack.c.b16 %v1342, %v1338
  %v2471 = vpack.c.b16 %v1343, %v1339
  %v2472 = vpack.c.b16 %v1348, %v1344
  %v2473 = vpack.c.b16 %v1349, %v1345
  %v2474 = vpack.c.b16 %v1350, %v1346
  %v2475 = vpack.c.b16 %v1351, %v1347
  %v2476 = vpack.c.b16 %v1356, %v1352
  %v2477 = vpack.c.b16 %v1357, %v1353
  %v2478 = vpack.c.b16 %v1358, %v1354
  %v2479 = vpack.c.b16 %v1359, %v1355
  %v2480 = vpack.c.b16 %v1364, %v1360
  %v2481 = vpack.c.b16 %v1365, %v1361
  %v2482 = vpack.c.b16 %v1366, %v1362
  %v2483 = vpack.c.b16 %v1367, %v1363
  %v2484 = vpack.c.b16 %v1372, %v1368
  %v2485 = vpack.c.b16 %v1373, %v1369
  %v2486 = vpack.c.b16 %v1374, %v1370
  %v2487 = vpack.c.b16 %v1375, %v1371
  %v2488 = vpack.c.b16 %v1380, %v1376
  %v2489 = vpack.c.b16 %v1381, %v1377
  %v2490 = vpack.c.b16 %v1382, %v1378
  %v2491 = vpack.c.b16 %v1383, %v1379
  %v2492 = vpack.c.b16 %v1388, %v1384
  %v2493 = vpack.c.b16 %v1389, %v1385
  %v2494 = vpack.c.b16 %v1390, %v1386
  %v2495 = vpack.c.b16 %v1391, %v1387
  %v2496 = vpack.c.b16 %v1396, %v1392
  %v2497 = vpack.c.b16 %v1397, %v1393
  %v2498 = vpack.c.b16 %v1398, %v1394
  %v2499 = vpack.c.b16 %v1399, %v1395
  %v2500 = vpack.c.b16 %v1404, %v1400
  %v2501 = vpack.c.b16 %v1405, %v1401
  %v2502 = vpack.c.b16 %v1406, %v1402
  %v2503 = vpack.c.b16 %v1407, %v1403
  %v2504 = vpack.c.b16 %v1412, %v1408
  %v2505 = vpack.c.b16 %v1413, %v1409
  %v2506 = vpack.c.b16 %v1414, %v1410
  %v2507 = vpack.c.b16 %v1415, %v1411
  %v2508 = vpack.c.b16 %v1420, %v1416
  %v2509 = vpack.c.b16 %v1421, %v1417
  %v2510 = vpack.c.b16 %v1422, %v1418
  %v2511 = vpack.c.b16 %v1423, %v1419
  %v2512 = vpack.c.b16 %v1428, %v1424
  %v2513 = vpack.c.b16 %v1429, %v1425
  %v2514 = vpack.c.b16 %v1430, %v1426
  %v2515 = vpack.c.b16 %v1431, %v1427
  %v2516 = vpack.c.b16 %v1436, %v1432
  %v2517 = vpack.c.b16 %v1437, %v1433
  %v2518 = vpack.c.b16 %v1438, %v1434
  %v2519 = vpack.c.b16 %v1439, %v1435
  %v2520 = vpack.c.b16 %v1444, %v1440
  %v2521 = vpack.c.b16 %v1445, %v1441
  %v2522 = vpack.c.b16 %v1446, %v1442
  %v2523 = vpack.c.b16 %v1447, %v1443
  %v2524 = vpack.c.b16 %v1452, %v1448
  %v2525 = vpack.c.b16 %v1453, %v1449
  %v2526 = vpack.c.b16 %v1454, %v1450
  %v2527 = vpack.c.b16 %v1455, %v1451
  %v2528 = vpack.c.b16 %v1460, %v1456
  %v2529 = vpack.c.b16 %v1461, %v1457
  %v2530 = vpack.c.b16 %v1462, %v1458
  %v2531 = vpack.c.b16 %v1463, %v1459
  %v2532 = vpack.c.b16 %v1468, %v1464
  %v2533 = vpack.c.b16 %v1469, %v1465
  %v2534 = vpack.c.b16 %v1470, %v1466
  %v2535 = vpack.c.b16 %v1471, %v1467
  %v2536 = vpack.c.b16 %v1476, %v1472
  %v2537 = vpack.c.b16 %v1477, %v1473
  %v2538 = vpack.c.b16 %v1478, %v1474
  %v2539 = vpack.c.b16 %v1479, %v1475
  %v2540 = vpack.c.b16 %v1484, %v1480
  %v2541 = vpack.c.b16 %v1485, %v1481
  %v2542 = vpack.c.b16 %v1486, %v1482
  %v2543 = vpack.c.b16 %v1487, %v1483
  %v2544 = vpack.c.b16 %v1492, %v1488
  %v2545 = vpack.c.b16 %v1493, %v1489
  %v2546 = vpack.c.b16 %v1494, %v1490
  %v2547 = vpack.c.b16 %v1495, %v1491
  %v2548 = vpack.c.b16 %v1500, %v1496
  %v2549 = vpack.c.b16 %v1501, %v1497
  %v2550 = vpack.c.b16 %v1502, %v1498
  %v2551 = vpack.c.b16 %v1503, %v1499
  %v2552 = vpack.c.b16 %v1508, %v1504
  %v2553 = vpack.c.b16 %v1509, %v1505
  %v2554 = vpack.c.b16 %v1510, %v1506
  %v2555 = vpack.c.b16 %v1511, %v1507
  %v2556 = vpack.c.b16 %v1516, %v1512
  %v2557 = vpack.c.b16 %v1517, %v1513
  %v2558 = vpack.c.b16 %v1518, %v1514
  %v2559 = vpack.c.b16 %v1519, %v1515
  %v2560 = vpack.c.b16 %v1524, %v1520
  %v2561 = vpack.c.b16 %v1525, %v1521
  %v2562 = vpack.c.b16 %v1526, %v1522
  %v2563 = vpack.c.b16 %v1527, %v1523
  %v2564 = vpack.c.b16 %v1532, %v1528
  %v2565 = vpack.c.b16 %v1533, %v1529
  %v2566 = vpack.c.b16 %v1534, %v1530
  %v2567 = vpack.c.b16 %v1535, %v1531
  %v2568 = vpack.c.b16 %v1540, %v1536
  %v2569 = vpack.c.b16 %v1541, %v1537
  %v2570 = vpack.c.b16 %v1542, %v1538
  %v2571 = vpack.c.b16 %v1543, %v1539
  %v2572 = vpack.c.b16 %v1548, %v1544
  %v2573 = vpack.c.b16 %v1549, %v1545
  %v2574 = vpack.c.b16 %v1550, %v1546
  %v2575 = vpack.c.b16 %v1551, %v1547
  %v2576 = vpack.c.b16 %v1556, %v1552
  %v2577 = vpack.c.b16 %v1557, %v1553
  %v2578 = vpack.c.b16 %v1558, %v1554
  %v2579 = vpack.c.b16 %v1559, %v1555
  %v2580 = vpack.c.b16 %v1564, %v1560
  %v2581 = vpack.c.b16 %v1565, %v1561
  %v2582 = vpack.c.b16 %v1566, %v1562
  %v2583 = vpack.c.b16 %v1567, %v1563
  %v2584 = vpack.c.b16 %v1572, %v1568
  %v2585 = vpack.c.b16 %v1573, %v1569
  %v2586 = vpack.c.b16 %v1574, %v1570
  %v2587 = vpack.c.b16 %v1575, %v1571
  %v2588 = vpack.c.b16 %v1580, %v1576
  %v2589 = vpack.c.b16 %v1581, %v1577
  %v2590 = vpack.c.b16 %v1582, %v1578
  %v2591 = vpack.c.b16 %v1583, %v1579
  %v2592 = vpack.c.b16 %v1588, %v1584
  %v2593 = vpack.c.b16 %v1589, %v1585
  %v2594 = vpack.c.b16 %v1590, %v1586
  %v2595 = vpack.c.b16 %v1591, %v1587
  %v2596 = vpack.c.b16 %v1596, %v1592
  %v2597 = vpack.c.b16 %v1597, %v1593
  %v2598 = vpack.c.b16 %v1598, %v1594
  %v2599 = vpack.c.b16 %v1599, %v1595
  %v2600 = vpack.c.b16 %v1604, %v1600
  %v2601 = vpack.c.b16 %v1605, %v1601
  %v2602 = vpack.c.b16 %v1606, %v1602
  %v2603 = vpack.c.b16 %v1607, %v1603
  %v2604 = vpack.c.b16 %v1612, %v1608
  %v2605 = vpack.c.b16 %v1613, %v1609
  %v2606 = vpack.c.b16 %v1614, %v1610
  %v2607 = vpack.c.b16 %v1615, %v1611
  %v2608 = vpack.c.b16 %v1620, %v1616
  %v2609 = vpack.c.b16 %v1621, %v1617
  %v2610 = vpack.c.b16 %v1622, %v1618
  %v2611 = vpack.c.b16 %v1623, %v1619
  %v2612 = vpack.c.b16 %v1628, %v1624
  %v2613 = vpack.c.b16 %v1629, %v1625
  %v2614 = vpack.c.b16 %v1630, %v1626
  %v2615 = vpack.c.b16 %v1631, %v1627
  %v2616 = vpack.c.b16 %v1636, %v1632
  %v2617 = vpack.c.b16 %v1637, %v1633
  %v2618 = vpack.c.b16 %v1638, %v1634
  %v2619 = vpack.c.b16 %v1639, %v1635
  %v2620 = vpack.c.b16 %v1644, %v1640
  %v2621 = vpack.c.b16 %v1645, %v1641
  %v2622 = vpack.c.b16 %v1646, %v1642
  %v2623 = vpack.c.b16 %v1647, %v1643
  %v2624 = vpack.c.b16 %v1652, %v1648
  %v2625 = vpack.c.b16 %v1653, %v1649
  %v2626 = vpack.c.b16 %v1654, %v1650
  %v2627 = vpack.c.b16 %v1655, %v1651
  %v2628 = vpack.c.b16 %v1660, %v1656
  %v2629 = vpack.c.b16 %v1661, %v1657
  %v2630 = vpack.c.b16 %v1662, %v1658
  %v2631 = vpack.c.b16 %v1663, %v1659
  %v2632 = vpack.c.b16 %v1668, %v1664
  %v2633 = vpack.c.b16 %v1669, %v1665
  %v2634 = vpack.c.b16 %v1670, %v1666
  %v2635 = vpack.c.b16 %v1671, %v1667
  %v2636 = vpack.c.b16 %v1676, %v1672
  %v2637 = vpack.c.b16 %v1677, %v1673
  %v2638 = vpack.c.b16 %v1678, %v1674
  %v2639 = vpack.c.b16 %v1679, %v1675
  %v2640 = vpack.c.b16 %v1684, %v1680
  %v2641 = vpack.c.b16 %v1685, %v1681
  %v2642 = vpack.c.b16 %v1686, %v1682
  %v2643 = vpack.c.b16 %v1687, %v1683
  %v2644 = vpack.c.b16 %v1692, %v1688
  %v2645 = vpack.c.b16 %v1693, %v1689
  %v2646 = vpack.c.b16 %v1694, %v1690
  %v2647 = vpack.c.b16 %v1695, %v1691
  %v2648 = vpack.c.b16 %v1700, %v1696
  %v2649 = vpack.c.b16 %v1701, %v1697
  %v2650 = vpack.c.b16 %v1702, %v1698
  %v2651 = vpack.c.b16 %v1703, %v1699
  %v2652 = vpack.c.b16 %v1708, %v1704
  %v2653 = vpack.c.b16 %v1709, %v1705
  %v2654 = vpack.c.b16 %v1710, %v1706
  %v2655 = vpack.c.b16 %v1711, %v1707
  %v2656 = vpack.c.b16 %v1716, %v1712
  %v2657 = vpack.c.b16 %v1717, %v1713
  %v2658 = vpack.c.b16 %v1718, %v1714
  %v2659 = vpack.c.b16 %v1719, %v1715
  %v2660 = vpack.c.b16 %v1724, %v1720
  %v2661 = vpack.c.b16 %v1725, %v1721
  %v2662 = vpack.c.b16 %v1726, %v1722
  %v2663 = vpack.c.b16 %v1727, %v1723
  %v2664 = vpack.c.b16 %v1732, %v1728
  %v2665 = vpack.c.b16 %v1733, %v1729
  %v2666 = vpack.c.b16 %v1734, %v1730
  %v2667 = vpack.c.b16 %v1735, %v1731
  %v2668 = vpack.c.b16 %v1740, %v1736
  %v2669 = vpack.c.b16 %v1741, %v1737
  %v2670 = vpack.c.b16 %v1742, %v1738
  %v2671 = vpack.c.b16 %v1743, %v1739
  %v2672 = vpack.c.b16 %v1748, %v1744
  %v2673 = vpack.c.b16 %v1749, %v1745
  %v2674 = vpack.c.b16 %v1750, %v1746
  %v2675 = vpack.c.b16 %v1751, %v1747
  %v2676 = vpack.c.b16 %v1756, %v1752
  %v2677 = vpack.c.b16 %v1757, %v1753
  %v2678 = vpack.c.b16 %v1758, %v1754
  %v2679 = vpack.c.b16 %v1759, %v1755
  %v2680 = vpack.c.b16 %v1764, %v1760
  %v2681 = vpack.c.b16 %v1765, %v1761
  %v2682 = vpack.c.b16 %v1766, %v1762
  %v2683 = vpack.c.b16 %v1767, %v1763
  %v2684 = vpack.c.b16 %v1772, %v1768
  %v2685 = vpack.c.b16 %v1773, %v1769
  %v2686 = vpack.c.b16 %v1774, %v1770
  %v2687 = vpack.c.b16 %v1775, %v1771
  %v2688 = vpack.c.b16 %v1780, %v1776
  %v2689 = vpack.c.b16 %v1781, %v1777
  %v2690 = vpack.c.b16 %v1782, %v1778
  %v2691 = vpack.c.b16 %v1783, %v1779
  %v2692 = vpack.c.b16 %v1788, %v1784
  %v2693 = vpack.c.b16 %v1789, %v1785
  %v2694 = vpack.c.b16 %v1790, %v1786
  %v2695 = vpack.c.b16 %v1791, %v1787
  %v2696 = vpack.c.b16 %v1796, %v1792
  %v2697 = vpack.c.b16 %v1797, %v1793
  %v2698 = vpack.c.b16 %v1798, %v1794
  %v2699 = vpack.c.b16 %v1799, %v1795
  %v2700 = vpack.c.b16 %v1804, %v1800
  %v2701 = vpack.c.b16 %v1805, %v1801
  %v2702 = vpack.c.b16 %v1806, %v1802
  %v2703 = vpack.c.b16 %v1807, %v1803
  %v2704 = vpack.c.b16 %v1812, %v1808
  %v2705 = vpack.c.b16 %v1813, %v1809
  %v2706 = vpack.c.b16 %v1814, %v1810
  %v2707 = vpack.c.b16 %v1815, %v1811
  %v2708 = vpack.c.b16 %v1820, %v1816
  %v2709 = vpack.c.b16 %v1821, %v1817
  %v2710 = vpack.c.b16 %v1822, %v1818
  %v2711 = vpack.c.b16 %v1823, %v1819
  %v2712 = vpack.c.b16 %v1828, %v1824
  %v2713 = vpack.c.b16 %v1829, %v1825
  %v2714 = vpack.c.b16 %v1830, %v1826
  %v2715 = vpack.c.b16 %v1831, %v1827
  %v2716 = vpack.c.b16 %v1836, %v1832
  %v2717 = vpack.c.b16 %v1837, %v1833
  %v2718 = vpack.c.b16 %v1838, %v1834
  %v2719 = vpack.c.b16 %v1839, %v1835
  %v2720 = vpack.c.b16 %v1844, %v1840
  %v2721 = vpack.c.b16 %v1845, %v1841
  %v2722 = vpack.c.b16 %v1846, %v1842
  %v2723 = vpack.c.b16 %v1847, %v1843
  %v2724 = vpack.c.b16 %v1852, %v1848
  %v2725 = vpack.c.b16 %v1853, %v1849
  %v2726 = vpack.c.b16 %v1854, %v1850
  %v2727 = vpack.c.b16 %v1855, %v1851
  %v2728 = vpack.c.b16 %v1860, %v1856
  %v2729 = vpack.c.b16 %v1861, %v1857
  %v2730 = vpack.c.b16 %v1862, %v1858
  %v2731 = vpack.c.b16 %v1863, %v1859
  %v2732 = vpack.c.b16 %v1868, %v1864
  %v2733 = vpack.c.b16 %v1869, %v1865
  %v2734 = vpack.c.b16 %v1870, %v1866
  %v2735 = vpack.c.b16 %v1871, %v1867
  %v2736 = vpack.c.b16 %v1876, %v1872
  %v2737 = vpack.c.b16 %v1877, %v1873
  %v2738 = vpack.c.b16 %v1878, %v1874
  %v2739 = vpack.c.b16 %v1879, %v1875
  %v2740 = vpack.c.b16 %v1884, %v1880
  %v2741 = vpack.c.b16 %v1885, %v1881
  %v2742 = vpack.c.b16 %v1886, %v1882
  %v2743 = vpack.c.b16 %v1887, %v1883
  %v2744 = vpack.c.b16 %v1892, %v1888
  %v2745 = vpack.c.b16 %v1893, %v1889
  %v2746 = vpack.c.b16 %v1894, %v1890
  %v2747 = vpack.c.b16 %v1895, %v1891
  %v2748 = vpack.c.b16 %v1900, %v1896
  %v2749 = vpack.c.b16 %v1901, %v1897
  %v2750 = vpack.c.b16 %v1902, %v1898
  %v2751 = vpack.c.b16 %v1903, %v1899
  %v2752 = vpack.c.b16 %v1908, %v1904
  %v2753 = vpack.c.b16 %v1909, %v1905
  %v2754 = vpack.c.b16 %v1910, %v1906
  %v2755 = vpack.c.b16 %v1911, %v1907
  %v2756 = vpack.c.b16 %v1916, %v1912
  %v2757 = vpack.c.b16 %v1917, %v1913
  %v2758 = vpack.c.b16 %v1918, %v1914
  %v2759 = vpack.c.b16 %v1919, %v1915
  %v2760 = vpack.c.b16 %v1924, %v1920
  %v2761 = vpack.c.b16 %v1925, %v1921
  %v2762 = vpack.c.b16 %v1926, %v1922
  %v2763 = vpack.c.b16 %v1927, %v1923
  %v2764 = vpack.c.b16 %v1932, %v1928
  %v2765 = vpack.c.b16 %v1933, %v1929
  %v2766 = vpack.c.b16 %v1934, %v1930
  %v2767 = vpack.c.b16 %v1935, %v1931
  %v2768 = vpack.c.b16 %v1940, %v1936
  %v2769 = vpack.c.b16 %v1941, %v1937
  %v2770 = vpack.c.b16 %v1942, %v1938
  %v2771 = vpack.c.b16 %v1943, %v1939
  %v2772 = vpack.c.b16 %v1948, %v1944
  %v2773 = vpack.c.b16 %v1949, %v1945
  %v2774 = vpack.c.b16 %v1950, %v1946
  %v2775 = vpack.c.b16 %v1951, %v1947
  %v2776 = vpack.c.b16 %v1956, %v1952
  %v2777 = vpack.c.b16 %v1957, %v1953
  %v2778 = vpack.c.b16 %v1958, %v1954
  %v2779 = vpack.c.b16 %v1959, %v1955
  %v2780 = vpack.c.b16 %v1964, %v1960
  %v2781 = vpack.c.b16 %v1965, %v1961
  %v2782 = vpack.c.b16 %v1966, %v1962
  %v2783 = vpack.c.b16 %v1967, %v1963
  %v2784 = vpack.c.b16 %v1972, %v1968
  %v2785 = vpack.c.b16 %v1973, %v1969
  %v2786 = vpack.c.b16 %v1974, %v1970
  %v2787 = vpack.c.b16 %v1975, %v1971
  %v2788 = vpack.c.b16 %v1980, %v1976
  %v2789 = vpack.c.b16 %v1981, %v1977
  %v2790 = vpack.c.b16 %v1982, %v1978
  %v2791 = vpack.c.b16 %v1983, %v1979
  %v2792 = vpack.c.b16 %v1988, %v1984
  %v2793 = vpack.c.b16 %v1989, %v1985
  %v2794 = vpack.c.b16 %v1990, %v1986
  %v2795 = vpack.c.b16 %v1991, %v1987
  %v2796 = vpack.c.b16 %v1996, %v1992
  %v2797 = vpack.c.b16 %v1997, %v1993
  %v2798 = vpack.c.b16 %v1998, %v1994
  %v2799 = vpack.c.b16 %v1999, %v1995
  %v2800 = vpack.c.b16 %v2004, %v2000
  %v2801 = vpack.c.b16 %v2005, %v2001
  %v2802 = vpack.c.b16 %v2006, %v2002
  %v2803 = vpack.c.b16 %v2007, %v2003
  %v2804 = vpack.c.b16 %v2012, %v2008
  %v2805 = vpack.c.b16 %v2013, %v2009
  %v2806 = vpack.c.b16 %v2014, %v2010
  %v2807 = vpack.c.b16 %v2015, %v2011
  %v2808 = vpack.c.b16 %v2020, %v2016
  %v2809 = vpack.c.b16 %v2021, %v2017
  %v2810 = vpack.c.b16 %v2022, %v2018
  %v2811 = vpack.c.b16 %v2023, %v2019
  %v2812 = vpack.c.b16 %v2028, %v2024
  %v2813 = vpack.c.b16 %v2029, %v2025
  %v2814 = vpack.c.b16 %v2030, %v2026
  %v2815 = vpack.c.b16 %v2031, %v2027
  %v2816 = vpack.c.b16 %v2036, %v2032
  %v2817 = vpack.c.b16 %v2037, %v2033
  %v2818 = vpack.c.b16 %v2038, %v2034
  %v2819 = vpack.c.b16 %v2039, %v2035
  %v2820 = vpack.c.b16 %v2044, %v2040
  %v2821 = vpack.c.b16 %v2045, %v2041
  %v2822 = vpack.c.b16 %v2046, %v2042
  %v2823 = vpack.c.b16 %v2047, %v2043
  %v2824 = vpack.c.b16 %v2052, %v2048
  %v2825 = vpack.c.b16 %v2053, %v2049
  %v2826 = vpack.c.b16 %v2054, %v2050
  %v2827 = vpack.c.b16 %v2055, %v2051
  %v2828 = vpack.c.b16 %v2060, %v2056
  %v2829 = vpack.c.b16 %v2061, %v2057
  %v2830 = vpack.c.b16 %v2062, %v2058
  %v2831 = vpack.c.b16 %v2063, %v2059
  %v2832 = vpack.c.b16 %v2068, %v2064
  %v2833 = vpack.c.b16 %v2069, %v2065
  %v2834 = vpack.c.b16 %v2070, %v2066
  %v2835 = vpack.c.b16 %v2071, %v2067
  %v2836 = vpack.c.b16 %v2076, %v2072
  %v2837 = vpack.c.b16 %v2077, %v2073
  %v2838 = vpack.c.b16 %v2078, %v2074
  %v2839 = vpack.c.b16 %v2079, %v2075
  %v2840 = vpack.c.b16 %v2084, %v2080
  %v2841 = vpack.c.b16 %v2085, %v2081
  %v2842 = vpack.c.b16 %v2086, %v2082
  %v2843 = vpack.c.b16 %v2087, %v2083
  %v2844 = vpack.c.b16 %v2092, %v2088
  %v2845 = vpack.c.b16 %v2093, %v2089
  %v2846 = vpack.c.b16 %v2094, %v2090
  %v2847 = vpack.c.b16 %v2095, %v2091
  %v2848 = vpack.c.b16 %v2100, %v2096
  %v2849 = vpack.c.b16 %v2101, %v2097
  %v2850 = vpack.c.b16 %v2102, %v2098
  %v2851 = vpack.c.b16 %v2103, %v2099
  %v2852 = vpack.c.b16 %v2108, %v2104
  %v2853 = vpack.c.b16 %v2109, %v2105
  %v2854 = vpack.c.b16 %v2110, %v2106
  %v2855 = vpack.c.b16 %v2111, %v2107
  %v2856 = vpack.c.b16 %v2116, %v2112
  %v2857 = vpack.c.b16 %v2117, %v2113
  %v2858 = vpack.c.b16 %v2118, %v2114
  %v2859 = vpack.c.b16 %v2119, %v2115
  %v2860 = vpack.c.b16 %v2124, %v2120
  %v2861 = vpack.c.b16 %v2125, %v2121
  %v2862 = vpack.c.b16 %v2126, %v2122
  %v2863 = vpack.c.b16 %v2127, %v2123
  %v2864 = vpack.c.b16 %v2132, %v2128
  %v2865 = vpack.c.b16 %v2133, %v2129
  %v2866 = vpack.c.b16 %v2134, %v2130
  %v2867 = vpack.c.b16 %v2135, %v2131
  %v2868 = vpack.c.b16 %v2140, %v2136
  %v2869 = vpack.c.b16 %v2141, %v2137
  %v2870 = vpack.c.b16 %v2142, %v2138
  %v2871 = vpack.c.b16 %v2143, %v2139
  %v2872 = vpack.c.b16 %v2148, %v2144
  %v2873 = vpack.c.b16 %v2149, %v2145
  %v2874 = vpack.c.b16 %v2150, %v2146
  %v2875 = vpack.c.b16 %v2151, %v2147
  %v2876 = vpack.c.b16 %v2156, %v2152
  %v2877 = vpack.c.b16 %v2157, %v2153
  %v2878 = vpack.c.b16 %v2158, %v2154
  %v2879 = vpack.c.b16 %v2159, %v2155
  %v2880 = vpack.c.b16 %v2164, %v2160
  %v2881 = vpack.c.b16 %v2165, %v2161
  %v2882 = vpack.c.b16 %v2166, %v2162
  %v2883 = vpack.c.b16 %v2167, %v2163
  %v2884 = vpack.c.b16 %v2172, %v2168
  %v2885 = vpack.c.b16 %v2173, %v2169
  %v2886 = vpack.c.b16 %v2174, %v2170
  %v2887 = vpack.c.b16 %v2175, %v2171
  %v2888 = vpack.c.b16 %v2180, %v2176
  %v2889 = vpack.c.b16 %v2181, %v2177
  %v2890 = vpack.c.b16 %v2182, %v2178
  %v2891 = vpack.c.b16 %v2183, %v2179
  %v2892 = vpack.c.b16 %v2188, %v2184
  %v2893 = vpack.c.b16 %v2189, %v2185
  %v2894 = vpack.c.b16 %v2190, %v2186
  %v2895 = vpack.c.b16 %v2191, %v2187
  %v2896 = vpack.c.b16 %v2196, %v2192
  %v2897 = vpack.c.b16 %v2197, %v2193
  %v2898 = vpack.c.b16 %v2198, %v2194
  %v2899 = vpack.c.b16 %v2199, %v2195
  %v2900 = vpack.c.b16 %v2204, %v2200
  %v2901 = vpack.c.b16 %v2205, %v2201
  %v2902 = vpack.c.b16 %v2206, %v2202
  %v2903 = vpack.c.b16 %v2207, %v2203
  %v2904 = vpack.c.b16 %v2212, %v2208
  %v2905 = vpack.c.b16 %v2213, %v2209
  %v2906 = vpack.c.b16 %v2214, %v2210
  %v2907 = vpack.c.b16 %v2215, %v2211
  %v2908 = vpack.c.b16 %v2220, %v2216
  %v2909 = vpack.c.b16 %v2221, %v2217
  %v2910 = vpack.c.b16 %v2222, %v2218
  %v2911 = vpack.c.b16 %v2223, %v2219
  %v2912 = vpack.c.b16 %v2228, %v2224
  %v2913 = vpack.c.b16 %v2229, %v2225
  %v2914 = vpack.c.b16 %v2230, %v2226
  %v2915 = vpack.c.b16 %v2231, %v2227
  %v2916 = vpack.c.b16 %v2236, %v2232
  %v2917 = vpack.c.b16 %v2237, %v2233
  %v2918 = vpack.c.b16 %v2238, %v2234
  %v2919 = vpack.c.b16 %v2239, %v2235
  %v2920 = vpack.c.b16 %v2244, %v2240
  %v2921 = vpack.c.b16 %v2245, %v2241
  %v2922 = vpack.c.b16 %v2246, %v2242
  %v2923 = vpack.c.b16 %v2247, %v2243
  %v2924 = vpack.c.b16 %v2252, %v2248
  %v2925 = vpack.c.b16 %v2253, %v2249
  %v2926 = vpack.c.b16 %v2254, %v2250
  %v2927 = vpack.c.b16 %v2255, %v2251
  %v2928 = vpack.c.b16 %v2260, %v2256
  %v2929 = vpack.c.b16 %v2261, %v2257
  %v2930 = vpack.c.b16 %v2262, %v2258
  %v2931 = vpack.c.b16 %v2263, %v2259
  %v2932 = vpack.c.b16 %v2268, %v2264
  %v2933 = vpack.c.b16 %v2269, %v2265
  %v2934 = vpack.c.b16 %v2270, %v2266
  %v2935 = vpack.c.b16 %v2271, %v2267
  %v2936 = vpack.c.b16 %v2276, %v2272
  %v2937 = vpack.c.b16 %v2277, %v2273
  %v2938 = vpack.c.b16 %v2278, %v2274
  %v2939 = vpack.c.b16 %v2279, %v2275
  %v2940 = vpack.c.b16 %v2284, %v2280
  %v2941 = vpack.c.b16 %v2285, %v2281
  %v2942 = vpack.c.b16 %v2286, %v2282
  %v2943 = vpack.c.b16 %v2287, %v2283
  %v2944 = vpack.c.b16 %v2292, %v2288
  %v2945 = vpack.c.b16 %v2293, %v2289
  %v2946 = vpack.c.b16 %v2294, %v2290
  %v2947 = vpack.c.b16 %v2295, %v2291
  %v2948 = vpack.c.b16 %v2300, %v2296
  %v2949 = vpack.c.b16 %v2301, %v2297
  %v2950 = vpack.c.b16 %v2302, %v2298
  %v2951 = vpack.c.b16 %v2303, %v2299
  %v2952 = vpack.c.b16 %v2308, %v2304
  %v2953 = vpack.c.b16 %v2309, %v2305
  %v2954 = vpack.c.b16 %v2310, %v2306
  %v2955 = vpack.c.b16 %v2311, %v2307
  %v2956 = vpack.c.b16 %v2316, %v2312
  %v2957 = vpack.c.b16 %v2317, %v2313
  %v2958 = vpack.c.b16 %v2318, %v2314
  %v2959 = vpack.c.b16 %v2319, %v2315
  %v2960 = vpack.c.b16 %v2324, %v2320
  %v2961 = vpack.c.b16 %v2325, %v2321
  %v2962 = vpack.c.b16 %v2326, %v2322
  %v2963 = vpack.c.b16 %v2327, %v2323
  %v2964 = vpack.c.b16 %v2332, %v2328
  %v2965 = vpack.c.b16 %v2333, %v2329
  %v2966 = vpack.c.b16 %v2334, %v2330
  %v2967 = vpack.c.b16 %v2335, %v2331
  %v2968 = vpack.c.b16 %v2340, %v2336
  %v2969 = vpack.c.b16 %v2341, %v2337
  %v2970 = vpack.c.b16 %v2342, %v2338
  %v2971 = vpack.c.b16 %v2343, %v2339
  %v2972 = vpack.c.b16 %v2348, %v2344
  %v2973 = vpack.c.b16 %v2349, %v2345
  %v2974 = vpack.c.b16 %v2350, %v2346
  %v2975 = vpack.c.b16 %v2351, %v2347
  %v2976 = vpack.c.b16 %v2356, %v2352
  %v2977 = vpack.c.b16 %v2357, %v2353
  %v2978 = vpack.c.b16 %v2358, %v2354
  %v2979 = vpack.c.b16 %v2359, %v2355
  %v2980 = vpack.c.b16 %v2364, %v2360
  %v2981 = vpack.c.b16 %v2365, %v2361
  %v2982 = vpack.c.b16 %v2366, %v2362
  %v2983 = vpack.c.b16 %v2367, %v2363
  %v2984 = vpack.c.b16 %v2372, %v2368
  %v2985 = vpack.c.b16 %v2373, %v2369
  %v2986 = vpack.c.b16 %v2374, %v2370
  %v2987 = vpack.c.b16 %v2375, %v2371
  %v2988 = vpack.c.b16 %v2380, %v2376
  %v2989 = vpack.c.b16 %v2381, %v2377
  %v2990 = vpack.c.b16 %v2382, %v2378
  %v2991 = vpack.c.b16 %v2383, %v2379
  %v2992 = vpack.c.b16 %v2388, %v2384
  %v2993 = vpack.c.b16 %v2389, %v2385
  %v2994 = vpack.c.b16 %v2390, %v2386
  %v2995 = vpack.c.b16 %v2391, %v2387
  %v2996 = vpack.c.b16 %v2396, %v2392
  %v2997 = vpack.c.b16 %v2397, %v2393
  %v2998 = vpack.c.b16 %v2398, %v2394
  %v2999 = vpack.c.b16 %v2399, %v2395
  %v3000 = vpack.c.b16 %v2404, %v2400
  %v3001 = vpack.c.b16 %v2405, %v2401
  %v3002 = vpack.c.b16 %v2406, %v2402
  %v3003 = vpack.c.b16 %v2407, %v2403
  %v3004 = vpack.c.b16 %v2412, %v2408
  %v3005 = vpack.c.b16 %v2413, %v2409
  %v3006 = vpack.c.b16 %v2414, %v2410
  %v3007 = vpack.c.b16 %v2415, %v2411
  %v3008 = vpack.c.b16 %v2420, %v2416
  %v3009 = vpack.c.b16 %v2421, %v2417
  %v3010 = vpack.c.b16 %v2422, %v2418
  %v3011 = vpack.c.b16 %v2423, %v2419
  %v3012 = vpack.c.b16 %v2428, %v2424
  %v3013 = vpack.c.b16 %v2429, %v2425
  %v3014 = vpack.c.b16 %v2430, %v2426
  %v3015 = vpack.c.b16 %v2431, %v2427
  %v3016 = vpack.c.b16 %v2436, %v2432
  %v3017 = vpack.c.b16 %v2437, %v2433
  %v3018 = vpack.c.b16 %v2438, %v2434
  %v3019 = vpack.c.b16 %v2439, %v2435
  %v3020 = vpack.c.b16 %v2444, %v2440
  %v3021 = vpack.c.b16 %v2445, %v2441
  %v3022 = vpack.c.b16 %v2446, %v2442
  %v3023 = vpack.c.b16 %v2447, %v2443
  %3600 = vmatprep.subr.bf16.mxu0 %v2477
  %3601 = vmatpush1.bf16.msra.mxu0 %v2476
  %3602 = vmatprep.subr.bf16.mxu0 %v2473
  %3603 = vmatpush1.bf16.msra.mxu0 %v2472
  %3604 = vmatprep.subr.bf16.mxu0 %v2469
  %3605 = vmatpush1.bf16.msra.mxu0 %v2468
  %3606 = vmatprep.subr.bf16.mxu0 %v2465
  %3607 = vmatpush1.bf16.msra.mxu0 %v2464
  %3608 = vmatprep.subr.bf16.mxu0 %v2461
  %3609 = vmatpush1.bf16.msra.mxu0 %v2460
  %3610 = vmatprep.subr.bf16.mxu0 %v2457
  %3611 = vmatpush1.bf16.msra.mxu0 %v2456
  %3612 = vmatprep.subr.bf16.mxu0 %v2453
  %3613 = vmatpush1.bf16.msra.mxu0 %v2452
  %3614 = vmatprep.subr.bf16.mxu0 %v2449
  %3615 = vmatpush1.bf16.msra.mxu0 %v2448
  %3616 = vmatprep.subr.bf16.mxu0 %v2509
  %3617 = vmatpush2.bf16.msra.mxu0 %v2508
  %3618 = vmatprep.subr.bf16.mxu0 %v2505
  %3619 = vmatpush2.bf16.msra.mxu0 %v2504
  %3620 = vmatprep.subr.bf16.mxu0 %v2501
  %3621 = vmatpush2.bf16.msra.mxu0 %v2500
  %3622 = vmatprep.subr.bf16.mxu0 %v2497
  %3623 = vmatpush2.bf16.msra.mxu0 %v2496
  %3624 = vmatprep.subr.bf16.mxu0 %v2493
  %3625 = vmatpush2.bf16.msra.mxu0 %v2492
  %3626 = vmatprep.subr.bf16.mxu0 %v2489
  %3627 = vmatpush2.bf16.msra.mxu0 %v2488
  %3628 = vmatprep.subr.bf16.mxu0 %v2485
  %3629 = vmatpush2.bf16.msra.mxu0 %v2484
  %3630 = vmatprep.subr.bf16.mxu0 %v2481
  %3631 = vmatpush2.bf16.msra.mxu0 %v2480
  %3632 = vmatprep.mubr.bf16.mxu0 %v685
  %3633 = vmatmul.mubr.bf16.gmra.mxu0 %v684
  %v3634 = vpop.f32.mrf.mxu0
  %v3635 = vadd.f32 %v613, %v3634
  %v3636 = vpop.f32.mrf.mxu0
  %v3637 = vadd.f32 %v617, %v3636
  %v3638 = vpop.f32.mrf.mxu0
  %v3639 = vadd.f32 %v613, %v3638
  %v3640 = vpop.f32.mrf.mxu0
  %v3641 = vadd.f32 %v617, %v3640
  %3642 = vdwg.mxu0
  %3643 = vmatprep.subr.bf16.mxu0 %v2541
  %3644 = vmatpush1.bf16.msra.mxu0 %v2540
  %3645 = vmatprep.subr.bf16.mxu0 %v2537
  %3646 = vmatpush1.bf16.msra.mxu0 %v2536
  %3647 = vmatprep.subr.bf16.mxu0 %v2533
  %3648 = vmatpush1.bf16.msra.mxu0 %v2532
  %3649 = vmatprep.subr.bf16.mxu0 %v2529
  %3650 = vmatpush1.bf16.msra.mxu0 %v2528
  %3651 = vmatprep.subr.bf16.mxu0 %v2525
  %3652 = vmatpush1.bf16.msra.mxu0 %v2524
  %3653 = vmatprep.subr.bf16.mxu0 %v2521
  %3654 = vmatpush1.bf16.msra.mxu0 %v2520
  %3655 = vmatprep.subr.bf16.mxu0 %v2517
  %3656 = vmatpush1.bf16.msra.mxu0 %v2516
  %3657 = vmatprep.subr.bf16.mxu0 %v2513
  %3658 = vmatpush1.bf16.msra.mxu0 %v2512
  %3659 = vmatprep.subr.bf16.mxu0 %v2573
  %3660 = vmatpush2.bf16.msra.mxu0 %v2572
  %3661 = vmatprep.subr.bf16.mxu0 %v2569
  %3662 = vmatpush2.bf16.msra.mxu0 %v2568
  %3663 = vmatprep.subr.bf16.mxu0 %v2565
  %3664 = vmatpush2.bf16.msra.mxu0 %v2564
  %3665 = vmatprep.subr.bf16.mxu0 %v2561
  %3666 = vmatpush2.bf16.msra.mxu0 %v2560
  %3667 = vmatprep.subr.bf16.mxu0 %v2557
  %3668 = vmatpush2.bf16.msra.mxu0 %v2556
  %3669 = vmatprep.subr.bf16.mxu0 %v2553
  %3670 = vmatpush2.bf16.msra.mxu0 %v2552
  %3671 = vmatprep.subr.bf16.mxu0 %v2549
  %3672 = vmatpush2.bf16.msra.mxu0 %v2548
  %3673 = vmatprep.subr.bf16.mxu0 %v2545
  %3674 = vmatpush2.bf16.msra.mxu0 %v2544
  %3675 = vmatprep.mubr.bf16.mxu0 %v687
  %3676 = vmatmul.mubr.bf16.gmra.mxu0 %v686
  %v3677 = vpop.f32.mrf.mxu0
  %v3678 = vadd.f32 %v3635, %v3677
  %v3679 = vpop.f32.mrf.mxu0
  %v3680 = vadd.f32 %v3637, %v3679
  %v3681 = vpop.f32.mrf.mxu0
  %v3682 = vadd.f32 %v3639, %v3681
  %v3683 = vpop.f32.mrf.mxu0
  %v3684 = vadd.f32 %v3641, %v3683
  %3685 = vdwg.mxu0
  %3686 = vmatprep.subr.bf16.mxu0 %v2605
  %3687 = vmatpush1.bf16.msra.mxu0 %v2604
  %3688 = vmatprep.subr.bf16.mxu0 %v2601
  %3689 = vmatpush1.bf16.msra.mxu0 %v2600
  %3690 = vmatprep.subr.bf16.mxu0 %v2597
  %3691 = vmatpush1.bf16.msra.mxu0 %v2596
  %3692 = vmatprep.subr.bf16.mxu0 %v2593
  %3693 = vmatpush1.bf16.msra.mxu0 %v2592
  %3694 = vmatprep.subr.bf16.mxu0 %v2589
  %3695 = vmatpush1.bf16.msra.mxu0 %v2588
  %3696 = vmatprep.subr.bf16.mxu0 %v2585
  %3697 = vmatpush1.bf16.msra.mxu0 %v2584
  %3698 = vmatprep.subr.bf16.mxu0 %v2581
  %3699 = vmatpush1.bf16.msra.mxu0 %v2580
  %3700 = vmatprep.subr.bf16.mxu0 %v2577
  %3701 = vmatpush1.bf16.msra.mxu0 %v2576
  %3702 = vmatprep.subr.bf16.mxu0 %v2637
  %3703 = vmatpush2.bf16.msra.mxu0 %v2636
  %3704 = vmatprep.subr.bf16.mxu0 %v2633
  %3705 = vmatpush2.bf16.msra.mxu0 %v2632
  %3706 = vmatprep.subr.bf16.mxu0 %v2629
  %3707 = vmatpush2.bf16.msra.mxu0 %v2628
  %3708 = vmatprep.subr.bf16.mxu0 %v2625
  %3709 = vmatpush2.bf16.msra.mxu0 %v2624
  %3710 = vmatprep.subr.bf16.mxu0 %v2621
  %3711 = vmatpush2.bf16.msra.mxu0 %v2620
  %3712 = vmatprep.subr.bf16.mxu0 %v2617
  %3713 = vmatpush2.bf16.msra.mxu0 %v2616
  %3714 = vmatprep.subr.bf16.mxu0 %v2613
  %3715 = vmatpush2.bf16.msra.mxu0 %v2612
  %3716 = vmatprep.subr.bf16.mxu0 %v2609
  %3717 = vmatpush2.bf16.msra.mxu0 %v2608
  %3718 = vmatprep.mubr.bf16.mxu0 %v689
  %3719 = vmatmul.mubr.bf16.gmra.mxu0 %v688
  %v3720 = vpop.f32.mrf.mxu0
  %v3721 = vadd.f32 %v3678, %v3720
  %v3722 = vpop.f32.mrf.mxu0
  %v3723 = vadd.f32 %v3680, %v3722
  %v3724 = vpop.f32.mrf.mxu0
  %v3725 = vadd.f32 %v3682, %v3724
  %v3726 = vpop.f32.mrf.mxu0
  %v3727 = vadd.f32 %v3684, %v3726
  %3728 = vdwg.mxu0
  %3729 = vmatprep.subr.bf16.mxu0 %v2669
  %3730 = vmatpush1.bf16.msra.mxu0 %v2668
  %3731 = vmatprep.subr.bf16.mxu0 %v2665
  %3732 = vmatpush1.bf16.msra.mxu0 %v2664
  %3733 = vmatprep.subr.bf16.mxu0 %v2661
  %3734 = vmatpush1.bf16.msra.mxu0 %v2660
  %3735 = vmatprep.subr.bf16.mxu0 %v2657
  %3736 = vmatpush1.bf16.msra.mxu0 %v2656
  %3737 = vmatprep.subr.bf16.mxu0 %v2653
  %3738 = vmatpush1.bf16.msra.mxu0 %v2652
  %3739 = vmatprep.subr.bf16.mxu0 %v2649
  %3740 = vmatpush1.bf16.msra.mxu0 %v2648
  %3741 = vmatprep.subr.bf16.mxu0 %v2645
  %3742 = vmatpush1.bf16.msra.mxu0 %v2644
  %3743 = vmatprep.subr.bf16.mxu0 %v2641
  %3744 = vmatpush1.bf16.msra.mxu0 %v2640
  %3745 = vmatprep.subr.bf16.mxu0 %v2701
  %3746 = vmatpush2.bf16.msra.mxu0 %v2700
  %3747 = vmatprep.subr.bf16.mxu0 %v2697
  %3748 = vmatpush2.bf16.msra.mxu0 %v2696
  %3749 = vmatprep.subr.bf16.mxu0 %v2693
  %3750 = vmatpush2.bf16.msra.mxu0 %v2692
  %3751 = vmatprep.subr.bf16.mxu0 %v2689
  %3752 = vmatpush2.bf16.msra.mxu0 %v2688
  %3753 = vmatprep.subr.bf16.mxu0 %v2685
  %3754 = vmatpush2.bf16.msra.mxu0 %v2684
  %3755 = vmatprep.subr.bf16.mxu0 %v2681
  %3756 = vmatpush2.bf16.msra.mxu0 %v2680
  %3757 = vmatprep.subr.bf16.mxu0 %v2677
  %3758 = vmatpush2.bf16.msra.mxu0 %v2676
  %3759 = vmatprep.subr.bf16.mxu0 %v2673
  %3760 = vmatpush2.bf16.msra.mxu0 %v2672
  %3761 = vmatprep.mubr.bf16.mxu0 %v691
  %3762 = vmatmul.mubr.bf16.gmra.mxu0 %v690
  %v3763 = vpop.f32.mrf.mxu0
  %v3764 = vadd.f32 %v3721, %v3763
  %v3765 = vpop.f32.mrf.mxu0
  %v3766 = vadd.f32 %v3723, %v3765
  %v3767 = vpop.f32.mrf.mxu0
  %v3768 = vadd.f32 %v3725, %v3767
  %v3769 = vpop.f32.mrf.mxu0
  %v3770 = vadd.f32 %v3727, %v3769
  %3771 = vdwg.mxu0
  %3772 = vmatprep.subr.bf16.mxu0 %v2733
  %3773 = vmatpush1.bf16.msra.mxu0 %v2732
  %3774 = vmatprep.subr.bf16.mxu0 %v2729
  %3775 = vmatpush1.bf16.msra.mxu0 %v2728
  %3776 = vmatprep.subr.bf16.mxu0 %v2725
  %3777 = vmatpush1.bf16.msra.mxu0 %v2724
  %3778 = vmatprep.subr.bf16.mxu0 %v2721
  %3779 = vmatpush1.bf16.msra.mxu0 %v2720
  %3780 = vmatprep.subr.bf16.mxu0 %v2717
  %3781 = vmatpush1.bf16.msra.mxu0 %v2716
  %3782 = vmatprep.subr.bf16.mxu0 %v2713
  %3783 = vmatpush1.bf16.msra.mxu0 %v2712
  %3784 = vmatprep.subr.bf16.mxu0 %v2709
  %3785 = vmatpush1.bf16.msra.mxu0 %v2708
  %3786 = vmatprep.subr.bf16.mxu0 %v2705
  %3787 = vmatpush1.bf16.msra.mxu0 %v2704
  %3788 = vmatprep.subr.bf16.mxu0 %v2765
  %3789 = vmatpush2.bf16.msra.mxu0 %v2764
  %3790 = vmatprep.subr.bf16.mxu0 %v2761
  %3791 = vmatpush2.bf16.msra.mxu0 %v2760
  %3792 = vmatprep.subr.bf16.mxu0 %v2757
  %3793 = vmatpush2.bf16.msra.mxu0 %v2756
  %3794 = vmatprep.subr.bf16.mxu0 %v2753
  %3795 = vmatpush2.bf16.msra.mxu0 %v2752
  %3796 = vmatprep.subr.bf16.mxu0 %v2749
  %3797 = vmatpush2.bf16.msra.mxu0 %v2748
  %3798 = vmatprep.subr.bf16.mxu0 %v2745
  %3799 = vmatpush2.bf16.msra.mxu0 %v2744
  %3800 = vmatprep.subr.bf16.mxu0 %v2741
  %3801 = vmatpush2.bf16.msra.mxu0 %v2740
  %3802 = vmatprep.subr.bf16.mxu0 %v2737
  %3803 = vmatpush2.bf16.msra.mxu0 %v2736
  %3804 = vmatprep.mubr.bf16.mxu0 %v693
  %3805 = vmatmul.mubr.bf16.gmra.mxu0 %v692
  %v3806 = vpop.f32.mrf.mxu0
  %v3807 = vadd.f32 %v3764, %v3806
  %v3808 = vpop.f32.mrf.mxu0
  %v3809 = vadd.f32 %v3766, %v3808
  %v3810 = vpop.f32.mrf.mxu0
  %v3811 = vadd.f32 %v3768, %v3810
  %v3812 = vpop.f32.mrf.mxu0
  %v3813 = vadd.f32 %v3770, %v3812
  %3814 = vdwg.mxu0
  %3815 = vmatprep.subr.bf16.mxu0 %v2797
  %3816 = vmatpush1.bf16.msra.mxu0 %v2796
  %3817 = vmatprep.subr.bf16.mxu0 %v2793
  %3818 = vmatpush1.bf16.msra.mxu0 %v2792
  %3819 = vmatprep.subr.bf16.mxu0 %v2789
  %3820 = vmatpush1.bf16.msra.mxu0 %v2788
  %3821 = vmatprep.subr.bf16.mxu0 %v2785
  %3822 = vmatpush1.bf16.msra.mxu0 %v2784
  %3823 = vmatprep.subr.bf16.mxu0 %v2781
  %3824 = vmatpush1.bf16.msra.mxu0 %v2780
  %3825 = vmatprep.subr.bf16.mxu0 %v2777
  %3826 = vmatpush1.bf16.msra.mxu0 %v2776
  %3827 = vmatprep.subr.bf16.mxu0 %v2773
  %3828 = vmatpush1.bf16.msra.mxu0 %v2772
  %3829 = vmatprep.subr.bf16.mxu0 %v2769
  %3830 = vmatpush1.bf16.msra.mxu0 %v2768
  %3831 = vmatprep.subr.bf16.mxu0 %v2829
  %3832 = vmatpush2.bf16.msra.mxu0 %v2828
  %3833 = vmatprep.subr.bf16.mxu0 %v2825
  %3834 = vmatpush2.bf16.msra.mxu0 %v2824
  %3835 = vmatprep.subr.bf16.mxu0 %v2821
  %3836 = vmatpush2.bf16.msra.mxu0 %v2820
  %3837 = vmatprep.subr.bf16.mxu0 %v2817
  %3838 = vmatpush2.bf16.msra.mxu0 %v2816
  %3839 = vmatprep.subr.bf16.mxu0 %v2813
  %3840 = vmatpush2.bf16.msra.mxu0 %v2812
  %3841 = vmatprep.subr.bf16.mxu0 %v2809
  %3842 = vmatpush2.bf16.msra.mxu0 %v2808
  %3843 = vmatprep.subr.bf16.mxu0 %v2805
  %3844 = vmatpush2.bf16.msra.mxu0 %v2804
  %3845 = vmatprep.subr.bf16.mxu0 %v2801
  %3846 = vmatpush2.bf16.msra.mxu0 %v2800
  %3847 = vmatprep.mubr.bf16.mxu0 %v695
  %3848 = vmatmul.mubr.bf16.gmra.mxu0 %v694
  %v3849 = vpop.f32.mrf.mxu0
  %v3850 = vadd.f32 %v3807, %v3849
  %v3851 = vpop.f32.mrf.mxu0
  %v3852 = vadd.f32 %v3809, %v3851
  %v3853 = vpop.f32.mrf.mxu0
  %v3854 = vadd.f32 %v3811, %v3853
  %v3855 = vpop.f32.mrf.mxu0
  %v3856 = vadd.f32 %v3813, %v3855
  %3857 = vdwg.mxu0
  %3858 = vmatprep.subr.bf16.mxu0 %v2861
  %3859 = vmatpush1.bf16.msra.mxu0 %v2860
  %3860 = vmatprep.subr.bf16.mxu0 %v2857
  %3861 = vmatpush1.bf16.msra.mxu0 %v2856
  %3862 = vmatprep.subr.bf16.mxu0 %v2853
  %3863 = vmatpush1.bf16.msra.mxu0 %v2852
  %3864 = vmatprep.subr.bf16.mxu0 %v2849
  %3865 = vmatpush1.bf16.msra.mxu0 %v2848
  %3866 = vmatprep.subr.bf16.mxu0 %v2845
  %3867 = vmatpush1.bf16.msra.mxu0 %v2844
  %3868 = vmatprep.subr.bf16.mxu0 %v2841
  %3869 = vmatpush1.bf16.msra.mxu0 %v2840
  %3870 = vmatprep.subr.bf16.mxu0 %v2837
  %3871 = vmatpush1.bf16.msra.mxu0 %v2836
  %3872 = vmatprep.subr.bf16.mxu0 %v2833
  %3873 = vmatpush1.bf16.msra.mxu0 %v2832
  %3874 = vmatprep.subr.bf16.mxu0 %v2893
  %3875 = vmatpush2.bf16.msra.mxu0 %v2892
  %3876 = vmatprep.subr.bf16.mxu0 %v2889
  %3877 = vmatpush2.bf16.msra.mxu0 %v2888
  %3878 = vmatprep.subr.bf16.mxu0 %v2885
  %3879 = vmatpush2.bf16.msra.mxu0 %v2884
  %3880 = vmatprep.subr.bf16.mxu0 %v2881
  %3881 = vmatpush2.bf16.msra.mxu0 %v2880
  %3882 = vmatprep.subr.bf16.mxu0 %v2877
  %3883 = vmatpush2.bf16.msra.mxu0 %v2876
  %3884 = vmatprep.subr.bf16.mxu0 %v2873
  %3885 = vmatpush2.bf16.msra.mxu0 %v2872
  %3886 = vmatprep.subr.bf16.mxu0 %v2869
  %3887 = vmatpush2.bf16.msra.mxu0 %v2868
  %3888 = vmatprep.subr.bf16.mxu0 %v2865
  %3889 = vmatpush2.bf16.msra.mxu0 %v2864
  %3890 = vmatprep.mubr.bf16.mxu0 %v697
  %3891 = vmatmul.mubr.bf16.gmra.mxu0 %v696
  %v3892 = vpop.f32.mrf.mxu0
  %v3893 = vadd.f32 %v3850, %v3892
  %v3894 = vpop.f32.mrf.mxu0
  %v3895 = vadd.f32 %v3852, %v3894
  %v3896 = vpop.f32.mrf.mxu0
  %v3897 = vadd.f32 %v3854, %v3896
  %v3898 = vpop.f32.mrf.mxu0
  %v3899 = vadd.f32 %v3856, %v3898
  %3900 = vdwg.mxu0
  %3901 = vmatprep.subr.bf16.mxu0 %v2925
  %3902 = vmatpush1.bf16.msra.mxu0 %v2924
  %3903 = vmatprep.subr.bf16.mxu0 %v2921
  %3904 = vmatpush1.bf16.msra.mxu0 %v2920
  %3905 = vmatprep.subr.bf16.mxu0 %v2917
  %3906 = vmatpush1.bf16.msra.mxu0 %v2916
  %3907 = vmatprep.subr.bf16.mxu0 %v2913
  %3908 = vmatpush1.bf16.msra.mxu0 %v2912
  %3909 = vmatprep.subr.bf16.mxu0 %v2909
  %3910 = vmatpush1.bf16.msra.mxu0 %v2908
  %3911 = vmatprep.subr.bf16.mxu0 %v2905
  %3912 = vmatpush1.bf16.msra.mxu0 %v2904
  %3913 = vmatprep.subr.bf16.mxu0 %v2901
  %3914 = vmatpush1.bf16.msra.mxu0 %v2900
  %3915 = vmatprep.subr.bf16.mxu0 %v2897
  %3916 = vmatpush1.bf16.msra.mxu0 %v2896
  %3917 = vmatprep.subr.bf16.mxu0 %v2957
  %3918 = vmatpush2.bf16.msra.mxu0 %v2956
  %3919 = vmatprep.subr.bf16.mxu0 %v2953
  %3920 = vmatpush2.bf16.msra.mxu0 %v2952
  %3921 = vmatprep.subr.bf16.mxu0 %v2949
  %3922 = vmatpush2.bf16.msra.mxu0 %v2948
  %3923 = vmatprep.subr.bf16.mxu0 %v2945
  %3924 = vmatpush2.bf16.msra.mxu0 %v2944
  %3925 = vmatprep.subr.bf16.mxu0 %v2941
  %3926 = vmatpush2.bf16.msra.mxu0 %v2940
  %3927 = vmatprep.subr.bf16.mxu0 %v2937
  %3928 = vmatpush2.bf16.msra.mxu0 %v2936
  %3929 = vmatprep.subr.bf16.mxu0 %v2933
  %3930 = vmatpush2.bf16.msra.mxu0 %v2932
  %3931 = vmatprep.subr.bf16.mxu0 %v2929
  %3932 = vmatpush2.bf16.msra.mxu0 %v2928
  %3933 = vmatprep.mubr.bf16.mxu0 %v699
  %3934 = vmatmul.mubr.bf16.gmra.mxu0 %v698
  %v3935 = vpop.f32.mrf.mxu0
  %v3936 = vadd.f32 %v3893, %v3935
  %v3937 = vpop.f32.mrf.mxu0
  %v3938 = vadd.f32 %v3895, %v3937
  %v3939 = vpop.f32.mrf.mxu0
  %v3940 = vadd.f32 %v3897, %v3939
  %v3941 = vpop.f32.mrf.mxu0
  %v3942 = vadd.f32 %v3899, %v3941
  %3943 = vdwg.mxu0
  %3944 = vmatprep.subr.bf16.mxu0 %v2989
  %3945 = vmatpush1.bf16.msra.mxu0 %v2988
  %3946 = vmatprep.subr.bf16.mxu0 %v2985
  %3947 = vmatpush1.bf16.msra.mxu0 %v2984
  %3948 = vmatprep.subr.bf16.mxu0 %v2981
  %3949 = vmatpush1.bf16.msra.mxu0 %v2980
  %3950 = vmatprep.subr.bf16.mxu0 %v2977
  %3951 = vmatpush1.bf16.msra.mxu0 %v2976
  %3952 = vmatprep.subr.bf16.mxu0 %v2973
  %3953 = vmatpush1.bf16.msra.mxu0 %v2972
  %3954 = vmatprep.subr.bf16.mxu0 %v2969
  %3955 = vmatpush1.bf16.msra.mxu0 %v2968
  %3956 = vmatprep.subr.bf16.mxu0 %v2965
  %3957 = vmatpush1.bf16.msra.mxu0 %v2964
  %3958 = vmatprep.subr.bf16.mxu0 %v2961
  %3959 = vmatpush1.bf16.msra.mxu0 %v2960
  %3960 = vmatprep.subr.bf16.mxu0 %v3021
  %3961 = vmatpush2.bf16.msra.mxu0 %v3020
  %3962 = vmatprep.subr.bf16.mxu0 %v3017
  %3963 = vmatpush2.bf16.msra.mxu0 %v3016
  %3964 = vmatprep.subr.bf16.mxu0 %v3013
  %3965 = vmatpush2.bf16.msra.mxu0 %v3012
  %3966 = vmatprep.subr.bf16.mxu0 %v3009
  %3967 = vmatpush2.bf16.msra.mxu0 %v3008
  %3968 = vmatprep.subr.bf16.mxu0 %v3005
  %3969 = vmatpush2.bf16.msra.mxu0 %v3004
  %3970 = vmatprep.subr.bf16.mxu0 %v3001
  %3971 = vmatpush2.bf16.msra.mxu0 %v3000
  %3972 = vmatprep.subr.bf16.mxu0 %v2997
  %3973 = vmatpush2.bf16.msra.mxu0 %v2996
  %3974 = vmatprep.subr.bf16.mxu0 %v2993
  %3975 = vmatpush2.bf16.msra.mxu0 %v2992
  %3976 = vmatprep.mubr.bf16.mxu0 %v701
  %3977 = vmatmul.mubr.bf16.gmra.mxu0 %v700
  %v3978 = vpop.f32.mrf.mxu0
  %v3979 = vadd.f32 %v3936, %v3978
  %v3980 = vpop.f32.mrf.mxu0
  %v3981 = vadd.f32 %v3938, %v3980
  %v3982 = vpop.f32.mrf.mxu0
  %v3983 = vadd.f32 %v3940, %v3982
  %v3984 = vpop.f32.mrf.mxu0
  %v3985 = vadd.f32 %v3942, %v3984
  %3986 = vdwg.mxu0
  %3987 = vmatprep.subr.bf16.mxu0 %v2479
  %3988 = vmatpush1.bf16.msra.mxu0 %v2478
  %3989 = vmatprep.subr.bf16.mxu0 %v2475
  %3990 = vmatpush1.bf16.msra.mxu0 %v2474
  %3991 = vmatprep.subr.bf16.mxu0 %v2471
  %3992 = vmatpush1.bf16.msra.mxu0 %v2470
  %3993 = vmatprep.subr.bf16.mxu0 %v2467
  %3994 = vmatpush1.bf16.msra.mxu0 %v2466
  %3995 = vmatprep.subr.bf16.mxu0 %v2463
  %3996 = vmatpush1.bf16.msra.mxu0 %v2462
  %3997 = vmatprep.subr.bf16.mxu0 %v2459
  %3998 = vmatpush1.bf16.msra.mxu0 %v2458
  %3999 = vmatprep.subr.bf16.mxu0 %v2455
  %4000 = vmatpush1.bf16.msra.mxu0 %v2454
  %4001 = vmatprep.subr.bf16.mxu0 %v2451
  %4002 = vmatpush1.bf16.msra.mxu0 %v2450
  %4003 = vmatprep.subr.bf16.mxu0 %v2511
  %4004 = vmatpush2.bf16.msra.mxu0 %v2510
  %4005 = vmatprep.subr.bf16.mxu0 %v2507
  %4006 = vmatpush2.bf16.msra.mxu0 %v2506
  %4007 = vmatprep.subr.bf16.mxu0 %v2503
  %4008 = vmatpush2.bf16.msra.mxu0 %v2502
  %4009 = vmatprep.subr.bf16.mxu0 %v2499
  %4010 = vmatpush2.bf16.msra.mxu0 %v2498
  %4011 = vmatprep.subr.bf16.mxu0 %v2495
  %4012 = vmatpush2.bf16.msra.mxu0 %v2494
  %4013 = vmatprep.subr.bf16.mxu0 %v2491
  %4014 = vmatpush2.bf16.msra.mxu0 %v2490
  %4015 = vmatprep.subr.bf16.mxu0 %v2487
  %4016 = vmatpush2.bf16.msra.mxu0 %v2486
  %4017 = vmatprep.subr.bf16.mxu0 %v2483
  %4018 = vmatpush2.bf16.msra.mxu0 %v2482
  %4019 = vmatprep.mubr.bf16.mxu0 %v685
  %4020 = vmatmul.mubr.bf16.gmra.mxu0 %v684
  %v4021 = vpop.f32.mrf.mxu0
  %v4022 = vadd.f32 %v621, %v4021
  %v4023 = vpop.f32.mrf.mxu0
  %v4024 = vadd.f32 %v625, %v4023
  %v4025 = vpop.f32.mrf.mxu0
  %v4026 = vadd.f32 %v621, %v4025
  %v4027 = vpop.f32.mrf.mxu0
  %v4028 = vadd.f32 %v625, %v4027
  %4029 = vdwg.mxu0
  %4030 = vmatprep.subr.bf16.mxu0 %v2543
  %4031 = vmatpush1.bf16.msra.mxu0 %v2542
  %4032 = vmatprep.subr.bf16.mxu0 %v2539
  %4033 = vmatpush1.bf16.msra.mxu0 %v2538
  %4034 = vmatprep.subr.bf16.mxu0 %v2535
  %4035 = vmatpush1.bf16.msra.mxu0 %v2534
  %4036 = vmatprep.subr.bf16.mxu0 %v2531
  %4037 = vmatpush1.bf16.msra.mxu0 %v2530
  %4038 = vmatprep.subr.bf16.mxu0 %v2527
  %4039 = vmatpush1.bf16.msra.mxu0 %v2526
  %4040 = vmatprep.subr.bf16.mxu0 %v2523
  %4041 = vmatpush1.bf16.msra.mxu0 %v2522
  %4042 = vmatprep.subr.bf16.mxu0 %v2519
  %4043 = vmatpush1.bf16.msra.mxu0 %v2518
  %4044 = vmatprep.subr.bf16.mxu0 %v2515
  %4045 = vmatpush1.bf16.msra.mxu0 %v2514
  %4046 = vmatprep.subr.bf16.mxu0 %v2575
  %4047 = vmatpush2.bf16.msra.mxu0 %v2574
  %4048 = vmatprep.subr.bf16.mxu0 %v2571
  %4049 = vmatpush2.bf16.msra.mxu0 %v2570
  %4050 = vmatprep.subr.bf16.mxu0 %v2567
  %4051 = vmatpush2.bf16.msra.mxu0 %v2566
  %4052 = vmatprep.subr.bf16.mxu0 %v2563
  %4053 = vmatpush2.bf16.msra.mxu0 %v2562
  %4054 = vmatprep.subr.bf16.mxu0 %v2559
  %4055 = vmatpush2.bf16.msra.mxu0 %v2558
  %4056 = vmatprep.subr.bf16.mxu0 %v2555
  %4057 = vmatpush2.bf16.msra.mxu0 %v2554
  %4058 = vmatprep.subr.bf16.mxu0 %v2551
  %4059 = vmatpush2.bf16.msra.mxu0 %v2550
  %4060 = vmatprep.subr.bf16.mxu0 %v2547
  %4061 = vmatpush2.bf16.msra.mxu0 %v2546
  %4062 = vmatprep.mubr.bf16.mxu0 %v687
  %4063 = vmatmul.mubr.bf16.gmra.mxu0 %v686
  %v4064 = vpop.f32.mrf.mxu0
  %v4065 = vadd.f32 %v4022, %v4064
  %v4066 = vpop.f32.mrf.mxu0
  %v4067 = vadd.f32 %v4024, %v4066
  %v4068 = vpop.f32.mrf.mxu0
  %v4069 = vadd.f32 %v4026, %v4068
  %v4070 = vpop.f32.mrf.mxu0
  %v4071 = vadd.f32 %v4028, %v4070
  %4072 = vdwg.mxu0
  %4073 = vmatprep.subr.bf16.mxu0 %v2607
  %4074 = vmatpush1.bf16.msra.mxu0 %v2606
  %4075 = vmatprep.subr.bf16.mxu0 %v2603
  %4076 = vmatpush1.bf16.msra.mxu0 %v2602
  %4077 = vmatprep.subr.bf16.mxu0 %v2599
  %4078 = vmatpush1.bf16.msra.mxu0 %v2598
  %4079 = vmatprep.subr.bf16.mxu0 %v2595
  %4080 = vmatpush1.bf16.msra.mxu0 %v2594
  %4081 = vmatprep.subr.bf16.mxu0 %v2591
  %4082 = vmatpush1.bf16.msra.mxu0 %v2590
  %4083 = vmatprep.subr.bf16.mxu0 %v2587
  %4084 = vmatpush1.bf16.msra.mxu0 %v2586
  %4085 = vmatprep.subr.bf16.mxu0 %v2583
  %4086 = vmatpush1.bf16.msra.mxu0 %v2582
  %4087 = vmatprep.subr.bf16.mxu0 %v2579
  %4088 = vmatpush1.bf16.msra.mxu0 %v2578
  %4089 = vmatprep.subr.bf16.mxu0 %v2639
  %4090 = vmatpush2.bf16.msra.mxu0 %v2638
  %4091 = vmatprep.subr.bf16.mxu0 %v2635
  %4092 = vmatpush2.bf16.msra.mxu0 %v2634
  %4093 = vmatprep.subr.bf16.mxu0 %v2631
  %4094 = vmatpush2.bf16.msra.mxu0 %v2630
  %4095 = vmatprep.subr.bf16.mxu0 %v2627
  %4096 = vmatpush2.bf16.msra.mxu0 %v2626
  %4097 = vmatprep.subr.bf16.mxu0 %v2623
  %4098 = vmatpush2.bf16.msra.mxu0 %v2622
  %4099 = vmatprep.subr.bf16.mxu0 %v2619
  %4100 = vmatpush2.bf16.msra.mxu0 %v2618
  %4101 = vmatprep.subr.bf16.mxu0 %v2615
  %4102 = vmatpush2.bf16.msra.mxu0 %v2614
  %4103 = vmatprep.subr.bf16.mxu0 %v2611
  %4104 = vmatpush2.bf16.msra.mxu0 %v2610
  %4105 = vmatprep.mubr.bf16.mxu0 %v689
  %4106 = vmatmul.mubr.bf16.gmra.mxu0 %v688
  %v4107 = vpop.f32.mrf.mxu0
  %v4108 = vadd.f32 %v4065, %v4107
  %v4109 = vpop.f32.mrf.mxu0
  %v4110 = vadd.f32 %v4067, %v4109
  %v4111 = vpop.f32.mrf.mxu0
  %v4112 = vadd.f32 %v4069, %v4111
  %v4113 = vpop.f32.mrf.mxu0
  %v4114 = vadd.f32 %v4071, %v4113
  %4115 = vdwg.mxu0
  %4116 = vmatprep.subr.bf16.mxu0 %v2671
  %4117 = vmatpush1.bf16.msra.mxu0 %v2670
  %4118 = vmatprep.subr.bf16.mxu0 %v2667
  %4119 = vmatpush1.bf16.msra.mxu0 %v2666
  %4120 = vmatprep.subr.bf16.mxu0 %v2663
  %4121 = vmatpush1.bf16.msra.mxu0 %v2662
  %4122 = vmatprep.subr.bf16.mxu0 %v2659
  %4123 = vmatpush1.bf16.msra.mxu0 %v2658
  %4124 = vmatprep.subr.bf16.mxu0 %v2655
  %4125 = vmatpush1.bf16.msra.mxu0 %v2654
  %4126 = vmatprep.subr.bf16.mxu0 %v2651
  %4127 = vmatpush1.bf16.msra.mxu0 %v2650
  %4128 = vmatprep.subr.bf16.mxu0 %v2647
  %4129 = vmatpush1.bf16.msra.mxu0 %v2646
  %4130 = vmatprep.subr.bf16.mxu0 %v2643
  %4131 = vmatpush1.bf16.msra.mxu0 %v2642
  %4132 = vmatprep.subr.bf16.mxu0 %v2703
  %4133 = vmatpush2.bf16.msra.mxu0 %v2702
  %4134 = vmatprep.subr.bf16.mxu0 %v2699
  %4135 = vmatpush2.bf16.msra.mxu0 %v2698
  %4136 = vmatprep.subr.bf16.mxu0 %v2695
  %4137 = vmatpush2.bf16.msra.mxu0 %v2694
  %4138 = vmatprep.subr.bf16.mxu0 %v2691
  %4139 = vmatpush2.bf16.msra.mxu0 %v2690
  %4140 = vmatprep.subr.bf16.mxu0 %v2687
  %4141 = vmatpush2.bf16.msra.mxu0 %v2686
  %4142 = vmatprep.subr.bf16.mxu0 %v2683
  %4143 = vmatpush2.bf16.msra.mxu0 %v2682
  %4144 = vmatprep.subr.bf16.mxu0 %v2679
  %4145 = vmatpush2.bf16.msra.mxu0 %v2678
  %4146 = vmatprep.subr.bf16.mxu0 %v2675
  %4147 = vmatpush2.bf16.msra.mxu0 %v2674
  %4148 = vmatprep.mubr.bf16.mxu0 %v691
  %4149 = vmatmul.mubr.bf16.gmra.mxu0 %v690
  %v4150 = vpop.f32.mrf.mxu0
  %v4151 = vadd.f32 %v4108, %v4150
  %v4152 = vpop.f32.mrf.mxu0
  %v4153 = vadd.f32 %v4110, %v4152
  %v4154 = vpop.f32.mrf.mxu0
  %v4155 = vadd.f32 %v4112, %v4154
  %v4156 = vpop.f32.mrf.mxu0
  %v4157 = vadd.f32 %v4114, %v4156
  %4158 = vdwg.mxu0
  %4159 = vmatprep.subr.bf16.mxu0 %v2735
  %4160 = vmatpush1.bf16.msra.mxu0 %v2734
  %4161 = vmatprep.subr.bf16.mxu0 %v2731
  %4162 = vmatpush1.bf16.msra.mxu0 %v2730
  %4163 = vmatprep.subr.bf16.mxu0 %v2727
  %4164 = vmatpush1.bf16.msra.mxu0 %v2726
  %4165 = vmatprep.subr.bf16.mxu0 %v2723
  %4166 = vmatpush1.bf16.msra.mxu0 %v2722
  %4167 = vmatprep.subr.bf16.mxu0 %v2719
  %4168 = vmatpush1.bf16.msra.mxu0 %v2718
  %4169 = vmatprep.subr.bf16.mxu0 %v2715
  %4170 = vmatpush1.bf16.msra.mxu0 %v2714
  %4171 = vmatprep.subr.bf16.mxu0 %v2711
  %4172 = vmatpush1.bf16.msra.mxu0 %v2710
  %4173 = vmatprep.subr.bf16.mxu0 %v2707
  %4174 = vmatpush1.bf16.msra.mxu0 %v2706
  %4175 = vmatprep.subr.bf16.mxu0 %v2767
  %4176 = vmatpush2.bf16.msra.mxu0 %v2766
  %4177 = vmatprep.subr.bf16.mxu0 %v2763
  %4178 = vmatpush2.bf16.msra.mxu0 %v2762
  %4179 = vmatprep.subr.bf16.mxu0 %v2759
  %4180 = vmatpush2.bf16.msra.mxu0 %v2758
  %4181 = vmatprep.subr.bf16.mxu0 %v2755
  %4182 = vmatpush2.bf16.msra.mxu0 %v2754
  %4183 = vmatprep.subr.bf16.mxu0 %v2751
  %4184 = vmatpush2.bf16.msra.mxu0 %v2750
  %4185 = vmatprep.subr.bf16.mxu0 %v2747
  %4186 = vmatpush2.bf16.msra.mxu0 %v2746
  %4187 = vmatprep.subr.bf16.mxu0 %v2743
  %4188 = vmatpush2.bf16.msra.mxu0 %v2742
  %4189 = vmatprep.subr.bf16.mxu0 %v2739
  %4190 = vmatpush2.bf16.msra.mxu0 %v2738
  %4191 = vmatprep.mubr.bf16.mxu0 %v693
  %4192 = vmatmul.mubr.bf16.gmra.mxu0 %v692
  %v4193 = vpop.f32.mrf.mxu0
  %v4194 = vadd.f32 %v4151, %v4193
  %v4195 = vpop.f32.mrf.mxu0
  %v4196 = vadd.f32 %v4153, %v4195
  %v4197 = vpop.f32.mrf.mxu0
  %v4198 = vadd.f32 %v4155, %v4197
  %v4199 = vpop.f32.mrf.mxu0
  %v4200 = vadd.f32 %v4157, %v4199
  %4201 = vdwg.mxu0
  %4202 = vmatprep.subr.bf16.mxu0 %v2799
  %4203 = vmatpush1.bf16.msra.mxu0 %v2798
  %4204 = vmatprep.subr.bf16.mxu0 %v2795
  %4205 = vmatpush1.bf16.msra.mxu0 %v2794
  %4206 = vmatprep.subr.bf16.mxu0 %v2791
  %4207 = vmatpush1.bf16.msra.mxu0 %v2790
  %4208 = vmatprep.subr.bf16.mxu0 %v2787
  %4209 = vmatpush1.bf16.msra.mxu0 %v2786
  %4210 = vmatprep.subr.bf16.mxu0 %v2783
  %4211 = vmatpush1.bf16.msra.mxu0 %v2782
  %4212 = vmatprep.subr.bf16.mxu0 %v2779
  %4213 = vmatpush1.bf16.msra.mxu0 %v2778
  %4214 = vmatprep.subr.bf16.mxu0 %v2775
  %4215 = vmatpush1.bf16.msra.mxu0 %v2774
  %4216 = vmatprep.subr.bf16.mxu0 %v2771
  %4217 = vmatpush1.bf16.msra.mxu0 %v2770
  %4218 = vmatprep.subr.bf16.mxu0 %v2831
  %4219 = vmatpush2.bf16.msra.mxu0 %v2830
  %4220 = vmatprep.subr.bf16.mxu0 %v2827
  %4221 = vmatpush2.bf16.msra.mxu0 %v2826
  %4222 = vmatprep.subr.bf16.mxu0 %v2823
  %4223 = vmatpush2.bf16.msra.mxu0 %v2822
  %4224 = vmatprep.subr.bf16.mxu0 %v2819
  %4225 = vmatpush2.bf16.msra.mxu0 %v2818
  %4226 = vmatprep.subr.bf16.mxu0 %v2815
  %4227 = vmatpush2.bf16.msra.mxu0 %v2814
  %4228 = vmatprep.subr.bf16.mxu0 %v2811
  %4229 = vmatpush2.bf16.msra.mxu0 %v2810
  %4230 = vmatprep.subr.bf16.mxu0 %v2807
  %4231 = vmatpush2.bf16.msra.mxu0 %v2806
  %4232 = vmatprep.subr.bf16.mxu0 %v2803
  %4233 = vmatpush2.bf16.msra.mxu0 %v2802
  %4234 = vmatprep.mubr.bf16.mxu0 %v695
  %4235 = vmatmul.mubr.bf16.gmra.mxu0 %v694
  %v4236 = vpop.f32.mrf.mxu0
  %v4237 = vadd.f32 %v4194, %v4236
  %v4238 = vpop.f32.mrf.mxu0
  %v4239 = vadd.f32 %v4196, %v4238
  %v4240 = vpop.f32.mrf.mxu0
  %v4241 = vadd.f32 %v4198, %v4240
  %v4242 = vpop.f32.mrf.mxu0
  %v4243 = vadd.f32 %v4200, %v4242
  %4244 = vdwg.mxu0
  %4245 = vmatprep.subr.bf16.mxu0 %v2863
  %4246 = vmatpush1.bf16.msra.mxu0 %v2862
  %4247 = vmatprep.subr.bf16.mxu0 %v2859
  %4248 = vmatpush1.bf16.msra.mxu0 %v2858
  %4249 = vmatprep.subr.bf16.mxu0 %v2855
  %4250 = vmatpush1.bf16.msra.mxu0 %v2854
  %4251 = vmatprep.subr.bf16.mxu0 %v2851
  %4252 = vmatpush1.bf16.msra.mxu0 %v2850
  %4253 = vmatprep.subr.bf16.mxu0 %v2847
  %4254 = vmatpush1.bf16.msra.mxu0 %v2846
  %4255 = vmatprep.subr.bf16.mxu0 %v2843
  %4256 = vmatpush1.bf16.msra.mxu0 %v2842
  %4257 = vmatprep.subr.bf16.mxu0 %v2839
  %4258 = vmatpush1.bf16.msra.mxu0 %v2838
  %4259 = vmatprep.subr.bf16.mxu0 %v2835
  %4260 = vmatpush1.bf16.msra.mxu0 %v2834
  %4261 = vmatprep.subr.bf16.mxu0 %v2895
  %4262 = vmatpush2.bf16.msra.mxu0 %v2894
  %4263 = vmatprep.subr.bf16.mxu0 %v2891
  %4264 = vmatpush2.bf16.msra.mxu0 %v2890
  %4265 = vmatprep.subr.bf16.mxu0 %v2887
  %4266 = vmatpush2.bf16.msra.mxu0 %v2886
  %4267 = vmatprep.subr.bf16.mxu0 %v2883
  %4268 = vmatpush2.bf16.msra.mxu0 %v2882
  %4269 = vmatprep.subr.bf16.mxu0 %v2879
  %4270 = vmatpush2.bf16.msra.mxu0 %v2878
  %4271 = vmatprep.subr.bf16.mxu0 %v2875
  %4272 = vmatpush2.bf16.msra.mxu0 %v2874
  %4273 = vmatprep.subr.bf16.mxu0 %v2871
  %4274 = vmatpush2.bf16.msra.mxu0 %v2870
  %4275 = vmatprep.subr.bf16.mxu0 %v2867
  %4276 = vmatpush2.bf16.msra.mxu0 %v2866
  %4277 = vmatprep.mubr.bf16.mxu0 %v697
  %4278 = vmatmul.mubr.bf16.gmra.mxu0 %v696
  %v4279 = vpop.f32.mrf.mxu0
  %v4280 = vadd.f32 %v4237, %v4279
  %v4281 = vpop.f32.mrf.mxu0
  %v4282 = vadd.f32 %v4239, %v4281
  %v4283 = vpop.f32.mrf.mxu0
  %v4284 = vadd.f32 %v4241, %v4283
  %v4285 = vpop.f32.mrf.mxu0
  %v4286 = vadd.f32 %v4243, %v4285
  %4287 = vdwg.mxu0
  %4288 = vmatprep.subr.bf16.mxu0 %v2927
  %4289 = vmatpush1.bf16.msra.mxu0 %v2926
  %4290 = vmatprep.subr.bf16.mxu0 %v2923
  %4291 = vmatpush1.bf16.msra.mxu0 %v2922
  %4292 = vmatprep.subr.bf16.mxu0 %v2919
  %4293 = vmatpush1.bf16.msra.mxu0 %v2918
  %4294 = vmatprep.subr.bf16.mxu0 %v2915
  %4295 = vmatpush1.bf16.msra.mxu0 %v2914
  %4296 = vmatprep.subr.bf16.mxu0 %v2911
  %4297 = vmatpush1.bf16.msra.mxu0 %v2910
  %4298 = vmatprep.subr.bf16.mxu0 %v2907
  %4299 = vmatpush1.bf16.msra.mxu0 %v2906
  %4300 = vmatprep.subr.bf16.mxu0 %v2903
  %4301 = vmatpush1.bf16.msra.mxu0 %v2902
  %4302 = vmatprep.subr.bf16.mxu0 %v2899
  %4303 = vmatpush1.bf16.msra.mxu0 %v2898
  %4304 = vmatprep.subr.bf16.mxu0 %v2959
  %4305 = vmatpush2.bf16.msra.mxu0 %v2958
  %4306 = vmatprep.subr.bf16.mxu0 %v2955
  %4307 = vmatpush2.bf16.msra.mxu0 %v2954
  %4308 = vmatprep.subr.bf16.mxu0 %v2951
  %4309 = vmatpush2.bf16.msra.mxu0 %v2950
  %4310 = vmatprep.subr.bf16.mxu0 %v2947
  %4311 = vmatpush2.bf16.msra.mxu0 %v2946
  %4312 = vmatprep.subr.bf16.mxu0 %v2943
  %4313 = vmatpush2.bf16.msra.mxu0 %v2942
  %4314 = vmatprep.subr.bf16.mxu0 %v2939
  %4315 = vmatpush2.bf16.msra.mxu0 %v2938
  %4316 = vmatprep.subr.bf16.mxu0 %v2935
  %4317 = vmatpush2.bf16.msra.mxu0 %v2934
  %4318 = vmatprep.subr.bf16.mxu0 %v2931
  %4319 = vmatpush2.bf16.msra.mxu0 %v2930
  %4320 = vmatprep.mubr.bf16.mxu0 %v699
  %4321 = vmatmul.mubr.bf16.gmra.mxu0 %v698
  %v4322 = vpop.f32.mrf.mxu0
  %v4323 = vadd.f32 %v4280, %v4322
  %v4324 = vpop.f32.mrf.mxu0
  %v4325 = vadd.f32 %v4282, %v4324
  %v4326 = vpop.f32.mrf.mxu0
  %v4327 = vadd.f32 %v4284, %v4326
  %v4328 = vpop.f32.mrf.mxu0
  %v4329 = vadd.f32 %v4286, %v4328
  %4330 = vdwg.mxu0
  %4331 = vmatprep.subr.bf16.mxu0 %v2991
  %4332 = vmatpush1.bf16.msra.mxu0 %v2990
  %4333 = vmatprep.subr.bf16.mxu0 %v2987
  %4334 = vmatpush1.bf16.msra.mxu0 %v2986
  %4335 = vmatprep.subr.bf16.mxu0 %v2983
  %4336 = vmatpush1.bf16.msra.mxu0 %v2982
  %4337 = vmatprep.subr.bf16.mxu0 %v2979
  %4338 = vmatpush1.bf16.msra.mxu0 %v2978
  %4339 = vmatprep.subr.bf16.mxu0 %v2975
  %4340 = vmatpush1.bf16.msra.mxu0 %v2974
  %4341 = vmatprep.subr.bf16.mxu0 %v2971
  %4342 = vmatpush1.bf16.msra.mxu0 %v2970
  %4343 = vmatprep.subr.bf16.mxu0 %v2967
  %4344 = vmatpush1.bf16.msra.mxu0 %v2966
  %4345 = vmatprep.subr.bf16.mxu0 %v2963
  %4346 = vmatpush1.bf16.msra.mxu0 %v2962
  %4347 = vmatprep.subr.bf16.mxu0 %v3023
  %4348 = vmatpush2.bf16.msra.mxu0 %v3022
  %4349 = vmatprep.subr.bf16.mxu0 %v3019
  %4350 = vmatpush2.bf16.msra.mxu0 %v3018
  %4351 = vmatprep.subr.bf16.mxu0 %v3015
  %4352 = vmatpush2.bf16.msra.mxu0 %v3014
  %4353 = vmatprep.subr.bf16.mxu0 %v3011
  %4354 = vmatpush2.bf16.msra.mxu0 %v3010
  %4355 = vmatprep.subr.bf16.mxu0 %v3007
  %4356 = vmatpush2.bf16.msra.mxu0 %v3006
  %4357 = vmatprep.subr.bf16.mxu0 %v3003
  %4358 = vmatpush2.bf16.msra.mxu0 %v3002
  %4359 = vmatprep.subr.bf16.mxu0 %v2999
  %4360 = vmatpush2.bf16.msra.mxu0 %v2998
  %4361 = vmatprep.subr.bf16.mxu0 %v2995
  %4362 = vmatpush2.bf16.msra.mxu0 %v2994
  %4363 = vmatprep.mubr.bf16.mxu0 %v701
  %4364 = vmatmul.mubr.bf16.gmra.mxu0 %v700
  %v4365 = vpop.f32.mrf.mxu0
  %v4366 = vadd.f32 %v4323, %v4365
  %v4367 = vpop.f32.mrf.mxu0
  %v4368 = vadd.f32 %v4325, %v4367
  %v4369 = vpop.f32.mrf.mxu0
  %v4370 = vadd.f32 %v4327, %v4369
  %v4371 = vpop.f32.mrf.mxu0
  %v4372 = vadd.f32 %v4329, %v4371
  %4373 = vdwg.mxu0
  %v4374 = vmax.f32 %v3979, 0.0
  %v4375 = vmax.f32 %v3981, 0.0
  %v4376 = vmax.f32 %v4366, 0.0
  %v4377 = vmax.f32 %v4368, 0.0
  %v4378 = vmax.f32 %v3983, 0.0
  %v4379 = vmax.f32 %v3985, 0.0
  %v4380 = vmax.f32 %v4370, 0.0
  %v4381 = vmax.f32 %v4372, 0.0
  %v4382 = vpack.c.bf16 %v4378, %v4374
  %v4383 = vpack.c.bf16 %v4379, %v4375
  %v4384 = vpack.c.bf16 %v4380, %v4376
  %v4385 = vpack.c.bf16 %v4381, %v4377
  %v4390 = vunpack.c.l.b16 %v4382
  %v4391 = vunpack.c.l.b16 %v4383
  %v4392 = vunpack.c.l.b16 %v4384
  %v4393 = vunpack.c.l.b16 %v4385
  %v4394 = vunpack.c.h.b16 %v4382
  %v4395 = vunpack.c.h.b16 %v4383
  %v4396 = vunpack.c.h.b16 %v4384
  %v4397 = vunpack.c.h.b16 %v4385
  %v4398 = vpack.c.b16 %v4391, %v4390
  %v4399 = vpack.c.b16 %v4393, %v4392
  %v4400 = vpack.c.b16 %v4395, %v4394
  %v4401 = vpack.c.b16 %v4397, %v4396
  %4406 = vst [vmem:[%s3] sm:$0xff] %v4398
  %4407 = vst [vmem:[%s3 + $0x8] sm:$0xff] %v4399
  %4408 = vst [vmem:[%s3 + $0x10] sm:$0xff] %v4400
  %4409 = vst [vmem:[%s3 + $0x18] sm:$0xff] %v4401
  // Predicated region
  $region14: #{generator_forward.9} parent=0 // pred_check
    _
  $region15: #{generator_forward.9} parent=0 // pred_check_branch
    %4411 = sbr.rel (0) target = $region17
  $region16: #{generator_forward.9} parent=0 // pred_region
    _
  $region17: #{generator_forward.9} parent=0 // pred_fallthru
    _
  // Predicated region
  $region18: #{generator_forward.9} parent=0 // pred_check
    _
  $region19: #{generator_forward.9} parent=0 // pred_check_branch
    %4413 = sbr.rel (0) target = $region21
  $region20: #{generator_forward.9} parent=0 // pred_region
    _
  $region21: #{generator_forward.9} parent=0 // pred_fallthru
    _

// kernel: generator_forward.10
$region0: #{generator_forward.10}
  #allocation0 [shape = 'u32[]', space=smem, size = 0x4, offset = 0x4, fixed_abs, tag = 'smem constant byte address 0x4 - core index']
  #allocation1 [shape = 'u32[144,128]{1,0:T(1,128)}', space=vmem, size = 0x12000, scoped, tag = 'internal scratch']
  %s0 = inlined_call_operand.vmem [shape: bf16[32,1152], index: 0, kind: input, shape index: {}]
  %s1 = inlined_call_operand.vmem [shape: bf16[1152,256], index: 1, kind: input, shape index: {}]
  %s2 = inlined_call_operand.vmem [shape: f32[1,256], index: 2, kind: input, shape index: {}]
  %s3 = inlined_call_operand.vmem [shape: bf16[32,256], index: 3, kind: output, shape index: {}]
  %s4 = sld [smem:[#allocation0]]
  $region22: #{generator_forward.10} parent=0
    _
  %s6 = ssub.s32 1, %s4
  %s7 = scalar_select 0, %s6, %s4
  // Predicated region
  $region2: #{generator_forward.10} parent=0 // pred_check
    _
  $region3: #{generator_forward.10} parent=0 // pred_check_branch
    %9 = sbr.rel (0) target = $region5
  $region4: #{generator_forward.10} parent=0 // pred_region
    _
  $region5: #{generator_forward.10} parent=0 // pred_fallthru
    _
  // Predicated region
  $region6: #{generator_forward.10} parent=0 // pred_check
    _
  $region7: #{generator_forward.10} parent=0 // pred_check_branch
    %11 = sbr.rel (0) target = $region9
  $region8: #{generator_forward.10} parent=0 // pred_region
    _
  $region9: #{generator_forward.10} parent=0 // pred_fallthru
    _
  // Predicated region
  $region10: #{generator_forward.10} parent=0 // pred_check
    _
  $region11: #{generator_forward.10} parent=0 // pred_check_branch
    %13 = sbr.rel (0) target = $region13
  $region12: #{generator_forward.10} parent=0 // pred_region
    _
  $region13: #{generator_forward.10} parent=0 // pred_fallthru
    _
  %v15 = vld [vmem:[%s0] sm:$0xff]
  %v16 = vld [vmem:[%s0 + $0x8] sm:$0xff]
  %v17 = vld [vmem:[%s0 + $0x10] sm:$0xff]
  %v18 = vld [vmem:[%s0 + $0x18] sm:$0xff]
  %v19 = vld [vmem:[%s0 + $0x20] sm:$0xf]
  %v20 = vld [vmem:[%s0 + $0x24] sm:$0xff]
  %v21 = vld [vmem:[%s0 + $0x2c] sm:$0xff]
  %v22 = vld [vmem:[%s0 + $0x34] sm:$0xff]
  %v23 = vld [vmem:[%s0 + $0x3c] sm:$0xff]
  %v24 = vld [vmem:[%s0 + $0x44] sm:$0xf]
  %v25 = vld [vmem:[%s0 + $0x48] sm:$0xff]
  %v26 = vld [vmem:[%s0 + $0x50] sm:$0xff]
  %v27 = vld [vmem:[%s0 + $0x58] sm:$0xff]
  %v28 = vld [vmem:[%s0 + $0x60] sm:$0xff]
  %v29 = vld [vmem:[%s0 + $0x68] sm:$0xf]
  %v30 = vld [vmem:[%s0 + $0x6c] sm:$0xff]
  %v31 = vld [vmem:[%s0 + $0x74] sm:$0xff]
  %v32 = vld [vmem:[%s0 + $0x7c] sm:$0xff]
  %v33 = vld [vmem:[%s0 + $0x84] sm:$0xff]
  %v34 = vld [vmem:[%s0 + $0x8c] sm:$0xf]
  %v35 = vld [vmem:[%s1] sm:$0xff]
  %v36 = vld [vmem:[%s1 + $0x8] sm:$0xff]
  %v37 = vld [vmem:[%s1 + $0x10] sm:$0xff]
  %v38 = vld [vmem:[%s1 + $0x18] sm:$0xff]
  %v39 = vld [vmem:[%s1 + $0x20] sm:$0xff]
  %v40 = vld [vmem:[%s1 + $0x28] sm:$0xff]
  %v41 = vld [vmem:[%s1 + $0x30] sm:$0xff]
  %v42 = vld [vmem:[%s1 + $0x38] sm:$0xff]
  %v43 = vld [vmem:[%s1 + $0x40] sm:$0xff]
  %v44 = vld [vmem:[%s1 + $0x48] sm:$0xff]
  %v45 = vld [vmem:[%s1 + $0x50] sm:$0xff]
  %v46 = vld [vmem:[%s1 + $0x58] sm:$0xff]
  %v47 = vld [vmem:[%s1 + $0x60] sm:$0xff]
  %v48 = vld [vmem:[%s1 + $0x68] sm:$0xff]
  %v49 = vld [vmem:[%s1 + $0x70] sm:$0xff]
  %v50 = vld [vmem:[%s1 + $0x78] sm:$0xff]
  %v51 = vld [vmem:[%s1 + $0x80] sm:$0xff]
  %v52 = vld [vmem:[%s1 + $0x88] sm:$0xff]
  %v53 = vld [vmem:[%s1 + $0x90] sm:$0xff]
  %v54 = vld [vmem:[%s1 + $0x98] sm:$0xff]
  %v55 = vld [vmem:[%s1 + $0xa0] sm:$0xff]
  %v56 = vld [vmem:[%s1 + $0xa8] sm:$0xff]
  %v57 = vld [vmem:[%s1 + $0xb0] sm:$0xff]
  %v58 = vld [vmem:[%s1 + $0xb8] sm:$0xff]
  %v59 = vld [vmem:[%s1 + $0xc0] sm:$0xff]
  %v60 = vld [vmem:[%s1 + $0xc8] sm:$0xff]
  %v61 = vld [vmem:[%s1 + $0xd0] sm:$0xff]
  %v62 = vld [vmem:[%s1 + $0xd8] sm:$0xff]
  %v63 = vld [vmem:[%s1 + $0xe0] sm:$0xff]
  %v64 = vld [vmem:[%s1 + $0xe8] sm:$0xff]
  %v65 = vld [vmem:[%s1 + $0xf0] sm:$0xff]
  %v66 = vld [vmem:[%s1 + $0xf8] sm:$0xff]
  %v67 = vld [vmem:[%s1 + $0x100] sm:$0xff]
  %v68 = vld [vmem:[%s1 + $0x108] sm:$0xff]
  %v69 = vld [vmem:[%s1 + $0x110] sm:$0xff]
  %v70 = vld [vmem:[%s1 + $0x118] sm:$0xff]
  %v71 = vld [vmem:[%s1 + $0x120] sm:$0xff]
  %v72 = vld [vmem:[%s1 + $0x128] sm:$0xff]
  %v73 = vld [vmem:[%s1 + $0x130] sm:$0xff]
  %v74 = vld [vmem:[%s1 + $0x138] sm:$0xff]
  %v75 = vld [vmem:[%s1 + $0x140] sm:$0xff]
  %v76 = vld [vmem:[%s1 + $0x148] sm:$0xff]
  %v77 = vld [vmem:[%s1 + $0x150] sm:$0xff]
  %v78 = vld [vmem:[%s1 + $0x158] sm:$0xff]
  %v79 = vld [vmem:[%s1 + $0x160] sm:$0xff]
  %v80 = vld [vmem:[%s1 + $0x168] sm:$0xff]
  %v81 = vld [vmem:[%s1 + $0x170] sm:$0xff]
  %v82 = vld [vmem:[%s1 + $0x178] sm:$0xff]
  %v83 = vld [vmem:[%s1 + $0x180] sm:$0xff]
  %v84 = vld [vmem:[%s1 + $0x188] sm:$0xff]
  %v85 = vld [vmem:[%s1 + $0x190] sm:$0xff]
  %v86 = vld [vmem:[%s1 + $0x198] sm:$0xff]
  %v87 = vld [vmem:[%s1 + $0x1a0] sm:$0xff]
  %v88 = vld [vmem:[%s1 + $0x1a8] sm:$0xff]
  %v89 = vld [vmem:[%s1 + $0x1b0] sm:$0xff]
  %v90 = vld [vmem:[%s1 + $0x1b8] sm:$0xff]
  %v91 = vld [vmem:[%s1 + $0x1c0] sm:$0xff]
  %v92 = vld [vmem:[%s1 + $0x1c8] sm:$0xff]
  %v93 = vld [vmem:[%s1 + $0x1d0] sm:$0xff]
  %v94 = vld [vmem:[%s1 + $0x1d8] sm:$0xff]
  %v95 = vld [vmem:[%s1 + $0x1e0] sm:$0xff]
  %v96 = vld [vmem:[%s1 + $0x1e8] sm:$0xff]
  %v97 = vld [vmem:[%s1 + $0x1f0] sm:$0xff]
  %v98 = vld [vmem:[%s1 + $0x1f8] sm:$0xff]
  %v99 = vld [vmem:[%s1 + $0x200] sm:$0xff]
  %v100 = vld [vmem:[%s1 + $0x208] sm:$0xff]
  %v101 = vld [vmem:[%s1 + $0x210] sm:$0xff]
  %v102 = vld [vmem:[%s1 + $0x218] sm:$0xff]
  %v103 = vld [vmem:[%s1 + $0x220] sm:$0xff]
  %v104 = vld [vmem:[%s1 + $0x228] sm:$0xff]
  %v105 = vld [vmem:[%s1 + $0x230] sm:$0xff]
  %v106 = vld [vmem:[%s1 + $0x238] sm:$0xff]
  %v107 = vld [vmem:[%s1 + $0x240] sm:$0xff]
  %v108 = vld [vmem:[%s1 + $0x248] sm:$0xff]
  %v109 = vld [vmem:[%s1 + $0x250] sm:$0xff]
  %v110 = vld [vmem:[%s1 + $0x258] sm:$0xff]
  %v111 = vld [vmem:[%s1 + $0x260] sm:$0xff]
  %v112 = vld [vmem:[%s1 + $0x268] sm:$0xff]
  %v113 = vld [vmem:[%s1 + $0x270] sm:$0xff]
  %v114 = vld [vmem:[%s1 + $0x278] sm:$0xff]
  %v115 = vld [vmem:[%s1 + $0x280] sm:$0xff]
  %v116 = vld [vmem:[%s1 + $0x288] sm:$0xff]
  %v117 = vld [vmem:[%s1 + $0x290] sm:$0xff]
  %v118 = vld [vmem:[%s1 + $0x298] sm:$0xff]
  %v119 = vld [vmem:[%s1 + $0x2a0] sm:$0xff]
  %v120 = vld [vmem:[%s1 + $0x2a8] sm:$0xff]
  %v121 = vld [vmem:[%s1 + $0x2b0] sm:$0xff]
  %v122 = vld [vmem:[%s1 + $0x2b8] sm:$0xff]
  %v123 = vld [vmem:[%s1 + $0x2c0] sm:$0xff]
  %v124 = vld [vmem:[%s1 + $0x2c8] sm:$0xff]
  %v125 = vld [vmem:[%s1 + $0x2d0] sm:$0xff]
  %v126 = vld [vmem:[%s1 + $0x2d8] sm:$0xff]
  %v127 = vld [vmem:[%s1 + $0x2e0] sm:$0xff]
  %v128 = vld [vmem:[%s1 + $0x2e8] sm:$0xff]
  %v129 = vld [vmem:[%s1 + $0x2f0] sm:$0xff]
  %v130 = vld [vmem:[%s1 + $0x2f8] sm:$0xff]
  %v131 = vld [vmem:[%s1 + $0x300] sm:$0xff]
  %v132 = vld [vmem:[%s1 + $0x308] sm:$0xff]
  %v133 = vld [vmem:[%s1 + $0x310] sm:$0xff]
  %v134 = vld [vmem:[%s1 + $0x318] sm:$0xff]
  %v135 = vld [vmem:[%s1 + $0x320] sm:$0xff]
  %v136 = vld [vmem:[%s1 + $0x328] sm:$0xff]
  %v137 = vld [vmem:[%s1 + $0x330] sm:$0xff]
  %v138 = vld [vmem:[%s1 + $0x338] sm:$0xff]
  %v139 = vld [vmem:[%s1 + $0x340] sm:$0xff]
  %v140 = vld [vmem:[%s1 + $0x348] sm:$0xff]
  %v141 = vld [vmem:[%s1 + $0x350] sm:$0xff]
  %v142 = vld [vmem:[%s1 + $0x358] sm:$0xff]
  %v143 = vld [vmem:[%s1 + $0x360] sm:$0xff]
  %v144 = vld [vmem:[%s1 + $0x368] sm:$0xff]
  %v145 = vld [vmem:[%s1 + $0x370] sm:$0xff]
  %v146 = vld [vmem:[%s1 + $0x378] sm:$0xff]
  %v147 = vld [vmem:[%s1 + $0x380] sm:$0xff]
  %v148 = vld [vmem:[%s1 + $0x388] sm:$0xff]
  %v149 = vld [vmem:[%s1 + $0x390] sm:$0xff]
  %v150 = vld [vmem:[%s1 + $0x398] sm:$0xff]
  %v151 = vld [vmem:[%s1 + $0x3a0] sm:$0xff]
  %v152 = vld [vmem:[%s1 + $0x3a8] sm:$0xff]
  %v153 = vld [vmem:[%s1 + $0x3b0] sm:$0xff]
  %v154 = vld [vmem:[%s1 + $0x3b8] sm:$0xff]
  %v155 = vld [vmem:[%s1 + $0x3c0] sm:$0xff]
  %v156 = vld [vmem:[%s1 + $0x3c8] sm:$0xff]
  %v157 = vld [vmem:[%s1 + $0x3d0] sm:$0xff]
  %v158 = vld [vmem:[%s1 + $0x3d8] sm:$0xff]
  %v159 = vld [vmem:[%s1 + $0x3e0] sm:$0xff]
  %v160 = vld [vmem:[%s1 + $0x3e8] sm:$0xff]
  %v161 = vld [vmem:[%s1 + $0x3f0] sm:$0xff]
  %v162 = vld [vmem:[%s1 + $0x3f8] sm:$0xff]
  %v163 = vld [vmem:[%s1 + $0x400] sm:$0xff]
  %v164 = vld [vmem:[%s1 + $0x408] sm:$0xff]
  %v165 = vld [vmem:[%s1 + $0x410] sm:$0xff]
  %v166 = vld [vmem:[%s1 + $0x418] sm:$0xff]
  %v167 = vld [vmem:[%s1 + $0x420] sm:$0xff]
  %v168 = vld [vmem:[%s1 + $0x428] sm:$0xff]
  %v169 = vld [vmem:[%s1 + $0x430] sm:$0xff]
  %v170 = vld [vmem:[%s1 + $0x438] sm:$0xff]
  %v171 = vld [vmem:[%s1 + $0x440] sm:$0xff]
  %v172 = vld [vmem:[%s1 + $0x448] sm:$0xff]
  %v173 = vld [vmem:[%s1 + $0x450] sm:$0xff]
  %v174 = vld [vmem:[%s1 + $0x458] sm:$0xff]
  %v175 = vld [vmem:[%s1 + $0x460] sm:$0xff]
  %v176 = vld [vmem:[%s1 + $0x468] sm:$0xff]
  %v177 = vld [vmem:[%s1 + $0x470] sm:$0xff]
  %v178 = vld [vmem:[%s1 + $0x478] sm:$0xff]
  %v179 = vld [vmem:[%s2] sm:$0x3]
  %v181 = vlaneseq
  %v182 = vshrl.u32 %v181, 7
  %v183 = vsub.s32 0, %v182
  %v184 = vrot.slane %v179, %v183
  %v185 = vlaneseq
  %v186 = vshrl.u32 %v185, 7
  %v187 = vsub.s32 1, %v186
  %v188 = vrot.slane %v179, %v187
  %v211 = vunpack.c.l.b16 %v15
  %v212 = vunpack.c.h.b16 %v15
  %v213 = vunpack.c.l.b16 %v16
  %v214 = vunpack.c.h.b16 %v16
  %v215 = vunpack.c.l.b16 %v17
  %v216 = vunpack.c.h.b16 %v17
  %v217 = vunpack.c.l.b16 %v18
  %v218 = vunpack.c.h.b16 %v18
  %v219 = vunpack.c.l.b16 %v19
  %v220 = vunpack.c.l.b16 %v20
  %v221 = vunpack.c.h.b16 %v20
  %v222 = vunpack.c.l.b16 %v21
  %v223 = vunpack.c.h.b16 %v21
  %v224 = vunpack.c.l.b16 %v22
  %v225 = vunpack.c.h.b16 %v22
  %v226 = vunpack.c.l.b16 %v23
  %v227 = vunpack.c.h.b16 %v23
  %v228 = vunpack.c.l.b16 %v24
  %v229 = vunpack.c.l.b16 %v25
  %v230 = vunpack.c.h.b16 %v25
  %v231 = vunpack.c.l.b16 %v26
  %v232 = vunpack.c.h.b16 %v26
  %v233 = vunpack.c.l.b16 %v27
  %v234 = vunpack.c.h.b16 %v27
  %v235 = vunpack.c.l.b16 %v28
  %v236 = vunpack.c.h.b16 %v28
  %v237 = vunpack.c.l.b16 %v29
  %v238 = vunpack.c.l.b16 %v30
  %v239 = vunpack.c.h.b16 %v30
  %v240 = vunpack.c.l.b16 %v31
  %v241 = vunpack.c.h.b16 %v31
  %v242 = vunpack.c.l.b16 %v32
  %v243 = vunpack.c.h.b16 %v32
  %v244 = vunpack.c.l.b16 %v33
  %v245 = vunpack.c.h.b16 %v33
  %v246 = vunpack.c.l.b16 %v34
  %v247 = vpack.c.b16 %v220, %v211
  %v248 = vpack.c.b16 %v221, %v212
  %v249 = vpack.c.b16 %v222, %v213
  %v250 = vpack.c.b16 %v223, %v214
  %v251 = vpack.c.b16 %v224, %v215
  %v252 = vpack.c.b16 %v225, %v216
  %v253 = vpack.c.b16 %v226, %v217
  %v254 = vpack.c.b16 %v227, %v218
  %v255 = vpack.c.b16 %v228, %v219
  %v256 = vpack.c.b16 %v238, %v229
  %v257 = vpack.c.b16 %v239, %v230
  %v258 = vpack.c.b16 %v240, %v231
  %v259 = vpack.c.b16 %v241, %v232
  %v260 = vpack.c.b16 %v242, %v233
  %v261 = vpack.c.b16 %v243, %v234
  %v262 = vpack.c.b16 %v244, %v235
  %v263 = vpack.c.b16 %v245, %v236
  %v264 = vpack.c.b16 %v246, %v237
  %v427 = vunpack.c.l.b16 %v35
  %v428 = vunpack.c.h.b16 %v35
  %v429 = vunpack.c.l.b16 %v36
  %v430 = vunpack.c.h.b16 %v36
  %v431 = vunpack.c.l.b16 %v37
  %v432 = vunpack.c.h.b16 %v37
  %v433 = vunpack.c.l.b16 %v38
  %v434 = vunpack.c.h.b16 %v38
  %v435 = vunpack.c.l.b16 %v39
  %v436 = vunpack.c.h.b16 %v39
  %v437 = vunpack.c.l.b16 %v40
  %v438 = vunpack.c.h.b16 %v40
  %v439 = vunpack.c.l.b16 %v41
  %v440 = vunpack.c.h.b16 %v41
  %v441 = vunpack.c.l.b16 %v42
  %v442 = vunpack.c.h.b16 %v42
  %v443 = vunpack.c.l.b16 %v43
  %v444 = vunpack.c.h.b16 %v43
  %v445 = vunpack.c.l.b16 %v44
  %v446 = vunpack.c.h.b16 %v44
  %v447 = vunpack.c.l.b16 %v45
  %v448 = vunpack.c.h.b16 %v45
  %v449 = vunpack.c.l.b16 %v46
  %v450 = vunpack.c.h.b16 %v46
  %v451 = vunpack.c.l.b16 %v47
  %v452 = vunpack.c.h.b16 %v47
  %v453 = vunpack.c.l.b16 %v48
  %v454 = vunpack.c.h.b16 %v48
  %v455 = vunpack.c.l.b16 %v49
  %v456 = vunpack.c.h.b16 %v49
  %v457 = vunpack.c.l.b16 %v50
  %v458 = vunpack.c.h.b16 %v50
  %v459 = vunpack.c.l.b16 %v51
  %v460 = vunpack.c.h.b16 %v51
  %v461 = vunpack.c.l.b16 %v52
  %v462 = vunpack.c.h.b16 %v52
  %v463 = vunpack.c.l.b16 %v53
  %v464 = vunpack.c.h.b16 %v53
  %v465 = vunpack.c.l.b16 %v54
  %v466 = vunpack.c.h.b16 %v54
  %v467 = vunpack.c.l.b16 %v55
  %v468 = vunpack.c.h.b16 %v55
  %v469 = vunpack.c.l.b16 %v56
  %v470 = vunpack.c.h.b16 %v56
  %v471 = vunpack.c.l.b16 %v57
  %v472 = vunpack.c.h.b16 %v57
  %v473 = vunpack.c.l.b16 %v58
  %v474 = vunpack.c.h.b16 %v58
  %v475 = vunpack.c.l.b16 %v59
  %v476 = vunpack.c.h.b16 %v59
  %v477 = vunpack.c.l.b16 %v60
  %v478 = vunpack.c.h.b16 %v60
  %v479 = vunpack.c.l.b16 %v61
  %v480 = vunpack.c.h.b16 %v61
  %v481 = vunpack.c.l.b16 %v62
  %v482 = vunpack.c.h.b16 %v62
  %v483 = vunpack.c.l.b16 %v63
  %v484 = vunpack.c.h.b16 %v63
  %v485 = vunpack.c.l.b16 %v64
  %v486 = vunpack.c.h.b16 %v64
  %v487 = vunpack.c.l.b16 %v65
  %v488 = vunpack.c.h.b16 %v65
  %v489 = vunpack.c.l.b16 %v66
  %v490 = vunpack.c.h.b16 %v66
  %v491 = vunpack.c.l.b16 %v67
  %v492 = vunpack.c.h.b16 %v67
  %v493 = vunpack.c.l.b16 %v68
  %v494 = vunpack.c.h.b16 %v68
  %v495 = vunpack.c.l.b16 %v69
  %v496 = vunpack.c.h.b16 %v69
  %v497 = vunpack.c.l.b16 %v70
  %v498 = vunpack.c.h.b16 %v70
  %v499 = vunpack.c.l.b16 %v71
  %v500 = vunpack.c.h.b16 %v71
  %v501 = vunpack.c.l.b16 %v72
  %v502 = vunpack.c.h.b16 %v72
  %v503 = vunpack.c.l.b16 %v73
  %v504 = vunpack.c.h.b16 %v73
  %v505 = vunpack.c.l.b16 %v74
  %v506 = vunpack.c.h.b16 %v74
  %v507 = vunpack.c.l.b16 %v75
  %v508 = vunpack.c.h.b16 %v75
  %v509 = vunpack.c.l.b16 %v76
  %v510 = vunpack.c.h.b16 %v76
  %v511 = vunpack.c.l.b16 %v77
  %v512 = vunpack.c.h.b16 %v77
  %v513 = vunpack.c.l.b16 %v78
  %v514 = vunpack.c.h.b16 %v78
  %v515 = vunpack.c.l.b16 %v79
  %v516 = vunpack.c.h.b16 %v79
  %v517 = vunpack.c.l.b16 %v80
  %v518 = vunpack.c.h.b16 %v80
  %v519 = vunpack.c.l.b16 %v81
  %v520 = vunpack.c.h.b16 %v81
  %v521 = vunpack.c.l.b16 %v82
  %v522 = vunpack.c.h.b16 %v82
  %v523 = vunpack.c.l.b16 %v83
  %v524 = vunpack.c.h.b16 %v83
  %v525 = vunpack.c.l.b16 %v84
  %v526 = vunpack.c.h.b16 %v84
  %v527 = vunpack.c.l.b16 %v85
  %v528 = vunpack.c.h.b16 %v85
  %v529 = vunpack.c.l.b16 %v86
  %v530 = vunpack.c.h.b16 %v86
  %v531 = vunpack.c.l.b16 %v87
  %v532 = vunpack.c.h.b16 %v87
  %v533 = vunpack.c.l.b16 %v88
  %v534 = vunpack.c.h.b16 %v88
  %v535 = vunpack.c.l.b16 %v89
  %v536 = vunpack.c.h.b16 %v89
  %v537 = vunpack.c.l.b16 %v90
  %v538 = vunpack.c.h.b16 %v90
  %v539 = vunpack.c.l.b16 %v91
  %v540 = vunpack.c.h.b16 %v91
  %v541 = vunpack.c.l.b16 %v92
  %v542 = vunpack.c.h.b16 %v92
  %v543 = vunpack.c.l.b16 %v93
  %v544 = vunpack.c.h.b16 %v93
  %v545 = vunpack.c.l.b16 %v94
  %v546 = vunpack.c.h.b16 %v94
  %v547 = vunpack.c.l.b16 %v95
  %v548 = vunpack.c.h.b16 %v95
  %v549 = vunpack.c.l.b16 %v96
  %v550 = vunpack.c.h.b16 %v96
  %v551 = vunpack.c.l.b16 %v97
  %v552 = vunpack.c.h.b16 %v97
  %v553 = vunpack.c.l.b16 %v98
  %v554 = vunpack.c.h.b16 %v98
  %v555 = vunpack.c.l.b16 %v99
  %v556 = vunpack.c.h.b16 %v99
  %v557 = vunpack.c.l.b16 %v100
  %v558 = vunpack.c.h.b16 %v100
  %v559 = vunpack.c.l.b16 %v101
  %v560 = vunpack.c.h.b16 %v101
  %v561 = vunpack.c.l.b16 %v102
  %v562 = vunpack.c.h.b16 %v102
  %v563 = vunpack.c.l.b16 %v103
  %v564 = vunpack.c.h.b16 %v103
  %v565 = vunpack.c.l.b16 %v104
  %v566 = vunpack.c.h.b16 %v104
  %v567 = vunpack.c.l.b16 %v105
  %v568 = vunpack.c.h.b16 %v105
  %v569 = vunpack.c.l.b16 %v106
  %v570 = vunpack.c.h.b16 %v106
  %v571 = vunpack.c.l.b16 %v107
  %v572 = vunpack.c.h.b16 %v107
  %v573 = vunpack.c.l.b16 %v108
  %v574 = vunpack.c.h.b16 %v108
  %v575 = vunpack.c.l.b16 %v109
  %v576 = vunpack.c.h.b16 %v109
  %v577 = vunpack.c.l.b16 %v110
  %v578 = vunpack.c.h.b16 %v110
  %v579 = vunpack.c.l.b16 %v111
  %v580 = vunpack.c.h.b16 %v111
  %v581 = vunpack.c.l.b16 %v112
  %v582 = vunpack.c.h.b16 %v112
  %v583 = vunpack.c.l.b16 %v113
  %v584 = vunpack.c.h.b16 %v113
  %v585 = vunpack.c.l.b16 %v114
  %v586 = vunpack.c.h.b16 %v114
  %v587 = vunpack.c.l.b16 %v115
  %v588 = vunpack.c.h.b16 %v115
  %v589 = vunpack.c.l.b16 %v116
  %v590 = vunpack.c.h.b16 %v116
  %v591 = vunpack.c.l.b16 %v117
  %v592 = vunpack.c.h.b16 %v117
  %v593 = vunpack.c.l.b16 %v118
  %v594 = vunpack.c.h.b16 %v118
  %v595 = vunpack.c.l.b16 %v119
  %v596 = vunpack.c.h.b16 %v119
  %v597 = vunpack.c.l.b16 %v120
  %v598 = vunpack.c.h.b16 %v120
  %v599 = vunpack.c.l.b16 %v121
  %v600 = vunpack.c.h.b16 %v121
  %v601 = vunpack.c.l.b16 %v122
  %v602 = vunpack.c.h.b16 %v122
  %v603 = vunpack.c.l.b16 %v123
  %v604 = vunpack.c.h.b16 %v123
  %v605 = vunpack.c.l.b16 %v124
  %v606 = vunpack.c.h.b16 %v124
  %v607 = vunpack.c.l.b16 %v125
  %v608 = vunpack.c.h.b16 %v125
  %v609 = vunpack.c.l.b16 %v126
  %v610 = vunpack.c.h.b16 %v126
  %v611 = vunpack.c.l.b16 %v127
  %v612 = vunpack.c.h.b16 %v127
  %v613 = vunpack.c.l.b16 %v128
  %v614 = vunpack.c.h.b16 %v128
  %v615 = vunpack.c.l.b16 %v129
  %v616 = vunpack.c.h.b16 %v129
  %v617 = vunpack.c.l.b16 %v130
  %v618 = vunpack.c.h.b16 %v130
  %v619 = vunpack.c.l.b16 %v131
  %v620 = vunpack.c.h.b16 %v131
  %v621 = vunpack.c.l.b16 %v132
  %v622 = vunpack.c.h.b16 %v132
  %v623 = vunpack.c.l.b16 %v133
  %v624 = vunpack.c.h.b16 %v133
  %v625 = vunpack.c.l.b16 %v134
  %v626 = vunpack.c.h.b16 %v134
  %v627 = vunpack.c.l.b16 %v135
  %v628 = vunpack.c.h.b16 %v135
  %v629 = vunpack.c.l.b16 %v136
  %v630 = vunpack.c.h.b16 %v136
  %v631 = vunpack.c.l.b16 %v137
  %v632 = vunpack.c.h.b16 %v137
  %v633 = vunpack.c.l.b16 %v138
  %v634 = vunpack.c.h.b16 %v138
  %v635 = vunpack.c.l.b16 %v139
  %v636 = vunpack.c.h.b16 %v139
  %v637 = vunpack.c.l.b16 %v140
  %v638 = vunpack.c.h.b16 %v140
  %v639 = vunpack.c.l.b16 %v141
  %v640 = vunpack.c.h.b16 %v141
  %v641 = vunpack.c.l.b16 %v142
  %v642 = vunpack.c.h.b16 %v142
  %v643 = vunpack.c.l.b16 %v143
  %v644 = vunpack.c.h.b16 %v143
  %v645 = vunpack.c.l.b16 %v144
  %v646 = vunpack.c.h.b16 %v144
  %v647 = vunpack.c.l.b16 %v145
  %v648 = vunpack.c.h.b16 %v145
  %v649 = vunpack.c.l.b16 %v146
  %v650 = vunpack.c.h.b16 %v146
  %v651 = vunpack.c.l.b16 %v147
  %v652 = vunpack.c.h.b16 %v147
  %v653 = vunpack.c.l.b16 %v148
  %v654 = vunpack.c.h.b16 %v148
  %v655 = vunpack.c.l.b16 %v149
  %v656 = vunpack.c.h.b16 %v149
  %v657 = vunpack.c.l.b16 %v150
  %v658 = vunpack.c.h.b16 %v150
  %v659 = vunpack.c.l.b16 %v151
  %v660 = vunpack.c.h.b16 %v151
  %v661 = vunpack.c.l.b16 %v152
  %v662 = vunpack.c.h.b16 %v152
  %v663 = vunpack.c.l.b16 %v153
  %v664 = vunpack.c.h.b16 %v153
  %v665 = vunpack.c.l.b16 %v154
  %v666 = vunpack.c.h.b16 %v154
  %v667 = vunpack.c.l.b16 %v155
  %v668 = vunpack.c.h.b16 %v155
  %v669 = vunpack.c.l.b16 %v156
  %v670 = vunpack.c.h.b16 %v156
  %v671 = vunpack.c.l.b16 %v157
  %v672 = vunpack.c.h.b16 %v157
  %v673 = vunpack.c.l.b16 %v158
  %v674 = vunpack.c.h.b16 %v158
  %v675 = vunpack.c.l.b16 %v159
  %v676 = vunpack.c.h.b16 %v159
  %v677 = vunpack.c.l.b16 %v160
  %v678 = vunpack.c.h.b16 %v160
  %v679 = vunpack.c.l.b16 %v161
  %v680 = vunpack.c.h.b16 %v161
  %v681 = vunpack.c.l.b16 %v162
  %v682 = vunpack.c.h.b16 %v162
  %v683 = vunpack.c.l.b16 %v163
  %v684 = vunpack.c.h.b16 %v163
  %v685 = vunpack.c.l.b16 %v164
  %v686 = vunpack.c.h.b16 %v164
  %v687 = vunpack.c.l.b16 %v165
  %v688 = vunpack.c.h.b16 %v165
  %v689 = vunpack.c.l.b16 %v166
  %v690 = vunpack.c.h.b16 %v166
  %v691 = vunpack.c.l.b16 %v167
  %v692 = vunpack.c.h.b16 %v167
  %v693 = vunpack.c.l.b16 %v168
  %v694 = vunpack.c.h.b16 %v168
  %v695 = vunpack.c.l.b16 %v169
  %v696 = vunpack.c.h.b16 %v169
  %v697 = vunpack.c.l.b16 %v170
  %v698 = vunpack.c.h.b16 %v170
  %v699 = vunpack.c.l.b16 %v171
  %v700 = vunpack.c.h.b16 %v171
  %v701 = vunpack.c.l.b16 %v172
  %v702 = vunpack.c.h.b16 %v172
  %v703 = vunpack.c.l.b16 %v173
  %v704 = vunpack.c.h.b16 %v173
  %v705 = vunpack.c.l.b16 %v174
  %v706 = vunpack.c.h.b16 %v174
  %v707 = vunpack.c.l.b16 %v175
  %v708 = vunpack.c.h.b16 %v175
  %v709 = vunpack.c.l.b16 %v176
  %v710 = vunpack.c.h.b16 %v176
  %v711 = vunpack.c.l.b16 %v177
  %v712 = vunpack.c.h.b16 %v177
  %v713 = vunpack.c.l.b16 %v178
  %v714 = vunpack.c.h.b16 %v178
  %v715 = vpack.c.b16 %v429, %v427
  %v716 = vpack.c.b16 %v430, %v428
  %v717 = vpack.c.b16 %v433, %v431
  %v718 = vpack.c.b16 %v434, %v432
  %v719 = vpack.c.b16 %v437, %v435
  %v720 = vpack.c.b16 %v438, %v436
  %v721 = vpack.c.b16 %v441, %v439
  %v722 = vpack.c.b16 %v442, %v440
  %v723 = vpack.c.b16 %v445, %v443
  %v724 = vpack.c.b16 %v446, %v444
  %v725 = vpack.c.b16 %v449, %v447
  %v726 = vpack.c.b16 %v450, %v448
  %v727 = vpack.c.b16 %v453, %v451
  %v728 = vpack.c.b16 %v454, %v452
  %v729 = vpack.c.b16 %v457, %v455
  %v730 = vpack.c.b16 %v458, %v456
  %v731 = vpack.c.b16 %v461, %v459
  %v732 = vpack.c.b16 %v462, %v460
  %v733 = vpack.c.b16 %v465, %v463
  %v734 = vpack.c.b16 %v466, %v464
  %v735 = vpack.c.b16 %v469, %v467
  %v736 = vpack.c.b16 %v470, %v468
  %v737 = vpack.c.b16 %v473, %v471
  %v738 = vpack.c.b16 %v474, %v472
  %v739 = vpack.c.b16 %v477, %v475
  %v740 = vpack.c.b16 %v478, %v476
  %v741 = vpack.c.b16 %v481, %v479
  %v742 = vpack.c.b16 %v482, %v480
  %v743 = vpack.c.b16 %v485, %v483
  %v744 = vpack.c.b16 %v486, %v484
  %v745 = vpack.c.b16 %v489, %v487
  %v746 = vpack.c.b16 %v490, %v488
  %v747 = vpack.c.b16 %v493, %v491
  %v748 = vpack.c.b16 %v494, %v492
  %v749 = vpack.c.b16 %v497, %v495
  %v750 = vpack.c.b16 %v498, %v496
  %v751 = vpack.c.b16 %v501, %v499
  %v752 = vpack.c.b16 %v502, %v500
  %v753 = vpack.c.b16 %v505, %v503
  %v754 = vpack.c.b16 %v506, %v504
  %v755 = vpack.c.b16 %v509, %v507
  %v756 = vpack.c.b16 %v510, %v508
  %v757 = vpack.c.b16 %v513, %v511
  %v758 = vpack.c.b16 %v514, %v512
  %v759 = vpack.c.b16 %v517, %v515
  %v760 = vpack.c.b16 %v518, %v516
  %v761 = vpack.c.b16 %v521, %v519
  %v762 = vpack.c.b16 %v522, %v520
  %v763 = vpack.c.b16 %v525, %v523
  %v764 = vpack.c.b16 %v526, %v524
  %v765 = vpack.c.b16 %v529, %v527
  %v766 = vpack.c.b16 %v530, %v528
  %v767 = vpack.c.b16 %v533, %v531
  %v768 = vpack.c.b16 %v534, %v532
  %v769 = vpack.c.b16 %v537, %v535
  %v770 = vpack.c.b16 %v538, %v536
  %v771 = vpack.c.b16 %v541, %v539
  %v772 = vpack.c.b16 %v542, %v540
  %v773 = vpack.c.b16 %v545, %v543
  %v774 = vpack.c.b16 %v546, %v544
  %v775 = vpack.c.b16 %v549, %v547
  %v776 = vpack.c.b16 %v550, %v548
  %v777 = vpack.c.b16 %v553, %v551
  %v778 = vpack.c.b16 %v554, %v552
  %v779 = vpack.c.b16 %v557, %v555
  %v780 = vpack.c.b16 %v558, %v556
  %v781 = vpack.c.b16 %v561, %v559
  %v782 = vpack.c.b16 %v562, %v560
  %v783 = vpack.c.b16 %v565, %v563
  %v784 = vpack.c.b16 %v566, %v564
  %v785 = vpack.c.b16 %v569, %v567
  %v786 = vpack.c.b16 %v570, %v568
  %v787 = vpack.c.b16 %v573, %v571
  %v788 = vpack.c.b16 %v574, %v572
  %v789 = vpack.c.b16 %v577, %v575
  %v790 = vpack.c.b16 %v578, %v576
  %v791 = vpack.c.b16 %v581, %v579
  %v792 = vpack.c.b16 %v582, %v580
  %v793 = vpack.c.b16 %v585, %v583
  %v794 = vpack.c.b16 %v586, %v584
  %v795 = vpack.c.b16 %v589, %v587
  %v796 = vpack.c.b16 %v590, %v588
  %v797 = vpack.c.b16 %v593, %v591
  %v798 = vpack.c.b16 %v594, %v592
  %v799 = vpack.c.b16 %v597, %v595
  %v800 = vpack.c.b16 %v598, %v596
  %v801 = vpack.c.b16 %v601, %v599
  %v802 = vpack.c.b16 %v602, %v600
  %v803 = vpack.c.b16 %v605, %v603
  %v804 = vpack.c.b16 %v606, %v604
  %v805 = vpack.c.b16 %v609, %v607
  %v806 = vpack.c.b16 %v610, %v608
  %v807 = vpack.c.b16 %v613, %v611
  %v808 = vpack.c.b16 %v614, %v612
  %v809 = vpack.c.b16 %v617, %v615
  %v810 = vpack.c.b16 %v618, %v616
  %v811 = vpack.c.b16 %v621, %v619
  %v812 = vpack.c.b16 %v622, %v620
  %v813 = vpack.c.b16 %v625, %v623
  %v814 = vpack.c.b16 %v626, %v624
  %v815 = vpack.c.b16 %v629, %v627
  %v816 = vpack.c.b16 %v630, %v628
  %v817 = vpack.c.b16 %v633, %v631
  %v818 = vpack.c.b16 %v634, %v632
  %v819 = vpack.c.b16 %v637, %v635
  %v820 = vpack.c.b16 %v638, %v636
  %v821 = vpack.c.b16 %v641, %v639
  %v822 = vpack.c.b16 %v642, %v640
  %v823 = vpack.c.b16 %v645, %v643
  %v824 = vpack.c.b16 %v646, %v644
  %v825 = vpack.c.b16 %v649, %v647
  %v826 = vpack.c.b16 %v650, %v648
  %v827 = vpack.c.b16 %v653, %v651
  %v828 = vpack.c.b16 %v654, %v652
  %v829 = vpack.c.b16 %v657, %v655
  %v830 = vpack.c.b16 %v658, %v656
  %v831 = vpack.c.b16 %v661, %v659
  %v832 = vpack.c.b16 %v662, %v660
  %v833 = vpack.c.b16 %v665, %v663
  %v834 = vpack.c.b16 %v666, %v664
  %v835 = vpack.c.b16 %v669, %v667
  %v836 = vpack.c.b16 %v670, %v668
  %v837 = vpack.c.b16 %v673, %v671
  %v838 = vpack.c.b16 %v674, %v672
  %v839 = vpack.c.b16 %v677, %v675
  %v840 = vpack.c.b16 %v678, %v676
  %v841 = vpack.c.b16 %v681, %v679
  %v842 = vpack.c.b16 %v682, %v680
  %v843 = vpack.c.b16 %v685, %v683
  %v844 = vpack.c.b16 %v686, %v684
  %v845 = vpack.c.b16 %v689, %v687
  %v846 = vpack.c.b16 %v690, %v688
  %v847 = vpack.c.b16 %v693, %v691
  %v848 = vpack.c.b16 %v694, %v692
  %v849 = vpack.c.b16 %v697, %v695
  %v850 = vpack.c.b16 %v698, %v696
  %v851 = vpack.c.b16 %v701, %v699
  %v852 = vpack.c.b16 %v702, %v700
  %v853 = vpack.c.b16 %v705, %v703
  %v854 = vpack.c.b16 %v706, %v704
  %v855 = vpack.c.b16 %v709, %v707
  %v856 = vpack.c.b16 %v710, %v708
  %v857 = vpack.c.b16 %v713, %v711
  %v858 = vpack.c.b16 %v714, %v712
  %1003 = vmatprep.subr.bf16.mxu0 %v730
  %1004 = vmatpush1.bf16.msra.mxu0 %v729
  %1005 = vmatprep.subr.bf16.mxu0 %v728
  %1006 = vmatpush1.bf16.msra.mxu0 %v727
  %1007 = vmatprep.subr.bf16.mxu0 %v726
  %1008 = vmatpush1.bf16.msra.mxu0 %v725
  %1009 = vmatprep.subr.bf16.mxu0 %v724
  %1010 = vmatpush1.bf16.msra.mxu0 %v723
  %1011 = vmatprep.subr.bf16.mxu0 %v722
  %1012 = vmatpush1.bf16.msra.mxu0 %v721
  %1013 = vmatprep.subr.bf16.mxu0 %v720
  %1014 = vmatpush1.bf16.msra.mxu0 %v719
  %1015 = vmatprep.subr.bf16.mxu0 %v718
  %1016 = vmatpush1.bf16.msra.mxu0 %v717
  %1017 = vmatprep.subr.bf16.mxu0 %v716
  %1018 = vmatpush1.bf16.msra.mxu0 %v715
  %1019 = vmatprep.subr.bf16.mxu0 %v746
  %1020 = vmatpush2.bf16.msra.mxu0 %v745
  %1021 = vmatprep.subr.bf16.mxu0 %v744
  %1022 = vmatpush2.bf16.msra.mxu0 %v743
  %1023 = vmatprep.subr.bf16.mxu0 %v742
  %1024 = vmatpush2.bf16.msra.mxu0 %v741
  %1025 = vmatprep.subr.bf16.mxu0 %v740
  %1026 = vmatpush2.bf16.msra.mxu0 %v739
  %1027 = vmatprep.subr.bf16.mxu0 %v738
  %1028 = vmatpush2.bf16.msra.mxu0 %v737
  %1029 = vmatprep.subr.bf16.mxu0 %v736
  %1030 = vmatpush2.bf16.msra.mxu0 %v735
  %1031 = vmatprep.subr.bf16.mxu0 %v734
  %1032 = vmatpush2.bf16.msra.mxu0 %v733
  %1033 = vmatprep.subr.bf16.mxu0 %v732
  %1034 = vmatpush2.bf16.msra.mxu0 %v731
  %1035 = vmatprep.mubr.bf16.mxu0 %v248
  %1036 = vmatmul.mubr.bf16.gmra.mxu0 %v247
  %v1037 = vpop.f32.mrf.mxu0
  %v1038 = vadd.f32 %v184, %v1037
  %v1039 = vpop.f32.mrf.mxu0
  %v1040 = vadd.f32 %v188, %v1039
  %v1041 = vpop.f32.mrf.mxu0
  %v1042 = vadd.f32 %v184, %v1041
  %v1043 = vpop.f32.mrf.mxu0
  %v1044 = vadd.f32 %v188, %v1043
  %1045 = vmatprep.mubr.bf16.mxu0 %v257
  %1046 = vmatmul.mubr.bf16.gmra.mxu0 %v256
  %v1047 = vpop.f32.mrf.mxu0
  %v1048 = vadd.f32 %v184, %v1047
  %v1049 = vpop.f32.mrf.mxu0
  %v1050 = vadd.f32 %v188, %v1049
  %v1051 = vpop.f32.mrf.mxu0
  %v1052 = vadd.f32 %v184, %v1051
  %v1053 = vpop.f32.mrf.mxu0
  %v1054 = vadd.f32 %v188, %v1053
  %1055 = vdwg.mxu0
  %1056 = vmatprep.subr.bf16.mxu0 %v762
  %1057 = vmatpush1.bf16.msra.mxu0 %v761
  %1058 = vmatprep.subr.bf16.mxu0 %v760
  %1059 = vmatpush1.bf16.msra.mxu0 %v759
  %1060 = vmatprep.subr.bf16.mxu0 %v758
  %1061 = vmatpush1.bf16.msra.mxu0 %v757
  %1062 = vmatprep.subr.bf16.mxu0 %v756
  %1063 = vmatpush1.bf16.msra.mxu0 %v755
  %1064 = vmatprep.subr.bf16.mxu0 %v754
  %1065 = vmatpush1.bf16.msra.mxu0 %v753
  %1066 = vmatprep.subr.bf16.mxu0 %v752
  %1067 = vmatpush1.bf16.msra.mxu0 %v751
  %1068 = vmatprep.subr.bf16.mxu0 %v750
  %1069 = vmatpush1.bf16.msra.mxu0 %v749
  %1070 = vmatprep.subr.bf16.mxu0 %v748
  %1071 = vmatpush1.bf16.msra.mxu0 %v747
  %1072 = vmatprep.subr.bf16.mxu0 %v778
  %1073 = vmatpush2.bf16.msra.mxu0 %v777
  %1074 = vmatprep.subr.bf16.mxu0 %v776
  %1075 = vmatpush2.bf16.msra.mxu0 %v775
  %1076 = vmatprep.subr.bf16.mxu0 %v774
  %1077 = vmatpush2.bf16.msra.mxu0 %v773
  %1078 = vmatprep.subr.bf16.mxu0 %v772
  %1079 = vmatpush2.bf16.msra.mxu0 %v771
  %1080 = vmatprep.subr.bf16.mxu0 %v770
  %1081 = vmatpush2.bf16.msra.mxu0 %v769
  %1082 = vmatprep.subr.bf16.mxu0 %v768
  %1083 = vmatpush2.bf16.msra.mxu0 %v767
  %1084 = vmatprep.subr.bf16.mxu0 %v766
  %1085 = vmatpush2.bf16.msra.mxu0 %v765
  %1086 = vmatprep.subr.bf16.mxu0 %v764
  %1087 = vmatpush2.bf16.msra.mxu0 %v763
  %1088 = vmatprep.mubr.bf16.mxu0 %v250
  %1089 = vmatmul.mubr.bf16.gmra.mxu0 %v249
  %v1090 = vpop.f32.mrf.mxu0
  %v1091 = vadd.f32 %v1038, %v1090
  %v1092 = vpop.f32.mrf.mxu0
  %v1093 = vadd.f32 %v1040, %v1092
  %v1094 = vpop.f32.mrf.mxu0
  %v1095 = vadd.f32 %v1042, %v1094
  %v1096 = vpop.f32.mrf.mxu0
  %v1097 = vadd.f32 %v1044, %v1096
  %1098 = vmatprep.mubr.bf16.mxu0 %v259
  %1099 = vmatmul.mubr.bf16.gmra.mxu0 %v258
  %v1100 = vpop.f32.mrf.mxu0
  %v1101 = vadd.f32 %v1048, %v1100
  %v1102 = vpop.f32.mrf.mxu0
  %v1103 = vadd.f32 %v1050, %v1102
  %v1104 = vpop.f32.mrf.mxu0
  %v1105 = vadd.f32 %v1052, %v1104
  %v1106 = vpop.f32.mrf.mxu0
  %v1107 = vadd.f32 %v1054, %v1106
  %1108 = vdwg.mxu0
  %1109 = vmatprep.subr.bf16.mxu0 %v794
  %1110 = vmatpush1.bf16.msra.mxu0 %v793
  %1111 = vmatprep.subr.bf16.mxu0 %v792
  %1112 = vmatpush1.bf16.msra.mxu0 %v791
  %1113 = vmatprep.subr.bf16.mxu0 %v790
  %1114 = vmatpush1.bf16.msra.mxu0 %v789
  %1115 = vmatprep.subr.bf16.mxu0 %v788
  %1116 = vmatpush1.bf16.msra.mxu0 %v787
  %1117 = vmatprep.subr.bf16.mxu0 %v786
  %1118 = vmatpush1.bf16.msra.mxu0 %v785
  %1119 = vmatprep.subr.bf16.mxu0 %v784
  %1120 = vmatpush1.bf16.msra.mxu0 %v783
  %1121 = vmatprep.subr.bf16.mxu0 %v782
  %1122 = vmatpush1.bf16.msra.mxu0 %v781
  %1123 = vmatprep.subr.bf16.mxu0 %v780
  %1124 = vmatpush1.bf16.msra.mxu0 %v779
  %1125 = vmatprep.subr.bf16.mxu0 %v810
  %1126 = vmatpush2.bf16.msra.mxu0 %v809
  %1127 = vmatprep.subr.bf16.mxu0 %v808
  %1128 = vmatpush2.bf16.msra.mxu0 %v807
  %1129 = vmatprep.subr.bf16.mxu0 %v806
  %1130 = vmatpush2.bf16.msra.mxu0 %v805
  %1131 = vmatprep.subr.bf16.mxu0 %v804
  %1132 = vmatpush2.bf16.msra.mxu0 %v803
  %1133 = vmatprep.subr.bf16.mxu0 %v802
  %1134 = vmatpush2.bf16.msra.mxu0 %v801
  %1135 = vmatprep.subr.bf16.mxu0 %v800
  %1136 = vmatpush2.bf16.msra.mxu0 %v799
  %1137 = vmatprep.subr.bf16.mxu0 %v798
  %1138 = vmatpush2.bf16.msra.mxu0 %v797
  %1139 = vmatprep.subr.bf16.mxu0 %v796
  %1140 = vmatpush2.bf16.msra.mxu0 %v795
  %1141 = vmatprep.mubr.bf16.mxu0 %v252
  %1142 = vmatmul.mubr.bf16.gmra.mxu0 %v251
  %v1143 = vpop.f32.mrf.mxu0
  %v1144 = vadd.f32 %v1091, %v1143
  %v1145 = vpop.f32.mrf.mxu0
  %v1146 = vadd.f32 %v1093, %v1145
  %v1147 = vpop.f32.mrf.mxu0
  %v1148 = vadd.f32 %v1095, %v1147
  %v1149 = vpop.f32.mrf.mxu0
  %v1150 = vadd.f32 %v1097, %v1149
  %1151 = vmatprep.mubr.bf16.mxu0 %v261
  %1152 = vmatmul.mubr.bf16.gmra.mxu0 %v260
  %v1153 = vpop.f32.mrf.mxu0
  %v1154 = vadd.f32 %v1101, %v1153
  %v1155 = vpop.f32.mrf.mxu0
  %v1156 = vadd.f32 %v1103, %v1155
  %v1157 = vpop.f32.mrf.mxu0
  %v1158 = vadd.f32 %v1105, %v1157
  %v1159 = vpop.f32.mrf.mxu0
  %v1160 = vadd.f32 %v1107, %v1159
  %1161 = vdwg.mxu0
  %1162 = vmatprep.subr.bf16.mxu0 %v826
  %1163 = vmatpush1.bf16.msra.mxu0 %v825
  %1164 = vmatprep.subr.bf16.mxu0 %v824
  %1165 = vmatpush1.bf16.msra.mxu0 %v823
  %1166 = vmatprep.subr.bf16.mxu0 %v822
  %1167 = vmatpush1.bf16.msra.mxu0 %v821
  %1168 = vmatprep.subr.bf16.mxu0 %v820
  %1169 = vmatpush1.bf16.msra.mxu0 %v819
  %1170 = vmatprep.subr.bf16.mxu0 %v818
  %1171 = vmatpush1.bf16.msra.mxu0 %v817
  %1172 = vmatprep.subr.bf16.mxu0 %v816
  %1173 = vmatpush1.bf16.msra.mxu0 %v815
  %1174 = vmatprep.subr.bf16.mxu0 %v814
  %1175 = vmatpush1.bf16.msra.mxu0 %v813
  %1176 = vmatprep.subr.bf16.mxu0 %v812
  %1177 = vmatpush1.bf16.msra.mxu0 %v811
  %1178 = vmatprep.subr.bf16.mxu0 %v842
  %1179 = vmatpush2.bf16.msra.mxu0 %v841
  %1180 = vmatprep.subr.bf16.mxu0 %v840
  %1181 = vmatpush2.bf16.msra.mxu0 %v839
  %1182 = vmatprep.subr.bf16.mxu0 %v838
  %1183 = vmatpush2.bf16.msra.mxu0 %v837
  %1184 = vmatprep.subr.bf16.mxu0 %v836
  %1185 = vmatpush2.bf16.msra.mxu0 %v835
  %1186 = vmatprep.subr.bf16.mxu0 %v834
  %1187 = vmatpush2.bf16.msra.mxu0 %v833
  %1188 = vmatprep.subr.bf16.mxu0 %v832
  %1189 = vmatpush2.bf16.msra.mxu0 %v831
  %1190 = vmatprep.subr.bf16.mxu0 %v830
  %1191 = vmatpush2.bf16.msra.mxu0 %v829
  %1192 = vmatprep.subr.bf16.mxu0 %v828
  %1193 = vmatpush2.bf16.msra.mxu0 %v827
  %1194 = vmatprep.mubr.bf16.mxu0 %v254
  %1195 = vmatmul.mubr.bf16.gmra.mxu0 %v253
  %v1196 = vpop.f32.mrf.mxu0
  %v1197 = vadd.f32 %v1144, %v1196
  %v1198 = vpop.f32.mrf.mxu0
  %v1199 = vadd.f32 %v1146, %v1198
  %v1200 = vpop.f32.mrf.mxu0
  %v1201 = vadd.f32 %v1148, %v1200
  %v1202 = vpop.f32.mrf.mxu0
  %v1203 = vadd.f32 %v1150, %v1202
  %1204 = vmatprep.mubr.bf16.mxu0 %v263
  %1205 = vmatmul.mubr.bf16.gmra.mxu0 %v262
  %v1206 = vpop.f32.mrf.mxu0
  %v1207 = vadd.f32 %v1154, %v1206
  %v1208 = vpop.f32.mrf.mxu0
  %v1209 = vadd.f32 %v1156, %v1208
  %v1210 = vpop.f32.mrf.mxu0
  %v1211 = vadd.f32 %v1158, %v1210
  %v1212 = vpop.f32.mrf.mxu0
  %v1213 = vadd.f32 %v1160, %v1212
  %1214 = vdwg.mxu0
  %1215 = vmatprep.subr.bf16.mxu0 %v858
  %1216 = vmatpush1.bf16.msra.mxu0 %v857
  %1217 = vmatprep.subr.bf16.mxu0 %v856
  %1218 = vmatpush1.bf16.msra.mxu0 %v855
  %1219 = vmatprep.subr.bf16.mxu0 %v854
  %1220 = vmatpush1.bf16.msra.mxu0 %v853
  %1221 = vmatprep.subr.bf16.mxu0 %v852
  %1222 = vmatpush1.bf16.msra.mxu0 %v851
  %1223 = vmatprep.subr.bf16.mxu0 %v850
  %1224 = vmatpush1.bf16.msra.mxu0 %v849
  %1225 = vmatprep.subr.bf16.mxu0 %v848
  %1226 = vmatpush1.bf16.msra.mxu0 %v847
  %1227 = vmatprep.subr.bf16.mxu0 %v846
  %1228 = vmatpush1.bf16.msra.mxu0 %v845
  %1229 = vmatprep.subr.bf16.mxu0 %v844
  %1230 = vmatpush1.bf16.msra.mxu0 %v843
  %1231 = vmatprep.subr.bf16.mxu0 0
  %1232 = vmatpush2.bf16.msra.mxu0 0
  %1233 = vmatprep.subr.bf16.mxu0 0
  %1234 = vmatpush2.bf16.msra.mxu0 0
  %1235 = vmatprep.subr.bf16.mxu0 0
  %1236 = vmatpush2.bf16.msra.mxu0 0
  %1237 = vmatprep.subr.bf16.mxu0 0
  %1238 = vmatpush2.bf16.msra.mxu0 0
  %1239 = vmatprep.subr.bf16.mxu0 0
  %1240 = vmatpush2.bf16.msra.mxu0 0
  %1241 = vmatprep.subr.bf16.mxu0 0
  %1242 = vmatpush2.bf16.msra.mxu0 0
  %1243 = vmatprep.subr.bf16.mxu0 0
  %1244 = vmatpush2.bf16.msra.mxu0 0
  %1245 = vmatprep.subr.bf16.mxu0 0
  %1246 = vmatpush2.bf16.msra.mxu0 0
  %1247 = vmatprep.mubr.bf16.mxu0 0
  %1248 = vmatmul.mubr.bf16.gmra.mxu0 %v255
  %v1249 = vpop.f32.mrf.mxu0
  %v1250 = vadd.f32 %v1197, %v1249
  %v1251 = vpop.f32.mrf.mxu0
  %v1252 = vadd.f32 %v1199, %v1251
  %v1253 = vpop.f32.mrf.mxu0
  %v1254 = vadd.f32 %v1201, %v1253
  %v1255 = vpop.f32.mrf.mxu0
  %v1256 = vadd.f32 %v1203, %v1255
  %1257 = vmatprep.mubr.bf16.mxu0 0
  %1258 = vmatmul.mubr.bf16.gmra.mxu0 %v264
  %v1259 = vpop.f32.mrf.mxu0
  %v1260 = vadd.f32 %v1207, %v1259
  %v1261 = vpop.f32.mrf.mxu0
  %v1262 = vadd.f32 %v1209, %v1261
  %v1263 = vpop.f32.mrf.mxu0
  %v1264 = vadd.f32 %v1211, %v1263
  %v1265 = vpop.f32.mrf.mxu0
  %v1266 = vadd.f32 %v1213, %v1265
  %1267 = vdwg.mxu0
  %v1268 = vmax.f32 %v1250, 0.0
  %v1269 = vmax.f32 %v1252, 0.0
  %v1270 = vmax.f32 %v1254, 0.0
  %v1271 = vmax.f32 %v1256, 0.0
  %v1272 = vmax.f32 %v1260, 0.0
  %v1273 = vmax.f32 %v1262, 0.0
  %v1274 = vmax.f32 %v1264, 0.0
  %v1275 = vmax.f32 %v1266, 0.0
  %v1276 = vpack.c.bf16 %v1270, %v1268
  %v1277 = vpack.c.bf16 %v1271, %v1269
  %v1278 = vpack.c.bf16 %v1274, %v1272
  %v1279 = vpack.c.bf16 %v1275, %v1273
  %v1284 = vunpack.c.l.b16 %v1276
  %v1285 = vunpack.c.l.b16 %v1277
  %v1286 = vunpack.c.h.b16 %v1276
  %v1287 = vunpack.c.h.b16 %v1277
  %v1288 = vunpack.c.l.b16 %v1278
  %v1289 = vunpack.c.l.b16 %v1279
  %v1290 = vunpack.c.h.b16 %v1278
  %v1291 = vunpack.c.h.b16 %v1279
  %v1292 = vpack.c.b16 %v1285, %v1284
  %v1293 = vpack.c.b16 %v1287, %v1286
  %v1294 = vpack.c.b16 %v1289, %v1288
  %v1295 = vpack.c.b16 %v1291, %v1290
  %1300 = vst [vmem:[%s3] sm:$0xff] %v1292
  %1301 = vst [vmem:[%s3 + $0x8] sm:$0xff] %v1293
  %1302 = vst [vmem:[%s3 + $0x10] sm:$0xff] %v1294
  %1303 = vst [vmem:[%s3 + $0x18] sm:$0xff] %v1295
  // Predicated region
  $region14: #{generator_forward.10} parent=0 // pred_check
    _
  $region15: #{generator_forward.10} parent=0 // pred_check_branch
    %1305 = sbr.rel (0) target = $region17
  $region16: #{generator_forward.10} parent=0 // pred_region
    _
  $region17: #{generator_forward.10} parent=0 // pred_fallthru
    _
  // Predicated region
  $region18: #{generator_forward.10} parent=0 // pred_check
    _
  $region19: #{generator_forward.10} parent=0 // pred_check_branch
    %1307 = sbr.rel (0) target = $region21
  $region20: #{generator_forward.10} parent=0 // pred_region
    _
  $region21: #{generator_forward.10} parent=0 // pred_fallthru
    _

// kernel: generator_forward.11
$region0: #{generator_forward.11}
  #allocation0 [shape = 'u32[]', space=smem, size = 0x4, offset = 0x4, fixed_abs, tag = 'smem constant byte address 0x4 - core index']
  #allocation1 [shape = 'u32[144,128]{1,0:T(1,128)}', space=vmem, size = 0x12000, scoped, tag = 'internal scratch']
  %s0 = inlined_call_operand.vmem [shape: bf16[128,640], index: 0, kind: input, shape index: {}]
  %s1 = inlined_call_operand.vmem [shape: bf16[640,128], index: 1, kind: input, shape index: {}]
  %s2 = inlined_call_operand.vmem [shape: f32[1,128], index: 2, kind: input, shape index: {}]
  %s3 = inlined_call_operand.vmem [shape: f32[128,128], index: 3, kind: output, shape index: {}]
  %s4 = sld [smem:[#allocation0]]
  $region22: #{generator_forward.11} parent=0
    _
  %s6 = ssub.s32 1, %s4
  %s7 = scalar_select 0, %s6, %s4
  // Predicated region
  $region2: #{generator_forward.11} parent=0 // pred_check
    _
  $region3: #{generator_forward.11} parent=0 // pred_check_branch
    %9 = sbr.rel (0) target = $region5
  $region4: #{generator_forward.11} parent=0 // pred_region
    _
  $region5: #{generator_forward.11} parent=0 // pred_fallthru
    _
  // Predicated region
  $region6: #{generator_forward.11} parent=0 // pred_check
    _
  $region7: #{generator_forward.11} parent=0 // pred_check_branch
    %11 = sbr.rel (0) target = $region9
  $region8: #{generator_forward.11} parent=0 // pred_region
    _
  $region9: #{generator_forward.11} parent=0 // pred_fallthru
    _
  // Predicated region
  $region10: #{generator_forward.11} parent=0 // pred_check
    _
  $region11: #{generator_forward.11} parent=0 // pred_check_branch
    %13 = sbr.rel (0) target = $region13
  $region12: #{generator_forward.11} parent=0 // pred_region
    _
  $region13: #{generator_forward.11} parent=0 // pred_fallthru
    _
  %v15 = vld [vmem:[%s0] sm:$0xff]
  %v16 = vld [vmem:[%s0 + $0x8] sm:$0xff]
  %v17 = vld [vmem:[%s0 + $0x10] sm:$0xf]
  %v18 = vld [vmem:[%s0 + $0x14] sm:$0xff]
  %v19 = vld [vmem:[%s0 + $0x1c] sm:$0xff]
  %v20 = vld [vmem:[%s0 + $0x24] sm:$0xf]
  %v21 = vld [vmem:[%s0 + $0x28] sm:$0xff]
  %v22 = vld [vmem:[%s0 + $0x30] sm:$0xff]
  %v23 = vld [vmem:[%s0 + $0x38] sm:$0xf]
  %v24 = vld [vmem:[%s0 + $0x3c] sm:$0xff]
  %v25 = vld [vmem:[%s0 + $0x44] sm:$0xff]
  %v26 = vld [vmem:[%s0 + $0x4c] sm:$0xf]
  %v27 = vld [vmem:[%s0 + $0x50] sm:$0xff]
  %v28 = vld [vmem:[%s0 + $0x58] sm:$0xff]
  %v29 = vld [vmem:[%s0 + $0x60] sm:$0xf]
  %v30 = vld [vmem:[%s0 + $0x64] sm:$0xff]
  %v31 = vld [vmem:[%s0 + $0x6c] sm:$0xff]
  %v32 = vld [vmem:[%s0 + $0x74] sm:$0xf]
  %v33 = vld [vmem:[%s0 + $0x78] sm:$0xff]
  %v34 = vld [vmem:[%s0 + $0x80] sm:$0xff]
  %v35 = vld [vmem:[%s0 + $0x88] sm:$0xf]
  %v36 = vld [vmem:[%s0 + $0x8c] sm:$0xff]
  %v37 = vld [vmem:[%s0 + $0x94] sm:$0xff]
  %v38 = vld [vmem:[%s0 + $0x9c] sm:$0xf]
  %v39 = vld [vmem:[%s0 + $0xa0] sm:$0xff]
  %v40 = vld [vmem:[%s0 + $0xa8] sm:$0xff]
  %v41 = vld [vmem:[%s0 + $0xb0] sm:$0xf]
  %v42 = vld [vmem:[%s0 + $0xb4] sm:$0xff]
  %v43 = vld [vmem:[%s0 + $0xbc] sm:$0xff]
  %v44 = vld [vmem:[%s0 + $0xc4] sm:$0xf]
  %v45 = vld [vmem:[%s0 + $0xc8] sm:$0xff]
  %v46 = vld [vmem:[%s0 + $0xd0] sm:$0xff]
  %v47 = vld [vmem:[%s0 + $0xd8] sm:$0xf]
  %v48 = vld [vmem:[%s0 + $0xdc] sm:$0xff]
  %v49 = vld [vmem:[%s0 + $0xe4] sm:$0xff]
  %v50 = vld [vmem:[%s0 + $0xec] sm:$0xf]
  %v51 = vld [vmem:[%s0 + $0xf0] sm:$0xff]
  %v52 = vld [vmem:[%s0 + $0xf8] sm:$0xff]
  %v53 = vld [vmem:[%s0 + $0x100] sm:$0xf]
  %v54 = vld [vmem:[%s0 + $0x104] sm:$0xff]
  %v55 = vld [vmem:[%s0 + $0x10c] sm:$0xff]
  %v56 = vld [vmem:[%s0 + $0x114] sm:$0xf]
  %v57 = vld [vmem:[%s0 + $0x118] sm:$0xff]
  %v58 = vld [vmem:[%s0 + $0x120] sm:$0xff]
  %v59 = vld [vmem:[%s0 + $0x128] sm:$0xf]
  %v60 = vld [vmem:[%s0 + $0x12c] sm:$0xff]
  %v61 = vld [vmem:[%s0 + $0x134] sm:$0xff]
  %v62 = vld [vmem:[%s0 + $0x13c] sm:$0xf]
  %v63 = vld [vmem:[%s1] sm:$0xf]
  %v64 = vld [vmem:[%s1 + $0x4] sm:$0xf]
  %v65 = vld [vmem:[%s1 + $0x8] sm:$0xf]
  %v66 = vld [vmem:[%s1 + $0xc] sm:$0xf]
  %v67 = vld [vmem:[%s1 + $0x10] sm:$0xf]
  %v68 = vld [vmem:[%s1 + $0x14] sm:$0xf]
  %v69 = vld [vmem:[%s1 + $0x18] sm:$0xf]
  %v70 = vld [vmem:[%s1 + $0x1c] sm:$0xf]
  %v71 = vld [vmem:[%s1 + $0x20] sm:$0xf]
  %v72 = vld [vmem:[%s1 + $0x24] sm:$0xf]
  %v73 = vld [vmem:[%s1 + $0x28] sm:$0xf]
  %v74 = vld [vmem:[%s1 + $0x2c] sm:$0xf]
  %v75 = vld [vmem:[%s1 + $0x30] sm:$0xf]
  %v76 = vld [vmem:[%s1 + $0x34] sm:$0xf]
  %v77 = vld [vmem:[%s1 + $0x38] sm:$0xf]
  %v78 = vld [vmem:[%s1 + $0x3c] sm:$0xf]
  %v79 = vld [vmem:[%s1 + $0x40] sm:$0xf]
  %v80 = vld [vmem:[%s1 + $0x44] sm:$0xf]
  %v81 = vld [vmem:[%s1 + $0x48] sm:$0xf]
  %v82 = vld [vmem:[%s1 + $0x4c] sm:$0xf]
  %v83 = vld [vmem:[%s1 + $0x50] sm:$0xf]
  %v84 = vld [vmem:[%s1 + $0x54] sm:$0xf]
  %v85 = vld [vmem:[%s1 + $0x58] sm:$0xf]
  %v86 = vld [vmem:[%s1 + $0x5c] sm:$0xf]
  %v87 = vld [vmem:[%s1 + $0x60] sm:$0xf]
  %v88 = vld [vmem:[%s1 + $0x64] sm:$0xf]
  %v89 = vld [vmem:[%s1 + $0x68] sm:$0xf]
  %v90 = vld [vmem:[%s1 + $0x6c] sm:$0xf]
  %v91 = vld [vmem:[%s1 + $0x70] sm:$0xf]
  %v92 = vld [vmem:[%s1 + $0x74] sm:$0xf]
  %v93 = vld [vmem:[%s1 + $0x78] sm:$0xf]
  %v94 = vld [vmem:[%s1 + $0x7c] sm:$0xf]
  %v95 = vld [vmem:[%s1 + $0x80] sm:$0xf]
  %v96 = vld [vmem:[%s1 + $0x84] sm:$0xf]
  %v97 = vld [vmem:[%s1 + $0x88] sm:$0xf]
  %v98 = vld [vmem:[%s1 + $0x8c] sm:$0xf]
  %v99 = vld [vmem:[%s1 + $0x90] sm:$0xf]
  %v100 = vld [vmem:[%s1 + $0x94] sm:$0xf]
  %v101 = vld [vmem:[%s1 + $0x98] sm:$0xf]
  %v102 = vld [vmem:[%s1 + $0x9c] sm:$0xf]
  %v103 = vld [vmem:[%s1 + $0xa0] sm:$0xf]
  %v104 = vld [vmem:[%s1 + $0xa4] sm:$0xf]
  %v105 = vld [vmem:[%s1 + $0xa8] sm:$0xf]
  %v106 = vld [vmem:[%s1 + $0xac] sm:$0xf]
  %v107 = vld [vmem:[%s1 + $0xb0] sm:$0xf]
  %v108 = vld [vmem:[%s1 + $0xb4] sm:$0xf]
  %v109 = vld [vmem:[%s1 + $0xb8] sm:$0xf]
  %v110 = vld [vmem:[%s1 + $0xbc] sm:$0xf]
  %v111 = vld [vmem:[%s1 + $0xc0] sm:$0xf]
  %v112 = vld [vmem:[%s1 + $0xc4] sm:$0xf]
  %v113 = vld [vmem:[%s1 + $0xc8] sm:$0xf]
  %v114 = vld [vmem:[%s1 + $0xcc] sm:$0xf]
  %v115 = vld [vmem:[%s1 + $0xd0] sm:$0xf]
  %v116 = vld [vmem:[%s1 + $0xd4] sm:$0xf]
  %v117 = vld [vmem:[%s1 + $0xd8] sm:$0xf]
  %v118 = vld [vmem:[%s1 + $0xdc] sm:$0xf]
  %v119 = vld [vmem:[%s1 + $0xe0] sm:$0xf]
  %v120 = vld [vmem:[%s1 + $0xe4] sm:$0xf]
  %v121 = vld [vmem:[%s1 + $0xe8] sm:$0xf]
  %v122 = vld [vmem:[%s1 + $0xec] sm:$0xf]
  %v123 = vld [vmem:[%s1 + $0xf0] sm:$0xf]
  %v124 = vld [vmem:[%s1 + $0xf4] sm:$0xf]
  %v125 = vld [vmem:[%s1 + $0xf8] sm:$0xf]
  %v126 = vld [vmem:[%s1 + $0xfc] sm:$0xf]
  %v127 = vld [vmem:[%s1 + $0x100] sm:$0xf]
  %v128 = vld [vmem:[%s1 + $0x104] sm:$0xf]
  %v129 = vld [vmem:[%s1 + $0x108] sm:$0xf]
  %v130 = vld [vmem:[%s1 + $0x10c] sm:$0xf]
  %v131 = vld [vmem:[%s1 + $0x110] sm:$0xf]
  %v132 = vld [vmem:[%s1 + $0x114] sm:$0xf]
  %v133 = vld [vmem:[%s1 + $0x118] sm:$0xf]
  %v134 = vld [vmem:[%s1 + $0x11c] sm:$0xf]
  %v135 = vld [vmem:[%s1 + $0x120] sm:$0xf]
  %v136 = vld [vmem:[%s1 + $0x124] sm:$0xf]
  %v137 = vld [vmem:[%s1 + $0x128] sm:$0xf]
  %v138 = vld [vmem:[%s1 + $0x12c] sm:$0xf]
  %v139 = vld [vmem:[%s1 + $0x130] sm:$0xf]
  %v140 = vld [vmem:[%s1 + $0x134] sm:$0xf]
  %v141 = vld [vmem:[%s1 + $0x138] sm:$0xf]
  %v142 = vld [vmem:[%s1 + $0x13c] sm:$0xf]
  %v143 = vld [vmem:[%s2] sm:$0x1]
  %v145 = vlaneseq
  %v146 = vshrl.u32 %v145, 7
  %v147 = vsub.s32 0, %v146
  %v148 = vrot.slane %v143, %v147
  %v198 = vunpack.c.l.b16 %v15
  %v199 = vunpack.c.h.b16 %v15
  %v200 = vunpack.c.l.b16 %v16
  %v201 = vunpack.c.h.b16 %v16
  %v202 = vunpack.c.l.b16 %v17
  %v203 = vunpack.c.l.b16 %v18
  %v204 = vunpack.c.h.b16 %v18
  %v205 = vunpack.c.l.b16 %v19
  %v206 = vunpack.c.h.b16 %v19
  %v207 = vunpack.c.l.b16 %v20
  %v208 = vunpack.c.l.b16 %v21
  %v209 = vunpack.c.h.b16 %v21
  %v210 = vunpack.c.l.b16 %v22
  %v211 = vunpack.c.h.b16 %v22
  %v212 = vunpack.c.l.b16 %v23
  %v213 = vunpack.c.l.b16 %v24
  %v214 = vunpack.c.h.b16 %v24
  %v215 = vunpack.c.l.b16 %v25
  %v216 = vunpack.c.h.b16 %v25
  %v217 = vunpack.c.l.b16 %v26
  %v218 = vunpack.c.l.b16 %v27
  %v219 = vunpack.c.h.b16 %v27
  %v220 = vunpack.c.l.b16 %v28
  %v221 = vunpack.c.h.b16 %v28
  %v222 = vunpack.c.l.b16 %v29
  %v223 = vunpack.c.l.b16 %v30
  %v224 = vunpack.c.h.b16 %v30
  %v225 = vunpack.c.l.b16 %v31
  %v226 = vunpack.c.h.b16 %v31
  %v227 = vunpack.c.l.b16 %v32
  %v228 = vunpack.c.l.b16 %v33
  %v229 = vunpack.c.h.b16 %v33
  %v230 = vunpack.c.l.b16 %v34
  %v231 = vunpack.c.h.b16 %v34
  %v232 = vunpack.c.l.b16 %v35
  %v233 = vunpack.c.l.b16 %v36
  %v234 = vunpack.c.h.b16 %v36
  %v235 = vunpack.c.l.b16 %v37
  %v236 = vunpack.c.h.b16 %v37
  %v237 = vunpack.c.l.b16 %v38
  %v238 = vunpack.c.l.b16 %v39
  %v239 = vunpack.c.h.b16 %v39
  %v240 = vunpack.c.l.b16 %v40
  %v241 = vunpack.c.h.b16 %v40
  %v242 = vunpack.c.l.b16 %v41
  %v243 = vunpack.c.l.b16 %v42
  %v244 = vunpack.c.h.b16 %v42
  %v245 = vunpack.c.l.b16 %v43
  %v246 = vunpack.c.h.b16 %v43
  %v247 = vunpack.c.l.b16 %v44
  %v248 = vunpack.c.l.b16 %v45
  %v249 = vunpack.c.h.b16 %v45
  %v250 = vunpack.c.l.b16 %v46
  %v251 = vunpack.c.h.b16 %v46
  %v252 = vunpack.c.l.b16 %v47
  %v253 = vunpack.c.l.b16 %v48
  %v254 = vunpack.c.h.b16 %v48
  %v255 = vunpack.c.l.b16 %v49
  %v256 = vunpack.c.h.b16 %v49
  %v257 = vunpack.c.l.b16 %v50
  %v258 = vunpack.c.l.b16 %v51
  %v259 = vunpack.c.h.b16 %v51
  %v260 = vunpack.c.l.b16 %v52
  %v261 = vunpack.c.h.b16 %v52
  %v262 = vunpack.c.l.b16 %v53
  %v263 = vunpack.c.l.b16 %v54
  %v264 = vunpack.c.h.b16 %v54
  %v265 = vunpack.c.l.b16 %v55
  %v266 = vunpack.c.h.b16 %v55
  %v267 = vunpack.c.l.b16 %v56
  %v268 = vunpack.c.l.b16 %v57
  %v269 = vunpack.c.h.b16 %v57
  %v270 = vunpack.c.l.b16 %v58
  %v271 = vunpack.c.h.b16 %v58
  %v272 = vunpack.c.l.b16 %v59
  %v273 = vunpack.c.l.b16 %v60
  %v274 = vunpack.c.h.b16 %v60
  %v275 = vunpack.c.l.b16 %v61
  %v276 = vunpack.c.h.b16 %v61
  %v277 = vunpack.c.l.b16 %v62
  %v278 = vpack.c.b16 %v203, %v198
  %v279 = vpack.c.b16 %v204, %v199
  %v280 = vpack.c.b16 %v205, %v200
  %v281 = vpack.c.b16 %v206, %v201
  %v282 = vpack.c.b16 %v207, %v202
  %v283 = vpack.c.b16 %v213, %v208
  %v284 = vpack.c.b16 %v214, %v209
  %v285 = vpack.c.b16 %v215, %v210
  %v286 = vpack.c.b16 %v216, %v211
  %v287 = vpack.c.b16 %v217, %v212
  %v288 = vpack.c.b16 %v223, %v218
  %v289 = vpack.c.b16 %v224, %v219
  %v290 = vpack.c.b16 %v225, %v220
  %v291 = vpack.c.b16 %v226, %v221
  %v292 = vpack.c.b16 %v227, %v222
  %v293 = vpack.c.b16 %v233, %v228
  %v294 = vpack.c.b16 %v234, %v229
  %v295 = vpack.c.b16 %v235, %v230
  %v296 = vpack.c.b16 %v236, %v231
  %v297 = vpack.c.b16 %v237, %v232
  %v298 = vpack.c.b16 %v243, %v238
  %v299 = vpack.c.b16 %v244, %v239
  %v300 = vpack.c.b16 %v245, %v240
  %v301 = vpack.c.b16 %v246, %v241
  %v302 = vpack.c.b16 %v247, %v242
  %v303 = vpack.c.b16 %v253, %v248
  %v304 = vpack.c.b16 %v254, %v249
  %v305 = vpack.c.b16 %v255, %v250
  %v306 = vpack.c.b16 %v256, %v251
  %v307 = vpack.c.b16 %v257, %v252
  %v308 = vpack.c.b16 %v263, %v258
  %v309 = vpack.c.b16 %v264, %v259
  %v310 = vpack.c.b16 %v265, %v260
  %v311 = vpack.c.b16 %v266, %v261
  %v312 = vpack.c.b16 %v267, %v262
  %v313 = vpack.c.b16 %v273, %v268
  %v314 = vpack.c.b16 %v274, %v269
  %v315 = vpack.c.b16 %v275, %v270
  %v316 = vpack.c.b16 %v276, %v271
  %v317 = vpack.c.b16 %v277, %v272
  %v438 = vunpack.c.l.b16 %v63
  %v439 = vunpack.c.l.b16 %v64
  %v440 = vunpack.c.l.b16 %v65
  %v441 = vunpack.c.l.b16 %v66
  %v442 = vunpack.c.l.b16 %v67
  %v443 = vunpack.c.l.b16 %v68
  %v444 = vunpack.c.l.b16 %v69
  %v445 = vunpack.c.l.b16 %v70
  %v446 = vunpack.c.l.b16 %v71
  %v447 = vunpack.c.l.b16 %v72
  %v448 = vunpack.c.l.b16 %v73
  %v449 = vunpack.c.l.b16 %v74
  %v450 = vunpack.c.l.b16 %v75
  %v451 = vunpack.c.l.b16 %v76
  %v452 = vunpack.c.l.b16 %v77
  %v453 = vunpack.c.l.b16 %v78
  %v454 = vunpack.c.l.b16 %v79
  %v455 = vunpack.c.l.b16 %v80
  %v456 = vunpack.c.l.b16 %v81
  %v457 = vunpack.c.l.b16 %v82
  %v458 = vunpack.c.l.b16 %v83
  %v459 = vunpack.c.l.b16 %v84
  %v460 = vunpack.c.l.b16 %v85
  %v461 = vunpack.c.l.b16 %v86
  %v462 = vunpack.c.l.b16 %v87
  %v463 = vunpack.c.l.b16 %v88
  %v464 = vunpack.c.l.b16 %v89
  %v465 = vunpack.c.l.b16 %v90
  %v466 = vunpack.c.l.b16 %v91
  %v467 = vunpack.c.l.b16 %v92
  %v468 = vunpack.c.l.b16 %v93
  %v469 = vunpack.c.l.b16 %v94
  %v470 = vunpack.c.l.b16 %v95
  %v471 = vunpack.c.l.b16 %v96
  %v472 = vunpack.c.l.b16 %v97
  %v473 = vunpack.c.l.b16 %v98
  %v474 = vunpack.c.l.b16 %v99
  %v475 = vunpack.c.l.b16 %v100
  %v476 = vunpack.c.l.b16 %v101
  %v477 = vunpack.c.l.b16 %v102
  %v478 = vunpack.c.l.b16 %v103
  %v479 = vunpack.c.l.b16 %v104
  %v480 = vunpack.c.l.b16 %v105
  %v481 = vunpack.c.l.b16 %v106
  %v482 = vunpack.c.l.b16 %v107
  %v483 = vunpack.c.l.b16 %v108
  %v484 = vunpack.c.l.b16 %v109
  %v485 = vunpack.c.l.b16 %v110
  %v486 = vunpack.c.l.b16 %v111
  %v487 = vunpack.c.l.b16 %v112
  %v488 = vunpack.c.l.b16 %v113
  %v489 = vunpack.c.l.b16 %v114
  %v490 = vunpack.c.l.b16 %v115
  %v491 = vunpack.c.l.b16 %v116
  %v492 = vunpack.c.l.b16 %v117
  %v493 = vunpack.c.l.b16 %v118
  %v494 = vunpack.c.l.b16 %v119
  %v495 = vunpack.c.l.b16 %v120
  %v496 = vunpack.c.l.b16 %v121
  %v497 = vunpack.c.l.b16 %v122
  %v498 = vunpack.c.l.b16 %v123
  %v499 = vunpack.c.l.b16 %v124
  %v500 = vunpack.c.l.b16 %v125
  %v501 = vunpack.c.l.b16 %v126
  %v502 = vunpack.c.l.b16 %v127
  %v503 = vunpack.c.l.b16 %v128
  %v504 = vunpack.c.l.b16 %v129
  %v505 = vunpack.c.l.b16 %v130
  %v506 = vunpack.c.l.b16 %v131
  %v507 = vunpack.c.l.b16 %v132
  %v508 = vunpack.c.l.b16 %v133
  %v509 = vunpack.c.l.b16 %v134
  %v510 = vunpack.c.l.b16 %v135
  %v511 = vunpack.c.l.b16 %v136
  %v512 = vunpack.c.l.b16 %v137
  %v513 = vunpack.c.l.b16 %v138
  %v514 = vunpack.c.l.b16 %v139
  %v515 = vunpack.c.l.b16 %v140
  %v516 = vunpack.c.l.b16 %v141
  %v517 = vunpack.c.l.b16 %v142
  %v518 = vpack.c.b16 %v439, %v438
  %v519 = vpack.c.b16 %v441, %v440
  %v520 = vpack.c.b16 %v443, %v442
  %v521 = vpack.c.b16 %v445, %v444
  %v522 = vpack.c.b16 %v447, %v446
  %v523 = vpack.c.b16 %v449, %v448
  %v524 = vpack.c.b16 %v451, %v450
  %v525 = vpack.c.b16 %v453, %v452
  %v526 = vpack.c.b16 %v455, %v454
  %v527 = vpack.c.b16 %v457, %v456
  %v528 = vpack.c.b16 %v459, %v458
  %v529 = vpack.c.b16 %v461, %v460
  %v530 = vpack.c.b16 %v463, %v462
  %v531 = vpack.c.b16 %v465, %v464
  %v532 = vpack.c.b16 %v467, %v466
  %v533 = vpack.c.b16 %v469, %v468
  %v534 = vpack.c.b16 %v471, %v470
  %v535 = vpack.c.b16 %v473, %v472
  %v536 = vpack.c.b16 %v475, %v474
  %v537 = vpack.c.b16 %v477, %v476
  %v538 = vpack.c.b16 %v479, %v478
  %v539 = vpack.c.b16 %v481, %v480
  %v540 = vpack.c.b16 %v483, %v482
  %v541 = vpack.c.b16 %v485, %v484
  %v542 = vpack.c.b16 %v487, %v486
  %v543 = vpack.c.b16 %v489, %v488
  %v544 = vpack.c.b16 %v491, %v490
  %v545 = vpack.c.b16 %v493, %v492
  %v546 = vpack.c.b16 %v495, %v494
  %v547 = vpack.c.b16 %v497, %v496
  %v548 = vpack.c.b16 %v499, %v498
  %v549 = vpack.c.b16 %v501, %v500
  %v550 = vpack.c.b16 %v503, %v502
  %v551 = vpack.c.b16 %v505, %v504
  %v552 = vpack.c.b16 %v507, %v506
  %v553 = vpack.c.b16 %v509, %v508
  %v554 = vpack.c.b16 %v511, %v510
  %v555 = vpack.c.b16 %v513, %v512
  %v556 = vpack.c.b16 %v515, %v514
  %v557 = vpack.c.b16 %v517, %v516
  %598 = vmatprep.subr.bf16.mxu0 0
  %599 = vmatpush1.bf16.msra.mxu0 %v525
  %600 = vmatprep.subr.bf16.mxu0 0
  %601 = vmatpush1.bf16.msra.mxu0 %v524
  %602 = vmatprep.subr.bf16.mxu0 0
  %603 = vmatpush1.bf16.msra.mxu0 %v523
  %604 = vmatprep.subr.bf16.mxu0 0
  %605 = vmatpush1.bf16.msra.mxu0 %v522
  %606 = vmatprep.subr.bf16.mxu0 0
  %607 = vmatpush1.bf16.msra.mxu0 %v521
  %608 = vmatprep.subr.bf16.mxu0 0
  %609 = vmatpush1.bf16.msra.mxu0 %v520
  %610 = vmatprep.subr.bf16.mxu0 0
  %611 = vmatpush1.bf16.msra.mxu0 %v519
  %612 = vmatprep.subr.bf16.mxu0 0
  %613 = vmatpush1.bf16.msra.mxu0 %v518
  %614 = vmatprep.subr.bf16.mxu0 0
  %615 = vmatpush2.bf16.msra.mxu0 %v533
  %616 = vmatprep.subr.bf16.mxu0 0
  %617 = vmatpush2.bf16.msra.mxu0 %v532
  %618 = vmatprep.subr.bf16.mxu0 0
  %619 = vmatpush2.bf16.msra.mxu0 %v531
  %620 = vmatprep.subr.bf16.mxu0 0
  %621 = vmatpush2.bf16.msra.mxu0 %v530
  %622 = vmatprep.subr.bf16.mxu0 0
  %623 = vmatpush2.bf16.msra.mxu0 %v529
  %624 = vmatprep.subr.bf16.mxu0 0
  %625 = vmatpush2.bf16.msra.mxu0 %v528
  %626 = vmatprep.subr.bf16.mxu0 0
  %627 = vmatpush2.bf16.msra.mxu0 %v527
  %628 = vmatprep.subr.bf16.mxu0 0
  %629 = vmatpush2.bf16.msra.mxu0 %v526
  %630 = vmatprep.mubr.bf16.mxu0 %v279
  %631 = vmatmul.mubr.bf16.gmra.mxu0 %v278
  %v632 = vpop.f32.mrf.mxu0
  %v633 = vadd.f32 %v148, %v632
  %v634 = vpop.f32.mrf.mxu0
  %v635 = vpop.f32.mrf.mxu0
  %v636 = vadd.f32 %v148, %v635
  %v637 = vpop.f32.mrf.mxu0
  %638 = vmatprep.mubr.bf16.mxu0 %v284
  %639 = vmatmul.mubr.bf16.gmra.mxu0 %v283
  %v640 = vpop.f32.mrf.mxu0
  %v641 = vadd.f32 %v148, %v640
  %v642 = vpop.f32.mrf.mxu0
  %v643 = vpop.f32.mrf.mxu0
  %v644 = vadd.f32 %v148, %v643
  %v645 = vpop.f32.mrf.mxu0
  %646 = vmatprep.mubr.bf16.mxu0 %v289
  %647 = vmatmul.mubr.bf16.gmra.mxu0 %v288
  %v648 = vpop.f32.mrf.mxu0
  %v649 = vadd.f32 %v148, %v648
  %v650 = vpop.f32.mrf.mxu0
  %v651 = vpop.f32.mrf.mxu0
  %v652 = vadd.f32 %v148, %v651
  %v653 = vpop.f32.mrf.mxu0
  %654 = vmatprep.mubr.bf16.mxu0 %v294
  %655 = vmatmul.mubr.bf16.gmra.mxu0 %v293
  %v656 = vpop.f32.mrf.mxu0
  %v657 = vadd.f32 %v148, %v656
  %v658 = vpop.f32.mrf.mxu0
  %v659 = vpop.f32.mrf.mxu0
  %v660 = vadd.f32 %v148, %v659
  %v661 = vpop.f32.mrf.mxu0
  %662 = vmatprep.mubr.bf16.mxu0 %v299
  %663 = vmatmul.mubr.bf16.gmra.mxu0 %v298
  %v664 = vpop.f32.mrf.mxu0
  %v665 = vadd.f32 %v148, %v664
  %v666 = vpop.f32.mrf.mxu0
  %v667 = vpop.f32.mrf.mxu0
  %v668 = vadd.f32 %v148, %v667
  %v669 = vpop.f32.mrf.mxu0
  %670 = vmatprep.mubr.bf16.mxu0 %v304
  %671 = vmatmul.mubr.bf16.gmra.mxu0 %v303
  %v672 = vpop.f32.mrf.mxu0
  %v673 = vadd.f32 %v148, %v672
  %v674 = vpop.f32.mrf.mxu0
  %v675 = vpop.f32.mrf.mxu0
  %v676 = vadd.f32 %v148, %v675
  %v677 = vpop.f32.mrf.mxu0
  %678 = vmatprep.mubr.bf16.mxu0 %v309
  %679 = vmatmul.mubr.bf16.gmra.mxu0 %v308
  %v680 = vpop.f32.mrf.mxu0
  %v681 = vadd.f32 %v148, %v680
  %v682 = vpop.f32.mrf.mxu0
  %v683 = vpop.f32.mrf.mxu0
  %v684 = vadd.f32 %v148, %v683
  %v685 = vpop.f32.mrf.mxu0
  %686 = vmatprep.mubr.bf16.mxu0 %v314
  %687 = vmatmul.mubr.bf16.gmra.mxu0 %v313
  %v688 = vpop.f32.mrf.mxu0
  %v689 = vadd.f32 %v148, %v688
  %v690 = vpop.f32.mrf.mxu0
  %v691 = vpop.f32.mrf.mxu0
  %v692 = vadd.f32 %v148, %v691
  %v693 = vpop.f32.mrf.mxu0
  %694 = vdwg.mxu0
  %695 = vmatprep.subr.bf16.mxu0 0
  %696 = vmatpush1.bf16.msra.mxu0 %v541
  %697 = vmatprep.subr.bf16.mxu0 0
  %698 = vmatpush1.bf16.msra.mxu0 %v540
  %699 = vmatprep.subr.bf16.mxu0 0
  %700 = vmatpush1.bf16.msra.mxu0 %v539
  %701 = vmatprep.subr.bf16.mxu0 0
  %702 = vmatpush1.bf16.msra.mxu0 %v538
  %703 = vmatprep.subr.bf16.mxu0 0
  %704 = vmatpush1.bf16.msra.mxu0 %v537
  %705 = vmatprep.subr.bf16.mxu0 0
  %706 = vmatpush1.bf16.msra.mxu0 %v536
  %707 = vmatprep.subr.bf16.mxu0 0
  %708 = vmatpush1.bf16.msra.mxu0 %v535
  %709 = vmatprep.subr.bf16.mxu0 0
  %710 = vmatpush1.bf16.msra.mxu0 %v534
  %711 = vmatprep.subr.bf16.mxu0 0
  %712 = vmatpush2.bf16.msra.mxu0 %v549
  %713 = vmatprep.subr.bf16.mxu0 0
  %714 = vmatpush2.bf16.msra.mxu0 %v548
  %715 = vmatprep.subr.bf16.mxu0 0
  %716 = vmatpush2.bf16.msra.mxu0 %v547
  %717 = vmatprep.subr.bf16.mxu0 0
  %718 = vmatpush2.bf16.msra.mxu0 %v546
  %719 = vmatprep.subr.bf16.mxu0 0
  %720 = vmatpush2.bf16.msra.mxu0 %v545
  %721 = vmatprep.subr.bf16.mxu0 0
  %722 = vmatpush2.bf16.msra.mxu0 %v544
  %723 = vmatprep.subr.bf16.mxu0 0
  %724 = vmatpush2.bf16.msra.mxu0 %v543
  %725 = vmatprep.subr.bf16.mxu0 0
  %726 = vmatpush2.bf16.msra.mxu0 %v542
  %727 = vmatprep.mubr.bf16.mxu0 %v281
  %728 = vmatmul.mubr.bf16.gmra.mxu0 %v280
  %v729 = vpop.f32.mrf.mxu0
  %v730 = vadd.f32 %v633, %v729
  %v731 = vpop.f32.mrf.mxu0
  %v732 = vpop.f32.mrf.mxu0
  %v733 = vadd.f32 %v636, %v732
  %v734 = vpop.f32.mrf.mxu0
  %735 = vmatprep.mubr.bf16.mxu0 %v286
  %736 = vmatmul.mubr.bf16.gmra.mxu0 %v285
  %v737 = vpop.f32.mrf.mxu0
  %v738 = vadd.f32 %v641, %v737
  %v739 = vpop.f32.mrf.mxu0
  %v740 = vpop.f32.mrf.mxu0
  %v741 = vadd.f32 %v644, %v740
  %v742 = vpop.f32.mrf.mxu0
  %743 = vmatprep.mubr.bf16.mxu0 %v291
  %744 = vmatmul.mubr.bf16.gmra.mxu0 %v290
  %v745 = vpop.f32.mrf.mxu0
  %v746 = vadd.f32 %v649, %v745
  %v747 = vpop.f32.mrf.mxu0
  %v748 = vpop.f32.mrf.mxu0
  %v749 = vadd.f32 %v652, %v748
  %v750 = vpop.f32.mrf.mxu0
  %751 = vmatprep.mubr.bf16.mxu0 %v296
  %752 = vmatmul.mubr.bf16.gmra.mxu0 %v295
  %v753 = vpop.f32.mrf.mxu0
  %v754 = vadd.f32 %v657, %v753
  %v755 = vpop.f32.mrf.mxu0
  %v756 = vpop.f32.mrf.mxu0
  %v757 = vadd.f32 %v660, %v756
  %v758 = vpop.f32.mrf.mxu0
  %759 = vmatprep.mubr.bf16.mxu0 %v301
  %760 = vmatmul.mubr.bf16.gmra.mxu0 %v300
  %v761 = vpop.f32.mrf.mxu0
  %v762 = vadd.f32 %v665, %v761
  %v763 = vpop.f32.mrf.mxu0
  %v764 = vpop.f32.mrf.mxu0
  %v765 = vadd.f32 %v668, %v764
  %v766 = vpop.f32.mrf.mxu0
  %767 = vmatprep.mubr.bf16.mxu0 %v306
  %768 = vmatmul.mubr.bf16.gmra.mxu0 %v305
  %v769 = vpop.f32.mrf.mxu0
  %v770 = vadd.f32 %v673, %v769
  %v771 = vpop.f32.mrf.mxu0
  %v772 = vpop.f32.mrf.mxu0
  %v773 = vadd.f32 %v676, %v772
  %v774 = vpop.f32.mrf.mxu0
  %775 = vmatprep.mubr.bf16.mxu0 %v311
  %776 = vmatmul.mubr.bf16.gmra.mxu0 %v310
  %v777 = vpop.f32.mrf.mxu0
  %v778 = vadd.f32 %v681, %v777
  %v779 = vpop.f32.mrf.mxu0
  %v780 = vpop.f32.mrf.mxu0
  %v781 = vadd.f32 %v684, %v780
  %v782 = vpop.f32.mrf.mxu0
  %783 = vmatprep.mubr.bf16.mxu0 %v316
  %784 = vmatmul.mubr.bf16.gmra.mxu0 %v315
  %v785 = vpop.f32.mrf.mxu0
  %v786 = vadd.f32 %v689, %v785
  %v787 = vpop.f32.mrf.mxu0
  %v788 = vpop.f32.mrf.mxu0
  %v789 = vadd.f32 %v692, %v788
  %v790 = vpop.f32.mrf.mxu0
  %791 = vdwg.mxu0
  %792 = vmatprep.subr.bf16.mxu0 0
  %793 = vmatpush1.bf16.msra.mxu0 %v557
  %794 = vmatprep.subr.bf16.mxu0 0
  %795 = vmatpush1.bf16.msra.mxu0 %v556
  %796 = vmatprep.subr.bf16.mxu0 0
  %797 = vmatpush1.bf16.msra.mxu0 %v555
  %798 = vmatprep.subr.bf16.mxu0 0
  %799 = vmatpush1.bf16.msra.mxu0 %v554
  %800 = vmatprep.subr.bf16.mxu0 0
  %801 = vmatpush1.bf16.msra.mxu0 %v553
  %802 = vmatprep.subr.bf16.mxu0 0
  %803 = vmatpush1.bf16.msra.mxu0 %v552
  %804 = vmatprep.subr.bf16.mxu0 0
  %805 = vmatpush1.bf16.msra.mxu0 %v551
  %806 = vmatprep.subr.bf16.mxu0 0
  %807 = vmatpush1.bf16.msra.mxu0 %v550
  %808 = vmatprep.subr.bf16.mxu0 0
  %809 = vmatpush2.bf16.msra.mxu0 0
  %810 = vmatprep.subr.bf16.mxu0 0
  %811 = vmatpush2.bf16.msra.mxu0 0
  %812 = vmatprep.subr.bf16.mxu0 0
  %813 = vmatpush2.bf16.msra.mxu0 0
  %814 = vmatprep.subr.bf16.mxu0 0
  %815 = vmatpush2.bf16.msra.mxu0 0
  %816 = vmatprep.subr.bf16.mxu0 0
  %817 = vmatpush2.bf16.msra.mxu0 0
  %818 = vmatprep.subr.bf16.mxu0 0
  %819 = vmatpush2.bf16.msra.mxu0 0
  %820 = vmatprep.subr.bf16.mxu0 0
  %821 = vmatpush2.bf16.msra.mxu0 0
  %822 = vmatprep.subr.bf16.mxu0 0
  %823 = vmatpush2.bf16.msra.mxu0 0
  %824 = vmatprep.mubr.bf16.mxu0 0
  %825 = vmatmul.mubr.bf16.gmra.mxu0 %v282
  %v826 = vpop.f32.mrf.mxu0
  %v827 = vadd.f32 %v730, %v826
  %v828 = vpop.f32.mrf.mxu0
  %v829 = vpop.f32.mrf.mxu0
  %v830 = vadd.f32 %v733, %v829
  %v831 = vpop.f32.mrf.mxu0
  %832 = vmatprep.mubr.bf16.mxu0 0
  %833 = vmatmul.mubr.bf16.gmra.mxu0 %v287
  %v834 = vpop.f32.mrf.mxu0
  %v835 = vadd.f32 %v738, %v834
  %v836 = vpop.f32.mrf.mxu0
  %v837 = vpop.f32.mrf.mxu0
  %v838 = vadd.f32 %v741, %v837
  %v839 = vpop.f32.mrf.mxu0
  %840 = vmatprep.mubr.bf16.mxu0 0
  %841 = vmatmul.mubr.bf16.gmra.mxu0 %v292
  %v842 = vpop.f32.mrf.mxu0
  %v843 = vadd.f32 %v746, %v842
  %v844 = vpop.f32.mrf.mxu0
  %v845 = vpop.f32.mrf.mxu0
  %v846 = vadd.f32 %v749, %v845
  %v847 = vpop.f32.mrf.mxu0
  %848 = vmatprep.mubr.bf16.mxu0 0
  %849 = vmatmul.mubr.bf16.gmra.mxu0 %v297
  %v850 = vpop.f32.mrf.mxu0
  %v851 = vadd.f32 %v754, %v850
  %v852 = vpop.f32.mrf.mxu0
  %v853 = vpop.f32.mrf.mxu0
  %v854 = vadd.f32 %v757, %v853
  %v855 = vpop.f32.mrf.mxu0
  %856 = vmatprep.mubr.bf16.mxu0 0
  %857 = vmatmul.mubr.bf16.gmra.mxu0 %v302
  %v858 = vpop.f32.mrf.mxu0
  %v859 = vadd.f32 %v762, %v858
  %v860 = vpop.f32.mrf.mxu0
  %v861 = vpop.f32.mrf.mxu0
  %v862 = vadd.f32 %v765, %v861
  %v863 = vpop.f32.mrf.mxu0
  %864 = vmatprep.mubr.bf16.mxu0 0
  %865 = vmatmul.mubr.bf16.gmra.mxu0 %v307
  %v866 = vpop.f32.mrf.mxu0
  %v867 = vadd.f32 %v770, %v866
  %v868 = vpop.f32.mrf.mxu0
  %v869 = vpop.f32.mrf.mxu0
  %v870 = vadd.f32 %v773, %v869
  %v871 = vpop.f32.mrf.mxu0
  %872 = vmatprep.mubr.bf16.mxu0 0
  %873 = vmatmul.mubr.bf16.gmra.mxu0 %v312
  %v874 = vpop.f32.mrf.mxu0
  %v875 = vadd.f32 %v778, %v874
  %v876 = vpop.f32.mrf.mxu0
  %v877 = vpop.f32.mrf.mxu0
  %v878 = vadd.f32 %v781, %v877
  %v879 = vpop.f32.mrf.mxu0
  %880 = vmatprep.mubr.bf16.mxu0 0
  %881 = vmatmul.mubr.bf16.gmra.mxu0 %v317
  %v882 = vpop.f32.mrf.mxu0
  %v883 = vadd.f32 %v786, %v882
  %v884 = vpop.f32.mrf.mxu0
  %v885 = vpop.f32.mrf.mxu0
  %v886 = vadd.f32 %v789, %v885
  %v887 = vpop.f32.mrf.mxu0
  %888 = vdwg.mxu0
  %v889 = vtanh.pop %v827
  %v890 = vtanh.pop %v830
  %v891 = vtanh.pop %v835
  %v892 = vtanh.pop %v838
  %v893 = vtanh.pop %v843
  %v894 = vtanh.pop %v846
  %v895 = vtanh.pop %v851
  %v896 = vtanh.pop %v854
  %v897 = vtanh.pop %v859
  %v898 = vtanh.pop %v862
  %v899 = vtanh.pop %v867
  %v900 = vtanh.pop %v870
  %v901 = vtanh.pop %v875
  %v902 = vtanh.pop %v878
  %v903 = vtanh.pop %v883
  %v904 = vtanh.pop %v886
  %905 = vst [vmem:[%s3] sm:$0xff] %v889
  %906 = vst [vmem:[%s3 + $0x8] sm:$0xff] %v890
  %907 = vst [vmem:[%s3 + $0x10] sm:$0xff] %v891
  %908 = vst [vmem:[%s3 + $0x18] sm:$0xff] %v892
  %909 = vst [vmem:[%s3 + $0x20] sm:$0xff] %v893
  %910 = vst [vmem:[%s3 + $0x28] sm:$0xff] %v894
  %911 = vst [vmem:[%s3 + $0x30] sm:$0xff] %v895
  %912 = vst [vmem:[%s3 + $0x38] sm:$0xff] %v896
  %913 = vst [vmem:[%s3 + $0x40] sm:$0xff] %v897
  %914 = vst [vmem:[%s3 + $0x48] sm:$0xff] %v898
  %915 = vst [vmem:[%s3 + $0x50] sm:$0xff] %v899
  %916 = vst [vmem:[%s3 + $0x58] sm:$0xff] %v900
  %917 = vst [vmem:[%s3 + $0x60] sm:$0xff] %v901
  %918 = vst [vmem:[%s3 + $0x68] sm:$0xff] %v902
  %919 = vst [vmem:[%s3 + $0x70] sm:$0xff] %v903
  %920 = vst [vmem:[%s3 + $0x78] sm:$0xff] %v904
  // Predicated region
  $region14: #{generator_forward.11} parent=0 // pred_check
    _
  $region15: #{generator_forward.11} parent=0 // pred_check_branch
    %922 = sbr.rel (0) target = $region17
  $region16: #{generator_forward.11} parent=0 // pred_region
    _
  $region17: #{generator_forward.11} parent=0 // pred_fallthru
    _
  // Predicated region
  $region18: #{generator_forward.11} parent=0 // pred_check
    _
  $region19: #{generator_forward.11} parent=0 // pred_check_branch
    %924 = sbr.rel (0) target = $region21
  $region20: #{generator_forward.11} parent=0 // pred_region
    _
  $region21: #{generator_forward.11} parent=0 // pred_fallthru
    _

</llo_original>
